<compile_context>
chip_gen: v6e
topology: v6e:2x2x1
jax: 0.10.0
libtpu: 0.0.40
codegen_flags: <defaults>
</compile_context>

<pallas_src>
import numpy as np

import jax
import jax.numpy as jnp
from jax.experimental import pallas as pl
from jax.experimental.pallas import tpu as pltpu


# ------------------------------ fused kernel ------------------------------ #

def _make_fused_kernel(H, W, HW, L, C, out_dim, ks_res, ks_f, get_feature,
                       matmul_dtype):
    """Builds the fused 7-conv kernel body (lane-dense, roll-based im2col)."""
    del HW, out_dim  # shapes are implied by the refs

    def conv(act, hpos, wpos, patch_ref, w, b, ks, leaky):
        """One 'SAME' conv: roll-based im2col into patch_ref, one MXU matmul.

        act : (C, L) f32 value  (channels on sublanes, pixels on lanes)
        w   : (Cout, ks*ks*C)   matmul_dtype
        b   : (Cout, 1)         f32
        returns (Cout, L) f32
        """
        half = ks // 2
        for ky in range(ks):
            dy = ky - half
            for kx in range(ks):
                dx = kx - half
                t = ky * ks + kx
                delta = dy * W + dx                 # flat lane offset of tap
                if delta == 0:
                    tap = act
                else:
                    # tap[pos] = act[pos + delta]  (lane roll -> XLU slot)
                    tap = pltpu.roll(act, shift=(-delta) % L, axis=1)
                # 'SAME' zero padding: zero positions whose source pixel is
                # outside the image (also kills row / image wrap-around from
                # the roll).  Only the needed comparisons are emitted.
                valid = None
                if dy > 0:
                    valid = hpos < (H - dy)
                elif dy < 0:
                    valid = hpos >= -dy
                if dx > 0:
                    cmask = wpos < (W - dx)
                    valid = cmask if valid is None else (valid & cmask)
                elif dx < 0:
                    cmask = wpos >= -dx
                    valid = cmask if valid is None else (valid & cmask)
                if valid is not None:
                    tap = jnp.where(valid, tap, 0.0)
                patch_ref[t * C:(t + 1) * C, :] = tap.astype(matmul_dtype)
        kk = ks * ks * C
        # Single lane-dense MXU matmul per conv: (Cout, kk) @ (kk, L).
        y = jnp.dot(w, patch_ref[:kk, :], preferred_element_type=jnp.float32)
        y = y + b                                   # (Cout, 1) lane-broadcast
        if leaky:
            y = jnp.where(y >= 0, y, 0.2 * y)       # LeakyReLU(0.2)
        return y

    def kernel(x_ref, hpos_ref, wpos_ref, wres_ref, bres_ref, wfin_ref,
               bfin_ref, *rest):
        if get_feature:
            out_ref, feat_ref, patch_ref = rest
        else:
            out_ref, patch_ref = rest
            feat_ref = None

        hpos = hpos_ref[...]            # (1, L) int32: within-image row index
        wpos = wpos_ref[...]            # (1, L) int32: within-image col index

        cur = x_ref[...]                # (C, L) f32, stays vreg/VMEM resident

        # 3 x ResnetBlock: conv5 -> LeakyReLU(0.2) -> conv5, then + residual.
        # The residual `cur` is only ~4 vregs in this layout.
        for blk in range(3):
            h = conv(cur, hpos, wpos, patch_ref,
                     wres_ref[2 * blk], bres_ref[2 * blk],
                     ks_res, leaky=True)
            cur = conv(h, hpos, wpos, patch_ref,
                       wres_ref[2 * blk + 1], bres_ref[2 * blk + 1],
                       ks_res, leaky=False) + cur

        if get_feature:
            feat_ref[...] = cur

        # Final Conv2d(in_dim, out_dim, ks_f), no activation.
        y = conv(cur, hpos, wpos, patch_ref,
                 wfin_ref[...], bfin_ref[...], ks_f, leaky=False)
        out_ref[...] = y

    return kernel


# ------------------------------ host wrapper ------------------------------ #

def decoder_layer_out_fwd(x_nhwc, params, get_feature=False,
                          images_per_step=None, use_bf16_matmul=False):
    """Fused forward of decoder_layer_out on NHWC input (N, H, W, C)."""
    N, H, W, C = x_nhwc.shape
    HW = H * W
    blocks = params["blocks"]
    wf, bf = params["final"]
    ks_res = blocks[0][0][0].shape[0]
    ks_f = wf.shape[0]
    out_dim = wf.shape[-1]
    kk_res = ks_res * ks_res * C
    kk_f = ks_f * ks_f * C
    kk_max = max(kk_res, kk_f)

    if images_per_step is None:
        images_per_step = N          # whole batch per grid step at toy sizes
    B = images_per_step
    if N % B != 0:
        raise ValueError("images_per_step must divide the batch size")
    L = B * HW
    if L % 128 != 0:
        raise ValueError("images_per_step * H * W must be a multiple of 128")

    matmul_dtype = jnp.bfloat16 if use_bf16_matmul else jnp.float32

    # Host-side weight folding, transposed to (Cout, kk) so the matmul is
    # (Cout, kk) @ (kk, L) with the pixel axis lane-dense.  The six
    # ResnetBlock convs are stacked into one slab (DMA'd to VMEM once).
    w_res = jnp.stack([w.reshape(kk_res, C).T
                       for (w1, b1), (w2, b2) in blocks
                       for w in (w1, w2)]).astype(matmul_dtype)    # (6,C,kk)
    b_res = jnp.stack([b.reshape(C, 1)
                       for (w1, b1), (w2, b2) in blocks
                       for b in (b1, b2)]).astype(jnp.float32)     # (6,C,1)
    w_fin = wf.reshape(kk_f, out_dim).T.astype(matmul_dtype)       # (od,kk)
    b_fin = bf.reshape(out_dim, 1).astype(jnp.float32)             # (od,1)

    # Lane-dense input slab: (C, N*H*W), images concatenated along lanes.
    x_cl = jnp.transpose(x_nhwc, (3, 0, 1, 2)).reshape(C, N * HW)

    # Host-precomputed within-image row / col index of every lane (avoids
    # in-kernel integer div/mod); used for the 'SAME' border masks.
    pos = np.arange(N * HW)
    hpos = jnp.asarray(((pos % HW) // W).astype(np.int32).reshape(1, N * HW))
    wpos = jnp.asarray((pos % W).astype(np.int32).reshape(1, N * HW))

    in_specs = [
        pl.BlockSpec((C, L), lambda g: (0, g)),
        pl.BlockSpec((1, L), lambda g: (0, g)),
        pl.BlockSpec((1, L), lambda g: (0, g)),
        pl.BlockSpec(w_res.shape, lambda g: (0, 0, 0)),
        pl.BlockSpec(b_res.shape, lambda g: (0, 0, 0)),
        pl.BlockSpec(w_fin.shape, lambda g: (0, 0)),
        pl.BlockSpec(b_fin.shape, lambda g: (0, 0)),
    ]
    out_shape = [jax.ShapeDtypeStruct((out_dim, N * HW), jnp.float32)]
    out_specs = [pl.BlockSpec((out_dim, L), lambda g: (0, g))]
    if get_feature:
        out_shape.append(jax.ShapeDtypeStruct((C, N * HW), jnp.float32))
        out_specs.append(pl.BlockSpec((C, L), lambda g: (0, g)))

    kernel = _make_fused_kernel(H, W, HW, L, C, out_dim, ks_res, ks_f,
                                get_feature, matmul_dtype)

    # Advisory scheduler hint so XLA can overlap this small fused call.
    macs_per_px = 6 * kk_res * C + kk_f * out_dim
    flops = 2 * N * HW * macs_per_px
    w_bytes = (w_res.size * w_res.dtype.itemsize + b_res.size * 4
               + w_fin.size * w_fin.dtype.itemsize + b_fin.size * 4)
    bytes_accessed = 4 * N * HW * (C + out_dim) + 8 * N * HW + w_bytes
    if get_feature:
        bytes_accessed += 4 * N * HW * C

    results = pl.pallas_call(
        kernel,
        out_shape=out_shape,
        grid_spec=pltpu.PrefetchScalarGridSpec(
            num_scalar_prefetch=0,
            grid=(N // B,),
            in_specs=in_specs,
            out_specs=out_specs,
            scratch_shapes=[
                # im2col patch matrix, pixels lane-dense: (ks*ks*C, B*H*W)
                pltpu.VMEM((kk_max, L), matmul_dtype),
            ],
        ),
        compiler_params=pltpu.CompilerParams(
            # independent image groups -> megacore sharding where available
            dimension_semantics=("parallel",),
        ),
        cost_estimate=pl.CostEstimate(flops=flops, transcendentals=0,
                                      bytes_accessed=bytes_accessed),
    )(x_cl, hpos, wpos, w_res, b_res, w_fin, b_fin)

    out = jnp.transpose(results[0].reshape(out_dim, N, H, W), (1, 2, 3, 0))
    if get_feature:
        feat = jnp.transpose(results[1].reshape(C, N, H, W), (1, 2, 3, 0))
        return out, feat
    return out


# --------------------------- module construction -------------------------- #

def _init_conv(key, cin, cout, ks):
    """Deterministic init mirroring nn.Conv2d default (uniform +-1/sqrt(fan_in))."""
    kw_, kb_ = jax.random.split(key)
    bound = 1.0 / np.sqrt(cin * ks * ks)
    w = jax.random.uniform(kw_, (ks, ks, cin, cout), jnp.float32, -bound, bound)
    b = jax.random.uniform(kb_, (cout,), jnp.float32, -bound, bound)
    return w, b


def init_decoder_layer_out(key, in_dim, out_dim, ks):
    keys = jax.random.split(key, 7)
    blocks = []
    for i in range(3):  # three ResnetBlocks with 5x5 convs
        w1, b1 = _init_conv(keys[2 * i], in_dim, in_dim, 5)
        w2, b2 = _init_conv(keys[2 * i + 1], in_dim, in_dim, 5)
        blocks.append(((w1, b1), (w2, b2)))
    wf, bf = _init_conv(keys[6], in_dim, out_dim, ks)
    return {"blocks": blocks, "final": (wf, bf)}


# ------------------------------ JAX reference ------------------------------ #

def _conv_ref(x, w, b):
    y = jax.lax.conv_general_dilated(
        x, w, window_strides=(1, 1), padding="SAME",
        dimension_numbers=("NHWC", "HWIO", "NHWC"))
    return y + b.reshape(1, 1, 1, -1)


def decoder_layer_out_ref(x_nhwc, params):
    feat = x_nhwc
    for (w1, b1), (w2, b2) in params["blocks"]:
        h = _conv_ref(feat, w1, b1)
        h = jnp.where(h >= 0, h, 0.2 * h)
        feat = _conv_ref(h, w2, b2) + feat
    wf, bf = params["final"]
    return _conv_ref(feat, wf, bf), feat


# ----------------------------------- main ---------------------------------- #

if __name__ == "__main__":
    key = jax.random.PRNGKey(0)
    k_x, k_p = jax.random.split(key)

    # Small shapes consistent with the module's tail: decoder_layer_out(C, 3, 5)
    N, in_dim, H, W = 2, 4, 16, 16
    out_dim, ks_final = 3, 5

    # PyTorch-style NCHW input, converted once to the kernel's NHWC interface.
    x_nchw = jax.random.normal(k_x, (N, in_dim, H, W), jnp.float32)
    x_nhwc = jnp.transpose(x_nchw, (0, 2, 3, 1))

    params = init_decoder_layer_out(k_p, in_dim, out_dim, ks_final)

    ref_out, ref_feat = decoder_layer_out_ref(x_nhwc, params)
    ref_out = jax.block_until_ready(ref_out)

    # f32 matmul path (portable default).
    out = jax.block_until_ready(decoder_layer_out_fwd(x_nhwc, params))
    np.testing.assert_allclose(np.asarray(out), np.asarray(ref_out),
                               rtol=2e-3, atol=2e-3)

    # get_feature=True branch (module returns (final_conv(feature), feature)).
    out2, feat2 = decoder_layer_out_fwd(x_nhwc, params, get_feature=True)
    out2 = jax.block_until_ready(out2)
    np.testing.assert_allclose(np.asarray(out2), np.asarray(ref_out),
                               rtol=2e-3, atol=2e-3)
    np.testing.assert_allclose(np.asarray(feat2), np.asarray(ref_feat),
                               rtol=2e-3, atol=2e-3)

    # bf16 MXU-operand path (v6e/v7x recommendation; elementwise stays f32).
    out_bf16 = jax.block_until_ready(
        decoder_layer_out_fwd(x_nhwc, params, use_bf16_matmul=True))
    np.testing.assert_allclose(np.asarray(out_bf16), np.asarray(ref_out),
                               rtol=5e-2, atol=5e-2)

    print("KERNEL_OK")
</pallas_src>

<mosaic_0001>
module attributes {stable_mosaic.version = 11 : i64} {
  func.func @kernel(%arg0: i32, %arg1: memref<4x512xf32, #tpu.memory_space<vmem>>, %arg2: memref<1x512xi32, #tpu.memory_space<vmem>>, %arg3: memref<1x512xi32, #tpu.memory_space<vmem>>, %arg4: memref<6x4x100xf32, #tpu.memory_space<vmem>>, %arg5: memref<6x4x1xf32, #tpu.memory_space<vmem>>, %arg6: memref<3x100xf32, #tpu.memory_space<vmem>>, %arg7: memref<3x1xf32, #tpu.memory_space<vmem>>, %arg8: memref<3x512xf32, #tpu.memory_space<vmem>>, %arg9: memref<100x512xf32, #tpu.memory_space<vmem>>) attributes {dimension_semantics = [#tpu.dimension_semantics<parallel>], iteration_bounds = array<i64: 1>, scalar_prefetch = 0 : i64, scratch_operands = 1 : i64, tpu.core_type = #tpu.core_type<tc>, window_params = [{transform_indices = @transform_0, window_bounds = array<i64: 4, 512>}, {transform_indices = @transform_1, window_bounds = array<i64: 1, 512>}, {transform_indices = @transform_2, window_bounds = array<i64: 1, 512>}, {pipeline_mode = #tpu.pipeline_mode<synchronous>, transform_indices = @transform_3, window_bounds = array<i64: 6, 4, 100>}, {pipeline_mode = #tpu.pipeline_mode<synchronous>, transform_indices = @transform_4, window_bounds = array<i64: 6, 4, 1>}, {pipeline_mode = #tpu.pipeline_mode<synchronous>, transform_indices = @transform_5, window_bounds = array<i64: 3, 100>}, {pipeline_mode = #tpu.pipeline_mode<synchronous>, transform_indices = @transform_6, window_bounds = array<i64: 3, 1>}, {transform_indices = @transform_7, window_bounds = array<i64: 3, 512>}]} {
    %c0 = arith.constant 0 : index
    %c0_0 = arith.constant 0 : index
    %0 = vector.load %arg2[%c0, %c0_0] : memref<1x512xi32, #tpu.memory_space<vmem>>, vector<1x512xi32>
    %c0_1 = arith.constant 0 : index
    %c0_2 = arith.constant 0 : index
    %1 = vector.load %arg3[%c0_1, %c0_2] : memref<1x512xi32, #tpu.memory_space<vmem>>, vector<1x512xi32>
    %c0_3 = arith.constant 0 : index
    %c0_4 = arith.constant 0 : index
    %2 = vector.load %arg1[%c0_3, %c0_4] : memref<4x512xf32, #tpu.memory_space<vmem>>, vector<4x512xf32>
    %c0_5 = arith.constant 0 : index
    %c0_6 = arith.constant 0 : index
    %c0_7 = arith.constant 0 : index
    %3 = vector.load %arg4[%c0_5, %c0_6, %c0_7] : memref<6x4x100xf32, #tpu.memory_space<vmem>>, vector<1x4x100xf32>
    %4 = vector.shape_cast %3 : vector<1x4x100xf32> to vector<4x100xf32>
    %c0_8 = arith.constant 0 : index
    %c0_9 = arith.constant 0 : index
    %c0_10 = arith.constant 0 : index
    %5 = vector.load %arg5[%c0_8, %c0_9, %c0_10] : memref<6x4x1xf32, #tpu.memory_space<vmem>>, vector<1x4x1xf32>
    %6 = vector.shape_cast %5 : vector<1x4x1xf32> to vector<4x1xf32>
    %c34_i32 = arith.constant 34 : i32
    %7 = tpu.dynamic_rotate %2 by %c34_i32 dim 1 : vector<4x512xf32>, i32 -> vector<4x512xf32>
    %c2_i32 = arith.constant 2 : i32
    %8 = vector.broadcast %c2_i32 : i32 to vector<1x512xi32>
    %9 = arith.cmpi sge, %0, %8 : vector<1x512xi32>
    %c2_i32_11 = arith.constant 2 : i32
    %10 = vector.broadcast %c2_i32_11 : i32 to vector<1x512xi32>
    %11 = arith.cmpi sge, %1, %10 : vector<1x512xi32>
    %12 = arith.andi %9, %11 : vector<1x512xi1>
    %cst = arith.constant 0.000000e+00 : f32
    %13 = vector.shape_cast %12 : vector<1x512xi1> to vector<1x512xi1>
    %14 = vector.broadcast %13 : vector<1x512xi1> to vector<4x512xi1>
    %15 = vector.broadcast %cst : f32 to vector<4x512xf32>
    %16 = arith.select %14, %7, %15 : vector<4x512xi1>, vector<4x512xf32>
    %c0_12 = arith.constant 0 : index
    %c0_13 = arith.constant 0 : index
    %17 = vector.load %arg9[%c0_12, %c0_13] : memref<100x512xf32, #tpu.memory_space<vmem>>, vector<4x512xf32>
    tpu.vector_store %arg9[%c0_12, %c0_13], %16 {strides = array<i32>} : memref<100x512xf32, #tpu.memory_space<vmem>>, vector<4x512xf32>,
    %c33_i32 = arith.constant 33 : i32
    %18 = tpu.dynamic_rotate %2 by %c33_i32 dim 1 : vector<4x512xf32>, i32 -> vector<4x512xf32>
    %c2_i32_14 = arith.constant 2 : i32
    %19 = vector.broadcast %c2_i32_14 : i32 to vector<1x512xi32>
    %20 = arith.cmpi sge, %0, %19 : vector<1x512xi32>
    %c1_i32 = arith.constant 1 : i32
    %21 = vector.broadcast %c1_i32 : i32 to vector<1x512xi32>
    %22 = arith.cmpi sge, %1, %21 : vector<1x512xi32>
    %23 = arith.andi %20, %22 : vector<1x512xi1>
    %cst_15 = arith.constant 0.000000e+00 : f32
    %24 = vector.shape_cast %23 : vector<1x512xi1> to vector<1x512xi1>
    %25 = vector.broadcast %24 : vector<1x512xi1> to vector<4x512xi1>
    %26 = vector.broadcast %cst_15 : f32 to vector<4x512xf32>
    %27 = arith.select %25, %18, %26 : vector<4x512xi1>, vector<4x512xf32>
    %c4 = arith.constant 4 : index
    %c0_16 = arith.constant 0 : index
    %28 = vector.load %arg9[%c4, %c0_16] : memref<100x512xf32, #tpu.memory_space<vmem>>, vector<4x512xf32>
    tpu.vector_store %arg9[%c4, %c0_16], %27 {strides = array<i32>} : memref<100x512xf32, #tpu.memory_space<vmem>>, vector<4x512xf32>,
    %c32_i32 = arith.constant 32 : i32
    %29 = tpu.dynamic_rotate %2 by %c32_i32 dim 1 : vector<4x512xf32>, i32 -> vector<4x512xf32>
    %c2_i32_17 = arith.constant 2 : i32
    %30 = vector.broadcast %c2_i32_17 : i32 to vector<1x512xi32>
    %31 = arith.cmpi sge, %0, %30 : vector<1x512xi32>
    %cst_18 = arith.constant 0.000000e+00 : f32
    %32 = vector.shape_cast %31 : vector<1x512xi1> to vector<1x512xi1>
    %33 = vector.broadcast %32 : vector<1x512xi1> to vector<4x512xi1>
    %34 = vector.broadcast %cst_18 : f32 to vector<4x512xf32>
    %35 = arith.select %33, %29, %34 : vector<4x512xi1>, vector<4x512xf32>
    %c8 = arith.constant 8 : index
    %c0_19 = arith.constant 0 : index
    %36 = vector.load %arg9[%c8, %c0_19] : memref<100x512xf32, #tpu.memory_space<vmem>>, vector<4x512xf32>
    tpu.vector_store %arg9[%c8, %c0_19], %35 {strides = array<i32>} : memref<100x512xf32, #tpu.memory_space<vmem>>, vector<4x512xf32>,
    %c31_i32 = arith.constant 31 : i32
    %37 = tpu.dynamic_rotate %2 by %c31_i32 dim 1 : vector<4x512xf32>, i32 -> vector<4x512xf32>
    %c2_i32_20 = arith.constant 2 : i32
    %38 = vector.broadcast %c2_i32_20 : i32 to vector<1x512xi32>
    %39 = arith.cmpi sge, %0, %38 : vector<1x512xi32>
    %c15_i32 = arith.constant 15 : i32
    %40 = vector.broadcast %c15_i32 : i32 to vector<1x512xi32>
    %41 = arith.cmpi slt, %1, %40 : vector<1x512xi32>
    %42 = arith.andi %39, %41 : vector<1x512xi1>
    %cst_21 = arith.constant 0.000000e+00 : f32
    %43 = vector.shape_cast %42 : vector<1x512xi1> to vector<1x512xi1>
    %44 = vector.broadcast %43 : vector<1x512xi1> to vector<4x512xi1>
    %45 = vector.broadcast %cst_21 : f32 to vector<4x512xf32>
    %46 = arith.select %44, %37, %45 : vector<4x512xi1>, vector<4x512xf32>
    %c12 = arith.constant 12 : index
    %c0_22 = arith.constant 0 : index
    %47 = vector.load %arg9[%c12, %c0_22] : memref<100x512xf32, #tpu.memory_space<vmem>>, vector<4x512xf32>
    tpu.vector_store %arg9[%c12, %c0_22], %46 {strides = array<i32>} : memref<100x512xf32, #tpu.memory_space<vmem>>, vector<4x512xf32>,
    %c30_i32 = arith.constant 30 : i32
    %48 = tpu.dynamic_rotate %2 by %c30_i32 dim 1 : vector<4x512xf32>, i32 -> vector<4x512xf32>
    %c2_i32_23 = arith.constant 2 : i32
    %49 = vector.broadcast %c2_i32_23 : i32 to vector<1x512xi32>
    %50 = arith.cmpi sge, %0, %49 : vector<1x512xi32>
    %c14_i32 = arith.constant 14 : i32
    %51 = vector.broadcast %c14_i32 : i32 to vector<1x512xi32>
    %52 = arith.cmpi slt, %1, %51 : vector<1x512xi32>
    %53 = arith.andi %50, %52 : vector<1x512xi1>
    %cst_24 = arith.constant 0.000000e+00 : f32
    %54 = vector.shape_cast %53 : vector<1x512xi1> to vector<1x512xi1>
    %55 = vector.broadcast %54 : vector<1x512xi1> to vector<4x512xi1>
    %56 = vector.broadcast %cst_24 : f32 to vector<4x512xf32>
    %57 = arith.select %55, %48, %56 : vector<4x512xi1>, vector<4x512xf32>
    %c16 = arith.constant 16 : index
    %c0_25 = arith.constant 0 : index
    %58 = vector.load %arg9[%c16, %c0_25] : memref<100x512xf32, #tpu.memory_space<vmem>>, vector<4x512xf32>
    tpu.vector_store %arg9[%c16, %c0_25], %57 {strides = array<i32>} : memref<100x512xf32, #tpu.memory_space<vmem>>, vector<4x512xf32>,
    %c18_i32 = arith.constant 18 : i32
    %59 = tpu.dynamic_rotate %2 by %c18_i32 dim 1 : vector<4x512xf32>, i32 -> vector<4x512xf32>
    %c1_i32_26 = arith.constant 1 : i32
    %60 = vector.broadcast %c1_i32_26 : i32 to vector<1x512xi32>
    %61 = arith.cmpi sge, %0, %60 : vector<1x512xi32>
    %c2_i32_27 = arith.constant 2 : i32
    %62 = vector.broadcast %c2_i32_27 : i32 to vector<1x512xi32>
    %63 = arith.cmpi sge, %1, %62 : vector<1x512xi32>
    %64 = arith.andi %61, %63 : vector<1x512xi1>
    %cst_28 = arith.constant 0.000000e+00 : f32
    %65 = vector.shape_cast %64 : vector<1x512xi1> to vector<1x512xi1>
    %66 = vector.broadcast %65 : vector<1x512xi1> to vector<4x512xi1>
    %67 = vector.broadcast %cst_28 : f32 to vector<4x512xf32>
    %68 = arith.select %66, %59, %67 : vector<4x512xi1>, vector<4x512xf32>
    %c20 = arith.constant 20 : index
    %c0_29 = arith.constant 0 : index
    %69 = vector.load %arg9[%c20, %c0_29] : memref<100x512xf32, #tpu.memory_space<vmem>>, vector<4x512xf32>
    tpu.vector_store %arg9[%c20, %c0_29], %68 {strides = array<i32>} : memref<100x512xf32, #tpu.memory_space<vmem>>, vector<4x512xf32>,
    %c17_i32 = arith.constant 17 : i32
    %70 = tpu.dynamic_rotate %2 by %c17_i32 dim 1 : vector<4x512xf32>, i32 -> vector<4x512xf32>
    %c1_i32_30 = arith.constant 1 : i32
    %71 = vector.broadcast %c1_i32_30 : i32 to vector<1x512xi32>
    %72 = arith.cmpi sge, %0, %71 : vector<1x512xi32>
    %c1_i32_31 = arith.constant 1 : i32
    %73 = vector.broadcast %c1_i32_31 : i32 to vector<1x512xi32>
    %74 = arith.cmpi sge, %1, %73 : vector<1x512xi32>
    %75 = arith.andi %72, %74 : vector<1x512xi1>
    %cst_32 = arith.constant 0.000000e+00 : f32
    %76 = vector.shape_cast %75 : vector<1x512xi1> to vector<1x512xi1>
    %77 = vector.broadcast %76 : vector<1x512xi1> to vector<4x512xi1>
    %78 = vector.broadcast %cst_32 : f32 to vector<4x512xf32>
    %79 = arith.select %77, %70, %78 : vector<4x512xi1>, vector<4x512xf32>
    %c24 = arith.constant 24 : index
    %c0_33 = arith.constant 0 : index
    %80 = vector.load %arg9[%c24, %c0_33] : memref<100x512xf32, #tpu.memory_space<vmem>>, vector<4x512xf32>
    tpu.vector_store %arg9[%c24, %c0_33], %79 {strides = array<i32>} : memref<100x512xf32, #tpu.memory_space<vmem>>, vector<4x512xf32>,
    %c16_i32 = arith.constant 16 : i32
    %81 = tpu.dynamic_rotate %2 by %c16_i32 dim 1 : vector<4x512xf32>, i32 -> vector<4x512xf32>
    %c1_i32_34 = arith.constant 1 : i32
    %82 = vector.broadcast %c1_i32_34 : i32 to vector<1x512xi32>
    %83 = arith.cmpi sge, %0, %82 : vector<1x512xi32>
    %cst_35 = arith.constant 0.000000e+00 : f32
    %84 = vector.shape_cast %83 : vector<1x512xi1> to vector<1x512xi1>
    %85 = vector.broadcast %84 : vector<1x512xi1> to vector<4x512xi1>
    %86 = vector.broadcast %cst_35 : f32 to vector<4x512xf32>
    %87 = arith.select %85, %81, %86 : vector<4x512xi1>, vector<4x512xf32>
    %c28 = arith.constant 28 : index
    %c0_36 = arith.constant 0 : index
    %88 = vector.load %arg9[%c28, %c0_36] : memref<100x512xf32, #tpu.memory_space<vmem>>, vector<4x512xf32>
    tpu.vector_store %arg9[%c28, %c0_36], %87 {strides = array<i32>} : memref<100x512xf32, #tpu.memory_space<vmem>>, vector<4x512xf32>,
    %c15_i32_37 = arith.constant 15 : i32
    %89 = tpu.dynamic_rotate %2 by %c15_i32_37 dim 1 : vector<4x512xf32>, i32 -> vector<4x512xf32>
    %c1_i32_38 = arith.constant 1 : i32
    %90 = vector.broadcast %c1_i32_38 : i32 to vector<1x512xi32>
    %91 = arith.cmpi sge, %0, %90 : vector<1x512xi32>
    %c15_i32_39 = arith.constant 15 : i32
    %92 = vector.broadcast %c15_i32_39 : i32 to vector<1x512xi32>
    %93 = arith.cmpi slt, %1, %92 : vector<1x512xi32>
    %94 = arith.andi %91, %93 : vector<1x512xi1>
    %cst_40 = arith.constant 0.000000e+00 : f32
    %95 = vector.shape_cast %94 : vector<1x512xi1> to vector<1x512xi1>
    %96 = vector.broadcast %95 : vector<1x512xi1> to vector<4x512xi1>
    %97 = vector.broadcast %cst_40 : f32 to vector<4x512xf32>
    %98 = arith.select %96, %89, %97 : vector<4x512xi1>, vector<4x512xf32>
    %c32 = arith.constant 32 : index
    %c0_41 = arith.constant 0 : index
    %99 = vector.load %arg9[%c32, %c0_41] : memref<100x512xf32, #tpu.memory_space<vmem>>, vector<4x512xf32>
    tpu.vector_store %arg9[%c32, %c0_41], %98 {strides = array<i32>} : memref<100x512xf32, #tpu.memory_space<vmem>>, vector<4x512xf32>,
    %c14_i32_42 = arith.constant 14 : i32
    %100 = tpu.dynamic_rotate %2 by %c14_i32_42 dim 1 : vector<4x512xf32>, i32 -> vector<4x512xf32>
    %c1_i32_43 = arith.constant 1 : i32
    %101 = vector.broadcast %c1_i32_43 : i32 to vector<1x512xi32>
    %102 = arith.cmpi sge, %0, %101 : vector<1x512xi32>
    %c14_i32_44 = arith.constant 14 : i32
    %103 = vector.broadcast %c14_i32_44 : i32 to vector<1x512xi32>
    %104 = arith.cmpi slt, %1, %103 : vector<1x512xi32>
    %105 = arith.andi %102, %104 : vector<1x512xi1>
    %cst_45 = arith.constant 0.000000e+00 : f32
    %106 = vector.shape_cast %105 : vector<1x512xi1> to vector<1x512xi1>
    %107 = vector.broadcast %106 : vector<1x512xi1> to vector<4x512xi1>
    %108 = vector.broadcast %cst_45 : f32 to vector<4x512xf32>
    %109 = arith.select %107, %100, %108 : vector<4x512xi1>, vector<4x512xf32>
    %c36 = arith.constant 36 : index
    %c0_46 = arith.constant 0 : index
    %110 = vector.load %arg9[%c36, %c0_46] : memref<100x512xf32, #tpu.memory_space<vmem>>, vector<4x512xf32>
    tpu.vector_store %arg9[%c36, %c0_46], %109 {strides = array<i32>} : memref<100x512xf32, #tpu.memory_space<vmem>>, vector<4x512xf32>,
    %c2_i32_47 = arith.constant 2 : i32
    %111 = tpu.dynamic_rotate %2 by %c2_i32_47 dim 1 : vector<4x512xf32>, i32 -> vector<4x512xf32>
    %c2_i32_48 = arith.constant 2 : i32
    %112 = vector.broadcast %c2_i32_48 : i32 to vector<1x512xi32>
    %113 = arith.cmpi sge, %1, %112 : vector<1x512xi32>
    %cst_49 = arith.constant 0.000000e+00 : f32
    %114 = vector.shape_cast %113 : vector<1x512xi1> to vector<1x512xi1>
    %115 = vector.broadcast %114 : vector<1x512xi1> to vector<4x512xi1>
    %116 = vector.broadcast %cst_49 : f32 to vector<4x512xf32>
    %117 = arith.select %115, %111, %116 : vector<4x512xi1>, vector<4x512xf32>
    %c40 = arith.constant 40 : index
    %c0_50 = arith.constant 0 : index
    %118 = vector.load %arg9[%c40, %c0_50] : memref<100x512xf32, #tpu.memory_space<vmem>>, vector<4x512xf32>
    tpu.vector_store %arg9[%c40, %c0_50], %117 {strides = array<i32>} : memref<100x512xf32, #tpu.memory_space<vmem>>, vector<4x512xf32>,
    %c1_i32_51 = arith.constant 1 : i32
    %119 = tpu.dynamic_rotate %2 by %c1_i32_51 dim 1 : vector<4x512xf32>, i32 -> vector<4x512xf32>
    %c1_i32_52 = arith.constant 1 : i32
    %120 = vector.broadcast %c1_i32_52 : i32 to vector<1x512xi32>
    %121 = arith.cmpi sge, %1, %120 : vector<1x512xi32>
    %cst_53 = arith.constant 0.000000e+00 : f32
    %122 = vector.shape_cast %121 : vector<1x512xi1> to vector<1x512xi1>
    %123 = vector.broadcast %122 : vector<1x512xi1> to vector<4x512xi1>
    %124 = vector.broadcast %cst_53 : f32 to vector<4x512xf32>
    %125 = arith.select %123, %119, %124 : vector<4x512xi1>, vector<4x512xf32>
    %c44 = arith.constant 44 : index
    %c0_54 = arith.constant 0 : index
    %126 = vector.load %arg9[%c44, %c0_54] : memref<100x512xf32, #tpu.memory_space<vmem>>, vector<4x512xf32>
    tpu.vector_store %arg9[%c44, %c0_54], %125 {strides = array<i32>} : memref<100x512xf32, #tpu.memory_space<vmem>>, vector<4x512xf32>,
    %c48 = arith.constant 48 : index
    %c0_55 = arith.constant 0 : index
    %127 = vector.load %arg9[%c48, %c0_55] : memref<100x512xf32, #tpu.memory_space<vmem>>, vector<4x512xf32>
    tpu.vector_store %arg9[%c48, %c0_55], %2 {strides = array<i32>} : memref<100x512xf32, #tpu.memory_space<vmem>>, vector<4x512xf32>,
    %c511_i32 = arith.constant 511 : i32
    %128 = tpu.dynamic_rotate %2 by %c511_i32 dim 1 : vector<4x512xf32>, i32 -> vector<4x512xf32>
    %c15_i32_56 = arith.constant 15 : i32
    %129 = vector.broadcast %c15_i32_56 : i32 to vector<1x512xi32>
    %130 = arith.cmpi slt, %1, %129 : vector<1x512xi32>
    %cst_57 = arith.constant 0.000000e+00 : f32
    %131 = vector.shape_cast %130 : vector<1x512xi1> to vector<1x512xi1>
    %132 = vector.broadcast %131 : vector<1x512xi1> to vector<4x512xi1>
    %133 = vector.broadcast %cst_57 : f32 to vector<4x512xf32>
    %134 = arith.select %132, %128, %133 : vector<4x512xi1>, vector<4x512xf32>
    %c52 = arith.constant 52 : index
    %c0_58 = arith.constant 0 : index
    %135 = vector.load %arg9[%c52, %c0_58] : memref<100x512xf32, #tpu.memory_space<vmem>>, vector<4x512xf32>
    tpu.vector_store %arg9[%c52, %c0_58], %134 {strides = array<i32>} : memref<100x512xf32, #tpu.memory_space<vmem>>, vector<4x512xf32>,
    %c510_i32 = arith.constant 510 : i32
    %136 = tpu.dynamic_rotate %2 by %c510_i32 dim 1 : vector<4x512xf32>, i32 -> vector<4x512xf32>
    %c14_i32_59 = arith.constant 14 : i32
    %137 = vector.broadcast %c14_i32_59 : i32 to vector<1x512xi32>
    %138 = arith.cmpi slt, %1, %137 : vector<1x512xi32>
    %cst_60 = arith.constant 0.000000e+00 : f32
    %139 = vector.shape_cast %138 : vector<1x512xi1> to vector<1x512xi1>
    %140 = vector.broadcast %139 : vector<1x512xi1> to vector<4x512xi1>
    %141 = vector.broadcast %cst_60 : f32 to vector<4x512xf32>
    %142 = arith.select %140, %136, %141 : vector<4x512xi1>, vector<4x512xf32>
    %c56 = arith.constant 56 : index
    %c0_61 = arith.constant 0 : index
    %143 = vector.load %arg9[%c56, %c0_61] : memref<100x512xf32, #tpu.memory_space<vmem>>, vector<4x512xf32>
    tpu.vector_store %arg9[%c56, %c0_61], %142 {strides = array<i32>} : memref<100x512xf32, #tpu.memory_space<vmem>>, vector<4x512xf32>,
    %c498_i32 = arith.constant 498 : i32
    %144 = tpu.dynamic_rotate %2 by %c498_i32 dim 1 : vector<4x512xf32>, i32 -> vector<4x512xf32>
    %c15_i32_62 = arith.constant 15 : i32
    %145 = vector.broadcast %c15_i32_62 : i32 to vector<1x512xi32>
    %146 = arith.cmpi slt, %0, %145 : vector<1x512xi32>
    %c2_i32_63 = arith.constant 2 : i32
    %147 = vector.broadcast %c2_i32_63 : i32 to vector<1x512xi32>
    %148 = arith.cmpi sge, %1, %147 : vector<1x512xi32>
    %149 = arith.andi %146, %148 : vector<1x512xi1>
    %cst_64 = arith.constant 0.000000e+00 : f32
    %150 = vector.shape_cast %149 : vector<1x512xi1> to vector<1x512xi1>
    %151 = vector.broadcast %150 : vector<1x512xi1> to vector<4x512xi1>
    %152 = vector.broadcast %cst_64 : f32 to vector<4x512xf32>
    %153 = arith.select %151, %144, %152 : vector<4x512xi1>, vector<4x512xf32>
    %c60 = arith.constant 60 : index
    %c0_65 = arith.constant 0 : index
    %154 = vector.load %arg9[%c60, %c0_65] : memref<100x512xf32, #tpu.memory_space<vmem>>, vector<4x512xf32>
    tpu.vector_store %arg9[%c60, %c0_65], %153 {strides = array<i32>} : memref<100x512xf32, #tpu.memory_space<vmem>>, vector<4x512xf32>,
    %c497_i32 = arith.constant 497 : i32
    %155 = tpu.dynamic_rotate %2 by %c497_i32 dim 1 : vector<4x512xf32>, i32 -> vector<4x512xf32>
    %c15_i32_66 = arith.constant 15 : i32
    %156 = vector.broadcast %c15_i32_66 : i32 to vector<1x512xi32>
    %157 = arith.cmpi slt, %0, %156 : vector<1x512xi32>
    %c1_i32_67 = arith.constant 1 : i32
    %158 = vector.broadcast %c1_i32_67 : i32 to vector<1x512xi32>
    %159 = arith.cmpi sge, %1, %158 : vector<1x512xi32>
    %160 = arith.andi %157, %159 : vector<1x512xi1>
    %cst_68 = arith.constant 0.000000e+00 : f32
    %161 = vector.shape_cast %160 : vector<1x512xi1> to vector<1x512xi1>
    %162 = vector.broadcast %161 : vector<1x512xi1> to vector<4x512xi1>
    %163 = vector.broadcast %cst_68 : f32 to vector<4x512xf32>
    %164 = arith.select %162, %155, %163 : vector<4x512xi1>, vector<4x512xf32>
    %c64 = arith.constant 64 : index
    %c0_69 = arith.constant 0 : index
    %165 = vector.load %arg9[%c64, %c0_69] : memref<100x512xf32, #tpu.memory_space<vmem>>, vector<4x512xf32>
    tpu.vector_store %arg9[%c64, %c0_69], %164 {strides = array<i32>} : memref<100x512xf32, #tpu.memory_space<vmem>>, vector<4x512xf32>,
    %c496_i32 = arith.constant 496 : i32
    %166 = tpu.dynamic_rotate %2 by %c496_i32 dim 1 : vector<4x512xf32>, i32 -> vector<4x512xf32>
    %c15_i32_70 = arith.constant 15 : i32
    %167 = vector.broadcast %c15_i32_70 : i32 to vector<1x512xi32>
    %168 = arith.cmpi slt, %0, %167 : vector<1x512xi32>
    %cst_71 = arith.constant 0.000000e+00 : f32
    %169 = vector.shape_cast %168 : vector<1x512xi1> to vector<1x512xi1>
    %170 = vector.broadcast %169 : vector<1x512xi1> to vector<4x512xi1>
    %171 = vector.broadcast %cst_71 : f32 to vector<4x512xf32>
    %172 = arith.select %170, %166, %171 : vector<4x512xi1>, vector<4x512xf32>
    %c68 = arith.constant 68 : index
    %c0_72 = arith.constant 0 : index
    %173 = vector.load %arg9[%c68, %c0_72] : memref<100x512xf32, #tpu.memory_space<vmem>>, vector<4x512xf32>
    tpu.vector_store %arg9[%c68, %c0_72], %172 {strides = array<i32>} : memref<100x512xf32, #tpu.memory_space<vmem>>, vector<4x512xf32>,
    %c495_i32 = arith.constant 495 : i32
    %174 = tpu.dynamic_rotate %2 by %c495_i32 dim 1 : vector<4x512xf32>, i32 -> vector<4x512xf32>
    %c15_i32_73 = arith.constant 15 : i32
    %175 = vector.broadcast %c15_i32_73 : i32 to vector<1x512xi32>
    %176 = arith.cmpi slt, %0, %175 : vector<1x512xi32>
    %c15_i32_74 = arith.constant 15 : i32
    %177 = vector.broadcast %c15_i32_74 : i32 to vector<1x512xi32>
    %178 = arith.cmpi slt, %1, %177 : vector<1x512xi32>
    %179 = arith.andi %176, %178 : vector<1x512xi1>
    %cst_75 = arith.constant 0.000000e+00 : f32
    %180 = vector.shape_cast %179 : vector<1x512xi1> to vector<1x512xi1>
    %181 = vector.broadcast %180 : vector<1x512xi1> to vector<4x512xi1>
    %182 = vector.broadcast %cst_75 : f32 to vector<4x512xf32>
    %183 = arith.select %181, %174, %182 : vector<4x512xi1>, vector<4x512xf32>
    %c72 = arith.constant 72 : index
    %c0_76 = arith.constant 0 : index
    %184 = vector.load %arg9[%c72, %c0_76] : memref<100x512xf32, #tpu.memory_space<vmem>>, vector<4x512xf32>
    tpu.vector_store %arg9[%c72, %c0_76], %183 {strides = array<i32>} : memref<100x512xf32, #tpu.memory_space<vmem>>, vector<4x512xf32>,
    %c494_i32 = arith.constant 494 : i32
    %185 = tpu.dynamic_rotate %2 by %c494_i32 dim 1 : vector<4x512xf32>, i32 -> vector<4x512xf32>
    %c15_i32_77 = arith.constant 15 : i32
    %186 = vector.broadcast %c15_i32_77 : i32 to vector<1x512xi32>
    %187 = arith.cmpi slt, %0, %186 : vector<1x512xi32>
    %c14_i32_78 = arith.constant 14 : i32
    %188 = vector.broadcast %c14_i32_78 : i32 to vector<1x512xi32>
    %189 = arith.cmpi slt, %1, %188 : vector<1x512xi32>
    %190 = arith.andi %187, %189 : vector<1x512xi1>
    %cst_79 = arith.constant 0.000000e+00 : f32
    %191 = vector.shape_cast %190 : vector<1x512xi1> to vector<1x512xi1>
    %192 = vector.broadcast %191 : vector<1x512xi1> to vector<4x512xi1>
    %193 = vector.broadcast %cst_79 : f32 to vector<4x512xf32>
    %194 = arith.select %192, %185, %193 : vector<4x512xi1>, vector<4x512xf32>
    %c76 = arith.constant 76 : index
    %c0_80 = arith.constant 0 : index
    %195 = vector.load %arg9[%c76, %c0_80] : memref<100x512xf32, #tpu.memory_space<vmem>>, vector<4x512xf32>
    tpu.vector_store %arg9[%c76, %c0_80], %194 {strides = array<i32>} : memref<100x512xf32, #tpu.memory_space<vmem>>, vector<4x512xf32>,
    %c482_i32 = arith.constant 482 : i32
    %196 = tpu.dynamic_rotate %2 by %c482_i32 dim 1 : vector<4x512xf32>, i32 -> vector<4x512xf32>
    %c14_i32_81 = arith.constant 14 : i32
    %197 = vector.broadcast %c14_i32_81 : i32 to vector<1x512xi32>
    %198 = arith.cmpi slt, %0, %197 : vector<1x512xi32>
    %c2_i32_82 = arith.constant 2 : i32
    %199 = vector.broadcast %c2_i32_82 : i32 to vector<1x512xi32>
    %200 = arith.cmpi sge, %1, %199 : vector<1x512xi32>
    %201 = arith.andi %198, %200 : vector<1x512xi1>
    %cst_83 = arith.constant 0.000000e+00 : f32
    %202 = vector.shape_cast %201 : vector<1x512xi1> to vector<1x512xi1>
    %203 = vector.broadcast %202 : vector<1x512xi1> to vector<4x512xi1>
    %204 = vector.broadcast %cst_83 : f32 to vector<4x512xf32>
    %205 = arith.select %203, %196, %204 : vector<4x512xi1>, vector<4x512xf32>
    %c80 = arith.constant 80 : index
    %c0_84 = arith.constant 0 : index
    %206 = vector.load %arg9[%c80, %c0_84] : memref<100x512xf32, #tpu.memory_space<vmem>>, vector<4x512xf32>
    tpu.vector_store %arg9[%c80, %c0_84], %205 {strides = array<i32>} : memref<100x512xf32, #tpu.memory_space<vmem>>, vector<4x512xf32>,
    %c481_i32 = arith.constant 481 : i32
    %207 = tpu.dynamic_rotate %2 by %c481_i32 dim 1 : vector<4x512xf32>, i32 -> vector<4x512xf32>
    %c14_i32_85 = arith.constant 14 : i32
    %208 = vector.broadcast %c14_i32_85 : i32 to vector<1x512xi32>
    %209 = arith.cmpi slt, %0, %208 : vector<1x512xi32>
    %c1_i32_86 = arith.constant 1 : i32
    %210 = vector.broadcast %c1_i32_86 : i32 to vector<1x512xi32>
    %211 = arith.cmpi sge, %1, %210 : vector<1x512xi32>
    %212 = arith.andi %209, %211 : vector<1x512xi1>
    %cst_87 = arith.constant 0.000000e+00 : f32
    %213 = vector.shape_cast %212 : vector<1x512xi1> to vector<1x512xi1>
    %214 = vector.broadcast %213 : vector<1x512xi1> to vector<4x512xi1>
    %215 = vector.broadcast %cst_87 : f32 to vector<4x512xf32>
    %216 = arith.select %214, %207, %215 : vector<4x512xi1>, vector<4x512xf32>
    %c84 = arith.constant 84 : index
    %c0_88 = arith.constant 0 : index
    %217 = vector.load %arg9[%c84, %c0_88] : memref<100x512xf32, #tpu.memory_space<vmem>>, vector<4x512xf32>
    tpu.vector_store %arg9[%c84, %c0_88], %216 {strides = array<i32>} : memref<100x512xf32, #tpu.memory_space<vmem>>, vector<4x512xf32>,
    %c480_i32 = arith.constant 480 : i32
    %218 = tpu.dynamic_rotate %2 by %c480_i32 dim 1 : vector<4x512xf32>, i32 -> vector<4x512xf32>
    %c14_i32_89 = arith.constant 14 : i32
    %219 = vector.broadcast %c14_i32_89 : i32 to vector<1x512xi32>
    %220 = arith.cmpi slt, %0, %219 : vector<1x512xi32>
    %cst_90 = arith.constant 0.000000e+00 : f32
    %221 = vector.shape_cast %220 : vector<1x512xi1> to vector<1x512xi1>
    %222 = vector.broadcast %221 : vector<1x512xi1> to vector<4x512xi1>
    %223 = vector.broadcast %cst_90 : f32 to vector<4x512xf32>
    %224 = arith.select %222, %218, %223 : vector<4x512xi1>, vector<4x512xf32>
    %c88 = arith.constant 88 : index
    %c0_91 = arith.constant 0 : index
    %225 = vector.load %arg9[%c88, %c0_91] : memref<100x512xf32, #tpu.memory_space<vmem>>, vector<4x512xf32>
    tpu.vector_store %arg9[%c88, %c0_91], %224 {strides = array<i32>} : memref<100x512xf32, #tpu.memory_space<vmem>>, vector<4x512xf32>,
    %c479_i32 = arith.constant 479 : i32
    %226 = tpu.dynamic_rotate %2 by %c479_i32 dim 1 : vector<4x512xf32>, i32 -> vector<4x512xf32>
    %c14_i32_92 = arith.constant 14 : i32
    %227 = vector.broadcast %c14_i32_92 : i32 to vector<1x512xi32>
    %228 = arith.cmpi slt, %0, %227 : vector<1x512xi32>
    %c15_i32_93 = arith.constant 15 : i32
    %229 = vector.broadcast %c15_i32_93 : i32 to vector<1x512xi32>
    %230 = arith.cmpi slt, %1, %229 : vector<1x512xi32>
    %231 = arith.andi %228, %230 : vector<1x512xi1>
    %cst_94 = arith.constant 0.000000e+00 : f32
    %232 = vector.shape_cast %231 : vector<1x512xi1> to vector<1x512xi1>
    %233 = vector.broadcast %232 : vector<1x512xi1> to vector<4x512xi1>
    %234 = vector.broadcast %cst_94 : f32 to vector<4x512xf32>
    %235 = arith.select %233, %226, %234 : vector<4x512xi1>, vector<4x512xf32>
    %c92 = arith.constant 92 : index
    %c0_95 = arith.constant 0 : index
    %236 = vector.load %arg9[%c92, %c0_95] : memref<100x512xf32, #tpu.memory_space<vmem>>, vector<4x512xf32>
    tpu.vector_store %arg9[%c92, %c0_95], %235 {strides = array<i32>} : memref<100x512xf32, #tpu.memory_space<vmem>>, vector<4x512xf32>,
    %c478_i32 = arith.constant 478 : i32
    %237 = tpu.dynamic_rotate %2 by %c478_i32 dim 1 : vector<4x512xf32>, i32 -> vector<4x512xf32>
    %c14_i32_96 = arith.constant 14 : i32
    %238 = vector.broadcast %c14_i32_96 : i32 to vector<1x512xi32>
    %239 = arith.cmpi slt, %0, %238 : vector<1x512xi32>
    %c14_i32_97 = arith.constant 14 : i32
    %240 = vector.broadcast %c14_i32_97 : i32 to vector<1x512xi32>
    %241 = arith.cmpi slt, %1, %240 : vector<1x512xi32>
    %242 = arith.andi %239, %241 : vector<1x512xi1>
    %cst_98 = arith.constant 0.000000e+00 : f32
    %243 = vector.shape_cast %242 : vector<1x512xi1> to vector<1x512xi1>
    %244 = vector.broadcast %243 : vector<1x512xi1> to vector<4x512xi1>
    %245 = vector.broadcast %cst_98 : f32 to vector<4x512xf32>
    %246 = arith.select %244, %237, %245 : vector<4x512xi1>, vector<4x512xf32>
    %c96 = arith.constant 96 : index
    %c0_99 = arith.constant 0 : index
    %247 = vector.load %arg9[%c96, %c0_99] : memref<100x512xf32, #tpu.memory_space<vmem>>, vector<4x512xf32>
    tpu.vector_store %arg9[%c96, %c0_99], %246 {strides = array<i32>} : memref<100x512xf32, #tpu.memory_space<vmem>>, vector<4x512xf32>,
    %c0_100 = arith.constant 0 : index
    %c0_101 = arith.constant 0 : index
    %248 = vector.load %arg9[%c0_100, %c0_101] : memref<100x512xf32, #tpu.memory_space<vmem>>, vector<100x512xf32>
    %cst_102 = arith.constant dense<0.000000e+00> : vector<4x512xf32>
    %249 = tpu.matmul %4, %248, %cst_102 {dimension_numbers = #tpu.dot_dimension_numbers<[1], [0], [0], [1], [0, 0, 1, 1], [], []>} : vector<4x100xf32>, vector<100x512xf32>, vector<4x512xf32> -> vector<4x512xf32>
    %250 = vector.broadcast %6 : vector<4x1xf32> to vector<4x512xf32>
    %251 = arith.addf %249, %250 : vector<4x512xf32>
    %cst_103 = arith.constant 0.000000e+00 : f32
    %252 = vector.broadcast %cst_103 : f32 to vector<4x512xf32>
    %253 = arith.cmpf oge, %251, %252 : vector<4x512xf32>
    %cst_104 = arith.constant 2.000000e-01 : f32
    %254 = vector.broadcast %cst_104 : f32 to vector<4x512xf32>
    %255 = arith.mulf %254, %251 : vector<4x512xf32>
    %256 = arith.select %253, %251, %255 : vector<4x512xi1>, vector<4x512xf32>
    %c1 = arith.constant 1 : index
    %c0_105 = arith.constant 0 : index
    %c0_106 = arith.constant 0 : index
    %257 = vector.load %arg4[%c1, %c0_105, %c0_106] : memref<6x4x100xf32, #tpu.memory_space<vmem>>, vector<1x4x100xf32>
    %258 = vector.shape_cast %257 : vector<1x4x100xf32> to vector<4x100xf32>
    %c1_107 = arith.constant 1 : index
    %c0_108 = arith.constant 0 : index
    %c0_109 = arith.constant 0 : index
    %259 = vector.load %arg5[%c1_107, %c0_108, %c0_109] : memref<6x4x1xf32, #tpu.memory_space<vmem>>, vector<1x4x1xf32>
    %260 = vector.shape_cast %259 : vector<1x4x1xf32> to vector<4x1xf32>
    %c34_i32_110 = arith.constant 34 : i32
    %261 = tpu.dynamic_rotate %256 by %c34_i32_110 dim 1 : vector<4x512xf32>, i32 -> vector<4x512xf32>
    %c2_i32_111 = arith.constant 2 : i32
    %262 = vector.broadcast %c2_i32_111 : i32 to vector<1x512xi32>
    %263 = arith.cmpi sge, %0, %262 : vector<1x512xi32>
    %c2_i32_112 = arith.constant 2 : i32
    %264 = vector.broadcast %c2_i32_112 : i32 to vector<1x512xi32>
    %265 = arith.cmpi sge, %1, %264 : vector<1x512xi32>
    %266 = arith.andi %263, %265 : vector<1x512xi1>
    %cst_113 = arith.constant 0.000000e+00 : f32
    %267 = vector.shape_cast %266 : vector<1x512xi1> to vector<1x512xi1>
    %268 = vector.broadcast %267 : vector<1x512xi1> to vector<4x512xi1>
    %269 = vector.broadcast %cst_113 : f32 to vector<4x512xf32>
    %270 = arith.select %268, %261, %269 : vector<4x512xi1>, vector<4x512xf32>
    %c0_114 = arith.constant 0 : index
    %c0_115 = arith.constant 0 : index
    %271 = vector.load %arg9[%c0_114, %c0_115] : memref<100x512xf32, #tpu.memory_space<vmem>>, vector<4x512xf32>
    tpu.vector_store %arg9[%c0_114, %c0_115], %270 {strides = array<i32>} : memref<100x512xf32, #tpu.memory_space<vmem>>, vector<4x512xf32>,
    %c33_i32_116 = arith.constant 33 : i32
    %272 = tpu.dynamic_rotate %256 by %c33_i32_116 dim 1 : vector<4x512xf32>, i32 -> vector<4x512xf32>
    %c2_i32_117 = arith.constant 2 : i32
    %273 = vector.broadcast %c2_i32_117 : i32 to vector<1x512xi32>
    %274 = arith.cmpi sge, %0, %273 : vector<1x512xi32>
    %c1_i32_118 = arith.constant 1 : i32
    %275 = vector.broadcast %c1_i32_118 : i32 to vector<1x512xi32>
    %276 = arith.cmpi sge, %1, %275 : vector<1x512xi32>
    %277 = arith.andi %274, %276 : vector<1x512xi1>
    %cst_119 = arith.constant 0.000000e+00 : f32
    %278 = vector.shape_cast %277 : vector<1x512xi1> to vector<1x512xi1>
    %279 = vector.broadcast %278 : vector<1x512xi1> to vector<4x512xi1>
    %280 = vector.broadcast %cst_119 : f32 to vector<4x512xf32>
    %281 = arith.select %279, %272, %280 : vector<4x512xi1>, vector<4x512xf32>
    %c4_120 = arith.constant 4 : index
    %c0_121 = arith.constant 0 : index
    %282 = vector.load %arg9[%c4_120, %c0_121] : memref<100x512xf32, #tpu.memory_space<vmem>>, vector<4x512xf32>
    tpu.vector_store %arg9[%c4_120, %c0_121], %281 {strides = array<i32>} : memref<100x512xf32, #tpu.memory_space<vmem>>, vector<4x512xf32>,
    %c32_i32_122 = arith.constant 32 : i32
    %283 = tpu.dynamic_rotate %256 by %c32_i32_122 dim 1 : vector<4x512xf32>, i32 -> vector<4x512xf32>
    %c2_i32_123 = arith.constant 2 : i32
    %284 = vector.broadcast %c2_i32_123 : i32 to vector<1x512xi32>
    %285 = arith.cmpi sge, %0, %284 : vector<1x512xi32>
    %cst_124 = arith.constant 0.000000e+00 : f32
    %286 = vector.shape_cast %285 : vector<1x512xi1> to vector<1x512xi1>
    %287 = vector.broadcast %286 : vector<1x512xi1> to vector<4x512xi1>
    %288 = vector.broadcast %cst_124 : f32 to vector<4x512xf32>
    %289 = arith.select %287, %283, %288 : vector<4x512xi1>, vector<4x512xf32>
    %c8_125 = arith.constant 8 : index
    %c0_126 = arith.constant 0 : index
    %290 = vector.load %arg9[%c8_125, %c0_126] : memref<100x512xf32, #tpu.memory_space<vmem>>, vector<4x512xf32>
    tpu.vector_store %arg9[%c8_125, %c0_126], %289 {strides = array<i32>} : memref<100x512xf32, #tpu.memory_space<vmem>>, vector<4x512xf32>,
    %c31_i32_127 = arith.constant 31 : i32
    %291 = tpu.dynamic_rotate %256 by %c31_i32_127 dim 1 : vector<4x512xf32>, i32 -> vector<4x512xf32>
    %c2_i32_128 = arith.constant 2 : i32
    %292 = vector.broadcast %c2_i32_128 : i32 to vector<1x512xi32>
    %293 = arith.cmpi sge, %0, %292 : vector<1x512xi32>
    %c15_i32_129 = arith.constant 15 : i32
    %294 = vector.broadcast %c15_i32_129 : i32 to vector<1x512xi32>
    %295 = arith.cmpi slt, %1, %294 : vector<1x512xi32>
    %296 = arith.andi %293, %295 : vector<1x512xi1>
    %cst_130 = arith.constant 0.000000e+00 : f32
    %297 = vector.shape_cast %296 : vector<1x512xi1> to vector<1x512xi1>
    %298 = vector.broadcast %297 : vector<1x512xi1> to vector<4x512xi1>
    %299 = vector.broadcast %cst_130 : f32 to vector<4x512xf32>
    %300 = arith.select %298, %291, %299 : vector<4x512xi1>, vector<4x512xf32>
    %c12_131 = arith.constant 12 : index
    %c0_132 = arith.constant 0 : index
    %301 = vector.load %arg9[%c12_131, %c0_132] : memref<100x512xf32, #tpu.memory_space<vmem>>, vector<4x512xf32>
    tpu.vector_store %arg9[%c12_131, %c0_132], %300 {strides = array<i32>} : memref<100x512xf32, #tpu.memory_space<vmem>>, vector<4x512xf32>,
    %c30_i32_133 = arith.constant 30 : i32
    %302 = tpu.dynamic_rotate %256 by %c30_i32_133 dim 1 : vector<4x512xf32>, i32 -> vector<4x512xf32>
    %c2_i32_134 = arith.constant 2 : i32
    %303 = vector.broadcast %c2_i32_134 : i32 to vector<1x512xi32>
    %304 = arith.cmpi sge, %0, %303 : vector<1x512xi32>
    %c14_i32_135 = arith.constant 14 : i32
    %305 = vector.broadcast %c14_i32_135 : i32 to vector<1x512xi32>
    %306 = arith.cmpi slt, %1, %305 : vector<1x512xi32>
    %307 = arith.andi %304, %306 : vector<1x512xi1>
    %cst_136 = arith.constant 0.000000e+00 : f32
    %308 = vector.shape_cast %307 : vector<1x512xi1> to vector<1x512xi1>
    %309 = vector.broadcast %308 : vector<1x512xi1> to vector<4x512xi1>
    %310 = vector.broadcast %cst_136 : f32 to vector<4x512xf32>
    %311 = arith.select %309, %302, %310 : vector<4x512xi1>, vector<4x512xf32>
    %c16_137 = arith.constant 16 : index
    %c0_138 = arith.constant 0 : index
    %312 = vector.load %arg9[%c16_137, %c0_138] : memref<100x512xf32, #tpu.memory_space<vmem>>, vector<4x512xf32>
    tpu.vector_store %arg9[%c16_137, %c0_138], %311 {strides = array<i32>} : memref<100x512xf32, #tpu.memory_space<vmem>>, vector<4x512xf32>,
    %c18_i32_139 = arith.constant 18 : i32
    %313 = tpu.dynamic_rotate %256 by %c18_i32_139 dim 1 : vector<4x512xf32>, i32 -> vector<4x512xf32>
    %c1_i32_140 = arith.constant 1 : i32
    %314 = vector.broadcast %c1_i32_140 : i32 to vector<1x512xi32>
    %315 = arith.cmpi sge, %0, %314 : vector<1x512xi32>
    %c2_i32_141 = arith.constant 2 : i32
    %316 = vector.broadcast %c2_i32_141 : i32 to vector<1x512xi32>
    %317 = arith.cmpi sge, %1, %316 : vector<1x512xi32>
    %318 = arith.andi %315, %317 : vector<1x512xi1>
    %cst_142 = arith.constant 0.000000e+00 : f32
    %319 = vector.shape_cast %318 : vector<1x512xi1> to vector<1x512xi1>
    %320 = vector.broadcast %319 : vector<1x512xi1> to vector<4x512xi1>
    %321 = vector.broadcast %cst_142 : f32 to vector<4x512xf32>
    %322 = arith.select %320, %313, %321 : vector<4x512xi1>, vector<4x512xf32>
    %c20_143 = arith.constant 20 : index
    %c0_144 = arith.constant 0 : index
    %323 = vector.load %arg9[%c20_143, %c0_144] : memref<100x512xf32, #tpu.memory_space<vmem>>, vector<4x512xf32>
    tpu.vector_store %arg9[%c20_143, %c0_144], %322 {strides = array<i32>} : memref<100x512xf32, #tpu.memory_space<vmem>>, vector<4x512xf32>,
    %c17_i32_145 = arith.constant 17 : i32
    %324 = tpu.dynamic_rotate %256 by %c17_i32_145 dim 1 : vector<4x512xf32>, i32 -> vector<4x512xf32>
    %c1_i32_146 = arith.constant 1 : i32
    %325 = vector.broadcast %c1_i32_146 : i32 to vector<1x512xi32>
    %326 = arith.cmpi sge, %0, %325 : vector<1x512xi32>
    %c1_i32_147 = arith.constant 1 : i32
    %327 = vector.broadcast %c1_i32_147 : i32 to vector<1x512xi32>
    %328 = arith.cmpi sge, %1, %327 : vector<1x512xi32>
    %329 = arith.andi %326, %328 : vector<1x512xi1>
    %cst_148 = arith.constant 0.000000e+00 : f32
    %330 = vector.shape_cast %329 : vector<1x512xi1> to vector<1x512xi1>
    %331 = vector.broadcast %330 : vector<1x512xi1> to vector<4x512xi1>
    %332 = vector.broadcast %cst_148 : f32 to vector<4x512xf32>
    %333 = arith.select %331, %324, %332 : vector<4x512xi1>, vector<4x512xf32>
    %c24_149 = arith.constant 24 : index
    %c0_150 = arith.constant 0 : index
    %334 = vector.load %arg9[%c24_149, %c0_150] : memref<100x512xf32, #tpu.memory_space<vmem>>, vector<4x512xf32>
    tpu.vector_store %arg9[%c24_149, %c0_150], %333 {strides = array<i32>} : memref<100x512xf32, #tpu.memory_space<vmem>>, vector<4x512xf32>,
    %c16_i32_151 = arith.constant 16 : i32
    %335 = tpu.dynamic_rotate %256 by %c16_i32_151 dim 1 : vector<4x512xf32>, i32 -> vector<4x512xf32>
    %c1_i32_152 = arith.constant 1 : i32
    %336 = vector.broadcast %c1_i32_152 : i32 to vector<1x512xi32>
    %337 = arith.cmpi sge, %0, %336 : vector<1x512xi32>
    %cst_153 = arith.constant 0.000000e+00 : f32
    %338 = vector.shape_cast %337 : vector<1x512xi1> to vector<1x512xi1>
    %339 = vector.broadcast %338 : vector<1x512xi1> to vector<4x512xi1>
    %340 = vector.broadcast %cst_153 : f32 to vector<4x512xf32>
    %341 = arith.select %339, %335, %340 : vector<4x512xi1>, vector<4x512xf32>
    %c28_154 = arith.constant 28 : index
    %c0_155 = arith.constant 0 : index
    %342 = vector.load %arg9[%c28_154, %c0_155] : memref<100x512xf32, #tpu.memory_space<vmem>>, vector<4x512xf32>
    tpu.vector_store %arg9[%c28_154, %c0_155], %341 {strides = array<i32>} : memref<100x512xf32, #tpu.memory_space<vmem>>, vector<4x512xf32>,
    %c15_i32_156 = arith.constant 15 : i32
    %343 = tpu.dynamic_rotate %256 by %c15_i32_156 dim 1 : vector<4x512xf32>, i32 -> vector<4x512xf32>
    %c1_i32_157 = arith.constant 1 : i32
    %344 = vector.broadcast %c1_i32_157 : i32 to vector<1x512xi32>
    %345 = arith.cmpi sge, %0, %344 : vector<1x512xi32>
    %c15_i32_158 = arith.constant 15 : i32
    %346 = vector.broadcast %c15_i32_158 : i32 to vector<1x512xi32>
    %347 = arith.cmpi slt, %1, %346 : vector<1x512xi32>
    %348 = arith.andi %345, %347 : vector<1x512xi1>
    %cst_159 = arith.constant 0.000000e+00 : f32
    %349 = vector.shape_cast %348 : vector<1x512xi1> to vector<1x512xi1>
    %350 = vector.broadcast %349 : vector<1x512xi1> to vector<4x512xi1>
    %351 = vector.broadcast %cst_159 : f32 to vector<4x512xf32>
    %352 = arith.select %350, %343, %351 : vector<4x512xi1>, vector<4x512xf32>
    %c32_160 = arith.constant 32 : index
    %c0_161 = arith.constant 0 : index
    %353 = vector.load %arg9[%c32_160, %c0_161] : memref<100x512xf32, #tpu.memory_space<vmem>>, vector<4x512xf32>
    tpu.vector_store %arg9[%c32_160, %c0_161], %352 {strides = array<i32>} : memref<100x512xf32, #tpu.memory_space<vmem>>, vector<4x512xf32>,
    %c14_i32_162 = arith.constant 14 : i32
    %354 = tpu.dynamic_rotate %256 by %c14_i32_162 dim 1 : vector<4x512xf32>, i32 -> vector<4x512xf32>
    %c1_i32_163 = arith.constant 1 : i32
    %355 = vector.broadcast %c1_i32_163 : i32 to vector<1x512xi32>
    %356 = arith.cmpi sge, %0, %355 : vector<1x512xi32>
    %c14_i32_164 = arith.constant 14 : i32
    %357 = vector.broadcast %c14_i32_164 : i32 to vector<1x512xi32>
    %358 = arith.cmpi slt, %1, %357 : vector<1x512xi32>
    %359 = arith.andi %356, %358 : vector<1x512xi1>
    %cst_165 = arith.constant 0.000000e+00 : f32
    %360 = vector.shape_cast %359 : vector<1x512xi1> to vector<1x512xi1>
    %361 = vector.broadcast %360 : vector<1x512xi1> to vector<4x512xi1>
    %362 = vector.broadcast %cst_165 : f32 to vector<4x512xf32>
    %363 = arith.select %361, %354, %362 : vector<4x512xi1>, vector<4x512xf32>
    %c36_166 = arith.constant 36 : index
    %c0_167 = arith.constant 0 : index
    %364 = vector.load %arg9[%c36_166, %c0_167] : memref<100x512xf32, #tpu.memory_space<vmem>>, vector<4x512xf32>
    tpu.vector_store %arg9[%c36_166, %c0_167], %363 {strides = array<i32>} : memref<100x512xf32, #tpu.memory_space<vmem>>, vector<4x512xf32>,
    %c2_i32_168 = arith.constant 2 : i32
    %365 = tpu.dynamic_rotate %256 by %c2_i32_168 dim 1 : vector<4x512xf32>, i32 -> vector<4x512xf32>
    %c2_i32_169 = arith.constant 2 : i32
    %366 = vector.broadcast %c2_i32_169 : i32 to vector<1x512xi32>
    %367 = arith.cmpi sge, %1, %366 : vector<1x512xi32>
    %cst_170 = arith.constant 0.000000e+00 : f32
    %368 = vector.shape_cast %367 : vector<1x512xi1> to vector<1x512xi1>
    %369 = vector.broadcast %368 : vector<1x512xi1> to vector<4x512xi1>
    %370 = vector.broadcast %cst_170 : f32 to vector<4x512xf32>
    %371 = arith.select %369, %365, %370 : vector<4x512xi1>, vector<4x512xf32>
    %c40_171 = arith.constant 40 : index
    %c0_172 = arith.constant 0 : index
    %372 = vector.load %arg9[%c40_171, %c0_172] : memref<100x512xf32, #tpu.memory_space<vmem>>, vector<4x512xf32>
    tpu.vector_store %arg9[%c40_171, %c0_172], %371 {strides = array<i32>} : memref<100x512xf32, #tpu.memory_space<vmem>>, vector<4x512xf32>,
    %c1_i32_173 = arith.constant 1 : i32
    %373 = tpu.dynamic_rotate %256 by %c1_i32_173 dim 1 : vector<4x512xf32>, i32 -> vector<4x512xf32>
    %c1_i32_174 = arith.constant 1 : i32
    %374 = vector.broadcast %c1_i32_174 : i32 to vector<1x512xi32>
    %375 = arith.cmpi sge, %1, %374 : vector<1x512xi32>
    %cst_175 = arith.constant 0.000000e+00 : f32
    %376 = vector.shape_cast %375 : vector<1x512xi1> to vector<1x512xi1>
    %377 = vector.broadcast %376 : vector<1x512xi1> to vector<4x512xi1>
    %378 = vector.broadcast %cst_175 : f32 to vector<4x512xf32>
    %379 = arith.select %377, %373, %378 : vector<4x512xi1>, vector<4x512xf32>
    %c44_176 = arith.constant 44 : index
    %c0_177 = arith.constant 0 : index
    %380 = vector.load %arg9[%c44_176, %c0_177] : memref<100x512xf32, #tpu.memory_space<vmem>>, vector<4x512xf32>
    tpu.vector_store %arg9[%c44_176, %c0_177], %379 {strides = array<i32>} : memref<100x512xf32, #tpu.memory_space<vmem>>, vector<4x512xf32>,
    %c48_178 = arith.constant 48 : index
    %c0_179 = arith.constant 0 : index
    %381 = vector.load %arg9[%c48_178, %c0_179] : memref<100x512xf32, #tpu.memory_space<vmem>>, vector<4x512xf32>
    tpu.vector_store %arg9[%c48_178, %c0_179], %256 {strides = array<i32>} : memref<100x512xf32, #tpu.memory_space<vmem>>, vector<4x512xf32>,
    %c511_i32_180 = arith.constant 511 : i32
    %382 = tpu.dynamic_rotate %256 by %c511_i32_180 dim 1 : vector<4x512xf32>, i32 -> vector<4x512xf32>
    %c15_i32_181 = arith.constant 15 : i32
    %383 = vector.broadcast %c15_i32_181 : i32 to vector<1x512xi32>
    %384 = arith.cmpi slt, %1, %383 : vector<1x512xi32>
    %cst_182 = arith.constant 0.000000e+00 : f32
    %385 = vector.shape_cast %384 : vector<1x512xi1> to vector<1x512xi1>
    %386 = vector.broadcast %385 : vector<1x512xi1> to vector<4x512xi1>
    %387 = vector.broadcast %cst_182 : f32 to vector<4x512xf32>
    %388 = arith.select %386, %382, %387 : vector<4x512xi1>, vector<4x512xf32>
    %c52_183 = arith.constant 52 : index
    %c0_184 = arith.constant 0 : index
    %389 = vector.load %arg9[%c52_183, %c0_184] : memref<100x512xf32, #tpu.memory_space<vmem>>, vector<4x512xf32>
    tpu.vector_store %arg9[%c52_183, %c0_184], %388 {strides = array<i32>} : memref<100x512xf32, #tpu.memory_space<vmem>>, vector<4x512xf32>,
    %c510_i32_185 = arith.constant 510 : i32
    %390 = tpu.dynamic_rotate %256 by %c510_i32_185 dim 1 : vector<4x512xf32>, i32 -> vector<4x512xf32>
    %c14_i32_186 = arith.constant 14 : i32
    %391 = vector.broadcast %c14_i32_186 : i32 to vector<1x512xi32>
    %392 = arith.cmpi slt, %1, %391 : vector<1x512xi32>
    %cst_187 = arith.constant 0.000000e+00 : f32
    %393 = vector.shape_cast %392 : vector<1x512xi1> to vector<1x512xi1>
    %394 = vector.broadcast %393 : vector<1x512xi1> to vector<4x512xi1>
    %395 = vector.broadcast %cst_187 : f32 to vector<4x512xf32>
    %396 = arith.select %394, %390, %395 : vector<4x512xi1>, vector<4x512xf32>
    %c56_188 = arith.constant 56 : index
    %c0_189 = arith.constant 0 : index
    %397 = vector.load %arg9[%c56_188, %c0_189] : memref<100x512xf32, #tpu.memory_space<vmem>>, vector<4x512xf32>
    tpu.vector_store %arg9[%c56_188, %c0_189], %396 {strides = array<i32>} : memref<100x512xf32, #tpu.memory_space<vmem>>, vector<4x512xf32>,
    %c498_i32_190 = arith.constant 498 : i32
    %398 = tpu.dynamic_rotate %256 by %c498_i32_190 dim 1 : vector<4x512xf32>, i32 -> vector<4x512xf32>
    %c15_i32_191 = arith.constant 15 : i32
    %399 = vector.broadcast %c15_i32_191 : i32 to vector<1x512xi32>
    %400 = arith.cmpi slt, %0, %399 : vector<1x512xi32>
    %c2_i32_192 = arith.constant 2 : i32
    %401 = vector.broadcast %c2_i32_192 : i32 to vector<1x512xi32>
    %402 = arith.cmpi sge, %1, %401 : vector<1x512xi32>
    %403 = arith.andi %400, %402 : vector<1x512xi1>
    %cst_193 = arith.constant 0.000000e+00 : f32
    %404 = vector.shape_cast %403 : vector<1x512xi1> to vector<1x512xi1>
    %405 = vector.broadcast %404 : vector<1x512xi1> to vector<4x512xi1>
    %406 = vector.broadcast %cst_193 : f32 to vector<4x512xf32>
    %407 = arith.select %405, %398, %406 : vector<4x512xi1>, vector<4x512xf32>
    %c60_194 = arith.constant 60 : index
    %c0_195 = arith.constant 0 : index
    %408 = vector.load %arg9[%c60_194, %c0_195] : memref<100x512xf32, #tpu.memory_space<vmem>>, vector<4x512xf32>
    tpu.vector_store %arg9[%c60_194, %c0_195], %407 {strides = array<i32>} : memref<100x512xf32, #tpu.memory_space<vmem>>, vector<4x512xf32>,
    %c497_i32_196 = arith.constant 497 : i32
    %409 = tpu.dynamic_rotate %256 by %c497_i32_196 dim 1 : vector<4x512xf32>, i32 -> vector<4x512xf32>
    %c15_i32_197 = arith.constant 15 : i32
    %410 = vector.broadcast %c15_i32_197 : i32 to vector<1x512xi32>
    %411 = arith.cmpi slt, %0, %410 : vector<1x512xi32>
    %c1_i32_198 = arith.constant 1 : i32
    %412 = vector.broadcast %c1_i32_198 : i32 to vector<1x512xi32>
    %413 = arith.cmpi sge, %1, %412 : vector<1x512xi32>
    %414 = arith.andi %411, %413 : vector<1x512xi1>
    %cst_199 = arith.constant 0.000000e+00 : f32
    %415 = vector.shape_cast %414 : vector<1x512xi1> to vector<1x512xi1>
    %416 = vector.broadcast %415 : vector<1x512xi1> to vector<4x512xi1>
    %417 = vector.broadcast %cst_199 : f32 to vector<4x512xf32>
    %418 = arith.select %416, %409, %417 : vector<4x512xi1>, vector<4x512xf32>
    %c64_200 = arith.constant 64 : index
    %c0_201 = arith.constant 0 : index
    %419 = vector.load %arg9[%c64_200, %c0_201] : memref<100x512xf32, #tpu.memory_space<vmem>>, vector<4x512xf32>
    tpu.vector_store %arg9[%c64_200, %c0_201], %418 {strides = array<i32>} : memref<100x512xf32, #tpu.memory_space<vmem>>, vector<4x512xf32>,
    %c496_i32_202 = arith.constant 496 : i32
    %420 = tpu.dynamic_rotate %256 by %c496_i32_202 dim 1 : vector<4x512xf32>, i32 -> vector<4x512xf32>
    %c15_i32_203 = arith.constant 15 : i32
    %421 = vector.broadcast %c15_i32_203 : i32 to vector<1x512xi32>
    %422 = arith.cmpi slt, %0, %421 : vector<1x512xi32>
    %cst_204 = arith.constant 0.000000e+00 : f32
    %423 = vector.shape_cast %422 : vector<1x512xi1> to vector<1x512xi1>
    %424 = vector.broadcast %423 : vector<1x512xi1> to vector<4x512xi1>
    %425 = vector.broadcast %cst_204 : f32 to vector<4x512xf32>
    %426 = arith.select %424, %420, %425 : vector<4x512xi1>, vector<4x512xf32>
    %c68_205 = arith.constant 68 : index
    %c0_206 = arith.constant 0 : index
    %427 = vector.load %arg9[%c68_205, %c0_206] : memref<100x512xf32, #tpu.memory_space<vmem>>, vector<4x512xf32>
    tpu.vector_store %arg9[%c68_205, %c0_206], %426 {strides = array<i32>} : memref<100x512xf32, #tpu.memory_space<vmem>>, vector<4x512xf32>,
    %c495_i32_207 = arith.constant 495 : i32
    %428 = tpu.dynamic_rotate %256 by %c495_i32_207 dim 1 : vector<4x512xf32>, i32 -> vector<4x512xf32>
    %c15_i32_208 = arith.constant 15 : i32
    %429 = vector.broadcast %c15_i32_208 : i32 to vector<1x512xi32>
    %430 = arith.cmpi slt, %0, %429 : vector<1x512xi32>
    %c15_i32_209 = arith.constant 15 : i32
    %431 = vector.broadcast %c15_i32_209 : i32 to vector<1x512xi32>
    %432 = arith.cmpi slt, %1, %431 : vector<1x512xi32>
    %433 = arith.andi %430, %432 : vector<1x512xi1>
    %cst_210 = arith.constant 0.000000e+00 : f32
    %434 = vector.shape_cast %433 : vector<1x512xi1> to vector<1x512xi1>
    %435 = vector.broadcast %434 : vector<1x512xi1> to vector<4x512xi1>
    %436 = vector.broadcast %cst_210 : f32 to vector<4x512xf32>
    %437 = arith.select %435, %428, %436 : vector<4x512xi1>, vector<4x512xf32>
    %c72_211 = arith.constant 72 : index
    %c0_212 = arith.constant 0 : index
    %438 = vector.load %arg9[%c72_211, %c0_212] : memref<100x512xf32, #tpu.memory_space<vmem>>, vector<4x512xf32>
    tpu.vector_store %arg9[%c72_211, %c0_212], %437 {strides = array<i32>} : memref<100x512xf32, #tpu.memory_space<vmem>>, vector<4x512xf32>,
    %c494_i32_213 = arith.constant 494 : i32
    %439 = tpu.dynamic_rotate %256 by %c494_i32_213 dim 1 : vector<4x512xf32>, i32 -> vector<4x512xf32>
    %c15_i32_214 = arith.constant 15 : i32
    %440 = vector.broadcast %c15_i32_214 : i32 to vector<1x512xi32>
    %441 = arith.cmpi slt, %0, %440 : vector<1x512xi32>
    %c14_i32_215 = arith.constant 14 : i32
    %442 = vector.broadcast %c14_i32_215 : i32 to vector<1x512xi32>
    %443 = arith.cmpi slt, %1, %442 : vector<1x512xi32>
    %444 = arith.andi %441, %443 : vector<1x512xi1>
    %cst_216 = arith.constant 0.000000e+00 : f32
    %445 = vector.shape_cast %444 : vector<1x512xi1> to vector<1x512xi1>
    %446 = vector.broadcast %445 : vector<1x512xi1> to vector<4x512xi1>
    %447 = vector.broadcast %cst_216 : f32 to vector<4x512xf32>
    %448 = arith.select %446, %439, %447 : vector<4x512xi1>, vector<4x512xf32>
    %c76_217 = arith.constant 76 : index
    %c0_218 = arith.constant 0 : index
    %449 = vector.load %arg9[%c76_217, %c0_218] : memref<100x512xf32, #tpu.memory_space<vmem>>, vector<4x512xf32>
    tpu.vector_store %arg9[%c76_217, %c0_218], %448 {strides = array<i32>} : memref<100x512xf32, #tpu.memory_space<vmem>>, vector<4x512xf32>,
    %c482_i32_219 = arith.constant 482 : i32
    %450 = tpu.dynamic_rotate %256 by %c482_i32_219 dim 1 : vector<4x512xf32>, i32 -> vector<4x512xf32>
    %c14_i32_220 = arith.constant 14 : i32
    %451 = vector.broadcast %c14_i32_220 : i32 to vector<1x512xi32>
    %452 = arith.cmpi slt, %0, %451 : vector<1x512xi32>
    %c2_i32_221 = arith.constant 2 : i32
    %453 = vector.broadcast %c2_i32_221 : i32 to vector<1x512xi32>
    %454 = arith.cmpi sge, %1, %453 : vector<1x512xi32>
    %455 = arith.andi %452, %454 : vector<1x512xi1>
    %cst_222 = arith.constant 0.000000e+00 : f32
    %456 = vector.shape_cast %455 : vector<1x512xi1> to vector<1x512xi1>
    %457 = vector.broadcast %456 : vector<1x512xi1> to vector<4x512xi1>
    %458 = vector.broadcast %cst_222 : f32 to vector<4x512xf32>
    %459 = arith.select %457, %450, %458 : vector<4x512xi1>, vector<4x512xf32>
    %c80_223 = arith.constant 80 : index
    %c0_224 = arith.constant 0 : index
    %460 = vector.load %arg9[%c80_223, %c0_224] : memref<100x512xf32, #tpu.memory_space<vmem>>, vector<4x512xf32>
    tpu.vector_store %arg9[%c80_223, %c0_224], %459 {strides = array<i32>} : memref<100x512xf32, #tpu.memory_space<vmem>>, vector<4x512xf32>,
    %c481_i32_225 = arith.constant 481 : i32
    %461 = tpu.dynamic_rotate %256 by %c481_i32_225 dim 1 : vector<4x512xf32>, i32 -> vector<4x512xf32>
    %c14_i32_226 = arith.constant 14 : i32
    %462 = vector.broadcast %c14_i32_226 : i32 to vector<1x512xi32>
    %463 = arith.cmpi slt, %0, %462 : vector<1x512xi32>
    %c1_i32_227 = arith.constant 1 : i32
    %464 = vector.broadcast %c1_i32_227 : i32 to vector<1x512xi32>
    %465 = arith.cmpi sge, %1, %464 : vector<1x512xi32>
    %466 = arith.andi %463, %465 : vector<1x512xi1>
    %cst_228 = arith.constant 0.000000e+00 : f32
    %467 = vector.shape_cast %466 : vector<1x512xi1> to vector<1x512xi1>
    %468 = vector.broadcast %467 : vector<1x512xi1> to vector<4x512xi1>
    %469 = vector.broadcast %cst_228 : f32 to vector<4x512xf32>
    %470 = arith.select %468, %461, %469 : vector<4x512xi1>, vector<4x512xf32>
    %c84_229 = arith.constant 84 : index
    %c0_230 = arith.constant 0 : index
    %471 = vector.load %arg9[%c84_229, %c0_230] : memref<100x512xf32, #tpu.memory_space<vmem>>, vector<4x512xf32>
    tpu.vector_store %arg9[%c84_229, %c0_230], %470 {strides = array<i32>} : memref<100x512xf32, #tpu.memory_space<vmem>>, vector<4x512xf32>,
    %c480_i32_231 = arith.constant 480 : i32
    %472 = tpu.dynamic_rotate %256 by %c480_i32_231 dim 1 : vector<4x512xf32>, i32 -> vector<4x512xf32>
    %c14_i32_232 = arith.constant 14 : i32
    %473 = vector.broadcast %c14_i32_232 : i32 to vector<1x512xi32>
    %474 = arith.cmpi slt, %0, %473 : vector<1x512xi32>
    %cst_233 = arith.constant 0.000000e+00 : f32
    %475 = vector.shape_cast %474 : vector<1x512xi1> to vector<1x512xi1>
    %476 = vector.broadcast %475 : vector<1x512xi1> to vector<4x512xi1>
    %477 = vector.broadcast %cst_233 : f32 to vector<4x512xf32>
    %478 = arith.select %476, %472, %477 : vector<4x512xi1>, vector<4x512xf32>
    %c88_234 = arith.constant 88 : index
    %c0_235 = arith.constant 0 : index
    %479 = vector.load %arg9[%c88_234, %c0_235] : memref<100x512xf32, #tpu.memory_space<vmem>>, vector<4x512xf32>
    tpu.vector_store %arg9[%c88_234, %c0_235], %478 {strides = array<i32>} : memref<100x512xf32, #tpu.memory_space<vmem>>, vector<4x512xf32>,
    %c479_i32_236 = arith.constant 479 : i32
    %480 = tpu.dynamic_rotate %256 by %c479_i32_236 dim 1 : vector<4x512xf32>, i32 -> vector<4x512xf32>
    %c14_i32_237 = arith.constant 14 : i32
    %481 = vector.broadcast %c14_i32_237 : i32 to vector<1x512xi32>
    %482 = arith.cmpi slt, %0, %481 : vector<1x512xi32>
    %c15_i32_238 = arith.constant 15 : i32
    %483 = vector.broadcast %c15_i32_238 : i32 to vector<1x512xi32>
    %484 = arith.cmpi slt, %1, %483 : vector<1x512xi32>
    %485 = arith.andi %482, %484 : vector<1x512xi1>
    %cst_239 = arith.constant 0.000000e+00 : f32
    %486 = vector.shape_cast %485 : vector<1x512xi1> to vector<1x512xi1>
    %487 = vector.broadcast %486 : vector<1x512xi1> to vector<4x512xi1>
    %488 = vector.broadcast %cst_239 : f32 to vector<4x512xf32>
    %489 = arith.select %487, %480, %488 : vector<4x512xi1>, vector<4x512xf32>
    %c92_240 = arith.constant 92 : index
    %c0_241 = arith.constant 0 : index
    %490 = vector.load %arg9[%c92_240, %c0_241] : memref<100x512xf32, #tpu.memory_space<vmem>>, vector<4x512xf32>
    tpu.vector_store %arg9[%c92_240, %c0_241], %489 {strides = array<i32>} : memref<100x512xf32, #tpu.memory_space<vmem>>, vector<4x512xf32>,
    %c478_i32_242 = arith.constant 478 : i32
    %491 = tpu.dynamic_rotate %256 by %c478_i32_242 dim 1 : vector<4x512xf32>, i32 -> vector<4x512xf32>
    %c14_i32_243 = arith.constant 14 : i32
    %492 = vector.broadcast %c14_i32_243 : i32 to vector<1x512xi32>
    %493 = arith.cmpi slt, %0, %492 : vector<1x512xi32>
    %c14_i32_244 = arith.constant 14 : i32
    %494 = vector.broadcast %c14_i32_244 : i32 to vector<1x512xi32>
    %495 = arith.cmpi slt, %1, %494 : vector<1x512xi32>
    %496 = arith.andi %493, %495 : vector<1x512xi1>
    %cst_245 = arith.constant 0.000000e+00 : f32
    %497 = vector.shape_cast %496 : vector<1x512xi1> to vector<1x512xi1>
    %498 = vector.broadcast %497 : vector<1x512xi1> to vector<4x512xi1>
    %499 = vector.broadcast %cst_245 : f32 to vector<4x512xf32>
    %500 = arith.select %498, %491, %499 : vector<4x512xi1>, vector<4x512xf32>
    %c96_246 = arith.constant 96 : index
    %c0_247 = arith.constant 0 : index
    %501 = vector.load %arg9[%c96_246, %c0_247] : memref<100x512xf32, #tpu.memory_space<vmem>>, vector<4x512xf32>
    tpu.vector_store %arg9[%c96_246, %c0_247], %500 {strides = array<i32>} : memref<100x512xf32, #tpu.memory_space<vmem>>, vector<4x512xf32>,
    %c0_248 = arith.constant 0 : index
    %c0_249 = arith.constant 0 : index
    %502 = vector.load %arg9[%c0_248, %c0_249] : memref<100x512xf32, #tpu.memory_space<vmem>>, vector<100x512xf32>
    %cst_250 = arith.constant dense<0.000000e+00> : vector<4x512xf32>
    %503 = tpu.matmul %258, %502, %cst_250 {dimension_numbers = #tpu.dot_dimension_numbers<[1], [0], [0], [1], [0, 0, 1, 1], [], []>} : vector<4x100xf32>, vector<100x512xf32>, vector<4x512xf32> -> vector<4x512xf32>
    %504 = vector.broadcast %260 : vector<4x1xf32> to vector<4x512xf32>
    %505 = arith.addf %503, %504 : vector<4x512xf32>
    %506 = arith.addf %505, %2 : vector<4x512xf32>
    %c2 = arith.constant 2 : index
    %c0_251 = arith.constant 0 : index
    %c0_252 = arith.constant 0 : index
    %507 = vector.load %arg4[%c2, %c0_251, %c0_252] : memref<6x4x100xf32, #tpu.memory_space<vmem>>, vector<1x4x100xf32>
    %508 = vector.shape_cast %507 : vector<1x4x100xf32> to vector<4x100xf32>
    %c2_253 = arith.constant 2 : index
    %c0_254 = arith.constant 0 : index
    %c0_255 = arith.constant 0 : index
    %509 = vector.load %arg5[%c2_253, %c0_254, %c0_255] : memref<6x4x1xf32, #tpu.memory_space<vmem>>, vector<1x4x1xf32>
    %510 = vector.shape_cast %509 : vector<1x4x1xf32> to vector<4x1xf32>
    %c34_i32_256 = arith.constant 34 : i32
    %511 = tpu.dynamic_rotate %506 by %c34_i32_256 dim 1 : vector<4x512xf32>, i32 -> vector<4x512xf32>
    %c2_i32_257 = arith.constant 2 : i32
    %512 = vector.broadcast %c2_i32_257 : i32 to vector<1x512xi32>
    %513 = arith.cmpi sge, %0, %512 : vector<1x512xi32>
    %c2_i32_258 = arith.constant 2 : i32
    %514 = vector.broadcast %c2_i32_258 : i32 to vector<1x512xi32>
    %515 = arith.cmpi sge, %1, %514 : vector<1x512xi32>
    %516 = arith.andi %513, %515 : vector<1x512xi1>
    %cst_259 = arith.constant 0.000000e+00 : f32
    %517 = vector.shape_cast %516 : vector<1x512xi1> to vector<1x512xi1>
    %518 = vector.broadcast %517 : vector<1x512xi1> to vector<4x512xi1>
    %519 = vector.broadcast %cst_259 : f32 to vector<4x512xf32>
    %520 = arith.select %518, %511, %519 : vector<4x512xi1>, vector<4x512xf32>
    %c0_260 = arith.constant 0 : index
    %c0_261 = arith.constant 0 : index
    %521 = vector.load %arg9[%c0_260, %c0_261] : memref<100x512xf32, #tpu.memory_space<vmem>>, vector<4x512xf32>
    tpu.vector_store %arg9[%c0_260, %c0_261], %520 {strides = array<i32>} : memref<100x512xf32, #tpu.memory_space<vmem>>, vector<4x512xf32>,
    %c33_i32_262 = arith.constant 33 : i32
    %522 = tpu.dynamic_rotate %506 by %c33_i32_262 dim 1 : vector<4x512xf32>, i32 -> vector<4x512xf32>
    %c2_i32_263 = arith.constant 2 : i32
    %523 = vector.broadcast %c2_i32_263 : i32 to vector<1x512xi32>
    %524 = arith.cmpi sge, %0, %523 : vector<1x512xi32>
    %c1_i32_264 = arith.constant 1 : i32
    %525 = vector.broadcast %c1_i32_264 : i32 to vector<1x512xi32>
    %526 = arith.cmpi sge, %1, %525 : vector<1x512xi32>
    %527 = arith.andi %524, %526 : vector<1x512xi1>
    %cst_265 = arith.constant 0.000000e+00 : f32
    %528 = vector.shape_cast %527 : vector<1x512xi1> to vector<1x512xi1>
    %529 = vector.broadcast %528 : vector<1x512xi1> to vector<4x512xi1>
    %530 = vector.broadcast %cst_265 : f32 to vector<4x512xf32>
    %531 = arith.select %529, %522, %530 : vector<4x512xi1>, vector<4x512xf32>
    %c4_266 = arith.constant 4 : index
    %c0_267 = arith.constant 0 : index
    %532 = vector.load %arg9[%c4_266, %c0_267] : memref<100x512xf32, #tpu.memory_space<vmem>>, vector<4x512xf32>
    tpu.vector_store %arg9[%c4_266, %c0_267], %531 {strides = array<i32>} : memref<100x512xf32, #tpu.memory_space<vmem>>, vector<4x512xf32>,
    %c32_i32_268 = arith.constant 32 : i32
    %533 = tpu.dynamic_rotate %506 by %c32_i32_268 dim 1 : vector<4x512xf32>, i32 -> vector<4x512xf32>
    %c2_i32_269 = arith.constant 2 : i32
    %534 = vector.broadcast %c2_i32_269 : i32 to vector<1x512xi32>
    %535 = arith.cmpi sge, %0, %534 : vector<1x512xi32>
    %cst_270 = arith.constant 0.000000e+00 : f32
    %536 = vector.shape_cast %535 : vector<1x512xi1> to vector<1x512xi1>
    %537 = vector.broadcast %536 : vector<1x512xi1> to vector<4x512xi1>
    %538 = vector.broadcast %cst_270 : f32 to vector<4x512xf32>
    %539 = arith.select %537, %533, %538 : vector<4x512xi1>, vector<4x512xf32>
    %c8_271 = arith.constant 8 : index
    %c0_272 = arith.constant 0 : index
    %540 = vector.load %arg9[%c8_271, %c0_272] : memref<100x512xf32, #tpu.memory_space<vmem>>, vector<4x512xf32>
    tpu.vector_store %arg9[%c8_271, %c0_272], %539 {strides = array<i32>} : memref<100x512xf32, #tpu.memory_space<vmem>>, vector<4x512xf32>,
    %c31_i32_273 = arith.constant 31 : i32
    %541 = tpu.dynamic_rotate %506 by %c31_i32_273 dim 1 : vector<4x512xf32>, i32 -> vector<4x512xf32>
    %c2_i32_274 = arith.constant 2 : i32
    %542 = vector.broadcast %c2_i32_274 : i32 to vector<1x512xi32>
    %543 = arith.cmpi sge, %0, %542 : vector<1x512xi32>
    %c15_i32_275 = arith.constant 15 : i32
    %544 = vector.broadcast %c15_i32_275 : i32 to vector<1x512xi32>
    %545 = arith.cmpi slt, %1, %544 : vector<1x512xi32>
    %546 = arith.andi %543, %545 : vector<1x512xi1>
    %cst_276 = arith.constant 0.000000e+00 : f32
    %547 = vector.shape_cast %546 : vector<1x512xi1> to vector<1x512xi1>
    %548 = vector.broadcast %547 : vector<1x512xi1> to vector<4x512xi1>
    %549 = vector.broadcast %cst_276 : f32 to vector<4x512xf32>
    %550 = arith.select %548, %541, %549 : vector<4x512xi1>, vector<4x512xf32>
    %c12_277 = arith.constant 12 : index
    %c0_278 = arith.constant 0 : index
    %551 = vector.load %arg9[%c12_277, %c0_278] : memref<100x512xf32, #tpu.memory_space<vmem>>, vector<4x512xf32>
    tpu.vector_store %arg9[%c12_277, %c0_278], %550 {strides = array<i32>} : memref<100x512xf32, #tpu.memory_space<vmem>>, vector<4x512xf32>,
    %c30_i32_279 = arith.constant 30 : i32
    %552 = tpu.dynamic_rotate %506 by %c30_i32_279 dim 1 : vector<4x512xf32>, i32 -> vector<4x512xf32>
    %c2_i32_280 = arith.constant 2 : i32
    %553 = vector.broadcast %c2_i32_280 : i32 to vector<1x512xi32>
    %554 = arith.cmpi sge, %0, %553 : vector<1x512xi32>
    %c14_i32_281 = arith.constant 14 : i32
    %555 = vector.broadcast %c14_i32_281 : i32 to vector<1x512xi32>
    %556 = arith.cmpi slt, %1, %555 : vector<1x512xi32>
    %557 = arith.andi %554, %556 : vector<1x512xi1>
    %cst_282 = arith.constant 0.000000e+00 : f32
    %558 = vector.shape_cast %557 : vector<1x512xi1> to vector<1x512xi1>
    %559 = vector.broadcast %558 : vector<1x512xi1> to vector<4x512xi1>
    %560 = vector.broadcast %cst_282 : f32 to vector<4x512xf32>
    %561 = arith.select %559, %552, %560 : vector<4x512xi1>, vector<4x512xf32>
    %c16_283 = arith.constant 16 : index
    %c0_284 = arith.constant 0 : index
    %562 = vector.load %arg9[%c16_283, %c0_284] : memref<100x512xf32, #tpu.memory_space<vmem>>, vector<4x512xf32>
    tpu.vector_store %arg9[%c16_283, %c0_284], %561 {strides = array<i32>} : memref<100x512xf32, #tpu.memory_space<vmem>>, vector<4x512xf32>,
    %c18_i32_285 = arith.constant 18 : i32
    %563 = tpu.dynamic_rotate %506 by %c18_i32_285 dim 1 : vector<4x512xf32>, i32 -> vector<4x512xf32>
    %c1_i32_286 = arith.constant 1 : i32
    %564 = vector.broadcast %c1_i32_286 : i32 to vector<1x512xi32>
    %565 = arith.cmpi sge, %0, %564 : vector<1x512xi32>
    %c2_i32_287 = arith.constant 2 : i32
    %566 = vector.broadcast %c2_i32_287 : i32 to vector<1x512xi32>
    %567 = arith.cmpi sge, %1, %566 : vector<1x512xi32>
    %568 = arith.andi %565, %567 : vector<1x512xi1>
    %cst_288 = arith.constant 0.000000e+00 : f32
    %569 = vector.shape_cast %568 : vector<1x512xi1> to vector<1x512xi1>
    %570 = vector.broadcast %569 : vector<1x512xi1> to vector<4x512xi1>
    %571 = vector.broadcast %cst_288 : f32 to vector<4x512xf32>
    %572 = arith.select %570, %563, %571 : vector<4x512xi1>, vector<4x512xf32>
    %c20_289 = arith.constant 20 : index
    %c0_290 = arith.constant 0 : index
    %573 = vector.load %arg9[%c20_289, %c0_290] : memref<100x512xf32, #tpu.memory_space<vmem>>, vector<4x512xf32>
    tpu.vector_store %arg9[%c20_289, %c0_290], %572 {strides = array<i32>} : memref<100x512xf32, #tpu.memory_space<vmem>>, vector<4x512xf32>,
    %c17_i32_291 = arith.constant 17 : i32
    %574 = tpu.dynamic_rotate %506 by %c17_i32_291 dim 1 : vector<4x512xf32>, i32 -> vector<4x512xf32>
    %c1_i32_292 = arith.constant 1 : i32
    %575 = vector.broadcast %c1_i32_292 : i32 to vector<1x512xi32>
    %576 = arith.cmpi sge, %0, %575 : vector<1x512xi32>
    %c1_i32_293 = arith.constant 1 : i32
    %577 = vector.broadcast %c1_i32_293 : i32 to vector<1x512xi32>
    %578 = arith.cmpi sge, %1, %577 : vector<1x512xi32>
    %579 = arith.andi %576, %578 : vector<1x512xi1>
    %cst_294 = arith.constant 0.000000e+00 : f32
    %580 = vector.shape_cast %579 : vector<1x512xi1> to vector<1x512xi1>
    %581 = vector.broadcast %580 : vector<1x512xi1> to vector<4x512xi1>
    %582 = vector.broadcast %cst_294 : f32 to vector<4x512xf32>
    %583 = arith.select %581, %574, %582 : vector<4x512xi1>, vector<4x512xf32>
    %c24_295 = arith.constant 24 : index
    %c0_296 = arith.constant 0 : index
    %584 = vector.load %arg9[%c24_295, %c0_296] : memref<100x512xf32, #tpu.memory_space<vmem>>, vector<4x512xf32>
    tpu.vector_store %arg9[%c24_295, %c0_296], %583 {strides = array<i32>} : memref<100x512xf32, #tpu.memory_space<vmem>>, vector<4x512xf32>,
    %c16_i32_297 = arith.constant 16 : i32
    %585 = tpu.dynamic_rotate %506 by %c16_i32_297 dim 1 : vector<4x512xf32>, i32 -> vector<4x512xf32>
    %c1_i32_298 = arith.constant 1 : i32
    %586 = vector.broadcast %c1_i32_298 : i32 to vector<1x512xi32>
    %587 = arith.cmpi sge, %0, %586 : vector<1x512xi32>
    %cst_299 = arith.constant 0.000000e+00 : f32
    %588 = vector.shape_cast %587 : vector<1x512xi1> to vector<1x512xi1>
    %589 = vector.broadcast %588 : vector<1x512xi1> to vector<4x512xi1>
    %590 = vector.broadcast %cst_299 : f32 to vector<4x512xf32>
    %591 = arith.select %589, %585, %590 : vector<4x512xi1>, vector<4x512xf32>
    %c28_300 = arith.constant 28 : index
    %c0_301 = arith.constant 0 : index
    %592 = vector.load %arg9[%c28_300, %c0_301] : memref<100x512xf32, #tpu.memory_space<vmem>>, vector<4x512xf32>
    tpu.vector_store %arg9[%c28_300, %c0_301], %591 {strides = array<i32>} : memref<100x512xf32, #tpu.memory_space<vmem>>, vector<4x512xf32>,
    %c15_i32_302 = arith.constant 15 : i32
    %593 = tpu.dynamic_rotate %506 by %c15_i32_302 dim 1 : vector<4x512xf32>, i32 -> vector<4x512xf32>
    %c1_i32_303 = arith.constant 1 : i32
    %594 = vector.broadcast %c1_i32_303 : i32 to vector<1x512xi32>
    %595 = arith.cmpi sge, %0, %594 : vector<1x512xi32>
    %c15_i32_304 = arith.constant 15 : i32
    %596 = vector.broadcast %c15_i32_304 : i32 to vector<1x512xi32>
    %597 = arith.cmpi slt, %1, %596 : vector<1x512xi32>
    %598 = arith.andi %595, %597 : vector<1x512xi1>
    %cst_305 = arith.constant 0.000000e+00 : f32
    %599 = vector.shape_cast %598 : vector<1x512xi1> to vector<1x512xi1>
    %600 = vector.broadcast %599 : vector<1x512xi1> to vector<4x512xi1>
    %601 = vector.broadcast %cst_305 : f32 to vector<4x512xf32>
    %602 = arith.select %600, %593, %601 : vector<4x512xi1>, vector<4x512xf32>
    %c32_306 = arith.constant 32 : index
    %c0_307 = arith.constant 0 : index
    %603 = vector.load %arg9[%c32_306, %c0_307] : memref<100x512xf32, #tpu.memory_space<vmem>>, vector<4x512xf32>
    tpu.vector_store %arg9[%c32_306, %c0_307], %602 {strides = array<i32>} : memref<100x512xf32, #tpu.memory_space<vmem>>, vector<4x512xf32>,
    %c14_i32_308 = arith.constant 14 : i32
    %604 = tpu.dynamic_rotate %506 by %c14_i32_308 dim 1 : vector<4x512xf32>, i32 -> vector<4x512xf32>
    %c1_i32_309 = arith.constant 1 : i32
    %605 = vector.broadcast %c1_i32_309 : i32 to vector<1x512xi32>
    %606 = arith.cmpi sge, %0, %605 : vector<1x512xi32>
    %c14_i32_310 = arith.constant 14 : i32
    %607 = vector.broadcast %c14_i32_310 : i32 to vector<1x512xi32>
    %608 = arith.cmpi slt, %1, %607 : vector<1x512xi32>
    %609 = arith.andi %606, %608 : vector<1x512xi1>
    %cst_311 = arith.constant 0.000000e+00 : f32
    %610 = vector.shape_cast %609 : vector<1x512xi1> to vector<1x512xi1>
    %611 = vector.broadcast %610 : vector<1x512xi1> to vector<4x512xi1>
    %612 = vector.broadcast %cst_311 : f32 to vector<4x512xf32>
    %613 = arith.select %611, %604, %612 : vector<4x512xi1>, vector<4x512xf32>
    %c36_312 = arith.constant 36 : index
    %c0_313 = arith.constant 0 : index
    %614 = vector.load %arg9[%c36_312, %c0_313] : memref<100x512xf32, #tpu.memory_space<vmem>>, vector<4x512xf32>
    tpu.vector_store %arg9[%c36_312, %c0_313], %613 {strides = array<i32>} : memref<100x512xf32, #tpu.memory_space<vmem>>, vector<4x512xf32>,
    %c2_i32_314 = arith.constant 2 : i32
    %615 = tpu.dynamic_rotate %506 by %c2_i32_314 dim 1 : vector<4x512xf32>, i32 -> vector<4x512xf32>
    %c2_i32_315 = arith.constant 2 : i32
    %616 = vector.broadcast %c2_i32_315 : i32 to vector<1x512xi32>
    %617 = arith.cmpi sge, %1, %616 : vector<1x512xi32>
    %cst_316 = arith.constant 0.000000e+00 : f32
    %618 = vector.shape_cast %617 : vector<1x512xi1> to vector<1x512xi1>
    %619 = vector.broadcast %618 : vector<1x512xi1> to vector<4x512xi1>
    %620 = vector.broadcast %cst_316 : f32 to vector<4x512xf32>
    %621 = arith.select %619, %615, %620 : vector<4x512xi1>, vector<4x512xf32>
    %c40_317 = arith.constant 40 : index
    %c0_318 = arith.constant 0 : index
    %622 = vector.load %arg9[%c40_317, %c0_318] : memref<100x512xf32, #tpu.memory_space<vmem>>, vector<4x512xf32>
    tpu.vector_store %arg9[%c40_317, %c0_318], %621 {strides = array<i32>} : memref<100x512xf32, #tpu.memory_space<vmem>>, vector<4x512xf32>,
    %c1_i32_319 = arith.constant 1 : i32
    %623 = tpu.dynamic_rotate %506 by %c1_i32_319 dim 1 : vector<4x512xf32>, i32 -> vector<4x512xf32>
    %c1_i32_320 = arith.constant 1 : i32
    %624 = vector.broadcast %c1_i32_320 : i32 to vector<1x512xi32>
    %625 = arith.cmpi sge, %1, %624 : vector<1x512xi32>
    %cst_321 = arith.constant 0.000000e+00 : f32
    %626 = vector.shape_cast %625 : vector<1x512xi1> to vector<1x512xi1>
    %627 = vector.broadcast %626 : vector<1x512xi1> to vector<4x512xi1>
    %628 = vector.broadcast %cst_321 : f32 to vector<4x512xf32>
    %629 = arith.select %627, %623, %628 : vector<4x512xi1>, vector<4x512xf32>
    %c44_322 = arith.constant 44 : index
    %c0_323 = arith.constant 0 : index
    %630 = vector.load %arg9[%c44_322, %c0_323] : memref<100x512xf32, #tpu.memory_space<vmem>>, vector<4x512xf32>
    tpu.vector_store %arg9[%c44_322, %c0_323], %629 {strides = array<i32>} : memref<100x512xf32, #tpu.memory_space<vmem>>, vector<4x512xf32>,
    %c48_324 = arith.constant 48 : index
    %c0_325 = arith.constant 0 : index
    %631 = vector.load %arg9[%c48_324, %c0_325] : memref<100x512xf32, #tpu.memory_space<vmem>>, vector<4x512xf32>
    tpu.vector_store %arg9[%c48_324, %c0_325], %506 {strides = array<i32>} : memref<100x512xf32, #tpu.memory_space<vmem>>, vector<4x512xf32>,
    %c511_i32_326 = arith.constant 511 : i32
    %632 = tpu.dynamic_rotate %506 by %c511_i32_326 dim 1 : vector<4x512xf32>, i32 -> vector<4x512xf32>
    %c15_i32_327 = arith.constant 15 : i32
    %633 = vector.broadcast %c15_i32_327 : i32 to vector<1x512xi32>
    %634 = arith.cmpi slt, %1, %633 : vector<1x512xi32>
    %cst_328 = arith.constant 0.000000e+00 : f32
    %635 = vector.shape_cast %634 : vector<1x512xi1> to vector<1x512xi1>
    %636 = vector.broadcast %635 : vector<1x512xi1> to vector<4x512xi1>
    %637 = vector.broadcast %cst_328 : f32 to vector<4x512xf32>
    %638 = arith.select %636, %632, %637 : vector<4x512xi1>, vector<4x512xf32>
    %c52_329 = arith.constant 52 : index
    %c0_330 = arith.constant 0 : index
    %639 = vector.load %arg9[%c52_329, %c0_330] : memref<100x512xf32, #tpu.memory_space<vmem>>, vector<4x512xf32>
    tpu.vector_store %arg9[%c52_329, %c0_330], %638 {strides = array<i32>} : memref<100x512xf32, #tpu.memory_space<vmem>>, vector<4x512xf32>,
    %c510_i32_331 = arith.constant 510 : i32
    %640 = tpu.dynamic_rotate %506 by %c510_i32_331 dim 1 : vector<4x512xf32>, i32 -> vector<4x512xf32>
    %c14_i32_332 = arith.constant 14 : i32
    %641 = vector.broadcast %c14_i32_332 : i32 to vector<1x512xi32>
    %642 = arith.cmpi slt, %1, %641 : vector<1x512xi32>
    %cst_333 = arith.constant 0.000000e+00 : f32
    %643 = vector.shape_cast %642 : vector<1x512xi1> to vector<1x512xi1>
    %644 = vector.broadcast %643 : vector<1x512xi1> to vector<4x512xi1>
    %645 = vector.broadcast %cst_333 : f32 to vector<4x512xf32>
    %646 = arith.select %644, %640, %645 : vector<4x512xi1>, vector<4x512xf32>
    %c56_334 = arith.constant 56 : index
    %c0_335 = arith.constant 0 : index
    %647 = vector.load %arg9[%c56_334, %c0_335] : memref<100x512xf32, #tpu.memory_space<vmem>>, vector<4x512xf32>
    tpu.vector_store %arg9[%c56_334, %c0_335], %646 {strides = array<i32>} : memref<100x512xf32, #tpu.memory_space<vmem>>, vector<4x512xf32>,
    %c498_i32_336 = arith.constant 498 : i32
    %648 = tpu.dynamic_rotate %506 by %c498_i32_336 dim 1 : vector<4x512xf32>, i32 -> vector<4x512xf32>
    %c15_i32_337 = arith.constant 15 : i32
    %649 = vector.broadcast %c15_i32_337 : i32 to vector<1x512xi32>
    %650 = arith.cmpi slt, %0, %649 : vector<1x512xi32>
    %c2_i32_338 = arith.constant 2 : i32
    %651 = vector.broadcast %c2_i32_338 : i32 to vector<1x512xi32>
    %652 = arith.cmpi sge, %1, %651 : vector<1x512xi32>
    %653 = arith.andi %650, %652 : vector<1x512xi1>
    %cst_339 = arith.constant 0.000000e+00 : f32
    %654 = vector.shape_cast %653 : vector<1x512xi1> to vector<1x512xi1>
    %655 = vector.broadcast %654 : vector<1x512xi1> to vector<4x512xi1>
    %656 = vector.broadcast %cst_339 : f32 to vector<4x512xf32>
    %657 = arith.select %655, %648, %656 : vector<4x512xi1>, vector<4x512xf32>
    %c60_340 = arith.constant 60 : index
    %c0_341 = arith.constant 0 : index
    %658 = vector.load %arg9[%c60_340, %c0_341] : memref<100x512xf32, #tpu.memory_space<vmem>>, vector<4x512xf32>
    tpu.vector_store %arg9[%c60_340, %c0_341], %657 {strides = array<i32>} : memref<100x512xf32, #tpu.memory_space<vmem>>, vector<4x512xf32>,
    %c497_i32_342 = arith.constant 497 : i32
    %659 = tpu.dynamic_rotate %506 by %c497_i32_342 dim 1 : vector<4x512xf32>, i32 -> vector<4x512xf32>
    %c15_i32_343 = arith.constant 15 : i32
    %660 = vector.broadcast %c15_i32_343 : i32 to vector<1x512xi32>
    %661 = arith.cmpi slt, %0, %660 : vector<1x512xi32>
    %c1_i32_344 = arith.constant 1 : i32
    %662 = vector.broadcast %c1_i32_344 : i32 to vector<1x512xi32>
    %663 = arith.cmpi sge, %1, %662 : vector<1x512xi32>
    %664 = arith.andi %661, %663 : vector<1x512xi1>
    %cst_345 = arith.constant 0.000000e+00 : f32
    %665 = vector.shape_cast %664 : vector<1x512xi1> to vector<1x512xi1>
    %666 = vector.broadcast %665 : vector<1x512xi1> to vector<4x512xi1>
    %667 = vector.broadcast %cst_345 : f32 to vector<4x512xf32>
    %668 = arith.select %666, %659, %667 : vector<4x512xi1>, vector<4x512xf32>
    %c64_346 = arith.constant 64 : index
    %c0_347 = arith.constant 0 : index
    %669 = vector.load %arg9[%c64_346, %c0_347] : memref<100x512xf32, #tpu.memory_space<vmem>>, vector<4x512xf32>
    tpu.vector_store %arg9[%c64_346, %c0_347], %668 {strides = array<i32>} : memref<100x512xf32, #tpu.memory_space<vmem>>, vector<4x512xf32>,
    %c496_i32_348 = arith.constant 496 : i32
    %670 = tpu.dynamic_rotate %506 by %c496_i32_348 dim 1 : vector<4x512xf32>, i32 -> vector<4x512xf32>
    %c15_i32_349 = arith.constant 15 : i32
    %671 = vector.broadcast %c15_i32_349 : i32 to vector<1x512xi32>
    %672 = arith.cmpi slt, %0, %671 : vector<1x512xi32>
    %cst_350 = arith.constant 0.000000e+00 : f32
    %673 = vector.shape_cast %672 : vector<1x512xi1> to vector<1x512xi1>
    %674 = vector.broadcast %673 : vector<1x512xi1> to vector<4x512xi1>
    %675 = vector.broadcast %cst_350 : f32 to vector<4x512xf32>
    %676 = arith.select %674, %670, %675 : vector<4x512xi1>, vector<4x512xf32>
    %c68_351 = arith.constant 68 : index
    %c0_352 = arith.constant 0 : index
    %677 = vector.load %arg9[%c68_351, %c0_352] : memref<100x512xf32, #tpu.memory_space<vmem>>, vector<4x512xf32>
    tpu.vector_store %arg9[%c68_351, %c0_352], %676 {strides = array<i32>} : memref<100x512xf32, #tpu.memory_space<vmem>>, vector<4x512xf32>,
    %c495_i32_353 = arith.constant 495 : i32
    %678 = tpu.dynamic_rotate %506 by %c495_i32_353 dim 1 : vector<4x512xf32>, i32 -> vector<4x512xf32>
    %c15_i32_354 = arith.constant 15 : i32
    %679 = vector.broadcast %c15_i32_354 : i32 to vector<1x512xi32>
    %680 = arith.cmpi slt, %0, %679 : vector<1x512xi32>
    %c15_i32_355 = arith.constant 15 : i32
    %681 = vector.broadcast %c15_i32_355 : i32 to vector<1x512xi32>
    %682 = arith.cmpi slt, %1, %681 : vector<1x512xi32>
    %683 = arith.andi %680, %682 : vector<1x512xi1>
    %cst_356 = arith.constant 0.000000e+00 : f32
    %684 = vector.shape_cast %683 : vector<1x512xi1> to vector<1x512xi1>
    %685 = vector.broadcast %684 : vector<1x512xi1> to vector<4x512xi1>
    %686 = vector.broadcast %cst_356 : f32 to vector<4x512xf32>
    %687 = arith.select %685, %678, %686 : vector<4x512xi1>, vector<4x512xf32>
    %c72_357 = arith.constant 72 : index
    %c0_358 = arith.constant 0 : index
    %688 = vector.load %arg9[%c72_357, %c0_358] : memref<100x512xf32, #tpu.memory_space<vmem>>, vector<4x512xf32>
    tpu.vector_store %arg9[%c72_357, %c0_358], %687 {strides = array<i32>} : memref<100x512xf32, #tpu.memory_space<vmem>>, vector<4x512xf32>,
    %c494_i32_359 = arith.constant 494 : i32
    %689 = tpu.dynamic_rotate %506 by %c494_i32_359 dim 1 : vector<4x512xf32>, i32 -> vector<4x512xf32>
    %c15_i32_360 = arith.constant 15 : i32
    %690 = vector.broadcast %c15_i32_360 : i32 to vector<1x512xi32>
    %691 = arith.cmpi slt, %0, %690 : vector<1x512xi32>
    %c14_i32_361 = arith.constant 14 : i32
    %692 = vector.broadcast %c14_i32_361 : i32 to vector<1x512xi32>
    %693 = arith.cmpi slt, %1, %692 : vector<1x512xi32>
    %694 = arith.andi %691, %693 : vector<1x512xi1>
    %cst_362 = arith.constant 0.000000e+00 : f32
    %695 = vector.shape_cast %694 : vector<1x512xi1> to vector<1x512xi1>
    %696 = vector.broadcast %695 : vector<1x512xi1> to vector<4x512xi1>
    %697 = vector.broadcast %cst_362 : f32 to vector<4x512xf32>
    %698 = arith.select %696, %689, %697 : vector<4x512xi1>, vector<4x512xf32>
    %c76_363 = arith.constant 76 : index
    %c0_364 = arith.constant 0 : index
    %699 = vector.load %arg9[%c76_363, %c0_364] : memref<100x512xf32, #tpu.memory_space<vmem>>, vector<4x512xf32>
    tpu.vector_store %arg9[%c76_363, %c0_364], %698 {strides = array<i32>} : memref<100x512xf32, #tpu.memory_space<vmem>>, vector<4x512xf32>,
    %c482_i32_365 = arith.constant 482 : i32
    %700 = tpu.dynamic_rotate %506 by %c482_i32_365 dim 1 : vector<4x512xf32>, i32 -> vector<4x512xf32>
    %c14_i32_366 = arith.constant 14 : i32
    %701 = vector.broadcast %c14_i32_366 : i32 to vector<1x512xi32>
    %702 = arith.cmpi slt, %0, %701 : vector<1x512xi32>
    %c2_i32_367 = arith.constant 2 : i32
    %703 = vector.broadcast %c2_i32_367 : i32 to vector<1x512xi32>
    %704 = arith.cmpi sge, %1, %703 : vector<1x512xi32>
    %705 = arith.andi %702, %704 : vector<1x512xi1>
    %cst_368 = arith.constant 0.000000e+00 : f32
    %706 = vector.shape_cast %705 : vector<1x512xi1> to vector<1x512xi1>
    %707 = vector.broadcast %706 : vector<1x512xi1> to vector<4x512xi1>
    %708 = vector.broadcast %cst_368 : f32 to vector<4x512xf32>
    %709 = arith.select %707, %700, %708 : vector<4x512xi1>, vector<4x512xf32>
    %c80_369 = arith.constant 80 : index
    %c0_370 = arith.constant 0 : index
    %710 = vector.load %arg9[%c80_369, %c0_370] : memref<100x512xf32, #tpu.memory_space<vmem>>, vector<4x512xf32>
    tpu.vector_store %arg9[%c80_369, %c0_370], %709 {strides = array<i32>} : memref<100x512xf32, #tpu.memory_space<vmem>>, vector<4x512xf32>,
    %c481_i32_371 = arith.constant 481 : i32
    %711 = tpu.dynamic_rotate %506 by %c481_i32_371 dim 1 : vector<4x512xf32>, i32 -> vector<4x512xf32>
    %c14_i32_372 = arith.constant 14 : i32
    %712 = vector.broadcast %c14_i32_372 : i32 to vector<1x512xi32>
    %713 = arith.cmpi slt, %0, %712 : vector<1x512xi32>
    %c1_i32_373 = arith.constant 1 : i32
    %714 = vector.broadcast %c1_i32_373 : i32 to vector<1x512xi32>
    %715 = arith.cmpi sge, %1, %714 : vector<1x512xi32>
    %716 = arith.andi %713, %715 : vector<1x512xi1>
    %cst_374 = arith.constant 0.000000e+00 : f32
    %717 = vector.shape_cast %716 : vector<1x512xi1> to vector<1x512xi1>
    %718 = vector.broadcast %717 : vector<1x512xi1> to vector<4x512xi1>
    %719 = vector.broadcast %cst_374 : f32 to vector<4x512xf32>
    %720 = arith.select %718, %711, %719 : vector<4x512xi1>, vector<4x512xf32>
    %c84_375 = arith.constant 84 : index
    %c0_376 = arith.constant 0 : index
    %721 = vector.load %arg9[%c84_375, %c0_376] : memref<100x512xf32, #tpu.memory_space<vmem>>, vector<4x512xf32>
    tpu.vector_store %arg9[%c84_375, %c0_376], %720 {strides = array<i32>} : memref<100x512xf32, #tpu.memory_space<vmem>>, vector<4x512xf32>,
    %c480_i32_377 = arith.constant 480 : i32
    %722 = tpu.dynamic_rotate %506 by %c480_i32_377 dim 1 : vector<4x512xf32>, i32 -> vector<4x512xf32>
    %c14_i32_378 = arith.constant 14 : i32
    %723 = vector.broadcast %c14_i32_378 : i32 to vector<1x512xi32>
    %724 = arith.cmpi slt, %0, %723 : vector<1x512xi32>
    %cst_379 = arith.constant 0.000000e+00 : f32
    %725 = vector.shape_cast %724 : vector<1x512xi1> to vector<1x512xi1>
    %726 = vector.broadcast %725 : vector<1x512xi1> to vector<4x512xi1>
    %727 = vector.broadcast %cst_379 : f32 to vector<4x512xf32>
    %728 = arith.select %726, %722, %727 : vector<4x512xi1>, vector<4x512xf32>
    %c88_380 = arith.constant 88 : index
    %c0_381 = arith.constant 0 : index
    %729 = vector.load %arg9[%c88_380, %c0_381] : memref<100x512xf32, #tpu.memory_space<vmem>>, vector<4x512xf32>
    tpu.vector_store %arg9[%c88_380, %c0_381], %728 {strides = array<i32>} : memref<100x512xf32, #tpu.memory_space<vmem>>, vector<4x512xf32>,
    %c479_i32_382 = arith.constant 479 : i32
    %730 = tpu.dynamic_rotate %506 by %c479_i32_382 dim 1 : vector<4x512xf32>, i32 -> vector<4x512xf32>
    %c14_i32_383 = arith.constant 14 : i32
    %731 = vector.broadcast %c14_i32_383 : i32 to vector<1x512xi32>
    %732 = arith.cmpi slt, %0, %731 : vector<1x512xi32>
    %c15_i32_384 = arith.constant 15 : i32
    %733 = vector.broadcast %c15_i32_384 : i32 to vector<1x512xi32>
    %734 = arith.cmpi slt, %1, %733 : vector<1x512xi32>
    %735 = arith.andi %732, %734 : vector<1x512xi1>
    %cst_385 = arith.constant 0.000000e+00 : f32
    %736 = vector.shape_cast %735 : vector<1x512xi1> to vector<1x512xi1>
    %737 = vector.broadcast %736 : vector<1x512xi1> to vector<4x512xi1>
    %738 = vector.broadcast %cst_385 : f32 to vector<4x512xf32>
    %739 = arith.select %737, %730, %738 : vector<4x512xi1>, vector<4x512xf32>
    %c92_386 = arith.constant 92 : index
    %c0_387 = arith.constant 0 : index
    %740 = vector.load %arg9[%c92_386, %c0_387] : memref<100x512xf32, #tpu.memory_space<vmem>>, vector<4x512xf32>
    tpu.vector_store %arg9[%c92_386, %c0_387], %739 {strides = array<i32>} : memref<100x512xf32, #tpu.memory_space<vmem>>, vector<4x512xf32>,
    %c478_i32_388 = arith.constant 478 : i32
    %741 = tpu.dynamic_rotate %506 by %c478_i32_388 dim 1 : vector<4x512xf32>, i32 -> vector<4x512xf32>
    %c14_i32_389 = arith.constant 14 : i32
    %742 = vector.broadcast %c14_i32_389 : i32 to vector<1x512xi32>
    %743 = arith.cmpi slt, %0, %742 : vector<1x512xi32>
    %c14_i32_390 = arith.constant 14 : i32
    %744 = vector.broadcast %c14_i32_390 : i32 to vector<1x512xi32>
    %745 = arith.cmpi slt, %1, %744 : vector<1x512xi32>
    %746 = arith.andi %743, %745 : vector<1x512xi1>
    %cst_391 = arith.constant 0.000000e+00 : f32
    %747 = vector.shape_cast %746 : vector<1x512xi1> to vector<1x512xi1>
    %748 = vector.broadcast %747 : vector<1x512xi1> to vector<4x512xi1>
    %749 = vector.broadcast %cst_391 : f32 to vector<4x512xf32>
    %750 = arith.select %748, %741, %749 : vector<4x512xi1>, vector<4x512xf32>
    %c96_392 = arith.constant 96 : index
    %c0_393 = arith.constant 0 : index
    %751 = vector.load %arg9[%c96_392, %c0_393] : memref<100x512xf32, #tpu.memory_space<vmem>>, vector<4x512xf32>
    tpu.vector_store %arg9[%c96_392, %c0_393], %750 {strides = array<i32>} : memref<100x512xf32, #tpu.memory_space<vmem>>, vector<4x512xf32>,
    %c0_394 = arith.constant 0 : index
    %c0_395 = arith.constant 0 : index
    %752 = vector.load %arg9[%c0_394, %c0_395] : memref<100x512xf32, #tpu.memory_space<vmem>>, vector<100x512xf32>
    %cst_396 = arith.constant dense<0.000000e+00> : vector<4x512xf32>
    %753 = tpu.matmul %508, %752, %cst_396 {dimension_numbers = #tpu.dot_dimension_numbers<[1], [0], [0], [1], [0, 0, 1, 1], [], []>} : vector<4x100xf32>, vector<100x512xf32>, vector<4x512xf32> -> vector<4x512xf32>
    %754 = vector.broadcast %510 : vector<4x1xf32> to vector<4x512xf32>
    %755 = arith.addf %753, %754 : vector<4x512xf32>
    %cst_397 = arith.constant 0.000000e+00 : f32
    %756 = vector.broadcast %cst_397 : f32 to vector<4x512xf32>
    %757 = arith.cmpf oge, %755, %756 : vector<4x512xf32>
    %cst_398 = arith.constant 2.000000e-01 : f32
    %758 = vector.broadcast %cst_398 : f32 to vector<4x512xf32>
    %759 = arith.mulf %758, %755 : vector<4x512xf32>
    %760 = arith.select %757, %755, %759 : vector<4x512xi1>, vector<4x512xf32>
    %c3 = arith.constant 3 : index
    %c0_399 = arith.constant 0 : index
    %c0_400 = arith.constant 0 : index
    %761 = vector.load %arg4[%c3, %c0_399, %c0_400] : memref<6x4x100xf32, #tpu.memory_space<vmem>>, vector<1x4x100xf32>
    %762 = vector.shape_cast %761 : vector<1x4x100xf32> to vector<4x100xf32>
    %c3_401 = arith.constant 3 : index
    %c0_402 = arith.constant 0 : index
    %c0_403 = arith.constant 0 : index
    %763 = vector.load %arg5[%c3_401, %c0_402, %c0_403] : memref<6x4x1xf32, #tpu.memory_space<vmem>>, vector<1x4x1xf32>
    %764 = vector.shape_cast %763 : vector<1x4x1xf32> to vector<4x1xf32>
    %c34_i32_404 = arith.constant 34 : i32
    %765 = tpu.dynamic_rotate %760 by %c34_i32_404 dim 1 : vector<4x512xf32>, i32 -> vector<4x512xf32>
    %c2_i32_405 = arith.constant 2 : i32
    %766 = vector.broadcast %c2_i32_405 : i32 to vector<1x512xi32>
    %767 = arith.cmpi sge, %0, %766 : vector<1x512xi32>
    %c2_i32_406 = arith.constant 2 : i32
    %768 = vector.broadcast %c2_i32_406 : i32 to vector<1x512xi32>
    %769 = arith.cmpi sge, %1, %768 : vector<1x512xi32>
    %770 = arith.andi %767, %769 : vector<1x512xi1>
    %cst_407 = arith.constant 0.000000e+00 : f32
    %771 = vector.shape_cast %770 : vector<1x512xi1> to vector<1x512xi1>
    %772 = vector.broadcast %771 : vector<1x512xi1> to vector<4x512xi1>
    %773 = vector.broadcast %cst_407 : f32 to vector<4x512xf32>
    %774 = arith.select %772, %765, %773 : vector<4x512xi1>, vector<4x512xf32>
    %c0_408 = arith.constant 0 : index
    %c0_409 = arith.constant 0 : index
    %775 = vector.load %arg9[%c0_408, %c0_409] : memref<100x512xf32, #tpu.memory_space<vmem>>, vector<4x512xf32>
    tpu.vector_store %arg9[%c0_408, %c0_409], %774 {strides = array<i32>} : memref<100x512xf32, #tpu.memory_space<vmem>>, vector<4x512xf32>,
    %c33_i32_410 = arith.constant 33 : i32
    %776 = tpu.dynamic_rotate %760 by %c33_i32_410 dim 1 : vector<4x512xf32>, i32 -> vector<4x512xf32>
    %c2_i32_411 = arith.constant 2 : i32
    %777 = vector.broadcast %c2_i32_411 : i32 to vector<1x512xi32>
    %778 = arith.cmpi sge, %0, %777 : vector<1x512xi32>
    %c1_i32_412 = arith.constant 1 : i32
    %779 = vector.broadcast %c1_i32_412 : i32 to vector<1x512xi32>
    %780 = arith.cmpi sge, %1, %779 : vector<1x512xi32>
    %781 = arith.andi %778, %780 : vector<1x512xi1>
    %cst_413 = arith.constant 0.000000e+00 : f32
    %782 = vector.shape_cast %781 : vector<1x512xi1> to vector<1x512xi1>
    %783 = vector.broadcast %782 : vector<1x512xi1> to vector<4x512xi1>
    %784 = vector.broadcast %cst_413 : f32 to vector<4x512xf32>
    %785 = arith.select %783, %776, %784 : vector<4x512xi1>, vector<4x512xf32>
    %c4_414 = arith.constant 4 : index
    %c0_415 = arith.constant 0 : index
    %786 = vector.load %arg9[%c4_414, %c0_415] : memref<100x512xf32, #tpu.memory_space<vmem>>, vector<4x512xf32>
    tpu.vector_store %arg9[%c4_414, %c0_415], %785 {strides = array<i32>} : memref<100x512xf32, #tpu.memory_space<vmem>>, vector<4x512xf32>,
    %c32_i32_416 = arith.constant 32 : i32
    %787 = tpu.dynamic_rotate %760 by %c32_i32_416 dim 1 : vector<4x512xf32>, i32 -> vector<4x512xf32>
    %c2_i32_417 = arith.constant 2 : i32
    %788 = vector.broadcast %c2_i32_417 : i32 to vector<1x512xi32>
    %789 = arith.cmpi sge, %0, %788 : vector<1x512xi32>
    %cst_418 = arith.constant 0.000000e+00 : f32
    %790 = vector.shape_cast %789 : vector<1x512xi1> to vector<1x512xi1>
    %791 = vector.broadcast %790 : vector<1x512xi1> to vector<4x512xi1>
    %792 = vector.broadcast %cst_418 : f32 to vector<4x512xf32>
    %793 = arith.select %791, %787, %792 : vector<4x512xi1>, vector<4x512xf32>
    %c8_419 = arith.constant 8 : index
    %c0_420 = arith.constant 0 : index
    %794 = vector.load %arg9[%c8_419, %c0_420] : memref<100x512xf32, #tpu.memory_space<vmem>>, vector<4x512xf32>
    tpu.vector_store %arg9[%c8_419, %c0_420], %793 {strides = array<i32>} : memref<100x512xf32, #tpu.memory_space<vmem>>, vector<4x512xf32>,
    %c31_i32_421 = arith.constant 31 : i32
    %795 = tpu.dynamic_rotate %760 by %c31_i32_421 dim 1 : vector<4x512xf32>, i32 -> vector<4x512xf32>
    %c2_i32_422 = arith.constant 2 : i32
    %796 = vector.broadcast %c2_i32_422 : i32 to vector<1x512xi32>
    %797 = arith.cmpi sge, %0, %796 : vector<1x512xi32>
    %c15_i32_423 = arith.constant 15 : i32
    %798 = vector.broadcast %c15_i32_423 : i32 to vector<1x512xi32>
    %799 = arith.cmpi slt, %1, %798 : vector<1x512xi32>
    %800 = arith.andi %797, %799 : vector<1x512xi1>
    %cst_424 = arith.constant 0.000000e+00 : f32
    %801 = vector.shape_cast %800 : vector<1x512xi1> to vector<1x512xi1>
    %802 = vector.broadcast %801 : vector<1x512xi1> to vector<4x512xi1>
    %803 = vector.broadcast %cst_424 : f32 to vector<4x512xf32>
    %804 = arith.select %802, %795, %803 : vector<4x512xi1>, vector<4x512xf32>
    %c12_425 = arith.constant 12 : index
    %c0_426 = arith.constant 0 : index
    %805 = vector.load %arg9[%c12_425, %c0_426] : memref<100x512xf32, #tpu.memory_space<vmem>>, vector<4x512xf32>
    tpu.vector_store %arg9[%c12_425, %c0_426], %804 {strides = array<i32>} : memref<100x512xf32, #tpu.memory_space<vmem>>, vector<4x512xf32>,
    %c30_i32_427 = arith.constant 30 : i32
    %806 = tpu.dynamic_rotate %760 by %c30_i32_427 dim 1 : vector<4x512xf32>, i32 -> vector<4x512xf32>
    %c2_i32_428 = arith.constant 2 : i32
    %807 = vector.broadcast %c2_i32_428 : i32 to vector<1x512xi32>
    %808 = arith.cmpi sge, %0, %807 : vector<1x512xi32>
    %c14_i32_429 = arith.constant 14 : i32
    %809 = vector.broadcast %c14_i32_429 : i32 to vector<1x512xi32>
    %810 = arith.cmpi slt, %1, %809 : vector<1x512xi32>
    %811 = arith.andi %808, %810 : vector<1x512xi1>
    %cst_430 = arith.constant 0.000000e+00 : f32
    %812 = vector.shape_cast %811 : vector<1x512xi1> to vector<1x512xi1>
    %813 = vector.broadcast %812 : vector<1x512xi1> to vector<4x512xi1>
    %814 = vector.broadcast %cst_430 : f32 to vector<4x512xf32>
    %815 = arith.select %813, %806, %814 : vector<4x512xi1>, vector<4x512xf32>
    %c16_431 = arith.constant 16 : index
    %c0_432 = arith.constant 0 : index
    %816 = vector.load %arg9[%c16_431, %c0_432] : memref<100x512xf32, #tpu.memory_space<vmem>>, vector<4x512xf32>
    tpu.vector_store %arg9[%c16_431, %c0_432], %815 {strides = array<i32>} : memref<100x512xf32, #tpu.memory_space<vmem>>, vector<4x512xf32>,
    %c18_i32_433 = arith.constant 18 : i32
    %817 = tpu.dynamic_rotate %760 by %c18_i32_433 dim 1 : vector<4x512xf32>, i32 -> vector<4x512xf32>
    %c1_i32_434 = arith.constant 1 : i32
    %818 = vector.broadcast %c1_i32_434 : i32 to vector<1x512xi32>
    %819 = arith.cmpi sge, %0, %818 : vector<1x512xi32>
    %c2_i32_435 = arith.constant 2 : i32
    %820 = vector.broadcast %c2_i32_435 : i32 to vector<1x512xi32>
    %821 = arith.cmpi sge, %1, %820 : vector<1x512xi32>
    %822 = arith.andi %819, %821 : vector<1x512xi1>
    %cst_436 = arith.constant 0.000000e+00 : f32
    %823 = vector.shape_cast %822 : vector<1x512xi1> to vector<1x512xi1>
    %824 = vector.broadcast %823 : vector<1x512xi1> to vector<4x512xi1>
    %825 = vector.broadcast %cst_436 : f32 to vector<4x512xf32>
    %826 = arith.select %824, %817, %825 : vector<4x512xi1>, vector<4x512xf32>
    %c20_437 = arith.constant 20 : index
    %c0_438 = arith.constant 0 : index
    %827 = vector.load %arg9[%c20_437, %c0_438] : memref<100x512xf32, #tpu.memory_space<vmem>>, vector<4x512xf32>
    tpu.vector_store %arg9[%c20_437, %c0_438], %826 {strides = array<i32>} : memref<100x512xf32, #tpu.memory_space<vmem>>, vector<4x512xf32>,
    %c17_i32_439 = arith.constant 17 : i32
    %828 = tpu.dynamic_rotate %760 by %c17_i32_439 dim 1 : vector<4x512xf32>, i32 -> vector<4x512xf32>
    %c1_i32_440 = arith.constant 1 : i32
    %829 = vector.broadcast %c1_i32_440 : i32 to vector<1x512xi32>
    %830 = arith.cmpi sge, %0, %829 : vector<1x512xi32>
    %c1_i32_441 = arith.constant 1 : i32
    %831 = vector.broadcast %c1_i32_441 : i32 to vector<1x512xi32>
    %832 = arith.cmpi sge, %1, %831 : vector<1x512xi32>
    %833 = arith.andi %830, %832 : vector<1x512xi1>
    %cst_442 = arith.constant 0.000000e+00 : f32
    %834 = vector.shape_cast %833 : vector<1x512xi1> to vector<1x512xi1>
    %835 = vector.broadcast %834 : vector<1x512xi1> to vector<4x512xi1>
    %836 = vector.broadcast %cst_442 : f32 to vector<4x512xf32>
    %837 = arith.select %835, %828, %836 : vector<4x512xi1>, vector<4x512xf32>
    %c24_443 = arith.constant 24 : index
    %c0_444 = arith.constant 0 : index
    %838 = vector.load %arg9[%c24_443, %c0_444] : memref<100x512xf32, #tpu.memory_space<vmem>>, vector<4x512xf32>
    tpu.vector_store %arg9[%c24_443, %c0_444], %837 {strides = array<i32>} : memref<100x512xf32, #tpu.memory_space<vmem>>, vector<4x512xf32>,
    %c16_i32_445 = arith.constant 16 : i32
    %839 = tpu.dynamic_rotate %760 by %c16_i32_445 dim 1 : vector<4x512xf32>, i32 -> vector<4x512xf32>
    %c1_i32_446 = arith.constant 1 : i32
    %840 = vector.broadcast %c1_i32_446 : i32 to vector<1x512xi32>
    %841 = arith.cmpi sge, %0, %840 : vector<1x512xi32>
    %cst_447 = arith.constant 0.000000e+00 : f32
    %842 = vector.shape_cast %841 : vector<1x512xi1> to vector<1x512xi1>
    %843 = vector.broadcast %842 : vector<1x512xi1> to vector<4x512xi1>
    %844 = vector.broadcast %cst_447 : f32 to vector<4x512xf32>
    %845 = arith.select %843, %839, %844 : vector<4x512xi1>, vector<4x512xf32>
    %c28_448 = arith.constant 28 : index
    %c0_449 = arith.constant 0 : index
    %846 = vector.load %arg9[%c28_448, %c0_449] : memref<100x512xf32, #tpu.memory_space<vmem>>, vector<4x512xf32>
    tpu.vector_store %arg9[%c28_448, %c0_449], %845 {strides = array<i32>} : memref<100x512xf32, #tpu.memory_space<vmem>>, vector<4x512xf32>,
    %c15_i32_450 = arith.constant 15 : i32
    %847 = tpu.dynamic_rotate %760 by %c15_i32_450 dim 1 : vector<4x512xf32>, i32 -> vector<4x512xf32>
    %c1_i32_451 = arith.constant 1 : i32
    %848 = vector.broadcast %c1_i32_451 : i32 to vector<1x512xi32>
    %849 = arith.cmpi sge, %0, %848 : vector<1x512xi32>
    %c15_i32_452 = arith.constant 15 : i32
    %850 = vector.broadcast %c15_i32_452 : i32 to vector<1x512xi32>
    %851 = arith.cmpi slt, %1, %850 : vector<1x512xi32>
    %852 = arith.andi %849, %851 : vector<1x512xi1>
    %cst_453 = arith.constant 0.000000e+00 : f32
    %853 = vector.shape_cast %852 : vector<1x512xi1> to vector<1x512xi1>
    %854 = vector.broadcast %853 : vector<1x512xi1> to vector<4x512xi1>
    %855 = vector.broadcast %cst_453 : f32 to vector<4x512xf32>
    %856 = arith.select %854, %847, %855 : vector<4x512xi1>, vector<4x512xf32>
    %c32_454 = arith.constant 32 : index
    %c0_455 = arith.constant 0 : index
    %857 = vector.load %arg9[%c32_454, %c0_455] : memref<100x512xf32, #tpu.memory_space<vmem>>, vector<4x512xf32>
    tpu.vector_store %arg9[%c32_454, %c0_455], %856 {strides = array<i32>} : memref<100x512xf32, #tpu.memory_space<vmem>>, vector<4x512xf32>,
    %c14_i32_456 = arith.constant 14 : i32
    %858 = tpu.dynamic_rotate %760 by %c14_i32_456 dim 1 : vector<4x512xf32>, i32 -> vector<4x512xf32>
    %c1_i32_457 = arith.constant 1 : i32
    %859 = vector.broadcast %c1_i32_457 : i32 to vector<1x512xi32>
    %860 = arith.cmpi sge, %0, %859 : vector<1x512xi32>
    %c14_i32_458 = arith.constant 14 : i32
    %861 = vector.broadcast %c14_i32_458 : i32 to vector<1x512xi32>
    %862 = arith.cmpi slt, %1, %861 : vector<1x512xi32>
    %863 = arith.andi %860, %862 : vector<1x512xi1>
    %cst_459 = arith.constant 0.000000e+00 : f32
    %864 = vector.shape_cast %863 : vector<1x512xi1> to vector<1x512xi1>
    %865 = vector.broadcast %864 : vector<1x512xi1> to vector<4x512xi1>
    %866 = vector.broadcast %cst_459 : f32 to vector<4x512xf32>
    %867 = arith.select %865, %858, %866 : vector<4x512xi1>, vector<4x512xf32>
    %c36_460 = arith.constant 36 : index
    %c0_461 = arith.constant 0 : index
    %868 = vector.load %arg9[%c36_460, %c0_461] : memref<100x512xf32, #tpu.memory_space<vmem>>, vector<4x512xf32>
    tpu.vector_store %arg9[%c36_460, %c0_461], %867 {strides = array<i32>} : memref<100x512xf32, #tpu.memory_space<vmem>>, vector<4x512xf32>,
    %c2_i32_462 = arith.constant 2 : i32
    %869 = tpu.dynamic_rotate %760 by %c2_i32_462 dim 1 : vector<4x512xf32>, i32 -> vector<4x512xf32>
    %c2_i32_463 = arith.constant 2 : i32
    %870 = vector.broadcast %c2_i32_463 : i32 to vector<1x512xi32>
    %871 = arith.cmpi sge, %1, %870 : vector<1x512xi32>
    %cst_464 = arith.constant 0.000000e+00 : f32
    %872 = vector.shape_cast %871 : vector<1x512xi1> to vector<1x512xi1>
    %873 = vector.broadcast %872 : vector<1x512xi1> to vector<4x512xi1>
    %874 = vector.broadcast %cst_464 : f32 to vector<4x512xf32>
    %875 = arith.select %873, %869, %874 : vector<4x512xi1>, vector<4x512xf32>
    %c40_465 = arith.constant 40 : index
    %c0_466 = arith.constant 0 : index
    %876 = vector.load %arg9[%c40_465, %c0_466] : memref<100x512xf32, #tpu.memory_space<vmem>>, vector<4x512xf32>
    tpu.vector_store %arg9[%c40_465, %c0_466], %875 {strides = array<i32>} : memref<100x512xf32, #tpu.memory_space<vmem>>, vector<4x512xf32>,
    %c1_i32_467 = arith.constant 1 : i32
    %877 = tpu.dynamic_rotate %760 by %c1_i32_467 dim 1 : vector<4x512xf32>, i32 -> vector<4x512xf32>
    %c1_i32_468 = arith.constant 1 : i32
    %878 = vector.broadcast %c1_i32_468 : i32 to vector<1x512xi32>
    %879 = arith.cmpi sge, %1, %878 : vector<1x512xi32>
    %cst_469 = arith.constant 0.000000e+00 : f32
    %880 = vector.shape_cast %879 : vector<1x512xi1> to vector<1x512xi1>
    %881 = vector.broadcast %880 : vector<1x512xi1> to vector<4x512xi1>
    %882 = vector.broadcast %cst_469 : f32 to vector<4x512xf32>
    %883 = arith.select %881, %877, %882 : vector<4x512xi1>, vector<4x512xf32>
    %c44_470 = arith.constant 44 : index
    %c0_471 = arith.constant 0 : index
    %884 = vector.load %arg9[%c44_470, %c0_471] : memref<100x512xf32, #tpu.memory_space<vmem>>, vector<4x512xf32>
    tpu.vector_store %arg9[%c44_470, %c0_471], %883 {strides = array<i32>} : memref<100x512xf32, #tpu.memory_space<vmem>>, vector<4x512xf32>,
    %c48_472 = arith.constant 48 : index
    %c0_473 = arith.constant 0 : index
    %885 = vector.load %arg9[%c48_472, %c0_473] : memref<100x512xf32, #tpu.memory_space<vmem>>, vector<4x512xf32>
    tpu.vector_store %arg9[%c48_472, %c0_473], %760 {strides = array<i32>} : memref<100x512xf32, #tpu.memory_space<vmem>>, vector<4x512xf32>,
    %c511_i32_474 = arith.constant 511 : i32
    %886 = tpu.dynamic_rotate %760 by %c511_i32_474 dim 1 : vector<4x512xf32>, i32 -> vector<4x512xf32>
    %c15_i32_475 = arith.constant 15 : i32
    %887 = vector.broadcast %c15_i32_475 : i32 to vector<1x512xi32>
    %888 = arith.cmpi slt, %1, %887 : vector<1x512xi32>
    %cst_476 = arith.constant 0.000000e+00 : f32
    %889 = vector.shape_cast %888 : vector<1x512xi1> to vector<1x512xi1>
    %890 = vector.broadcast %889 : vector<1x512xi1> to vector<4x512xi1>
    %891 = vector.broadcast %cst_476 : f32 to vector<4x512xf32>
    %892 = arith.select %890, %886, %891 : vector<4x512xi1>, vector<4x512xf32>
    %c52_477 = arith.constant 52 : index
    %c0_478 = arith.constant 0 : index
    %893 = vector.load %arg9[%c52_477, %c0_478] : memref<100x512xf32, #tpu.memory_space<vmem>>, vector<4x512xf32>
    tpu.vector_store %arg9[%c52_477, %c0_478], %892 {strides = array<i32>} : memref<100x512xf32, #tpu.memory_space<vmem>>, vector<4x512xf32>,
    %c510_i32_479 = arith.constant 510 : i32
    %894 = tpu.dynamic_rotate %760 by %c510_i32_479 dim 1 : vector<4x512xf32>, i32 -> vector<4x512xf32>
    %c14_i32_480 = arith.constant 14 : i32
    %895 = vector.broadcast %c14_i32_480 : i32 to vector<1x512xi32>
    %896 = arith.cmpi slt, %1, %895 : vector<1x512xi32>
    %cst_481 = arith.constant 0.000000e+00 : f32
    %897 = vector.shape_cast %896 : vector<1x512xi1> to vector<1x512xi1>
    %898 = vector.broadcast %897 : vector<1x512xi1> to vector<4x512xi1>
    %899 = vector.broadcast %cst_481 : f32 to vector<4x512xf32>
    %900 = arith.select %898, %894, %899 : vector<4x512xi1>, vector<4x512xf32>
    %c56_482 = arith.constant 56 : index
    %c0_483 = arith.constant 0 : index
    %901 = vector.load %arg9[%c56_482, %c0_483] : memref<100x512xf32, #tpu.memory_space<vmem>>, vector<4x512xf32>
    tpu.vector_store %arg9[%c56_482, %c0_483], %900 {strides = array<i32>} : memref<100x512xf32, #tpu.memory_space<vmem>>, vector<4x512xf32>,
    %c498_i32_484 = arith.constant 498 : i32
    %902 = tpu.dynamic_rotate %760 by %c498_i32_484 dim 1 : vector<4x512xf32>, i32 -> vector<4x512xf32>
    %c15_i32_485 = arith.constant 15 : i32
    %903 = vector.broadcast %c15_i32_485 : i32 to vector<1x512xi32>
    %904 = arith.cmpi slt, %0, %903 : vector<1x512xi32>
    %c2_i32_486 = arith.constant 2 : i32
    %905 = vector.broadcast %c2_i32_486 : i32 to vector<1x512xi32>
    %906 = arith.cmpi sge, %1, %905 : vector<1x512xi32>
    %907 = arith.andi %904, %906 : vector<1x512xi1>
    %cst_487 = arith.constant 0.000000e+00 : f32
    %908 = vector.shape_cast %907 : vector<1x512xi1> to vector<1x512xi1>
    %909 = vector.broadcast %908 : vector<1x512xi1> to vector<4x512xi1>
    %910 = vector.broadcast %cst_487 : f32 to vector<4x512xf32>
    %911 = arith.select %909, %902, %910 : vector<4x512xi1>, vector<4x512xf32>
    %c60_488 = arith.constant 60 : index
    %c0_489 = arith.constant 0 : index
    %912 = vector.load %arg9[%c60_488, %c0_489] : memref<100x512xf32, #tpu.memory_space<vmem>>, vector<4x512xf32>
    tpu.vector_store %arg9[%c60_488, %c0_489], %911 {strides = array<i32>} : memref<100x512xf32, #tpu.memory_space<vmem>>, vector<4x512xf32>,
    %c497_i32_490 = arith.constant 497 : i32
    %913 = tpu.dynamic_rotate %760 by %c497_i32_490 dim 1 : vector<4x512xf32>, i32 -> vector<4x512xf32>
    %c15_i32_491 = arith.constant 15 : i32
    %914 = vector.broadcast %c15_i32_491 : i32 to vector<1x512xi32>
    %915 = arith.cmpi slt, %0, %914 : vector<1x512xi32>
    %c1_i32_492 = arith.constant 1 : i32
    %916 = vector.broadcast %c1_i32_492 : i32 to vector<1x512xi32>
    %917 = arith.cmpi sge, %1, %916 : vector<1x512xi32>
    %918 = arith.andi %915, %917 : vector<1x512xi1>
    %cst_493 = arith.constant 0.000000e+00 : f32
    %919 = vector.shape_cast %918 : vector<1x512xi1> to vector<1x512xi1>
    %920 = vector.broadcast %919 : vector<1x512xi1> to vector<4x512xi1>
    %921 = vector.broadcast %cst_493 : f32 to vector<4x512xf32>
    %922 = arith.select %920, %913, %921 : vector<4x512xi1>, vector<4x512xf32>
    %c64_494 = arith.constant 64 : index
    %c0_495 = arith.constant 0 : index
    %923 = vector.load %arg9[%c64_494, %c0_495] : memref<100x512xf32, #tpu.memory_space<vmem>>, vector<4x512xf32>
    tpu.vector_store %arg9[%c64_494, %c0_495], %922 {strides = array<i32>} : memref<100x512xf32, #tpu.memory_space<vmem>>, vector<4x512xf32>,
    %c496_i32_496 = arith.constant 496 : i32
    %924 = tpu.dynamic_rotate %760 by %c496_i32_496 dim 1 : vector<4x512xf32>, i32 -> vector<4x512xf32>
    %c15_i32_497 = arith.constant 15 : i32
    %925 = vector.broadcast %c15_i32_497 : i32 to vector<1x512xi32>
    %926 = arith.cmpi slt, %0, %925 : vector<1x512xi32>
    %cst_498 = arith.constant 0.000000e+00 : f32
    %927 = vector.shape_cast %926 : vector<1x512xi1> to vector<1x512xi1>
    %928 = vector.broadcast %927 : vector<1x512xi1> to vector<4x512xi1>
    %929 = vector.broadcast %cst_498 : f32 to vector<4x512xf32>
    %930 = arith.select %928, %924, %929 : vector<4x512xi1>, vector<4x512xf32>
    %c68_499 = arith.constant 68 : index
    %c0_500 = arith.constant 0 : index
    %931 = vector.load %arg9[%c68_499, %c0_500] : memref<100x512xf32, #tpu.memory_space<vmem>>, vector<4x512xf32>
    tpu.vector_store %arg9[%c68_499, %c0_500], %930 {strides = array<i32>} : memref<100x512xf32, #tpu.memory_space<vmem>>, vector<4x512xf32>,
    %c495_i32_501 = arith.constant 495 : i32
    %932 = tpu.dynamic_rotate %760 by %c495_i32_501 dim 1 : vector<4x512xf32>, i32 -> vector<4x512xf32>
    %c15_i32_502 = arith.constant 15 : i32
    %933 = vector.broadcast %c15_i32_502 : i32 to vector<1x512xi32>
    %934 = arith.cmpi slt, %0, %933 : vector<1x512xi32>
    %c15_i32_503 = arith.constant 15 : i32
    %935 = vector.broadcast %c15_i32_503 : i32 to vector<1x512xi32>
    %936 = arith.cmpi slt, %1, %935 : vector<1x512xi32>
    %937 = arith.andi %934, %936 : vector<1x512xi1>
    %cst_504 = arith.constant 0.000000e+00 : f32
    %938 = vector.shape_cast %937 : vector<1x512xi1> to vector<1x512xi1>
    %939 = vector.broadcast %938 : vector<1x512xi1> to vector<4x512xi1>
    %940 = vector.broadcast %cst_504 : f32 to vector<4x512xf32>
    %941 = arith.select %939, %932, %940 : vector<4x512xi1>, vector<4x512xf32>
    %c72_505 = arith.constant 72 : index
    %c0_506 = arith.constant 0 : index
    %942 = vector.load %arg9[%c72_505, %c0_506] : memref<100x512xf32, #tpu.memory_space<vmem>>, vector<4x512xf32>
    tpu.vector_store %arg9[%c72_505, %c0_506], %941 {strides = array<i32>} : memref<100x512xf32, #tpu.memory_space<vmem>>, vector<4x512xf32>,
    %c494_i32_507 = arith.constant 494 : i32
    %943 = tpu.dynamic_rotate %760 by %c494_i32_507 dim 1 : vector<4x512xf32>, i32 -> vector<4x512xf32>
    %c15_i32_508 = arith.constant 15 : i32
    %944 = vector.broadcast %c15_i32_508 : i32 to vector<1x512xi32>
    %945 = arith.cmpi slt, %0, %944 : vector<1x512xi32>
    %c14_i32_509 = arith.constant 14 : i32
    %946 = vector.broadcast %c14_i32_509 : i32 to vector<1x512xi32>
    %947 = arith.cmpi slt, %1, %946 : vector<1x512xi32>
    %948 = arith.andi %945, %947 : vector<1x512xi1>
    %cst_510 = arith.constant 0.000000e+00 : f32
    %949 = vector.shape_cast %948 : vector<1x512xi1> to vector<1x512xi1>
    %950 = vector.broadcast %949 : vector<1x512xi1> to vector<4x512xi1>
    %951 = vector.broadcast %cst_510 : f32 to vector<4x512xf32>
    %952 = arith.select %950, %943, %951 : vector<4x512xi1>, vector<4x512xf32>
    %c76_511 = arith.constant 76 : index
    %c0_512 = arith.constant 0 : index
    %953 = vector.load %arg9[%c76_511, %c0_512] : memref<100x512xf32, #tpu.memory_space<vmem>>, vector<4x512xf32>
    tpu.vector_store %arg9[%c76_511, %c0_512], %952 {strides = array<i32>} : memref<100x512xf32, #tpu.memory_space<vmem>>, vector<4x512xf32>,
    %c482_i32_513 = arith.constant 482 : i32
    %954 = tpu.dynamic_rotate %760 by %c482_i32_513 dim 1 : vector<4x512xf32>, i32 -> vector<4x512xf32>
    %c14_i32_514 = arith.constant 14 : i32
    %955 = vector.broadcast %c14_i32_514 : i32 to vector<1x512xi32>
    %956 = arith.cmpi slt, %0, %955 : vector<1x512xi32>
    %c2_i32_515 = arith.constant 2 : i32
    %957 = vector.broadcast %c2_i32_515 : i32 to vector<1x512xi32>
    %958 = arith.cmpi sge, %1, %957 : vector<1x512xi32>
    %959 = arith.andi %956, %958 : vector<1x512xi1>
    %cst_516 = arith.constant 0.000000e+00 : f32
    %960 = vector.shape_cast %959 : vector<1x512xi1> to vector<1x512xi1>
    %961 = vector.broadcast %960 : vector<1x512xi1> to vector<4x512xi1>
    %962 = vector.broadcast %cst_516 : f32 to vector<4x512xf32>
    %963 = arith.select %961, %954, %962 : vector<4x512xi1>, vector<4x512xf32>
    %c80_517 = arith.constant 80 : index
    %c0_518 = arith.constant 0 : index
    %964 = vector.load %arg9[%c80_517, %c0_518] : memref<100x512xf32, #tpu.memory_space<vmem>>, vector<4x512xf32>
    tpu.vector_store %arg9[%c80_517, %c0_518], %963 {strides = array<i32>} : memref<100x512xf32, #tpu.memory_space<vmem>>, vector<4x512xf32>,
    %c481_i32_519 = arith.constant 481 : i32
    %965 = tpu.dynamic_rotate %760 by %c481_i32_519 dim 1 : vector<4x512xf32>, i32 -> vector<4x512xf32>
    %c14_i32_520 = arith.constant 14 : i32
    %966 = vector.broadcast %c14_i32_520 : i32 to vector<1x512xi32>
    %967 = arith.cmpi slt, %0, %966 : vector<1x512xi32>
    %c1_i32_521 = arith.constant 1 : i32
    %968 = vector.broadcast %c1_i32_521 : i32 to vector<1x512xi32>
    %969 = arith.cmpi sge, %1, %968 : vector<1x512xi32>
    %970 = arith.andi %967, %969 : vector<1x512xi1>
    %cst_522 = arith.constant 0.000000e+00 : f32
    %971 = vector.shape_cast %970 : vector<1x512xi1> to vector<1x512xi1>
    %972 = vector.broadcast %971 : vector<1x512xi1> to vector<4x512xi1>
    %973 = vector.broadcast %cst_522 : f32 to vector<4x512xf32>
    %974 = arith.select %972, %965, %973 : vector<4x512xi1>, vector<4x512xf32>
    %c84_523 = arith.constant 84 : index
    %c0_524 = arith.constant 0 : index
    %975 = vector.load %arg9[%c84_523, %c0_524] : memref<100x512xf32, #tpu.memory_space<vmem>>, vector<4x512xf32>
    tpu.vector_store %arg9[%c84_523, %c0_524], %974 {strides = array<i32>} : memref<100x512xf32, #tpu.memory_space<vmem>>, vector<4x512xf32>,
    %c480_i32_525 = arith.constant 480 : i32
    %976 = tpu.dynamic_rotate %760 by %c480_i32_525 dim 1 : vector<4x512xf32>, i32 -> vector<4x512xf32>
    %c14_i32_526 = arith.constant 14 : i32
    %977 = vector.broadcast %c14_i32_526 : i32 to vector<1x512xi32>
    %978 = arith.cmpi slt, %0, %977 : vector<1x512xi32>
    %cst_527 = arith.constant 0.000000e+00 : f32
    %979 = vector.shape_cast %978 : vector<1x512xi1> to vector<1x512xi1>
    %980 = vector.broadcast %979 : vector<1x512xi1> to vector<4x512xi1>
    %981 = vector.broadcast %cst_527 : f32 to vector<4x512xf32>
    %982 = arith.select %980, %976, %981 : vector<4x512xi1>, vector<4x512xf32>
    %c88_528 = arith.constant 88 : index
    %c0_529 = arith.constant 0 : index
    %983 = vector.load %arg9[%c88_528, %c0_529] : memref<100x512xf32, #tpu.memory_space<vmem>>, vector<4x512xf32>
    tpu.vector_store %arg9[%c88_528, %c0_529], %982 {strides = array<i32>} : memref<100x512xf32, #tpu.memory_space<vmem>>, vector<4x512xf32>,
    %c479_i32_530 = arith.constant 479 : i32
    %984 = tpu.dynamic_rotate %760 by %c479_i32_530 dim 1 : vector<4x512xf32>, i32 -> vector<4x512xf32>
    %c14_i32_531 = arith.constant 14 : i32
    %985 = vector.broadcast %c14_i32_531 : i32 to vector<1x512xi32>
    %986 = arith.cmpi slt, %0, %985 : vector<1x512xi32>
    %c15_i32_532 = arith.constant 15 : i32
    %987 = vector.broadcast %c15_i32_532 : i32 to vector<1x512xi32>
    %988 = arith.cmpi slt, %1, %987 : vector<1x512xi32>
    %989 = arith.andi %986, %988 : vector<1x512xi1>
    %cst_533 = arith.constant 0.000000e+00 : f32
    %990 = vector.shape_cast %989 : vector<1x512xi1> to vector<1x512xi1>
    %991 = vector.broadcast %990 : vector<1x512xi1> to vector<4x512xi1>
    %992 = vector.broadcast %cst_533 : f32 to vector<4x512xf32>
    %993 = arith.select %991, %984, %992 : vector<4x512xi1>, vector<4x512xf32>
    %c92_534 = arith.constant 92 : index
    %c0_535 = arith.constant 0 : index
    %994 = vector.load %arg9[%c92_534, %c0_535] : memref<100x512xf32, #tpu.memory_space<vmem>>, vector<4x512xf32>
    tpu.vector_store %arg9[%c92_534, %c0_535], %993 {strides = array<i32>} : memref<100x512xf32, #tpu.memory_space<vmem>>, vector<4x512xf32>,
    %c478_i32_536 = arith.constant 478 : i32
    %995 = tpu.dynamic_rotate %760 by %c478_i32_536 dim 1 : vector<4x512xf32>, i32 -> vector<4x512xf32>
    %c14_i32_537 = arith.constant 14 : i32
    %996 = vector.broadcast %c14_i32_537 : i32 to vector<1x512xi32>
    %997 = arith.cmpi slt, %0, %996 : vector<1x512xi32>
    %c14_i32_538 = arith.constant 14 : i32
    %998 = vector.broadcast %c14_i32_538 : i32 to vector<1x512xi32>
    %999 = arith.cmpi slt, %1, %998 : vector<1x512xi32>
    %1000 = arith.andi %997, %999 : vector<1x512xi1>
    %cst_539 = arith.constant 0.000000e+00 : f32
    %1001 = vector.shape_cast %1000 : vector<1x512xi1> to vector<1x512xi1>
    %1002 = vector.broadcast %1001 : vector<1x512xi1> to vector<4x512xi1>
    %1003 = vector.broadcast %cst_539 : f32 to vector<4x512xf32>
    %1004 = arith.select %1002, %995, %1003 : vector<4x512xi1>, vector<4x512xf32>
    %c96_540 = arith.constant 96 : index
    %c0_541 = arith.constant 0 : index
    %1005 = vector.load %arg9[%c96_540, %c0_541] : memref<100x512xf32, #tpu.memory_space<vmem>>, vector<4x512xf32>
    tpu.vector_store %arg9[%c96_540, %c0_541], %1004 {strides = array<i32>} : memref<100x512xf32, #tpu.memory_space<vmem>>, vector<4x512xf32>,
    %c0_542 = arith.constant 0 : index
    %c0_543 = arith.constant 0 : index
    %1006 = vector.load %arg9[%c0_542, %c0_543] : memref<100x512xf32, #tpu.memory_space<vmem>>, vector<100x512xf32>
    %cst_544 = arith.constant dense<0.000000e+00> : vector<4x512xf32>
    %1007 = tpu.matmul %762, %1006, %cst_544 {dimension_numbers = #tpu.dot_dimension_numbers<[1], [0], [0], [1], [0, 0, 1, 1], [], []>} : vector<4x100xf32>, vector<100x512xf32>, vector<4x512xf32> -> vector<4x512xf32>
    %1008 = vector.broadcast %764 : vector<4x1xf32> to vector<4x512xf32>
    %1009 = arith.addf %1007, %1008 : vector<4x512xf32>
    %1010 = arith.addf %1009, %506 : vector<4x512xf32>
    %c4_545 = arith.constant 4 : index
    %c0_546 = arith.constant 0 : index
    %c0_547 = arith.constant 0 : index
    %1011 = vector.load %arg4[%c4_545, %c0_546, %c0_547] : memref<6x4x100xf32, #tpu.memory_space<vmem>>, vector<1x4x100xf32>
    %1012 = vector.shape_cast %1011 : vector<1x4x100xf32> to vector<4x100xf32>
    %c4_548 = arith.constant 4 : index
    %c0_549 = arith.constant 0 : index
    %c0_550 = arith.constant 0 : index
    %1013 = vector.load %arg5[%c4_548, %c0_549, %c0_550] : memref<6x4x1xf32, #tpu.memory_space<vmem>>, vector<1x4x1xf32>
    %1014 = vector.shape_cast %1013 : vector<1x4x1xf32> to vector<4x1xf32>
    %c34_i32_551 = arith.constant 34 : i32
    %1015 = tpu.dynamic_rotate %1010 by %c34_i32_551 dim 1 : vector<4x512xf32>, i32 -> vector<4x512xf32>
    %c2_i32_552 = arith.constant 2 : i32
    %1016 = vector.broadcast %c2_i32_552 : i32 to vector<1x512xi32>
    %1017 = arith.cmpi sge, %0, %1016 : vector<1x512xi32>
    %c2_i32_553 = arith.constant 2 : i32
    %1018 = vector.broadcast %c2_i32_553 : i32 to vector<1x512xi32>
    %1019 = arith.cmpi sge, %1, %1018 : vector<1x512xi32>
    %1020 = arith.andi %1017, %1019 : vector<1x512xi1>
    %cst_554 = arith.constant 0.000000e+00 : f32
    %1021 = vector.shape_cast %1020 : vector<1x512xi1> to vector<1x512xi1>
    %1022 = vector.broadcast %1021 : vector<1x512xi1> to vector<4x512xi1>
    %1023 = vector.broadcast %cst_554 : f32 to vector<4x512xf32>
    %1024 = arith.select %1022, %1015, %1023 : vector<4x512xi1>, vector<4x512xf32>
    %c0_555 = arith.constant 0 : index
    %c0_556 = arith.constant 0 : index
    %1025 = vector.load %arg9[%c0_555, %c0_556] : memref<100x512xf32, #tpu.memory_space<vmem>>, vector<4x512xf32>
    tpu.vector_store %arg9[%c0_555, %c0_556], %1024 {strides = array<i32>} : memref<100x512xf32, #tpu.memory_space<vmem>>, vector<4x512xf32>,
    %c33_i32_557 = arith.constant 33 : i32
    %1026 = tpu.dynamic_rotate %1010 by %c33_i32_557 dim 1 : vector<4x512xf32>, i32 -> vector<4x512xf32>
    %c2_i32_558 = arith.constant 2 : i32
    %1027 = vector.broadcast %c2_i32_558 : i32 to vector<1x512xi32>
    %1028 = arith.cmpi sge, %0, %1027 : vector<1x512xi32>
    %c1_i32_559 = arith.constant 1 : i32
    %1029 = vector.broadcast %c1_i32_559 : i32 to vector<1x512xi32>
    %1030 = arith.cmpi sge, %1, %1029 : vector<1x512xi32>
    %1031 = arith.andi %1028, %1030 : vector<1x512xi1>
    %cst_560 = arith.constant 0.000000e+00 : f32
    %1032 = vector.shape_cast %1031 : vector<1x512xi1> to vector<1x512xi1>
    %1033 = vector.broadcast %1032 : vector<1x512xi1> to vector<4x512xi1>
    %1034 = vector.broadcast %cst_560 : f32 to vector<4x512xf32>
    %1035 = arith.select %1033, %1026, %1034 : vector<4x512xi1>, vector<4x512xf32>
    %c4_561 = arith.constant 4 : index
    %c0_562 = arith.constant 0 : index
    %1036 = vector.load %arg9[%c4_561, %c0_562] : memref<100x512xf32, #tpu.memory_space<vmem>>, vector<4x512xf32>
    tpu.vector_store %arg9[%c4_561, %c0_562], %1035 {strides = array<i32>} : memref<100x512xf32, #tpu.memory_space<vmem>>, vector<4x512xf32>,
    %c32_i32_563 = arith.constant 32 : i32
    %1037 = tpu.dynamic_rotate %1010 by %c32_i32_563 dim 1 : vector<4x512xf32>, i32 -> vector<4x512xf32>
    %c2_i32_564 = arith.constant 2 : i32
    %1038 = vector.broadcast %c2_i32_564 : i32 to vector<1x512xi32>
    %1039 = arith.cmpi sge, %0, %1038 : vector<1x512xi32>
    %cst_565 = arith.constant 0.000000e+00 : f32
    %1040 = vector.shape_cast %1039 : vector<1x512xi1> to vector<1x512xi1>
    %1041 = vector.broadcast %1040 : vector<1x512xi1> to vector<4x512xi1>
    %1042 = vector.broadcast %cst_565 : f32 to vector<4x512xf32>
    %1043 = arith.select %1041, %1037, %1042 : vector<4x512xi1>, vector<4x512xf32>
    %c8_566 = arith.constant 8 : index
    %c0_567 = arith.constant 0 : index
    %1044 = vector.load %arg9[%c8_566, %c0_567] : memref<100x512xf32, #tpu.memory_space<vmem>>, vector<4x512xf32>
    tpu.vector_store %arg9[%c8_566, %c0_567], %1043 {strides = array<i32>} : memref<100x512xf32, #tpu.memory_space<vmem>>, vector<4x512xf32>,
    %c31_i32_568 = arith.constant 31 : i32
    %1045 = tpu.dynamic_rotate %1010 by %c31_i32_568 dim 1 : vector<4x512xf32>, i32 -> vector<4x512xf32>
    %c2_i32_569 = arith.constant 2 : i32
    %1046 = vector.broadcast %c2_i32_569 : i32 to vector<1x512xi32>
    %1047 = arith.cmpi sge, %0, %1046 : vector<1x512xi32>
    %c15_i32_570 = arith.constant 15 : i32
    %1048 = vector.broadcast %c15_i32_570 : i32 to vector<1x512xi32>
    %1049 = arith.cmpi slt, %1, %1048 : vector<1x512xi32>
    %1050 = arith.andi %1047, %1049 : vector<1x512xi1>
    %cst_571 = arith.constant 0.000000e+00 : f32
    %1051 = vector.shape_cast %1050 : vector<1x512xi1> to vector<1x512xi1>
    %1052 = vector.broadcast %1051 : vector<1x512xi1> to vector<4x512xi1>
    %1053 = vector.broadcast %cst_571 : f32 to vector<4x512xf32>
    %1054 = arith.select %1052, %1045, %1053 : vector<4x512xi1>, vector<4x512xf32>
    %c12_572 = arith.constant 12 : index
    %c0_573 = arith.constant 0 : index
    %1055 = vector.load %arg9[%c12_572, %c0_573] : memref<100x512xf32, #tpu.memory_space<vmem>>, vector<4x512xf32>
    tpu.vector_store %arg9[%c12_572, %c0_573], %1054 {strides = array<i32>} : memref<100x512xf32, #tpu.memory_space<vmem>>, vector<4x512xf32>,
    %c30_i32_574 = arith.constant 30 : i32
    %1056 = tpu.dynamic_rotate %1010 by %c30_i32_574 dim 1 : vector<4x512xf32>, i32 -> vector<4x512xf32>
    %c2_i32_575 = arith.constant 2 : i32
    %1057 = vector.broadcast %c2_i32_575 : i32 to vector<1x512xi32>
    %1058 = arith.cmpi sge, %0, %1057 : vector<1x512xi32>
    %c14_i32_576 = arith.constant 14 : i32
    %1059 = vector.broadcast %c14_i32_576 : i32 to vector<1x512xi32>
    %1060 = arith.cmpi slt, %1, %1059 : vector<1x512xi32>
    %1061 = arith.andi %1058, %1060 : vector<1x512xi1>
    %cst_577 = arith.constant 0.000000e+00 : f32
    %1062 = vector.shape_cast %1061 : vector<1x512xi1> to vector<1x512xi1>
    %1063 = vector.broadcast %1062 : vector<1x512xi1> to vector<4x512xi1>
    %1064 = vector.broadcast %cst_577 : f32 to vector<4x512xf32>
    %1065 = arith.select %1063, %1056, %1064 : vector<4x512xi1>, vector<4x512xf32>
    %c16_578 = arith.constant 16 : index
    %c0_579 = arith.constant 0 : index
    %1066 = vector.load %arg9[%c16_578, %c0_579] : memref<100x512xf32, #tpu.memory_space<vmem>>, vector<4x512xf32>
    tpu.vector_store %arg9[%c16_578, %c0_579], %1065 {strides = array<i32>} : memref<100x512xf32, #tpu.memory_space<vmem>>, vector<4x512xf32>,
    %c18_i32_580 = arith.constant 18 : i32
    %1067 = tpu.dynamic_rotate %1010 by %c18_i32_580 dim 1 : vector<4x512xf32>, i32 -> vector<4x512xf32>
    %c1_i32_581 = arith.constant 1 : i32
    %1068 = vector.broadcast %c1_i32_581 : i32 to vector<1x512xi32>
    %1069 = arith.cmpi sge, %0, %1068 : vector<1x512xi32>
    %c2_i32_582 = arith.constant 2 : i32
    %1070 = vector.broadcast %c2_i32_582 : i32 to vector<1x512xi32>
    %1071 = arith.cmpi sge, %1, %1070 : vector<1x512xi32>
    %1072 = arith.andi %1069, %1071 : vector<1x512xi1>
    %cst_583 = arith.constant 0.000000e+00 : f32
    %1073 = vector.shape_cast %1072 : vector<1x512xi1> to vector<1x512xi1>
    %1074 = vector.broadcast %1073 : vector<1x512xi1> to vector<4x512xi1>
    %1075 = vector.broadcast %cst_583 : f32 to vector<4x512xf32>
    %1076 = arith.select %1074, %1067, %1075 : vector<4x512xi1>, vector<4x512xf32>
    %c20_584 = arith.constant 20 : index
    %c0_585 = arith.constant 0 : index
    %1077 = vector.load %arg9[%c20_584, %c0_585] : memref<100x512xf32, #tpu.memory_space<vmem>>, vector<4x512xf32>
    tpu.vector_store %arg9[%c20_584, %c0_585], %1076 {strides = array<i32>} : memref<100x512xf32, #tpu.memory_space<vmem>>, vector<4x512xf32>,
    %c17_i32_586 = arith.constant 17 : i32
    %1078 = tpu.dynamic_rotate %1010 by %c17_i32_586 dim 1 : vector<4x512xf32>, i32 -> vector<4x512xf32>
    %c1_i32_587 = arith.constant 1 : i32
    %1079 = vector.broadcast %c1_i32_587 : i32 to vector<1x512xi32>
    %1080 = arith.cmpi sge, %0, %1079 : vector<1x512xi32>
    %c1_i32_588 = arith.constant 1 : i32
    %1081 = vector.broadcast %c1_i32_588 : i32 to vector<1x512xi32>
    %1082 = arith.cmpi sge, %1, %1081 : vector<1x512xi32>
    %1083 = arith.andi %1080, %1082 : vector<1x512xi1>
    %cst_589 = arith.constant 0.000000e+00 : f32
    %1084 = vector.shape_cast %1083 : vector<1x512xi1> to vector<1x512xi1>
    %1085 = vector.broadcast %1084 : vector<1x512xi1> to vector<4x512xi1>
    %1086 = vector.broadcast %cst_589 : f32 to vector<4x512xf32>
    %1087 = arith.select %1085, %1078, %1086 : vector<4x512xi1>, vector<4x512xf32>
    %c24_590 = arith.constant 24 : index
    %c0_591 = arith.constant 0 : index
    %1088 = vector.load %arg9[%c24_590, %c0_591] : memref<100x512xf32, #tpu.memory_space<vmem>>, vector<4x512xf32>
    tpu.vector_store %arg9[%c24_590, %c0_591], %1087 {strides = array<i32>} : memref<100x512xf32, #tpu.memory_space<vmem>>, vector<4x512xf32>,
    %c16_i32_592 = arith.constant 16 : i32
    %1089 = tpu.dynamic_rotate %1010 by %c16_i32_592 dim 1 : vector<4x512xf32>, i32 -> vector<4x512xf32>
    %c1_i32_593 = arith.constant 1 : i32
    %1090 = vector.broadcast %c1_i32_593 : i32 to vector<1x512xi32>
    %1091 = arith.cmpi sge, %0, %1090 : vector<1x512xi32>
    %cst_594 = arith.constant 0.000000e+00 : f32
    %1092 = vector.shape_cast %1091 : vector<1x512xi1> to vector<1x512xi1>
    %1093 = vector.broadcast %1092 : vector<1x512xi1> to vector<4x512xi1>
    %1094 = vector.broadcast %cst_594 : f32 to vector<4x512xf32>
    %1095 = arith.select %1093, %1089, %1094 : vector<4x512xi1>, vector<4x512xf32>
    %c28_595 = arith.constant 28 : index
    %c0_596 = arith.constant 0 : index
    %1096 = vector.load %arg9[%c28_595, %c0_596] : memref<100x512xf32, #tpu.memory_space<vmem>>, vector<4x512xf32>
    tpu.vector_store %arg9[%c28_595, %c0_596], %1095 {strides = array<i32>} : memref<100x512xf32, #tpu.memory_space<vmem>>, vector<4x512xf32>,
    %c15_i32_597 = arith.constant 15 : i32
    %1097 = tpu.dynamic_rotate %1010 by %c15_i32_597 dim 1 : vector<4x512xf32>, i32 -> vector<4x512xf32>
    %c1_i32_598 = arith.constant 1 : i32
    %1098 = vector.broadcast %c1_i32_598 : i32 to vector<1x512xi32>
    %1099 = arith.cmpi sge, %0, %1098 : vector<1x512xi32>
    %c15_i32_599 = arith.constant 15 : i32
    %1100 = vector.broadcast %c15_i32_599 : i32 to vector<1x512xi32>
    %1101 = arith.cmpi slt, %1, %1100 : vector<1x512xi32>
    %1102 = arith.andi %1099, %1101 : vector<1x512xi1>
    %cst_600 = arith.constant 0.000000e+00 : f32
    %1103 = vector.shape_cast %1102 : vector<1x512xi1> to vector<1x512xi1>
    %1104 = vector.broadcast %1103 : vector<1x512xi1> to vector<4x512xi1>
    %1105 = vector.broadcast %cst_600 : f32 to vector<4x512xf32>
    %1106 = arith.select %1104, %1097, %1105 : vector<4x512xi1>, vector<4x512xf32>
    %c32_601 = arith.constant 32 : index
    %c0_602 = arith.constant 0 : index
    %1107 = vector.load %arg9[%c32_601, %c0_602] : memref<100x512xf32, #tpu.memory_space<vmem>>, vector<4x512xf32>
    tpu.vector_store %arg9[%c32_601, %c0_602], %1106 {strides = array<i32>} : memref<100x512xf32, #tpu.memory_space<vmem>>, vector<4x512xf32>,
    %c14_i32_603 = arith.constant 14 : i32
    %1108 = tpu.dynamic_rotate %1010 by %c14_i32_603 dim 1 : vector<4x512xf32>, i32 -> vector<4x512xf32>
    %c1_i32_604 = arith.constant 1 : i32
    %1109 = vector.broadcast %c1_i32_604 : i32 to vector<1x512xi32>
    %1110 = arith.cmpi sge, %0, %1109 : vector<1x512xi32>
    %c14_i32_605 = arith.constant 14 : i32
    %1111 = vector.broadcast %c14_i32_605 : i32 to vector<1x512xi32>
    %1112 = arith.cmpi slt, %1, %1111 : vector<1x512xi32>
    %1113 = arith.andi %1110, %1112 : vector<1x512xi1>
    %cst_606 = arith.constant 0.000000e+00 : f32
    %1114 = vector.shape_cast %1113 : vector<1x512xi1> to vector<1x512xi1>
    %1115 = vector.broadcast %1114 : vector<1x512xi1> to vector<4x512xi1>
    %1116 = vector.broadcast %cst_606 : f32 to vector<4x512xf32>
    %1117 = arith.select %1115, %1108, %1116 : vector<4x512xi1>, vector<4x512xf32>
    %c36_607 = arith.constant 36 : index
    %c0_608 = arith.constant 0 : index
    %1118 = vector.load %arg9[%c36_607, %c0_608] : memref<100x512xf32, #tpu.memory_space<vmem>>, vector<4x512xf32>
    tpu.vector_store %arg9[%c36_607, %c0_608], %1117 {strides = array<i32>} : memref<100x512xf32, #tpu.memory_space<vmem>>, vector<4x512xf32>,
    %c2_i32_609 = arith.constant 2 : i32
    %1119 = tpu.dynamic_rotate %1010 by %c2_i32_609 dim 1 : vector<4x512xf32>, i32 -> vector<4x512xf32>
    %c2_i32_610 = arith.constant 2 : i32
    %1120 = vector.broadcast %c2_i32_610 : i32 to vector<1x512xi32>
    %1121 = arith.cmpi sge, %1, %1120 : vector<1x512xi32>
    %cst_611 = arith.constant 0.000000e+00 : f32
    %1122 = vector.shape_cast %1121 : vector<1x512xi1> to vector<1x512xi1>
    %1123 = vector.broadcast %1122 : vector<1x512xi1> to vector<4x512xi1>
    %1124 = vector.broadcast %cst_611 : f32 to vector<4x512xf32>
    %1125 = arith.select %1123, %1119, %1124 : vector<4x512xi1>, vector<4x512xf32>
    %c40_612 = arith.constant 40 : index
    %c0_613 = arith.constant 0 : index
    %1126 = vector.load %arg9[%c40_612, %c0_613] : memref<100x512xf32, #tpu.memory_space<vmem>>, vector<4x512xf32>
    tpu.vector_store %arg9[%c40_612, %c0_613], %1125 {strides = array<i32>} : memref<100x512xf32, #tpu.memory_space<vmem>>, vector<4x512xf32>,
    %c1_i32_614 = arith.constant 1 : i32
    %1127 = tpu.dynamic_rotate %1010 by %c1_i32_614 dim 1 : vector<4x512xf32>, i32 -> vector<4x512xf32>
    %c1_i32_615 = arith.constant 1 : i32
    %1128 = vector.broadcast %c1_i32_615 : i32 to vector<1x512xi32>
    %1129 = arith.cmpi sge, %1, %1128 : vector<1x512xi32>
    %cst_616 = arith.constant 0.000000e+00 : f32
    %1130 = vector.shape_cast %1129 : vector<1x512xi1> to vector<1x512xi1>
    %1131 = vector.broadcast %1130 : vector<1x512xi1> to vector<4x512xi1>
    %1132 = vector.broadcast %cst_616 : f32 to vector<4x512xf32>
    %1133 = arith.select %1131, %1127, %1132 : vector<4x512xi1>, vector<4x512xf32>
    %c44_617 = arith.constant 44 : index
    %c0_618 = arith.constant 0 : index
    %1134 = vector.load %arg9[%c44_617, %c0_618] : memref<100x512xf32, #tpu.memory_space<vmem>>, vector<4x512xf32>
    tpu.vector_store %arg9[%c44_617, %c0_618], %1133 {strides = array<i32>} : memref<100x512xf32, #tpu.memory_space<vmem>>, vector<4x512xf32>,
    %c48_619 = arith.constant 48 : index
    %c0_620 = arith.constant 0 : index
    %1135 = vector.load %arg9[%c48_619, %c0_620] : memref<100x512xf32, #tpu.memory_space<vmem>>, vector<4x512xf32>
    tpu.vector_store %arg9[%c48_619, %c0_620], %1010 {strides = array<i32>} : memref<100x512xf32, #tpu.memory_space<vmem>>, vector<4x512xf32>,
    %c511_i32_621 = arith.constant 511 : i32
    %1136 = tpu.dynamic_rotate %1010 by %c511_i32_621 dim 1 : vector<4x512xf32>, i32 -> vector<4x512xf32>
    %c15_i32_622 = arith.constant 15 : i32
    %1137 = vector.broadcast %c15_i32_622 : i32 to vector<1x512xi32>
    %1138 = arith.cmpi slt, %1, %1137 : vector<1x512xi32>
    %cst_623 = arith.constant 0.000000e+00 : f32
    %1139 = vector.shape_cast %1138 : vector<1x512xi1> to vector<1x512xi1>
    %1140 = vector.broadcast %1139 : vector<1x512xi1> to vector<4x512xi1>
    %1141 = vector.broadcast %cst_623 : f32 to vector<4x512xf32>
    %1142 = arith.select %1140, %1136, %1141 : vector<4x512xi1>, vector<4x512xf32>
    %c52_624 = arith.constant 52 : index
    %c0_625 = arith.constant 0 : index
    %1143 = vector.load %arg9[%c52_624, %c0_625] : memref<100x512xf32, #tpu.memory_space<vmem>>, vector<4x512xf32>
    tpu.vector_store %arg9[%c52_624, %c0_625], %1142 {strides = array<i32>} : memref<100x512xf32, #tpu.memory_space<vmem>>, vector<4x512xf32>,
    %c510_i32_626 = arith.constant 510 : i32
    %1144 = tpu.dynamic_rotate %1010 by %c510_i32_626 dim 1 : vector<4x512xf32>, i32 -> vector<4x512xf32>
    %c14_i32_627 = arith.constant 14 : i32
    %1145 = vector.broadcast %c14_i32_627 : i32 to vector<1x512xi32>
    %1146 = arith.cmpi slt, %1, %1145 : vector<1x512xi32>
    %cst_628 = arith.constant 0.000000e+00 : f32
    %1147 = vector.shape_cast %1146 : vector<1x512xi1> to vector<1x512xi1>
    %1148 = vector.broadcast %1147 : vector<1x512xi1> to vector<4x512xi1>
    %1149 = vector.broadcast %cst_628 : f32 to vector<4x512xf32>
    %1150 = arith.select %1148, %1144, %1149 : vector<4x512xi1>, vector<4x512xf32>
    %c56_629 = arith.constant 56 : index
    %c0_630 = arith.constant 0 : index
    %1151 = vector.load %arg9[%c56_629, %c0_630] : memref<100x512xf32, #tpu.memory_space<vmem>>, vector<4x512xf32>
    tpu.vector_store %arg9[%c56_629, %c0_630], %1150 {strides = array<i32>} : memref<100x512xf32, #tpu.memory_space<vmem>>, vector<4x512xf32>,
    %c498_i32_631 = arith.constant 498 : i32
    %1152 = tpu.dynamic_rotate %1010 by %c498_i32_631 dim 1 : vector<4x512xf32>, i32 -> vector<4x512xf32>
    %c15_i32_632 = arith.constant 15 : i32
    %1153 = vector.broadcast %c15_i32_632 : i32 to vector<1x512xi32>
    %1154 = arith.cmpi slt, %0, %1153 : vector<1x512xi32>
    %c2_i32_633 = arith.constant 2 : i32
    %1155 = vector.broadcast %c2_i32_633 : i32 to vector<1x512xi32>
    %1156 = arith.cmpi sge, %1, %1155 : vector<1x512xi32>
    %1157 = arith.andi %1154, %1156 : vector<1x512xi1>
    %cst_634 = arith.constant 0.000000e+00 : f32
    %1158 = vector.shape_cast %1157 : vector<1x512xi1> to vector<1x512xi1>
    %1159 = vector.broadcast %1158 : vector<1x512xi1> to vector<4x512xi1>
    %1160 = vector.broadcast %cst_634 : f32 to vector<4x512xf32>
    %1161 = arith.select %1159, %1152, %1160 : vector<4x512xi1>, vector<4x512xf32>
    %c60_635 = arith.constant 60 : index
    %c0_636 = arith.constant 0 : index
    %1162 = vector.load %arg9[%c60_635, %c0_636] : memref<100x512xf32, #tpu.memory_space<vmem>>, vector<4x512xf32>
    tpu.vector_store %arg9[%c60_635, %c0_636], %1161 {strides = array<i32>} : memref<100x512xf32, #tpu.memory_space<vmem>>, vector<4x512xf32>,
    %c497_i32_637 = arith.constant 497 : i32
    %1163 = tpu.dynamic_rotate %1010 by %c497_i32_637 dim 1 : vector<4x512xf32>, i32 -> vector<4x512xf32>
    %c15_i32_638 = arith.constant 15 : i32
    %1164 = vector.broadcast %c15_i32_638 : i32 to vector<1x512xi32>
    %1165 = arith.cmpi slt, %0, %1164 : vector<1x512xi32>
    %c1_i32_639 = arith.constant 1 : i32
    %1166 = vector.broadcast %c1_i32_639 : i32 to vector<1x512xi32>
    %1167 = arith.cmpi sge, %1, %1166 : vector<1x512xi32>
    %1168 = arith.andi %1165, %1167 : vector<1x512xi1>
    %cst_640 = arith.constant 0.000000e+00 : f32
    %1169 = vector.shape_cast %1168 : vector<1x512xi1> to vector<1x512xi1>
    %1170 = vector.broadcast %1169 : vector<1x512xi1> to vector<4x512xi1>
    %1171 = vector.broadcast %cst_640 : f32 to vector<4x512xf32>
    %1172 = arith.select %1170, %1163, %1171 : vector<4x512xi1>, vector<4x512xf32>
    %c64_641 = arith.constant 64 : index
    %c0_642 = arith.constant 0 : index
    %1173 = vector.load %arg9[%c64_641, %c0_642] : memref<100x512xf32, #tpu.memory_space<vmem>>, vector<4x512xf32>
    tpu.vector_store %arg9[%c64_641, %c0_642], %1172 {strides = array<i32>} : memref<100x512xf32, #tpu.memory_space<vmem>>, vector<4x512xf32>,
    %c496_i32_643 = arith.constant 496 : i32
    %1174 = tpu.dynamic_rotate %1010 by %c496_i32_643 dim 1 : vector<4x512xf32>, i32 -> vector<4x512xf32>
    %c15_i32_644 = arith.constant 15 : i32
    %1175 = vector.broadcast %c15_i32_644 : i32 to vector<1x512xi32>
    %1176 = arith.cmpi slt, %0, %1175 : vector<1x512xi32>
    %cst_645 = arith.constant 0.000000e+00 : f32
    %1177 = vector.shape_cast %1176 : vector<1x512xi1> to vector<1x512xi1>
    %1178 = vector.broadcast %1177 : vector<1x512xi1> to vector<4x512xi1>
    %1179 = vector.broadcast %cst_645 : f32 to vector<4x512xf32>
    %1180 = arith.select %1178, %1174, %1179 : vector<4x512xi1>, vector<4x512xf32>
    %c68_646 = arith.constant 68 : index
    %c0_647 = arith.constant 0 : index
    %1181 = vector.load %arg9[%c68_646, %c0_647] : memref<100x512xf32, #tpu.memory_space<vmem>>, vector<4x512xf32>
    tpu.vector_store %arg9[%c68_646, %c0_647], %1180 {strides = array<i32>} : memref<100x512xf32, #tpu.memory_space<vmem>>, vector<4x512xf32>,
    %c495_i32_648 = arith.constant 495 : i32
    %1182 = tpu.dynamic_rotate %1010 by %c495_i32_648 dim 1 : vector<4x512xf32>, i32 -> vector<4x512xf32>
    %c15_i32_649 = arith.constant 15 : i32
    %1183 = vector.broadcast %c15_i32_649 : i32 to vector<1x512xi32>
    %1184 = arith.cmpi slt, %0, %1183 : vector<1x512xi32>
    %c15_i32_650 = arith.constant 15 : i32
    %1185 = vector.broadcast %c15_i32_650 : i32 to vector<1x512xi32>
    %1186 = arith.cmpi slt, %1, %1185 : vector<1x512xi32>
    %1187 = arith.andi %1184, %1186 : vector<1x512xi1>
    %cst_651 = arith.constant 0.000000e+00 : f32
    %1188 = vector.shape_cast %1187 : vector<1x512xi1> to vector<1x512xi1>
    %1189 = vector.broadcast %1188 : vector<1x512xi1> to vector<4x512xi1>
    %1190 = vector.broadcast %cst_651 : f32 to vector<4x512xf32>
    %1191 = arith.select %1189, %1182, %1190 : vector<4x512xi1>, vector<4x512xf32>
    %c72_652 = arith.constant 72 : index
    %c0_653 = arith.constant 0 : index
    %1192 = vector.load %arg9[%c72_652, %c0_653] : memref<100x512xf32, #tpu.memory_space<vmem>>, vector<4x512xf32>
    tpu.vector_store %arg9[%c72_652, %c0_653], %1191 {strides = array<i32>} : memref<100x512xf32, #tpu.memory_space<vmem>>, vector<4x512xf32>,
    %c494_i32_654 = arith.constant 494 : i32
    %1193 = tpu.dynamic_rotate %1010 by %c494_i32_654 dim 1 : vector<4x512xf32>, i32 -> vector<4x512xf32>
    %c15_i32_655 = arith.constant 15 : i32
    %1194 = vector.broadcast %c15_i32_655 : i32 to vector<1x512xi32>
    %1195 = arith.cmpi slt, %0, %1194 : vector<1x512xi32>
    %c14_i32_656 = arith.constant 14 : i32
    %1196 = vector.broadcast %c14_i32_656 : i32 to vector<1x512xi32>
    %1197 = arith.cmpi slt, %1, %1196 : vector<1x512xi32>
    %1198 = arith.andi %1195, %1197 : vector<1x512xi1>
    %cst_657 = arith.constant 0.000000e+00 : f32
    %1199 = vector.shape_cast %1198 : vector<1x512xi1> to vector<1x512xi1>
    %1200 = vector.broadcast %1199 : vector<1x512xi1> to vector<4x512xi1>
    %1201 = vector.broadcast %cst_657 : f32 to vector<4x512xf32>
    %1202 = arith.select %1200, %1193, %1201 : vector<4x512xi1>, vector<4x512xf32>
    %c76_658 = arith.constant 76 : index
    %c0_659 = arith.constant 0 : index
    %1203 = vector.load %arg9[%c76_658, %c0_659] : memref<100x512xf32, #tpu.memory_space<vmem>>, vector<4x512xf32>
    tpu.vector_store %arg9[%c76_658, %c0_659], %1202 {strides = array<i32>} : memref<100x512xf32, #tpu.memory_space<vmem>>, vector<4x512xf32>,
    %c482_i32_660 = arith.constant 482 : i32
    %1204 = tpu.dynamic_rotate %1010 by %c482_i32_660 dim 1 : vector<4x512xf32>, i32 -> vector<4x512xf32>
    %c14_i32_661 = arith.constant 14 : i32
    %1205 = vector.broadcast %c14_i32_661 : i32 to vector<1x512xi32>
    %1206 = arith.cmpi slt, %0, %1205 : vector<1x512xi32>
    %c2_i32_662 = arith.constant 2 : i32
    %1207 = vector.broadcast %c2_i32_662 : i32 to vector<1x512xi32>
    %1208 = arith.cmpi sge, %1, %1207 : vector<1x512xi32>
    %1209 = arith.andi %1206, %1208 : vector<1x512xi1>
    %cst_663 = arith.constant 0.000000e+00 : f32
    %1210 = vector.shape_cast %1209 : vector<1x512xi1> to vector<1x512xi1>
    %1211 = vector.broadcast %1210 : vector<1x512xi1> to vector<4x512xi1>
    %1212 = vector.broadcast %cst_663 : f32 to vector<4x512xf32>
    %1213 = arith.select %1211, %1204, %1212 : vector<4x512xi1>, vector<4x512xf32>
    %c80_664 = arith.constant 80 : index
    %c0_665 = arith.constant 0 : index
    %1214 = vector.load %arg9[%c80_664, %c0_665] : memref<100x512xf32, #tpu.memory_space<vmem>>, vector<4x512xf32>
    tpu.vector_store %arg9[%c80_664, %c0_665], %1213 {strides = array<i32>} : memref<100x512xf32, #tpu.memory_space<vmem>>, vector<4x512xf32>,
    %c481_i32_666 = arith.constant 481 : i32
    %1215 = tpu.dynamic_rotate %1010 by %c481_i32_666 dim 1 : vector<4x512xf32>, i32 -> vector<4x512xf32>
    %c14_i32_667 = arith.constant 14 : i32
    %1216 = vector.broadcast %c14_i32_667 : i32 to vector<1x512xi32>
    %1217 = arith.cmpi slt, %0, %1216 : vector<1x512xi32>
    %c1_i32_668 = arith.constant 1 : i32
    %1218 = vector.broadcast %c1_i32_668 : i32 to vector<1x512xi32>
    %1219 = arith.cmpi sge, %1, %1218 : vector<1x512xi32>
    %1220 = arith.andi %1217, %1219 : vector<1x512xi1>
    %cst_669 = arith.constant 0.000000e+00 : f32
    %1221 = vector.shape_cast %1220 : vector<1x512xi1> to vector<1x512xi1>
    %1222 = vector.broadcast %1221 : vector<1x512xi1> to vector<4x512xi1>
    %1223 = vector.broadcast %cst_669 : f32 to vector<4x512xf32>
    %1224 = arith.select %1222, %1215, %1223 : vector<4x512xi1>, vector<4x512xf32>
    %c84_670 = arith.constant 84 : index
    %c0_671 = arith.constant 0 : index
    %1225 = vector.load %arg9[%c84_670, %c0_671] : memref<100x512xf32, #tpu.memory_space<vmem>>, vector<4x512xf32>
    tpu.vector_store %arg9[%c84_670, %c0_671], %1224 {strides = array<i32>} : memref<100x512xf32, #tpu.memory_space<vmem>>, vector<4x512xf32>,
    %c480_i32_672 = arith.constant 480 : i32
    %1226 = tpu.dynamic_rotate %1010 by %c480_i32_672 dim 1 : vector<4x512xf32>, i32 -> vector<4x512xf32>
    %c14_i32_673 = arith.constant 14 : i32
    %1227 = vector.broadcast %c14_i32_673 : i32 to vector<1x512xi32>
    %1228 = arith.cmpi slt, %0, %1227 : vector<1x512xi32>
    %cst_674 = arith.constant 0.000000e+00 : f32
    %1229 = vector.shape_cast %1228 : vector<1x512xi1> to vector<1x512xi1>
    %1230 = vector.broadcast %1229 : vector<1x512xi1> to vector<4x512xi1>
    %1231 = vector.broadcast %cst_674 : f32 to vector<4x512xf32>
    %1232 = arith.select %1230, %1226, %1231 : vector<4x512xi1>, vector<4x512xf32>
    %c88_675 = arith.constant 88 : index
    %c0_676 = arith.constant 0 : index
    %1233 = vector.load %arg9[%c88_675, %c0_676] : memref<100x512xf32, #tpu.memory_space<vmem>>, vector<4x512xf32>
    tpu.vector_store %arg9[%c88_675, %c0_676], %1232 {strides = array<i32>} : memref<100x512xf32, #tpu.memory_space<vmem>>, vector<4x512xf32>,
    %c479_i32_677 = arith.constant 479 : i32
    %1234 = tpu.dynamic_rotate %1010 by %c479_i32_677 dim 1 : vector<4x512xf32>, i32 -> vector<4x512xf32>
    %c14_i32_678 = arith.constant 14 : i32
    %1235 = vector.broadcast %c14_i32_678 : i32 to vector<1x512xi32>
    %1236 = arith.cmpi slt, %0, %1235 : vector<1x512xi32>
    %c15_i32_679 = arith.constant 15 : i32
    %1237 = vector.broadcast %c15_i32_679 : i32 to vector<1x512xi32>
    %1238 = arith.cmpi slt, %1, %1237 : vector<1x512xi32>
    %1239 = arith.andi %1236, %1238 : vector<1x512xi1>
    %cst_680 = arith.constant 0.000000e+00 : f32
    %1240 = vector.shape_cast %1239 : vector<1x512xi1> to vector<1x512xi1>
    %1241 = vector.broadcast %1240 : vector<1x512xi1> to vector<4x512xi1>
    %1242 = vector.broadcast %cst_680 : f32 to vector<4x512xf32>
    %1243 = arith.select %1241, %1234, %1242 : vector<4x512xi1>, vector<4x512xf32>
    %c92_681 = arith.constant 92 : index
    %c0_682 = arith.constant 0 : index
    %1244 = vector.load %arg9[%c92_681, %c0_682] : memref<100x512xf32, #tpu.memory_space<vmem>>, vector<4x512xf32>
    tpu.vector_store %arg9[%c92_681, %c0_682], %1243 {strides = array<i32>} : memref<100x512xf32, #tpu.memory_space<vmem>>, vector<4x512xf32>,
    %c478_i32_683 = arith.constant 478 : i32
    %1245 = tpu.dynamic_rotate %1010 by %c478_i32_683 dim 1 : vector<4x512xf32>, i32 -> vector<4x512xf32>
    %c14_i32_684 = arith.constant 14 : i32
    %1246 = vector.broadcast %c14_i32_684 : i32 to vector<1x512xi32>
    %1247 = arith.cmpi slt, %0, %1246 : vector<1x512xi32>
    %c14_i32_685 = arith.constant 14 : i32
    %1248 = vector.broadcast %c14_i32_685 : i32 to vector<1x512xi32>
    %1249 = arith.cmpi slt, %1, %1248 : vector<1x512xi32>
    %1250 = arith.andi %1247, %1249 : vector<1x512xi1>
    %cst_686 = arith.constant 0.000000e+00 : f32
    %1251 = vector.shape_cast %1250 : vector<1x512xi1> to vector<1x512xi1>
    %1252 = vector.broadcast %1251 : vector<1x512xi1> to vector<4x512xi1>
    %1253 = vector.broadcast %cst_686 : f32 to vector<4x512xf32>
    %1254 = arith.select %1252, %1245, %1253 : vector<4x512xi1>, vector<4x512xf32>
    %c96_687 = arith.constant 96 : index
    %c0_688 = arith.constant 0 : index
    %1255 = vector.load %arg9[%c96_687, %c0_688] : memref<100x512xf32, #tpu.memory_space<vmem>>, vector<4x512xf32>
    tpu.vector_store %arg9[%c96_687, %c0_688], %1254 {strides = array<i32>} : memref<100x512xf32, #tpu.memory_space<vmem>>, vector<4x512xf32>,
    %c0_689 = arith.constant 0 : index
    %c0_690 = arith.constant 0 : index
    %1256 = vector.load %arg9[%c0_689, %c0_690] : memref<100x512xf32, #tpu.memory_space<vmem>>, vector<100x512xf32>
    %cst_691 = arith.constant dense<0.000000e+00> : vector<4x512xf32>
    %1257 = tpu.matmul %1012, %1256, %cst_691 {dimension_numbers = #tpu.dot_dimension_numbers<[1], [0], [0], [1], [0, 0, 1, 1], [], []>} : vector<4x100xf32>, vector<100x512xf32>, vector<4x512xf32> -> vector<4x512xf32>
    %1258 = vector.broadcast %1014 : vector<4x1xf32> to vector<4x512xf32>
    %1259 = arith.addf %1257, %1258 : vector<4x512xf32>
    %cst_692 = arith.constant 0.000000e+00 : f32
    %1260 = vector.broadcast %cst_692 : f32 to vector<4x512xf32>
    %1261 = arith.cmpf oge, %1259, %1260 : vector<4x512xf32>
    %cst_693 = arith.constant 2.000000e-01 : f32
    %1262 = vector.broadcast %cst_693 : f32 to vector<4x512xf32>
    %1263 = arith.mulf %1262, %1259 : vector<4x512xf32>
    %1264 = arith.select %1261, %1259, %1263 : vector<4x512xi1>, vector<4x512xf32>
    %c5 = arith.constant 5 : index
    %c0_694 = arith.constant 0 : index
    %c0_695 = arith.constant 0 : index
    %1265 = vector.load %arg4[%c5, %c0_694, %c0_695] : memref<6x4x100xf32, #tpu.memory_space<vmem>>, vector<1x4x100xf32>
    %1266 = vector.shape_cast %1265 : vector<1x4x100xf32> to vector<4x100xf32>
    %c5_696 = arith.constant 5 : index
    %c0_697 = arith.constant 0 : index
    %c0_698 = arith.constant 0 : index
    %1267 = vector.load %arg5[%c5_696, %c0_697, %c0_698] : memref<6x4x1xf32, #tpu.memory_space<vmem>>, vector<1x4x1xf32>
    %1268 = vector.shape_cast %1267 : vector<1x4x1xf32> to vector<4x1xf32>
    %c34_i32_699 = arith.constant 34 : i32
    %1269 = tpu.dynamic_rotate %1264 by %c34_i32_699 dim 1 : vector<4x512xf32>, i32 -> vector<4x512xf32>
    %c2_i32_700 = arith.constant 2 : i32
    %1270 = vector.broadcast %c2_i32_700 : i32 to vector<1x512xi32>
    %1271 = arith.cmpi sge, %0, %1270 : vector<1x512xi32>
    %c2_i32_701 = arith.constant 2 : i32
    %1272 = vector.broadcast %c2_i32_701 : i32 to vector<1x512xi32>
    %1273 = arith.cmpi sge, %1, %1272 : vector<1x512xi32>
    %1274 = arith.andi %1271, %1273 : vector<1x512xi1>
    %cst_702 = arith.constant 0.000000e+00 : f32
    %1275 = vector.shape_cast %1274 : vector<1x512xi1> to vector<1x512xi1>
    %1276 = vector.broadcast %1275 : vector<1x512xi1> to vector<4x512xi1>
    %1277 = vector.broadcast %cst_702 : f32 to vector<4x512xf32>
    %1278 = arith.select %1276, %1269, %1277 : vector<4x512xi1>, vector<4x512xf32>
    %c0_703 = arith.constant 0 : index
    %c0_704 = arith.constant 0 : index
    %1279 = vector.load %arg9[%c0_703, %c0_704] : memref<100x512xf32, #tpu.memory_space<vmem>>, vector<4x512xf32>
    tpu.vector_store %arg9[%c0_703, %c0_704], %1278 {strides = array<i32>} : memref<100x512xf32, #tpu.memory_space<vmem>>, vector<4x512xf32>,
    %c33_i32_705 = arith.constant 33 : i32
    %1280 = tpu.dynamic_rotate %1264 by %c33_i32_705 dim 1 : vector<4x512xf32>, i32 -> vector<4x512xf32>
    %c2_i32_706 = arith.constant 2 : i32
    %1281 = vector.broadcast %c2_i32_706 : i32 to vector<1x512xi32>
    %1282 = arith.cmpi sge, %0, %1281 : vector<1x512xi32>
    %c1_i32_707 = arith.constant 1 : i32
    %1283 = vector.broadcast %c1_i32_707 : i32 to vector<1x512xi32>
    %1284 = arith.cmpi sge, %1, %1283 : vector<1x512xi32>
    %1285 = arith.andi %1282, %1284 : vector<1x512xi1>
    %cst_708 = arith.constant 0.000000e+00 : f32
    %1286 = vector.shape_cast %1285 : vector<1x512xi1> to vector<1x512xi1>
    %1287 = vector.broadcast %1286 : vector<1x512xi1> to vector<4x512xi1>
    %1288 = vector.broadcast %cst_708 : f32 to vector<4x512xf32>
    %1289 = arith.select %1287, %1280, %1288 : vector<4x512xi1>, vector<4x512xf32>
    %c4_709 = arith.constant 4 : index
    %c0_710 = arith.constant 0 : index
    %1290 = vector.load %arg9[%c4_709, %c0_710] : memref<100x512xf32, #tpu.memory_space<vmem>>, vector<4x512xf32>
    tpu.vector_store %arg9[%c4_709, %c0_710], %1289 {strides = array<i32>} : memref<100x512xf32, #tpu.memory_space<vmem>>, vector<4x512xf32>,
    %c32_i32_711 = arith.constant 32 : i32
    %1291 = tpu.dynamic_rotate %1264 by %c32_i32_711 dim 1 : vector<4x512xf32>, i32 -> vector<4x512xf32>
    %c2_i32_712 = arith.constant 2 : i32
    %1292 = vector.broadcast %c2_i32_712 : i32 to vector<1x512xi32>
    %1293 = arith.cmpi sge, %0, %1292 : vector<1x512xi32>
    %cst_713 = arith.constant 0.000000e+00 : f32
    %1294 = vector.shape_cast %1293 : vector<1x512xi1> to vector<1x512xi1>
    %1295 = vector.broadcast %1294 : vector<1x512xi1> to vector<4x512xi1>
    %1296 = vector.broadcast %cst_713 : f32 to vector<4x512xf32>
    %1297 = arith.select %1295, %1291, %1296 : vector<4x512xi1>, vector<4x512xf32>
    %c8_714 = arith.constant 8 : index
    %c0_715 = arith.constant 0 : index
    %1298 = vector.load %arg9[%c8_714, %c0_715] : memref<100x512xf32, #tpu.memory_space<vmem>>, vector<4x512xf32>
    tpu.vector_store %arg9[%c8_714, %c0_715], %1297 {strides = array<i32>} : memref<100x512xf32, #tpu.memory_space<vmem>>, vector<4x512xf32>,
    %c31_i32_716 = arith.constant 31 : i32
    %1299 = tpu.dynamic_rotate %1264 by %c31_i32_716 dim 1 : vector<4x512xf32>, i32 -> vector<4x512xf32>
    %c2_i32_717 = arith.constant 2 : i32
    %1300 = vector.broadcast %c2_i32_717 : i32 to vector<1x512xi32>
    %1301 = arith.cmpi sge, %0, %1300 : vector<1x512xi32>
    %c15_i32_718 = arith.constant 15 : i32
    %1302 = vector.broadcast %c15_i32_718 : i32 to vector<1x512xi32>
    %1303 = arith.cmpi slt, %1, %1302 : vector<1x512xi32>
    %1304 = arith.andi %1301, %1303 : vector<1x512xi1>
    %cst_719 = arith.constant 0.000000e+00 : f32
    %1305 = vector.shape_cast %1304 : vector<1x512xi1> to vector<1x512xi1>
    %1306 = vector.broadcast %1305 : vector<1x512xi1> to vector<4x512xi1>
    %1307 = vector.broadcast %cst_719 : f32 to vector<4x512xf32>
    %1308 = arith.select %1306, %1299, %1307 : vector<4x512xi1>, vector<4x512xf32>
    %c12_720 = arith.constant 12 : index
    %c0_721 = arith.constant 0 : index
    %1309 = vector.load %arg9[%c12_720, %c0_721] : memref<100x512xf32, #tpu.memory_space<vmem>>, vector<4x512xf32>
    tpu.vector_store %arg9[%c12_720, %c0_721], %1308 {strides = array<i32>} : memref<100x512xf32, #tpu.memory_space<vmem>>, vector<4x512xf32>,
    %c30_i32_722 = arith.constant 30 : i32
    %1310 = tpu.dynamic_rotate %1264 by %c30_i32_722 dim 1 : vector<4x512xf32>, i32 -> vector<4x512xf32>
    %c2_i32_723 = arith.constant 2 : i32
    %1311 = vector.broadcast %c2_i32_723 : i32 to vector<1x512xi32>
    %1312 = arith.cmpi sge, %0, %1311 : vector<1x512xi32>
    %c14_i32_724 = arith.constant 14 : i32
    %1313 = vector.broadcast %c14_i32_724 : i32 to vector<1x512xi32>
    %1314 = arith.cmpi slt, %1, %1313 : vector<1x512xi32>
    %1315 = arith.andi %1312, %1314 : vector<1x512xi1>
    %cst_725 = arith.constant 0.000000e+00 : f32
    %1316 = vector.shape_cast %1315 : vector<1x512xi1> to vector<1x512xi1>
    %1317 = vector.broadcast %1316 : vector<1x512xi1> to vector<4x512xi1>
    %1318 = vector.broadcast %cst_725 : f32 to vector<4x512xf32>
    %1319 = arith.select %1317, %1310, %1318 : vector<4x512xi1>, vector<4x512xf32>
    %c16_726 = arith.constant 16 : index
    %c0_727 = arith.constant 0 : index
    %1320 = vector.load %arg9[%c16_726, %c0_727] : memref<100x512xf32, #tpu.memory_space<vmem>>, vector<4x512xf32>
    tpu.vector_store %arg9[%c16_726, %c0_727], %1319 {strides = array<i32>} : memref<100x512xf32, #tpu.memory_space<vmem>>, vector<4x512xf32>,
    %c18_i32_728 = arith.constant 18 : i32
    %1321 = tpu.dynamic_rotate %1264 by %c18_i32_728 dim 1 : vector<4x512xf32>, i32 -> vector<4x512xf32>
    %c1_i32_729 = arith.constant 1 : i32
    %1322 = vector.broadcast %c1_i32_729 : i32 to vector<1x512xi32>
    %1323 = arith.cmpi sge, %0, %1322 : vector<1x512xi32>
    %c2_i32_730 = arith.constant 2 : i32
    %1324 = vector.broadcast %c2_i32_730 : i32 to vector<1x512xi32>
    %1325 = arith.cmpi sge, %1, %1324 : vector<1x512xi32>
    %1326 = arith.andi %1323, %1325 : vector<1x512xi1>
    %cst_731 = arith.constant 0.000000e+00 : f32
    %1327 = vector.shape_cast %1326 : vector<1x512xi1> to vector<1x512xi1>
    %1328 = vector.broadcast %1327 : vector<1x512xi1> to vector<4x512xi1>
    %1329 = vector.broadcast %cst_731 : f32 to vector<4x512xf32>
    %1330 = arith.select %1328, %1321, %1329 : vector<4x512xi1>, vector<4x512xf32>
    %c20_732 = arith.constant 20 : index
    %c0_733 = arith.constant 0 : index
    %1331 = vector.load %arg9[%c20_732, %c0_733] : memref<100x512xf32, #tpu.memory_space<vmem>>, vector<4x512xf32>
    tpu.vector_store %arg9[%c20_732, %c0_733], %1330 {strides = array<i32>} : memref<100x512xf32, #tpu.memory_space<vmem>>, vector<4x512xf32>,
    %c17_i32_734 = arith.constant 17 : i32
    %1332 = tpu.dynamic_rotate %1264 by %c17_i32_734 dim 1 : vector<4x512xf32>, i32 -> vector<4x512xf32>
    %c1_i32_735 = arith.constant 1 : i32
    %1333 = vector.broadcast %c1_i32_735 : i32 to vector<1x512xi32>
    %1334 = arith.cmpi sge, %0, %1333 : vector<1x512xi32>
    %c1_i32_736 = arith.constant 1 : i32
    %1335 = vector.broadcast %c1_i32_736 : i32 to vector<1x512xi32>
    %1336 = arith.cmpi sge, %1, %1335 : vector<1x512xi32>
    %1337 = arith.andi %1334, %1336 : vector<1x512xi1>
    %cst_737 = arith.constant 0.000000e+00 : f32
    %1338 = vector.shape_cast %1337 : vector<1x512xi1> to vector<1x512xi1>
    %1339 = vector.broadcast %1338 : vector<1x512xi1> to vector<4x512xi1>
    %1340 = vector.broadcast %cst_737 : f32 to vector<4x512xf32>
    %1341 = arith.select %1339, %1332, %1340 : vector<4x512xi1>, vector<4x512xf32>
    %c24_738 = arith.constant 24 : index
    %c0_739 = arith.constant 0 : index
    %1342 = vector.load %arg9[%c24_738, %c0_739] : memref<100x512xf32, #tpu.memory_space<vmem>>, vector<4x512xf32>
    tpu.vector_store %arg9[%c24_738, %c0_739], %1341 {strides = array<i32>} : memref<100x512xf32, #tpu.memory_space<vmem>>, vector<4x512xf32>,
    %c16_i32_740 = arith.constant 16 : i32
    %1343 = tpu.dynamic_rotate %1264 by %c16_i32_740 dim 1 : vector<4x512xf32>, i32 -> vector<4x512xf32>
    %c1_i32_741 = arith.constant 1 : i32
    %1344 = vector.broadcast %c1_i32_741 : i32 to vector<1x512xi32>
    %1345 = arith.cmpi sge, %0, %1344 : vector<1x512xi32>
    %cst_742 = arith.constant 0.000000e+00 : f32
    %1346 = vector.shape_cast %1345 : vector<1x512xi1> to vector<1x512xi1>
    %1347 = vector.broadcast %1346 : vector<1x512xi1> to vector<4x512xi1>
    %1348 = vector.broadcast %cst_742 : f32 to vector<4x512xf32>
    %1349 = arith.select %1347, %1343, %1348 : vector<4x512xi1>, vector<4x512xf32>
    %c28_743 = arith.constant 28 : index
    %c0_744 = arith.constant 0 : index
    %1350 = vector.load %arg9[%c28_743, %c0_744] : memref<100x512xf32, #tpu.memory_space<vmem>>, vector<4x512xf32>
    tpu.vector_store %arg9[%c28_743, %c0_744], %1349 {strides = array<i32>} : memref<100x512xf32, #tpu.memory_space<vmem>>, vector<4x512xf32>,
    %c15_i32_745 = arith.constant 15 : i32
    %1351 = tpu.dynamic_rotate %1264 by %c15_i32_745 dim 1 : vector<4x512xf32>, i32 -> vector<4x512xf32>
    %c1_i32_746 = arith.constant 1 : i32
    %1352 = vector.broadcast %c1_i32_746 : i32 to vector<1x512xi32>
    %1353 = arith.cmpi sge, %0, %1352 : vector<1x512xi32>
    %c15_i32_747 = arith.constant 15 : i32
    %1354 = vector.broadcast %c15_i32_747 : i32 to vector<1x512xi32>
    %1355 = arith.cmpi slt, %1, %1354 : vector<1x512xi32>
    %1356 = arith.andi %1353, %1355 : vector<1x512xi1>
    %cst_748 = arith.constant 0.000000e+00 : f32
    %1357 = vector.shape_cast %1356 : vector<1x512xi1> to vector<1x512xi1>
    %1358 = vector.broadcast %1357 : vector<1x512xi1> to vector<4x512xi1>
    %1359 = vector.broadcast %cst_748 : f32 to vector<4x512xf32>
    %1360 = arith.select %1358, %1351, %1359 : vector<4x512xi1>, vector<4x512xf32>
    %c32_749 = arith.constant 32 : index
    %c0_750 = arith.constant 0 : index
    %1361 = vector.load %arg9[%c32_749, %c0_750] : memref<100x512xf32, #tpu.memory_space<vmem>>, vector<4x512xf32>
    tpu.vector_store %arg9[%c32_749, %c0_750], %1360 {strides = array<i32>} : memref<100x512xf32, #tpu.memory_space<vmem>>, vector<4x512xf32>,
    %c14_i32_751 = arith.constant 14 : i32
    %1362 = tpu.dynamic_rotate %1264 by %c14_i32_751 dim 1 : vector<4x512xf32>, i32 -> vector<4x512xf32>
    %c1_i32_752 = arith.constant 1 : i32
    %1363 = vector.broadcast %c1_i32_752 : i32 to vector<1x512xi32>
    %1364 = arith.cmpi sge, %0, %1363 : vector<1x512xi32>
    %c14_i32_753 = arith.constant 14 : i32
    %1365 = vector.broadcast %c14_i32_753 : i32 to vector<1x512xi32>
    %1366 = arith.cmpi slt, %1, %1365 : vector<1x512xi32>
    %1367 = arith.andi %1364, %1366 : vector<1x512xi1>
    %cst_754 = arith.constant 0.000000e+00 : f32
    %1368 = vector.shape_cast %1367 : vector<1x512xi1> to vector<1x512xi1>
    %1369 = vector.broadcast %1368 : vector<1x512xi1> to vector<4x512xi1>
    %1370 = vector.broadcast %cst_754 : f32 to vector<4x512xf32>
    %1371 = arith.select %1369, %1362, %1370 : vector<4x512xi1>, vector<4x512xf32>
    %c36_755 = arith.constant 36 : index
    %c0_756 = arith.constant 0 : index
    %1372 = vector.load %arg9[%c36_755, %c0_756] : memref<100x512xf32, #tpu.memory_space<vmem>>, vector<4x512xf32>
    tpu.vector_store %arg9[%c36_755, %c0_756], %1371 {strides = array<i32>} : memref<100x512xf32, #tpu.memory_space<vmem>>, vector<4x512xf32>,
    %c2_i32_757 = arith.constant 2 : i32
    %1373 = tpu.dynamic_rotate %1264 by %c2_i32_757 dim 1 : vector<4x512xf32>, i32 -> vector<4x512xf32>
    %c2_i32_758 = arith.constant 2 : i32
    %1374 = vector.broadcast %c2_i32_758 : i32 to vector<1x512xi32>
    %1375 = arith.cmpi sge, %1, %1374 : vector<1x512xi32>
    %cst_759 = arith.constant 0.000000e+00 : f32
    %1376 = vector.shape_cast %1375 : vector<1x512xi1> to vector<1x512xi1>
    %1377 = vector.broadcast %1376 : vector<1x512xi1> to vector<4x512xi1>
    %1378 = vector.broadcast %cst_759 : f32 to vector<4x512xf32>
    %1379 = arith.select %1377, %1373, %1378 : vector<4x512xi1>, vector<4x512xf32>
    %c40_760 = arith.constant 40 : index
    %c0_761 = arith.constant 0 : index
    %1380 = vector.load %arg9[%c40_760, %c0_761] : memref<100x512xf32, #tpu.memory_space<vmem>>, vector<4x512xf32>
    tpu.vector_store %arg9[%c40_760, %c0_761], %1379 {strides = array<i32>} : memref<100x512xf32, #tpu.memory_space<vmem>>, vector<4x512xf32>,
    %c1_i32_762 = arith.constant 1 : i32
    %1381 = tpu.dynamic_rotate %1264 by %c1_i32_762 dim 1 : vector<4x512xf32>, i32 -> vector<4x512xf32>
    %c1_i32_763 = arith.constant 1 : i32
    %1382 = vector.broadcast %c1_i32_763 : i32 to vector<1x512xi32>
    %1383 = arith.cmpi sge, %1, %1382 : vector<1x512xi32>
    %cst_764 = arith.constant 0.000000e+00 : f32
    %1384 = vector.shape_cast %1383 : vector<1x512xi1> to vector<1x512xi1>
    %1385 = vector.broadcast %1384 : vector<1x512xi1> to vector<4x512xi1>
    %1386 = vector.broadcast %cst_764 : f32 to vector<4x512xf32>
    %1387 = arith.select %1385, %1381, %1386 : vector<4x512xi1>, vector<4x512xf32>
    %c44_765 = arith.constant 44 : index
    %c0_766 = arith.constant 0 : index
    %1388 = vector.load %arg9[%c44_765, %c0_766] : memref<100x512xf32, #tpu.memory_space<vmem>>, vector<4x512xf32>
    tpu.vector_store %arg9[%c44_765, %c0_766], %1387 {strides = array<i32>} : memref<100x512xf32, #tpu.memory_space<vmem>>, vector<4x512xf32>,
    %c48_767 = arith.constant 48 : index
    %c0_768 = arith.constant 0 : index
    %1389 = vector.load %arg9[%c48_767, %c0_768] : memref<100x512xf32, #tpu.memory_space<vmem>>, vector<4x512xf32>
    tpu.vector_store %arg9[%c48_767, %c0_768], %1264 {strides = array<i32>} : memref<100x512xf32, #tpu.memory_space<vmem>>, vector<4x512xf32>,
    %c511_i32_769 = arith.constant 511 : i32
    %1390 = tpu.dynamic_rotate %1264 by %c511_i32_769 dim 1 : vector<4x512xf32>, i32 -> vector<4x512xf32>
    %c15_i32_770 = arith.constant 15 : i32
    %1391 = vector.broadcast %c15_i32_770 : i32 to vector<1x512xi32>
    %1392 = arith.cmpi slt, %1, %1391 : vector<1x512xi32>
    %cst_771 = arith.constant 0.000000e+00 : f32
    %1393 = vector.shape_cast %1392 : vector<1x512xi1> to vector<1x512xi1>
    %1394 = vector.broadcast %1393 : vector<1x512xi1> to vector<4x512xi1>
    %1395 = vector.broadcast %cst_771 : f32 to vector<4x512xf32>
    %1396 = arith.select %1394, %1390, %1395 : vector<4x512xi1>, vector<4x512xf32>
    %c52_772 = arith.constant 52 : index
    %c0_773 = arith.constant 0 : index
    %1397 = vector.load %arg9[%c52_772, %c0_773] : memref<100x512xf32, #tpu.memory_space<vmem>>, vector<4x512xf32>
    tpu.vector_store %arg9[%c52_772, %c0_773], %1396 {strides = array<i32>} : memref<100x512xf32, #tpu.memory_space<vmem>>, vector<4x512xf32>,
    %c510_i32_774 = arith.constant 510 : i32
    %1398 = tpu.dynamic_rotate %1264 by %c510_i32_774 dim 1 : vector<4x512xf32>, i32 -> vector<4x512xf32>
    %c14_i32_775 = arith.constant 14 : i32
    %1399 = vector.broadcast %c14_i32_775 : i32 to vector<1x512xi32>
    %1400 = arith.cmpi slt, %1, %1399 : vector<1x512xi32>
    %cst_776 = arith.constant 0.000000e+00 : f32
    %1401 = vector.shape_cast %1400 : vector<1x512xi1> to vector<1x512xi1>
    %1402 = vector.broadcast %1401 : vector<1x512xi1> to vector<4x512xi1>
    %1403 = vector.broadcast %cst_776 : f32 to vector<4x512xf32>
    %1404 = arith.select %1402, %1398, %1403 : vector<4x512xi1>, vector<4x512xf32>
    %c56_777 = arith.constant 56 : index
    %c0_778 = arith.constant 0 : index
    %1405 = vector.load %arg9[%c56_777, %c0_778] : memref<100x512xf32, #tpu.memory_space<vmem>>, vector<4x512xf32>
    tpu.vector_store %arg9[%c56_777, %c0_778], %1404 {strides = array<i32>} : memref<100x512xf32, #tpu.memory_space<vmem>>, vector<4x512xf32>,
    %c498_i32_779 = arith.constant 498 : i32
    %1406 = tpu.dynamic_rotate %1264 by %c498_i32_779 dim 1 : vector<4x512xf32>, i32 -> vector<4x512xf32>
    %c15_i32_780 = arith.constant 15 : i32
    %1407 = vector.broadcast %c15_i32_780 : i32 to vector<1x512xi32>
    %1408 = arith.cmpi slt, %0, %1407 : vector<1x512xi32>
    %c2_i32_781 = arith.constant 2 : i32
    %1409 = vector.broadcast %c2_i32_781 : i32 to vector<1x512xi32>
    %1410 = arith.cmpi sge, %1, %1409 : vector<1x512xi32>
    %1411 = arith.andi %1408, %1410 : vector<1x512xi1>
    %cst_782 = arith.constant 0.000000e+00 : f32
    %1412 = vector.shape_cast %1411 : vector<1x512xi1> to vector<1x512xi1>
    %1413 = vector.broadcast %1412 : vector<1x512xi1> to vector<4x512xi1>
    %1414 = vector.broadcast %cst_782 : f32 to vector<4x512xf32>
    %1415 = arith.select %1413, %1406, %1414 : vector<4x512xi1>, vector<4x512xf32>
    %c60_783 = arith.constant 60 : index
    %c0_784 = arith.constant 0 : index
    %1416 = vector.load %arg9[%c60_783, %c0_784] : memref<100x512xf32, #tpu.memory_space<vmem>>, vector<4x512xf32>
    tpu.vector_store %arg9[%c60_783, %c0_784], %1415 {strides = array<i32>} : memref<100x512xf32, #tpu.memory_space<vmem>>, vector<4x512xf32>,
    %c497_i32_785 = arith.constant 497 : i32
    %1417 = tpu.dynamic_rotate %1264 by %c497_i32_785 dim 1 : vector<4x512xf32>, i32 -> vector<4x512xf32>
    %c15_i32_786 = arith.constant 15 : i32
    %1418 = vector.broadcast %c15_i32_786 : i32 to vector<1x512xi32>
    %1419 = arith.cmpi slt, %0, %1418 : vector<1x512xi32>
    %c1_i32_787 = arith.constant 1 : i32
    %1420 = vector.broadcast %c1_i32_787 : i32 to vector<1x512xi32>
    %1421 = arith.cmpi sge, %1, %1420 : vector<1x512xi32>
    %1422 = arith.andi %1419, %1421 : vector<1x512xi1>
    %cst_788 = arith.constant 0.000000e+00 : f32
    %1423 = vector.shape_cast %1422 : vector<1x512xi1> to vector<1x512xi1>
    %1424 = vector.broadcast %1423 : vector<1x512xi1> to vector<4x512xi1>
    %1425 = vector.broadcast %cst_788 : f32 to vector<4x512xf32>
    %1426 = arith.select %1424, %1417, %1425 : vector<4x512xi1>, vector<4x512xf32>
    %c64_789 = arith.constant 64 : index
    %c0_790 = arith.constant 0 : index
    %1427 = vector.load %arg9[%c64_789, %c0_790] : memref<100x512xf32, #tpu.memory_space<vmem>>, vector<4x512xf32>
    tpu.vector_store %arg9[%c64_789, %c0_790], %1426 {strides = array<i32>} : memref<100x512xf32, #tpu.memory_space<vmem>>, vector<4x512xf32>,
    %c496_i32_791 = arith.constant 496 : i32
    %1428 = tpu.dynamic_rotate %1264 by %c496_i32_791 dim 1 : vector<4x512xf32>, i32 -> vector<4x512xf32>
    %c15_i32_792 = arith.constant 15 : i32
    %1429 = vector.broadcast %c15_i32_792 : i32 to vector<1x512xi32>
    %1430 = arith.cmpi slt, %0, %1429 : vector<1x512xi32>
    %cst_793 = arith.constant 0.000000e+00 : f32
    %1431 = vector.shape_cast %1430 : vector<1x512xi1> to vector<1x512xi1>
    %1432 = vector.broadcast %1431 : vector<1x512xi1> to vector<4x512xi1>
    %1433 = vector.broadcast %cst_793 : f32 to vector<4x512xf32>
    %1434 = arith.select %1432, %1428, %1433 : vector<4x512xi1>, vector<4x512xf32>
    %c68_794 = arith.constant 68 : index
    %c0_795 = arith.constant 0 : index
    %1435 = vector.load %arg9[%c68_794, %c0_795] : memref<100x512xf32, #tpu.memory_space<vmem>>, vector<4x512xf32>
    tpu.vector_store %arg9[%c68_794, %c0_795], %1434 {strides = array<i32>} : memref<100x512xf32, #tpu.memory_space<vmem>>, vector<4x512xf32>,
    %c495_i32_796 = arith.constant 495 : i32
    %1436 = tpu.dynamic_rotate %1264 by %c495_i32_796 dim 1 : vector<4x512xf32>, i32 -> vector<4x512xf32>
    %c15_i32_797 = arith.constant 15 : i32
    %1437 = vector.broadcast %c15_i32_797 : i32 to vector<1x512xi32>
    %1438 = arith.cmpi slt, %0, %1437 : vector<1x512xi32>
    %c15_i32_798 = arith.constant 15 : i32
    %1439 = vector.broadcast %c15_i32_798 : i32 to vector<1x512xi32>
    %1440 = arith.cmpi slt, %1, %1439 : vector<1x512xi32>
    %1441 = arith.andi %1438, %1440 : vector<1x512xi1>
    %cst_799 = arith.constant 0.000000e+00 : f32
    %1442 = vector.shape_cast %1441 : vector<1x512xi1> to vector<1x512xi1>
    %1443 = vector.broadcast %1442 : vector<1x512xi1> to vector<4x512xi1>
    %1444 = vector.broadcast %cst_799 : f32 to vector<4x512xf32>
    %1445 = arith.select %1443, %1436, %1444 : vector<4x512xi1>, vector<4x512xf32>
    %c72_800 = arith.constant 72 : index
    %c0_801 = arith.constant 0 : index
    %1446 = vector.load %arg9[%c72_800, %c0_801] : memref<100x512xf32, #tpu.memory_space<vmem>>, vector<4x512xf32>
    tpu.vector_store %arg9[%c72_800, %c0_801], %1445 {strides = array<i32>} : memref<100x512xf32, #tpu.memory_space<vmem>>, vector<4x512xf32>,
    %c494_i32_802 = arith.constant 494 : i32
    %1447 = tpu.dynamic_rotate %1264 by %c494_i32_802 dim 1 : vector<4x512xf32>, i32 -> vector<4x512xf32>
    %c15_i32_803 = arith.constant 15 : i32
    %1448 = vector.broadcast %c15_i32_803 : i32 to vector<1x512xi32>
    %1449 = arith.cmpi slt, %0, %1448 : vector<1x512xi32>
    %c14_i32_804 = arith.constant 14 : i32
    %1450 = vector.broadcast %c14_i32_804 : i32 to vector<1x512xi32>
    %1451 = arith.cmpi slt, %1, %1450 : vector<1x512xi32>
    %1452 = arith.andi %1449, %1451 : vector<1x512xi1>
    %cst_805 = arith.constant 0.000000e+00 : f32
    %1453 = vector.shape_cast %1452 : vector<1x512xi1> to vector<1x512xi1>
    %1454 = vector.broadcast %1453 : vector<1x512xi1> to vector<4x512xi1>
    %1455 = vector.broadcast %cst_805 : f32 to vector<4x512xf32>
    %1456 = arith.select %1454, %1447, %1455 : vector<4x512xi1>, vector<4x512xf32>
    %c76_806 = arith.constant 76 : index
    %c0_807 = arith.constant 0 : index
    %1457 = vector.load %arg9[%c76_806, %c0_807] : memref<100x512xf32, #tpu.memory_space<vmem>>, vector<4x512xf32>
    tpu.vector_store %arg9[%c76_806, %c0_807], %1456 {strides = array<i32>} : memref<100x512xf32, #tpu.memory_space<vmem>>, vector<4x512xf32>,
    %c482_i32_808 = arith.constant 482 : i32
    %1458 = tpu.dynamic_rotate %1264 by %c482_i32_808 dim 1 : vector<4x512xf32>, i32 -> vector<4x512xf32>
    %c14_i32_809 = arith.constant 14 : i32
    %1459 = vector.broadcast %c14_i32_809 : i32 to vector<1x512xi32>
    %1460 = arith.cmpi slt, %0, %1459 : vector<1x512xi32>
    %c2_i32_810 = arith.constant 2 : i32
    %1461 = vector.broadcast %c2_i32_810 : i32 to vector<1x512xi32>
    %1462 = arith.cmpi sge, %1, %1461 : vector<1x512xi32>
    %1463 = arith.andi %1460, %1462 : vector<1x512xi1>
    %cst_811 = arith.constant 0.000000e+00 : f32
    %1464 = vector.shape_cast %1463 : vector<1x512xi1> to vector<1x512xi1>
    %1465 = vector.broadcast %1464 : vector<1x512xi1> to vector<4x512xi1>
    %1466 = vector.broadcast %cst_811 : f32 to vector<4x512xf32>
    %1467 = arith.select %1465, %1458, %1466 : vector<4x512xi1>, vector<4x512xf32>
    %c80_812 = arith.constant 80 : index
    %c0_813 = arith.constant 0 : index
    %1468 = vector.load %arg9[%c80_812, %c0_813] : memref<100x512xf32, #tpu.memory_space<vmem>>, vector<4x512xf32>
    tpu.vector_store %arg9[%c80_812, %c0_813], %1467 {strides = array<i32>} : memref<100x512xf32, #tpu.memory_space<vmem>>, vector<4x512xf32>,
    %c481_i32_814 = arith.constant 481 : i32
    %1469 = tpu.dynamic_rotate %1264 by %c481_i32_814 dim 1 : vector<4x512xf32>, i32 -> vector<4x512xf32>
    %c14_i32_815 = arith.constant 14 : i32
    %1470 = vector.broadcast %c14_i32_815 : i32 to vector<1x512xi32>
    %1471 = arith.cmpi slt, %0, %1470 : vector<1x512xi32>
    %c1_i32_816 = arith.constant 1 : i32
    %1472 = vector.broadcast %c1_i32_816 : i32 to vector<1x512xi32>
    %1473 = arith.cmpi sge, %1, %1472 : vector<1x512xi32>
    %1474 = arith.andi %1471, %1473 : vector<1x512xi1>
    %cst_817 = arith.constant 0.000000e+00 : f32
    %1475 = vector.shape_cast %1474 : vector<1x512xi1> to vector<1x512xi1>
    %1476 = vector.broadcast %1475 : vector<1x512xi1> to vector<4x512xi1>
    %1477 = vector.broadcast %cst_817 : f32 to vector<4x512xf32>
    %1478 = arith.select %1476, %1469, %1477 : vector<4x512xi1>, vector<4x512xf32>
    %c84_818 = arith.constant 84 : index
    %c0_819 = arith.constant 0 : index
    %1479 = vector.load %arg9[%c84_818, %c0_819] : memref<100x512xf32, #tpu.memory_space<vmem>>, vector<4x512xf32>
    tpu.vector_store %arg9[%c84_818, %c0_819], %1478 {strides = array<i32>} : memref<100x512xf32, #tpu.memory_space<vmem>>, vector<4x512xf32>,
    %c480_i32_820 = arith.constant 480 : i32
    %1480 = tpu.dynamic_rotate %1264 by %c480_i32_820 dim 1 : vector<4x512xf32>, i32 -> vector<4x512xf32>
    %c14_i32_821 = arith.constant 14 : i32
    %1481 = vector.broadcast %c14_i32_821 : i32 to vector<1x512xi32>
    %1482 = arith.cmpi slt, %0, %1481 : vector<1x512xi32>
    %cst_822 = arith.constant 0.000000e+00 : f32
    %1483 = vector.shape_cast %1482 : vector<1x512xi1> to vector<1x512xi1>
    %1484 = vector.broadcast %1483 : vector<1x512xi1> to vector<4x512xi1>
    %1485 = vector.broadcast %cst_822 : f32 to vector<4x512xf32>
    %1486 = arith.select %1484, %1480, %1485 : vector<4x512xi1>, vector<4x512xf32>
    %c88_823 = arith.constant 88 : index
    %c0_824 = arith.constant 0 : index
    %1487 = vector.load %arg9[%c88_823, %c0_824] : memref<100x512xf32, #tpu.memory_space<vmem>>, vector<4x512xf32>
    tpu.vector_store %arg9[%c88_823, %c0_824], %1486 {strides = array<i32>} : memref<100x512xf32, #tpu.memory_space<vmem>>, vector<4x512xf32>,
    %c479_i32_825 = arith.constant 479 : i32
    %1488 = tpu.dynamic_rotate %1264 by %c479_i32_825 dim 1 : vector<4x512xf32>, i32 -> vector<4x512xf32>
    %c14_i32_826 = arith.constant 14 : i32
    %1489 = vector.broadcast %c14_i32_826 : i32 to vector<1x512xi32>
    %1490 = arith.cmpi slt, %0, %1489 : vector<1x512xi32>
    %c15_i32_827 = arith.constant 15 : i32
    %1491 = vector.broadcast %c15_i32_827 : i32 to vector<1x512xi32>
    %1492 = arith.cmpi slt, %1, %1491 : vector<1x512xi32>
    %1493 = arith.andi %1490, %1492 : vector<1x512xi1>
    %cst_828 = arith.constant 0.000000e+00 : f32
    %1494 = vector.shape_cast %1493 : vector<1x512xi1> to vector<1x512xi1>
    %1495 = vector.broadcast %1494 : vector<1x512xi1> to vector<4x512xi1>
    %1496 = vector.broadcast %cst_828 : f32 to vector<4x512xf32>
    %1497 = arith.select %1495, %1488, %1496 : vector<4x512xi1>, vector<4x512xf32>
    %c92_829 = arith.constant 92 : index
    %c0_830 = arith.constant 0 : index
    %1498 = vector.load %arg9[%c92_829, %c0_830] : memref<100x512xf32, #tpu.memory_space<vmem>>, vector<4x512xf32>
    tpu.vector_store %arg9[%c92_829, %c0_830], %1497 {strides = array<i32>} : memref<100x512xf32, #tpu.memory_space<vmem>>, vector<4x512xf32>,
    %c478_i32_831 = arith.constant 478 : i32
    %1499 = tpu.dynamic_rotate %1264 by %c478_i32_831 dim 1 : vector<4x512xf32>, i32 -> vector<4x512xf32>
    %c14_i32_832 = arith.constant 14 : i32
    %1500 = vector.broadcast %c14_i32_832 : i32 to vector<1x512xi32>
    %1501 = arith.cmpi slt, %0, %1500 : vector<1x512xi32>
    %c14_i32_833 = arith.constant 14 : i32
    %1502 = vector.broadcast %c14_i32_833 : i32 to vector<1x512xi32>
    %1503 = arith.cmpi slt, %1, %1502 : vector<1x512xi32>
    %1504 = arith.andi %1501, %1503 : vector<1x512xi1>
    %cst_834 = arith.constant 0.000000e+00 : f32
    %1505 = vector.shape_cast %1504 : vector<1x512xi1> to vector<1x512xi1>
    %1506 = vector.broadcast %1505 : vector<1x512xi1> to vector<4x512xi1>
    %1507 = vector.broadcast %cst_834 : f32 to vector<4x512xf32>
    %1508 = arith.select %1506, %1499, %1507 : vector<4x512xi1>, vector<4x512xf32>
    %c96_835 = arith.constant 96 : index
    %c0_836 = arith.constant 0 : index
    %1509 = vector.load %arg9[%c96_835, %c0_836] : memref<100x512xf32, #tpu.memory_space<vmem>>, vector<4x512xf32>
    tpu.vector_store %arg9[%c96_835, %c0_836], %1508 {strides = array<i32>} : memref<100x512xf32, #tpu.memory_space<vmem>>, vector<4x512xf32>,
    %c0_837 = arith.constant 0 : index
    %c0_838 = arith.constant 0 : index
    %1510 = vector.load %arg9[%c0_837, %c0_838] : memref<100x512xf32, #tpu.memory_space<vmem>>, vector<100x512xf32>
    %cst_839 = arith.constant dense<0.000000e+00> : vector<4x512xf32>
    %1511 = tpu.matmul %1266, %1510, %cst_839 {dimension_numbers = #tpu.dot_dimension_numbers<[1], [0], [0], [1], [0, 0, 1, 1], [], []>} : vector<4x100xf32>, vector<100x512xf32>, vector<4x512xf32> -> vector<4x512xf32>
    %1512 = vector.broadcast %1268 : vector<4x1xf32> to vector<4x512xf32>
    %1513 = arith.addf %1511, %1512 : vector<4x512xf32>
    %1514 = arith.addf %1513, %1010 : vector<4x512xf32>
    %c0_840 = arith.constant 0 : index
    %c0_841 = arith.constant 0 : index
    %1515 = vector.load %arg6[%c0_840, %c0_841] : memref<3x100xf32, #tpu.memory_space<vmem>>, vector<3x100xf32>
    %c0_842 = arith.constant 0 : index
    %c0_843 = arith.constant 0 : index
    %1516 = vector.load %arg7[%c0_842, %c0_843] : memref<3x1xf32, #tpu.memory_space<vmem>>, vector<3x1xf32>
    %c34_i32_844 = arith.constant 34 : i32
    %1517 = tpu.dynamic_rotate %1514 by %c34_i32_844 dim 1 : vector<4x512xf32>, i32 -> vector<4x512xf32>
    %c2_i32_845 = arith.constant 2 : i32
    %1518 = vector.broadcast %c2_i32_845 : i32 to vector<1x512xi32>
    %1519 = arith.cmpi sge, %0, %1518 : vector<1x512xi32>
    %c2_i32_846 = arith.constant 2 : i32
    %1520 = vector.broadcast %c2_i32_846 : i32 to vector<1x512xi32>
    %1521 = arith.cmpi sge, %1, %1520 : vector<1x512xi32>
    %1522 = arith.andi %1519, %1521 : vector<1x512xi1>
    %cst_847 = arith.constant 0.000000e+00 : f32
    %1523 = vector.shape_cast %1522 : vector<1x512xi1> to vector<1x512xi1>
    %1524 = vector.broadcast %1523 : vector<1x512xi1> to vector<4x512xi1>
    %1525 = vector.broadcast %cst_847 : f32 to vector<4x512xf32>
    %1526 = arith.select %1524, %1517, %1525 : vector<4x512xi1>, vector<4x512xf32>
    %c0_848 = arith.constant 0 : index
    %c0_849 = arith.constant 0 : index
    %1527 = vector.load %arg9[%c0_848, %c0_849] : memref<100x512xf32, #tpu.memory_space<vmem>>, vector<4x512xf32>
    tpu.vector_store %arg9[%c0_848, %c0_849], %1526 {strides = array<i32>} : memref<100x512xf32, #tpu.memory_space<vmem>>, vector<4x512xf32>,
    %c33_i32_850 = arith.constant 33 : i32
    %1528 = tpu.dynamic_rotate %1514 by %c33_i32_850 dim 1 : vector<4x512xf32>, i32 -> vector<4x512xf32>
    %c2_i32_851 = arith.constant 2 : i32
    %1529 = vector.broadcast %c2_i32_851 : i32 to vector<1x512xi32>
    %1530 = arith.cmpi sge, %0, %1529 : vector<1x512xi32>
    %c1_i32_852 = arith.constant 1 : i32
    %1531 = vector.broadcast %c1_i32_852 : i32 to vector<1x512xi32>
    %1532 = arith.cmpi sge, %1, %1531 : vector<1x512xi32>
    %1533 = arith.andi %1530, %1532 : vector<1x512xi1>
    %cst_853 = arith.constant 0.000000e+00 : f32
    %1534 = vector.shape_cast %1533 : vector<1x512xi1> to vector<1x512xi1>
    %1535 = vector.broadcast %1534 : vector<1x512xi1> to vector<4x512xi1>
    %1536 = vector.broadcast %cst_853 : f32 to vector<4x512xf32>
    %1537 = arith.select %1535, %1528, %1536 : vector<4x512xi1>, vector<4x512xf32>
    %c4_854 = arith.constant 4 : index
    %c0_855 = arith.constant 0 : index
    %1538 = vector.load %arg9[%c4_854, %c0_855] : memref<100x512xf32, #tpu.memory_space<vmem>>, vector<4x512xf32>
    tpu.vector_store %arg9[%c4_854, %c0_855], %1537 {strides = array<i32>} : memref<100x512xf32, #tpu.memory_space<vmem>>, vector<4x512xf32>,
    %c32_i32_856 = arith.constant 32 : i32
    %1539 = tpu.dynamic_rotate %1514 by %c32_i32_856 dim 1 : vector<4x512xf32>, i32 -> vector<4x512xf32>
    %c2_i32_857 = arith.constant 2 : i32
    %1540 = vector.broadcast %c2_i32_857 : i32 to vector<1x512xi32>
    %1541 = arith.cmpi sge, %0, %1540 : vector<1x512xi32>
    %cst_858 = arith.constant 0.000000e+00 : f32
    %1542 = vector.shape_cast %1541 : vector<1x512xi1> to vector<1x512xi1>
    %1543 = vector.broadcast %1542 : vector<1x512xi1> to vector<4x512xi1>
    %1544 = vector.broadcast %cst_858 : f32 to vector<4x512xf32>
    %1545 = arith.select %1543, %1539, %1544 : vector<4x512xi1>, vector<4x512xf32>
    %c8_859 = arith.constant 8 : index
    %c0_860 = arith.constant 0 : index
    %1546 = vector.load %arg9[%c8_859, %c0_860] : memref<100x512xf32, #tpu.memory_space<vmem>>, vector<4x512xf32>
    tpu.vector_store %arg9[%c8_859, %c0_860], %1545 {strides = array<i32>} : memref<100x512xf32, #tpu.memory_space<vmem>>, vector<4x512xf32>,
    %c31_i32_861 = arith.constant 31 : i32
    %1547 = tpu.dynamic_rotate %1514 by %c31_i32_861 dim 1 : vector<4x512xf32>, i32 -> vector<4x512xf32>
    %c2_i32_862 = arith.constant 2 : i32
    %1548 = vector.broadcast %c2_i32_862 : i32 to vector<1x512xi32>
    %1549 = arith.cmpi sge, %0, %1548 : vector<1x512xi32>
    %c15_i32_863 = arith.constant 15 : i32
    %1550 = vector.broadcast %c15_i32_863 : i32 to vector<1x512xi32>
    %1551 = arith.cmpi slt, %1, %1550 : vector<1x512xi32>
    %1552 = arith.andi %1549, %1551 : vector<1x512xi1>
    %cst_864 = arith.constant 0.000000e+00 : f32
    %1553 = vector.shape_cast %1552 : vector<1x512xi1> to vector<1x512xi1>
    %1554 = vector.broadcast %1553 : vector<1x512xi1> to vector<4x512xi1>
    %1555 = vector.broadcast %cst_864 : f32 to vector<4x512xf32>
    %1556 = arith.select %1554, %1547, %1555 : vector<4x512xi1>, vector<4x512xf32>
    %c12_865 = arith.constant 12 : index
    %c0_866 = arith.constant 0 : index
    %1557 = vector.load %arg9[%c12_865, %c0_866] : memref<100x512xf32, #tpu.memory_space<vmem>>, vector<4x512xf32>
    tpu.vector_store %arg9[%c12_865, %c0_866], %1556 {strides = array<i32>} : memref<100x512xf32, #tpu.memory_space<vmem>>, vector<4x512xf32>,
    %c30_i32_867 = arith.constant 30 : i32
    %1558 = tpu.dynamic_rotate %1514 by %c30_i32_867 dim 1 : vector<4x512xf32>, i32 -> vector<4x512xf32>
    %c2_i32_868 = arith.constant 2 : i32
    %1559 = vector.broadcast %c2_i32_868 : i32 to vector<1x512xi32>
    %1560 = arith.cmpi sge, %0, %1559 : vector<1x512xi32>
    %c14_i32_869 = arith.constant 14 : i32
    %1561 = vector.broadcast %c14_i32_869 : i32 to vector<1x512xi32>
    %1562 = arith.cmpi slt, %1, %1561 : vector<1x512xi32>
    %1563 = arith.andi %1560, %1562 : vector<1x512xi1>
    %cst_870 = arith.constant 0.000000e+00 : f32
    %1564 = vector.shape_cast %1563 : vector<1x512xi1> to vector<1x512xi1>
    %1565 = vector.broadcast %1564 : vector<1x512xi1> to vector<4x512xi1>
    %1566 = vector.broadcast %cst_870 : f32 to vector<4x512xf32>
    %1567 = arith.select %1565, %1558, %1566 : vector<4x512xi1>, vector<4x512xf32>
    %c16_871 = arith.constant 16 : index
    %c0_872 = arith.constant 0 : index
    %1568 = vector.load %arg9[%c16_871, %c0_872] : memref<100x512xf32, #tpu.memory_space<vmem>>, vector<4x512xf32>
    tpu.vector_store %arg9[%c16_871, %c0_872], %1567 {strides = array<i32>} : memref<100x512xf32, #tpu.memory_space<vmem>>, vector<4x512xf32>,
    %c18_i32_873 = arith.constant 18 : i32
    %1569 = tpu.dynamic_rotate %1514 by %c18_i32_873 dim 1 : vector<4x512xf32>, i32 -> vector<4x512xf32>
    %c1_i32_874 = arith.constant 1 : i32
    %1570 = vector.broadcast %c1_i32_874 : i32 to vector<1x512xi32>
    %1571 = arith.cmpi sge, %0, %1570 : vector<1x512xi32>
    %c2_i32_875 = arith.constant 2 : i32
    %1572 = vector.broadcast %c2_i32_875 : i32 to vector<1x512xi32>
    %1573 = arith.cmpi sge, %1, %1572 : vector<1x512xi32>
    %1574 = arith.andi %1571, %1573 : vector<1x512xi1>
    %cst_876 = arith.constant 0.000000e+00 : f32
    %1575 = vector.shape_cast %1574 : vector<1x512xi1> to vector<1x512xi1>
    %1576 = vector.broadcast %1575 : vector<1x512xi1> to vector<4x512xi1>
    %1577 = vector.broadcast %cst_876 : f32 to vector<4x512xf32>
    %1578 = arith.select %1576, %1569, %1577 : vector<4x512xi1>, vector<4x512xf32>
    %c20_877 = arith.constant 20 : index
    %c0_878 = arith.constant 0 : index
    %1579 = vector.load %arg9[%c20_877, %c0_878] : memref<100x512xf32, #tpu.memory_space<vmem>>, vector<4x512xf32>
    tpu.vector_store %arg9[%c20_877, %c0_878], %1578 {strides = array<i32>} : memref<100x512xf32, #tpu.memory_space<vmem>>, vector<4x512xf32>,
    %c17_i32_879 = arith.constant 17 : i32
    %1580 = tpu.dynamic_rotate %1514 by %c17_i32_879 dim 1 : vector<4x512xf32>, i32 -> vector<4x512xf32>
    %c1_i32_880 = arith.constant 1 : i32
    %1581 = vector.broadcast %c1_i32_880 : i32 to vector<1x512xi32>
    %1582 = arith.cmpi sge, %0, %1581 : vector<1x512xi32>
    %c1_i32_881 = arith.constant 1 : i32
    %1583 = vector.broadcast %c1_i32_881 : i32 to vector<1x512xi32>
    %1584 = arith.cmpi sge, %1, %1583 : vector<1x512xi32>
    %1585 = arith.andi %1582, %1584 : vector<1x512xi1>
    %cst_882 = arith.constant 0.000000e+00 : f32
    %1586 = vector.shape_cast %1585 : vector<1x512xi1> to vector<1x512xi1>
    %1587 = vector.broadcast %1586 : vector<1x512xi1> to vector<4x512xi1>
    %1588 = vector.broadcast %cst_882 : f32 to vector<4x512xf32>
    %1589 = arith.select %1587, %1580, %1588 : vector<4x512xi1>, vector<4x512xf32>
    %c24_883 = arith.constant 24 : index
    %c0_884 = arith.constant 0 : index
    %1590 = vector.load %arg9[%c24_883, %c0_884] : memref<100x512xf32, #tpu.memory_space<vmem>>, vector<4x512xf32>
    tpu.vector_store %arg9[%c24_883, %c0_884], %1589 {strides = array<i32>} : memref<100x512xf32, #tpu.memory_space<vmem>>, vector<4x512xf32>,
    %c16_i32_885 = arith.constant 16 : i32
    %1591 = tpu.dynamic_rotate %1514 by %c16_i32_885 dim 1 : vector<4x512xf32>, i32 -> vector<4x512xf32>
    %c1_i32_886 = arith.constant 1 : i32
    %1592 = vector.broadcast %c1_i32_886 : i32 to vector<1x512xi32>
    %1593 = arith.cmpi sge, %0, %1592 : vector<1x512xi32>
    %cst_887 = arith.constant 0.000000e+00 : f32
    %1594 = vector.shape_cast %1593 : vector<1x512xi1> to vector<1x512xi1>
    %1595 = vector.broadcast %1594 : vector<1x512xi1> to vector<4x512xi1>
    %1596 = vector.broadcast %cst_887 : f32 to vector<4x512xf32>
    %1597 = arith.select %1595, %1591, %1596 : vector<4x512xi1>, vector<4x512xf32>
    %c28_888 = arith.constant 28 : index
    %c0_889 = arith.constant 0 : index
    %1598 = vector.load %arg9[%c28_888, %c0_889] : memref<100x512xf32, #tpu.memory_space<vmem>>, vector<4x512xf32>
    tpu.vector_store %arg9[%c28_888, %c0_889], %1597 {strides = array<i32>} : memref<100x512xf32, #tpu.memory_space<vmem>>, vector<4x512xf32>,
    %c15_i32_890 = arith.constant 15 : i32
    %1599 = tpu.dynamic_rotate %1514 by %c15_i32_890 dim 1 : vector<4x512xf32>, i32 -> vector<4x512xf32>
    %c1_i32_891 = arith.constant 1 : i32
    %1600 = vector.broadcast %c1_i32_891 : i32 to vector<1x512xi32>
    %1601 = arith.cmpi sge, %0, %1600 : vector<1x512xi32>
    %c15_i32_892 = arith.constant 15 : i32
    %1602 = vector.broadcast %c15_i32_892 : i32 to vector<1x512xi32>
    %1603 = arith.cmpi slt, %1, %1602 : vector<1x512xi32>
    %1604 = arith.andi %1601, %1603 : vector<1x512xi1>
    %cst_893 = arith.constant 0.000000e+00 : f32
    %1605 = vector.shape_cast %1604 : vector<1x512xi1> to vector<1x512xi1>
    %1606 = vector.broadcast %1605 : vector<1x512xi1> to vector<4x512xi1>
    %1607 = vector.broadcast %cst_893 : f32 to vector<4x512xf32>
    %1608 = arith.select %1606, %1599, %1607 : vector<4x512xi1>, vector<4x512xf32>
    %c32_894 = arith.constant 32 : index
    %c0_895 = arith.constant 0 : index
    %1609 = vector.load %arg9[%c32_894, %c0_895] : memref<100x512xf32, #tpu.memory_space<vmem>>, vector<4x512xf32>
    tpu.vector_store %arg9[%c32_894, %c0_895], %1608 {strides = array<i32>} : memref<100x512xf32, #tpu.memory_space<vmem>>, vector<4x512xf32>,
    %c14_i32_896 = arith.constant 14 : i32
    %1610 = tpu.dynamic_rotate %1514 by %c14_i32_896 dim 1 : vector<4x512xf32>, i32 -> vector<4x512xf32>
    %c1_i32_897 = arith.constant 1 : i32
    %1611 = vector.broadcast %c1_i32_897 : i32 to vector<1x512xi32>
    %1612 = arith.cmpi sge, %0, %1611 : vector<1x512xi32>
    %c14_i32_898 = arith.constant 14 : i32
    %1613 = vector.broadcast %c14_i32_898 : i32 to vector<1x512xi32>
    %1614 = arith.cmpi slt, %1, %1613 : vector<1x512xi32>
    %1615 = arith.andi %1612, %1614 : vector<1x512xi1>
    %cst_899 = arith.constant 0.000000e+00 : f32
    %1616 = vector.shape_cast %1615 : vector<1x512xi1> to vector<1x512xi1>
    %1617 = vector.broadcast %1616 : vector<1x512xi1> to vector<4x512xi1>
    %1618 = vector.broadcast %cst_899 : f32 to vector<4x512xf32>
    %1619 = arith.select %1617, %1610, %1618 : vector<4x512xi1>, vector<4x512xf32>
    %c36_900 = arith.constant 36 : index
    %c0_901 = arith.constant 0 : index
    %1620 = vector.load %arg9[%c36_900, %c0_901] : memref<100x512xf32, #tpu.memory_space<vmem>>, vector<4x512xf32>
    tpu.vector_store %arg9[%c36_900, %c0_901], %1619 {strides = array<i32>} : memref<100x512xf32, #tpu.memory_space<vmem>>, vector<4x512xf32>,
    %c2_i32_902 = arith.constant 2 : i32
    %1621 = tpu.dynamic_rotate %1514 by %c2_i32_902 dim 1 : vector<4x512xf32>, i32 -> vector<4x512xf32>
    %c2_i32_903 = arith.constant 2 : i32
    %1622 = vector.broadcast %c2_i32_903 : i32 to vector<1x512xi32>
    %1623 = arith.cmpi sge, %1, %1622 : vector<1x512xi32>
    %cst_904 = arith.constant 0.000000e+00 : f32
    %1624 = vector.shape_cast %1623 : vector<1x512xi1> to vector<1x512xi1>
    %1625 = vector.broadcast %1624 : vector<1x512xi1> to vector<4x512xi1>
    %1626 = vector.broadcast %cst_904 : f32 to vector<4x512xf32>
    %1627 = arith.select %1625, %1621, %1626 : vector<4x512xi1>, vector<4x512xf32>
    %c40_905 = arith.constant 40 : index
    %c0_906 = arith.constant 0 : index
    %1628 = vector.load %arg9[%c40_905, %c0_906] : memref<100x512xf32, #tpu.memory_space<vmem>>, vector<4x512xf32>
    tpu.vector_store %arg9[%c40_905, %c0_906], %1627 {strides = array<i32>} : memref<100x512xf32, #tpu.memory_space<vmem>>, vector<4x512xf32>,
    %c1_i32_907 = arith.constant 1 : i32
    %1629 = tpu.dynamic_rotate %1514 by %c1_i32_907 dim 1 : vector<4x512xf32>, i32 -> vector<4x512xf32>
    %c1_i32_908 = arith.constant 1 : i32
    %1630 = vector.broadcast %c1_i32_908 : i32 to vector<1x512xi32>
    %1631 = arith.cmpi sge, %1, %1630 : vector<1x512xi32>
    %cst_909 = arith.constant 0.000000e+00 : f32
    %1632 = vector.shape_cast %1631 : vector<1x512xi1> to vector<1x512xi1>
    %1633 = vector.broadcast %1632 : vector<1x512xi1> to vector<4x512xi1>
    %1634 = vector.broadcast %cst_909 : f32 to vector<4x512xf32>
    %1635 = arith.select %1633, %1629, %1634 : vector<4x512xi1>, vector<4x512xf32>
    %c44_910 = arith.constant 44 : index
    %c0_911 = arith.constant 0 : index
    %1636 = vector.load %arg9[%c44_910, %c0_911] : memref<100x512xf32, #tpu.memory_space<vmem>>, vector<4x512xf32>
    tpu.vector_store %arg9[%c44_910, %c0_911], %1635 {strides = array<i32>} : memref<100x512xf32, #tpu.memory_space<vmem>>, vector<4x512xf32>,
    %c48_912 = arith.constant 48 : index
    %c0_913 = arith.constant 0 : index
    %1637 = vector.load %arg9[%c48_912, %c0_913] : memref<100x512xf32, #tpu.memory_space<vmem>>, vector<4x512xf32>
    tpu.vector_store %arg9[%c48_912, %c0_913], %1514 {strides = array<i32>} : memref<100x512xf32, #tpu.memory_space<vmem>>, vector<4x512xf32>,
    %c511_i32_914 = arith.constant 511 : i32
    %1638 = tpu.dynamic_rotate %1514 by %c511_i32_914 dim 1 : vector<4x512xf32>, i32 -> vector<4x512xf32>
    %c15_i32_915 = arith.constant 15 : i32
    %1639 = vector.broadcast %c15_i32_915 : i32 to vector<1x512xi32>
    %1640 = arith.cmpi slt, %1, %1639 : vector<1x512xi32>
    %cst_916 = arith.constant 0.000000e+00 : f32
    %1641 = vector.shape_cast %1640 : vector<1x512xi1> to vector<1x512xi1>
    %1642 = vector.broadcast %1641 : vector<1x512xi1> to vector<4x512xi1>
    %1643 = vector.broadcast %cst_916 : f32 to vector<4x512xf32>
    %1644 = arith.select %1642, %1638, %1643 : vector<4x512xi1>, vector<4x512xf32>
    %c52_917 = arith.constant 52 : index
    %c0_918 = arith.constant 0 : index
    %1645 = vector.load %arg9[%c52_917, %c0_918] : memref<100x512xf32, #tpu.memory_space<vmem>>, vector<4x512xf32>
    tpu.vector_store %arg9[%c52_917, %c0_918], %1644 {strides = array<i32>} : memref<100x512xf32, #tpu.memory_space<vmem>>, vector<4x512xf32>,
    %c510_i32_919 = arith.constant 510 : i32
    %1646 = tpu.dynamic_rotate %1514 by %c510_i32_919 dim 1 : vector<4x512xf32>, i32 -> vector<4x512xf32>
    %c14_i32_920 = arith.constant 14 : i32
    %1647 = vector.broadcast %c14_i32_920 : i32 to vector<1x512xi32>
    %1648 = arith.cmpi slt, %1, %1647 : vector<1x512xi32>
    %cst_921 = arith.constant 0.000000e+00 : f32
    %1649 = vector.shape_cast %1648 : vector<1x512xi1> to vector<1x512xi1>
    %1650 = vector.broadcast %1649 : vector<1x512xi1> to vector<4x512xi1>
    %1651 = vector.broadcast %cst_921 : f32 to vector<4x512xf32>
    %1652 = arith.select %1650, %1646, %1651 : vector<4x512xi1>, vector<4x512xf32>
    %c56_922 = arith.constant 56 : index
    %c0_923 = arith.constant 0 : index
    %1653 = vector.load %arg9[%c56_922, %c0_923] : memref<100x512xf32, #tpu.memory_space<vmem>>, vector<4x512xf32>
    tpu.vector_store %arg9[%c56_922, %c0_923], %1652 {strides = array<i32>} : memref<100x512xf32, #tpu.memory_space<vmem>>, vector<4x512xf32>,
    %c498_i32_924 = arith.constant 498 : i32
    %1654 = tpu.dynamic_rotate %1514 by %c498_i32_924 dim 1 : vector<4x512xf32>, i32 -> vector<4x512xf32>
    %c15_i32_925 = arith.constant 15 : i32
    %1655 = vector.broadcast %c15_i32_925 : i32 to vector<1x512xi32>
    %1656 = arith.cmpi slt, %0, %1655 : vector<1x512xi32>
    %c2_i32_926 = arith.constant 2 : i32
    %1657 = vector.broadcast %c2_i32_926 : i32 to vector<1x512xi32>
    %1658 = arith.cmpi sge, %1, %1657 : vector<1x512xi32>
    %1659 = arith.andi %1656, %1658 : vector<1x512xi1>
    %cst_927 = arith.constant 0.000000e+00 : f32
    %1660 = vector.shape_cast %1659 : vector<1x512xi1> to vector<1x512xi1>
    %1661 = vector.broadcast %1660 : vector<1x512xi1> to vector<4x512xi1>
    %1662 = vector.broadcast %cst_927 : f32 to vector<4x512xf32>
    %1663 = arith.select %1661, %1654, %1662 : vector<4x512xi1>, vector<4x512xf32>
    %c60_928 = arith.constant 60 : index
    %c0_929 = arith.constant 0 : index
    %1664 = vector.load %arg9[%c60_928, %c0_929] : memref<100x512xf32, #tpu.memory_space<vmem>>, vector<4x512xf32>
    tpu.vector_store %arg9[%c60_928, %c0_929], %1663 {strides = array<i32>} : memref<100x512xf32, #tpu.memory_space<vmem>>, vector<4x512xf32>,
    %c497_i32_930 = arith.constant 497 : i32
    %1665 = tpu.dynamic_rotate %1514 by %c497_i32_930 dim 1 : vector<4x512xf32>, i32 -> vector<4x512xf32>
    %c15_i32_931 = arith.constant 15 : i32
    %1666 = vector.broadcast %c15_i32_931 : i32 to vector<1x512xi32>
    %1667 = arith.cmpi slt, %0, %1666 : vector<1x512xi32>
    %c1_i32_932 = arith.constant 1 : i32
    %1668 = vector.broadcast %c1_i32_932 : i32 to vector<1x512xi32>
    %1669 = arith.cmpi sge, %1, %1668 : vector<1x512xi32>
    %1670 = arith.andi %1667, %1669 : vector<1x512xi1>
    %cst_933 = arith.constant 0.000000e+00 : f32
    %1671 = vector.shape_cast %1670 : vector<1x512xi1> to vector<1x512xi1>
    %1672 = vector.broadcast %1671 : vector<1x512xi1> to vector<4x512xi1>
    %1673 = vector.broadcast %cst_933 : f32 to vector<4x512xf32>
    %1674 = arith.select %1672, %1665, %1673 : vector<4x512xi1>, vector<4x512xf32>
    %c64_934 = arith.constant 64 : index
    %c0_935 = arith.constant 0 : index
    %1675 = vector.load %arg9[%c64_934, %c0_935] : memref<100x512xf32, #tpu.memory_space<vmem>>, vector<4x512xf32>
    tpu.vector_store %arg9[%c64_934, %c0_935], %1674 {strides = array<i32>} : memref<100x512xf32, #tpu.memory_space<vmem>>, vector<4x512xf32>,
    %c496_i32_936 = arith.constant 496 : i32
    %1676 = tpu.dynamic_rotate %1514 by %c496_i32_936 dim 1 : vector<4x512xf32>, i32 -> vector<4x512xf32>
    %c15_i32_937 = arith.constant 15 : i32
    %1677 = vector.broadcast %c15_i32_937 : i32 to vector<1x512xi32>
    %1678 = arith.cmpi slt, %0, %1677 : vector<1x512xi32>
    %cst_938 = arith.constant 0.000000e+00 : f32
    %1679 = vector.shape_cast %1678 : vector<1x512xi1> to vector<1x512xi1>
    %1680 = vector.broadcast %1679 : vector<1x512xi1> to vector<4x512xi1>
    %1681 = vector.broadcast %cst_938 : f32 to vector<4x512xf32>
    %1682 = arith.select %1680, %1676, %1681 : vector<4x512xi1>, vector<4x512xf32>
    %c68_939 = arith.constant 68 : index
    %c0_940 = arith.constant 0 : index
    %1683 = vector.load %arg9[%c68_939, %c0_940] : memref<100x512xf32, #tpu.memory_space<vmem>>, vector<4x512xf32>
    tpu.vector_store %arg9[%c68_939, %c0_940], %1682 {strides = array<i32>} : memref<100x512xf32, #tpu.memory_space<vmem>>, vector<4x512xf32>,
    %c495_i32_941 = arith.constant 495 : i32
    %1684 = tpu.dynamic_rotate %1514 by %c495_i32_941 dim 1 : vector<4x512xf32>, i32 -> vector<4x512xf32>
    %c15_i32_942 = arith.constant 15 : i32
    %1685 = vector.broadcast %c15_i32_942 : i32 to vector<1x512xi32>
    %1686 = arith.cmpi slt, %0, %1685 : vector<1x512xi32>
    %c15_i32_943 = arith.constant 15 : i32
    %1687 = vector.broadcast %c15_i32_943 : i32 to vector<1x512xi32>
    %1688 = arith.cmpi slt, %1, %1687 : vector<1x512xi32>
    %1689 = arith.andi %1686, %1688 : vector<1x512xi1>
    %cst_944 = arith.constant 0.000000e+00 : f32
    %1690 = vector.shape_cast %1689 : vector<1x512xi1> to vector<1x512xi1>
    %1691 = vector.broadcast %1690 : vector<1x512xi1> to vector<4x512xi1>
    %1692 = vector.broadcast %cst_944 : f32 to vector<4x512xf32>
    %1693 = arith.select %1691, %1684, %1692 : vector<4x512xi1>, vector<4x512xf32>
    %c72_945 = arith.constant 72 : index
    %c0_946 = arith.constant 0 : index
    %1694 = vector.load %arg9[%c72_945, %c0_946] : memref<100x512xf32, #tpu.memory_space<vmem>>, vector<4x512xf32>
    tpu.vector_store %arg9[%c72_945, %c0_946], %1693 {strides = array<i32>} : memref<100x512xf32, #tpu.memory_space<vmem>>, vector<4x512xf32>,
    %c494_i32_947 = arith.constant 494 : i32
    %1695 = tpu.dynamic_rotate %1514 by %c494_i32_947 dim 1 : vector<4x512xf32>, i32 -> vector<4x512xf32>
    %c15_i32_948 = arith.constant 15 : i32
    %1696 = vector.broadcast %c15_i32_948 : i32 to vector<1x512xi32>
    %1697 = arith.cmpi slt, %0, %1696 : vector<1x512xi32>
    %c14_i32_949 = arith.constant 14 : i32
    %1698 = vector.broadcast %c14_i32_949 : i32 to vector<1x512xi32>
    %1699 = arith.cmpi slt, %1, %1698 : vector<1x512xi32>
    %1700 = arith.andi %1697, %1699 : vector<1x512xi1>
    %cst_950 = arith.constant 0.000000e+00 : f32
    %1701 = vector.shape_cast %1700 : vector<1x512xi1> to vector<1x512xi1>
    %1702 = vector.broadcast %1701 : vector<1x512xi1> to vector<4x512xi1>
    %1703 = vector.broadcast %cst_950 : f32 to vector<4x512xf32>
    %1704 = arith.select %1702, %1695, %1703 : vector<4x512xi1>, vector<4x512xf32>
    %c76_951 = arith.constant 76 : index
    %c0_952 = arith.constant 0 : index
    %1705 = vector.load %arg9[%c76_951, %c0_952] : memref<100x512xf32, #tpu.memory_space<vmem>>, vector<4x512xf32>
    tpu.vector_store %arg9[%c76_951, %c0_952], %1704 {strides = array<i32>} : memref<100x512xf32, #tpu.memory_space<vmem>>, vector<4x512xf32>,
    %c482_i32_953 = arith.constant 482 : i32
    %1706 = tpu.dynamic_rotate %1514 by %c482_i32_953 dim 1 : vector<4x512xf32>, i32 -> vector<4x512xf32>
    %c14_i32_954 = arith.constant 14 : i32
    %1707 = vector.broadcast %c14_i32_954 : i32 to vector<1x512xi32>
    %1708 = arith.cmpi slt, %0, %1707 : vector<1x512xi32>
    %c2_i32_955 = arith.constant 2 : i32
    %1709 = vector.broadcast %c2_i32_955 : i32 to vector<1x512xi32>
    %1710 = arith.cmpi sge, %1, %1709 : vector<1x512xi32>
    %1711 = arith.andi %1708, %1710 : vector<1x512xi1>
    %cst_956 = arith.constant 0.000000e+00 : f32
    %1712 = vector.shape_cast %1711 : vector<1x512xi1> to vector<1x512xi1>
    %1713 = vector.broadcast %1712 : vector<1x512xi1> to vector<4x512xi1>
    %1714 = vector.broadcast %cst_956 : f32 to vector<4x512xf32>
    %1715 = arith.select %1713, %1706, %1714 : vector<4x512xi1>, vector<4x512xf32>
    %c80_957 = arith.constant 80 : index
    %c0_958 = arith.constant 0 : index
    %1716 = vector.load %arg9[%c80_957, %c0_958] : memref<100x512xf32, #tpu.memory_space<vmem>>, vector<4x512xf32>
    tpu.vector_store %arg9[%c80_957, %c0_958], %1715 {strides = array<i32>} : memref<100x512xf32, #tpu.memory_space<vmem>>, vector<4x512xf32>,
    %c481_i32_959 = arith.constant 481 : i32
    %1717 = tpu.dynamic_rotate %1514 by %c481_i32_959 dim 1 : vector<4x512xf32>, i32 -> vector<4x512xf32>
    %c14_i32_960 = arith.constant 14 : i32
    %1718 = vector.broadcast %c14_i32_960 : i32 to vector<1x512xi32>
    %1719 = arith.cmpi slt, %0, %1718 : vector<1x512xi32>
    %c1_i32_961 = arith.constant 1 : i32
    %1720 = vector.broadcast %c1_i32_961 : i32 to vector<1x512xi32>
    %1721 = arith.cmpi sge, %1, %1720 : vector<1x512xi32>
    %1722 = arith.andi %1719, %1721 : vector<1x512xi1>
    %cst_962 = arith.constant 0.000000e+00 : f32
    %1723 = vector.shape_cast %1722 : vector<1x512xi1> to vector<1x512xi1>
    %1724 = vector.broadcast %1723 : vector<1x512xi1> to vector<4x512xi1>
    %1725 = vector.broadcast %cst_962 : f32 to vector<4x512xf32>
    %1726 = arith.select %1724, %1717, %1725 : vector<4x512xi1>, vector<4x512xf32>
    %c84_963 = arith.constant 84 : index
    %c0_964 = arith.constant 0 : index
    %1727 = vector.load %arg9[%c84_963, %c0_964] : memref<100x512xf32, #tpu.memory_space<vmem>>, vector<4x512xf32>
    tpu.vector_store %arg9[%c84_963, %c0_964], %1726 {strides = array<i32>} : memref<100x512xf32, #tpu.memory_space<vmem>>, vector<4x512xf32>,
    %c480_i32_965 = arith.constant 480 : i32
    %1728 = tpu.dynamic_rotate %1514 by %c480_i32_965 dim 1 : vector<4x512xf32>, i32 -> vector<4x512xf32>
    %c14_i32_966 = arith.constant 14 : i32
    %1729 = vector.broadcast %c14_i32_966 : i32 to vector<1x512xi32>
    %1730 = arith.cmpi slt, %0, %1729 : vector<1x512xi32>
    %cst_967 = arith.constant 0.000000e+00 : f32
    %1731 = vector.shape_cast %1730 : vector<1x512xi1> to vector<1x512xi1>
    %1732 = vector.broadcast %1731 : vector<1x512xi1> to vector<4x512xi1>
    %1733 = vector.broadcast %cst_967 : f32 to vector<4x512xf32>
    %1734 = arith.select %1732, %1728, %1733 : vector<4x512xi1>, vector<4x512xf32>
    %c88_968 = arith.constant 88 : index
    %c0_969 = arith.constant 0 : index
    %1735 = vector.load %arg9[%c88_968, %c0_969] : memref<100x512xf32, #tpu.memory_space<vmem>>, vector<4x512xf32>
    tpu.vector_store %arg9[%c88_968, %c0_969], %1734 {strides = array<i32>} : memref<100x512xf32, #tpu.memory_space<vmem>>, vector<4x512xf32>,
    %c479_i32_970 = arith.constant 479 : i32
    %1736 = tpu.dynamic_rotate %1514 by %c479_i32_970 dim 1 : vector<4x512xf32>, i32 -> vector<4x512xf32>
    %c14_i32_971 = arith.constant 14 : i32
    %1737 = vector.broadcast %c14_i32_971 : i32 to vector<1x512xi32>
    %1738 = arith.cmpi slt, %0, %1737 : vector<1x512xi32>
    %c15_i32_972 = arith.constant 15 : i32
    %1739 = vector.broadcast %c15_i32_972 : i32 to vector<1x512xi32>
    %1740 = arith.cmpi slt, %1, %1739 : vector<1x512xi32>
    %1741 = arith.andi %1738, %1740 : vector<1x512xi1>
    %cst_973 = arith.constant 0.000000e+00 : f32
    %1742 = vector.shape_cast %1741 : vector<1x512xi1> to vector<1x512xi1>
    %1743 = vector.broadcast %1742 : vector<1x512xi1> to vector<4x512xi1>
    %1744 = vector.broadcast %cst_973 : f32 to vector<4x512xf32>
    %1745 = arith.select %1743, %1736, %1744 : vector<4x512xi1>, vector<4x512xf32>
    %c92_974 = arith.constant 92 : index
    %c0_975 = arith.constant 0 : index
    %1746 = vector.load %arg9[%c92_974, %c0_975] : memref<100x512xf32, #tpu.memory_space<vmem>>, vector<4x512xf32>
    tpu.vector_store %arg9[%c92_974, %c0_975], %1745 {strides = array<i32>} : memref<100x512xf32, #tpu.memory_space<vmem>>, vector<4x512xf32>,
    %c478_i32_976 = arith.constant 478 : i32
    %1747 = tpu.dynamic_rotate %1514 by %c478_i32_976 dim 1 : vector<4x512xf32>, i32 -> vector<4x512xf32>
    %c14_i32_977 = arith.constant 14 : i32
    %1748 = vector.broadcast %c14_i32_977 : i32 to vector<1x512xi32>
    %1749 = arith.cmpi slt, %0, %1748 : vector<1x512xi32>
    %c14_i32_978 = arith.constant 14 : i32
    %1750 = vector.broadcast %c14_i32_978 : i32 to vector<1x512xi32>
    %1751 = arith.cmpi slt, %1, %1750 : vector<1x512xi32>
    %1752 = arith.andi %1749, %1751 : vector<1x512xi1>
    %cst_979 = arith.constant 0.000000e+00 : f32
    %1753 = vector.shape_cast %1752 : vector<1x512xi1> to vector<1x512xi1>
    %1754 = vector.broadcast %1753 : vector<1x512xi1> to vector<4x512xi1>
    %1755 = vector.broadcast %cst_979 : f32 to vector<4x512xf32>
    %1756 = arith.select %1754, %1747, %1755 : vector<4x512xi1>, vector<4x512xf32>
    %c96_980 = arith.constant 96 : index
    %c0_981 = arith.constant 0 : index
    %1757 = vector.load %arg9[%c96_980, %c0_981] : memref<100x512xf32, #tpu.memory_space<vmem>>, vector<4x512xf32>
    tpu.vector_store %arg9[%c96_980, %c0_981], %1756 {strides = array<i32>} : memref<100x512xf32, #tpu.memory_space<vmem>>, vector<4x512xf32>,
    %c0_982 = arith.constant 0 : index
    %c0_983 = arith.constant 0 : index
    %1758 = vector.load %arg9[%c0_982, %c0_983] : memref<100x512xf32, #tpu.memory_space<vmem>>, vector<100x512xf32>
    %cst_984 = arith.constant dense<0.000000e+00> : vector<3x512xf32>
    %1759 = tpu.matmul %1515, %1758, %cst_984 {dimension_numbers = #tpu.dot_dimension_numbers<[1], [0], [0], [1], [0, 0, 1, 1], [], []>} : vector<3x100xf32>, vector<100x512xf32>, vector<3x512xf32> -> vector<3x512xf32>
    %1760 = vector.broadcast %1516 : vector<3x1xf32> to vector<3x512xf32>
    %1761 = arith.addf %1759, %1760 : vector<3x512xf32>
    %c0_985 = arith.constant 0 : index
    %c0_986 = arith.constant 0 : index
    %1762 = vector.load %arg8[%c0_985, %c0_986] : memref<3x512xf32, #tpu.memory_space<vmem>>, vector<3x512xf32>
    tpu.vector_store %arg8[%c0_985, %c0_986], %1761 {strides = array<i32>} : memref<3x512xf32, #tpu.memory_space<vmem>>, vector<3x512xf32>,
    return
  }
  func.func @transform_0(%arg0: i32) -> (i32, i32) {
    %c0_i32 = arith.constant 0 : i32
    %c0_i32_0 = arith.constant 0 : i32
    return %c0_i32, %arg0 : i32, i32
  }
  func.func @transform_1(%arg0: i32) -> (i32, i32) {
    %c0_i32 = arith.constant 0 : i32
    %c0_i32_0 = arith.constant 0 : i32
    return %c0_i32, %arg0 : i32, i32
  }
  func.func @transform_2(%arg0: i32) -> (i32, i32) {
    %c0_i32 = arith.constant 0 : i32
    %c0_i32_0 = arith.constant 0 : i32
    return %c0_i32, %arg0 : i32, i32
  }
  func.func @transform_3(%arg0: i32) -> (i32, i32, i32) {
    %c0_i32 = arith.constant 0 : i32
    %c0_i32_0 = arith.constant 0 : i32
    %c0_i32_1 = arith.constant 0 : i32
    %c0_i32_2 = arith.constant 0 : i32
    return %c0_i32, %c0_i32_0, %c0_i32_1 : i32, i32, i32
  }
  func.func @transform_4(%arg0: i32) -> (i32, i32, i32) {
    %c0_i32 = arith.constant 0 : i32
    %c0_i32_0 = arith.constant 0 : i32
    %c0_i32_1 = arith.constant 0 : i32
    %c0_i32_2 = arith.constant 0 : i32
    return %c0_i32, %c0_i32_0, %c0_i32_1 : i32, i32, i32
  }
  func.func @transform_5(%arg0: i32) -> (i32, i32) {
    %c0_i32 = arith.constant 0 : i32
    %c0_i32_0 = arith.constant 0 : i32
    %c0_i32_1 = arith.constant 0 : i32
    return %c0_i32, %c0_i32_0 : i32, i32
  }
  func.func @transform_6(%arg0: i32) -> (i32, i32) {
    %c0_i32 = arith.constant 0 : i32
    %c0_i32_0 = arith.constant 0 : i32
    %c0_i32_1 = arith.constant 0 : i32
    return %c0_i32, %c0_i32_0 : i32, i32
  }
  func.func @transform_7(%arg0: i32) -> (i32, i32) {
    %c0_i32 = arith.constant 0 : i32
    %c0_i32_0 = arith.constant 0 : i32
    return %c0_i32, %arg0 : i32, i32
  }
}

</mosaic_0001>

<llo_original>
// kernel: tpu_custom_call.1
$region0: #{tpu_custom_call.1}
  #allocation0 [shape = 'u32[]', space=smem, size = 0x4, offset = 0x4, fixed_abs, tag = 'smem constant byte address 0x4 - core index']
  #allocation1 [shape = 'u32[144,128]{1,0:T(1,128)}', space=vmem, size = 0x12000, scoped, tag = 'internal scratch']
  #allocation2 [shape = 'f32[100,512]{1,0:T(8,128)}', space=vmem, size = 0x34000, scoped, tag = 'scratch operand']
  %s0 = inlined_call_operand.hbm [shape: f32[4,512], index: 0, kind: input, shape index: {}]
  %s1 = inlined_call_operand.vmem [shape: s32[1,512], index: 1, kind: input, shape index: {}]
  %s2 = inlined_call_operand.vmem [shape: s32[1,512], index: 2, kind: input, shape index: {}]
  %s3 = inlined_call_operand.vmem [shape: f32[6,4,100], index: 3, kind: input, shape index: {}]
  %s4 = inlined_call_operand.vmem [shape: f32[6,4,1], index: 4, kind: input, shape index: {}]
  %s5 = inlined_call_operand.vmem [shape: f32[3,100], index: 5, kind: input, shape index: {}]
  %s6 = inlined_call_operand.vmem [shape: f32[3,1], index: 6, kind: input, shape index: {}]
  %s7 = inlined_call_operand.hbm [shape: f32[3,512], index: 7, kind: output, shape index: {}]
  %s8 = sld [smem:[#allocation0]]
  $region42: #{tpu_custom_call.1} parent=0
    _
  %s10 = ssub.s32 1, %s8
  %s11 = scalar_select 0, %s10, %s8
  $region1: #{tpu_custom_call.1} parent=0
    #allocation3 [shape = 'u8[8192]{0}', space=vmem, size = 0x2000, scoped, tag = 'input window, operand 0, single buffered']
    #allocation4 [shape = 's32[1]{0}', space=sflag, size = 0x4, scoped, tag = 'scoped memory for tpu_custom_call.1']
    #allocation5 [shape = 's32[1]{0}', space=sflag, size = 0x4, scoped, tag = 'scoped memory for tpu_custom_call.1']
    #allocation6 [shape = 'u8[8192]{0}', space=vmem, size = 0x2000, scoped, tag = 'output window, operand 0, single buffered']
    %12 = vsyncpa [#allocation4], 0
    %13 = vsyncpa [#allocation5], 0
    // Predicated region
    $region2: #{tpu_custom_call.1} parent=1 // pred_check
      _
    $region3: #{tpu_custom_call.1} parent=1 // pred_check_branch
      %15 = sbr.rel (0) target = $region5
    $region4: #{tpu_custom_call.1} parent=1 // pred_region
      %s17 = ssub.s32 256, 256
      %18 = vsyncadd [#allocation4], %s17
      %s20 = sshll.u32 [#allocation3], 4
      %s21 = int_to_ptr.vmem [resolvable:$true] %s20
      %23 = dma.hbm_to_vmem [thread:$0]  %s0, 256, %s21, [#allocation4]
    $region5: #{tpu_custom_call.1} parent=1 // pred_fallthru
      _
    // Predicated region
    $region6: #{tpu_custom_call.1} parent=1 // pred_check
      _
    $region7: #{tpu_custom_call.1} parent=1 // pred_check_branch
      %25 = sbr.rel (0) target = $region9
    $region8: #{tpu_custom_call.1} parent=1 // pred_region
      _
    $region9: #{tpu_custom_call.1} parent=1 // pred_fallthru
      _
    // Predicated region
    $region10: #{tpu_custom_call.1} parent=1 // pred_check
      _
    $region11: #{tpu_custom_call.1} parent=1 // pred_check_branch
      %27 = sbr.rel (0) target = $region13
    $region12: #{tpu_custom_call.1} parent=1 // pred_region
      _
    $region13: #{tpu_custom_call.1} parent=1 // pred_fallthru
      _
    // Predicated region
    $region14: #{tpu_custom_call.1} parent=1 // pred_check
      _
    $region15: #{tpu_custom_call.1} parent=1 // pred_check_branch
      %29 = sbr.rel (0) target = $region17
    $region16: #{tpu_custom_call.1} parent=1 // pred_region
      _
    $region17: #{tpu_custom_call.1} parent=1 // pred_fallthru
      _
    // Predicated region
    $region18: #{tpu_custom_call.1} parent=1 // pred_check
      _
    $region19: #{tpu_custom_call.1} parent=1 // pred_check_branch
      %31 = sbr.rel (0) target = $region21
    $region20: #{tpu_custom_call.1} parent=1 // pred_region
      _
    $region21: #{tpu_custom_call.1} parent=1 // pred_fallthru
      _
    // Predicated region
    $region22: #{tpu_custom_call.1} parent=1 // pred_check
      _
    $region23: #{tpu_custom_call.1} parent=1 // pred_check_branch
      %33 = sbr.rel (0) target = $region25
    $region24: #{tpu_custom_call.1} parent=1 // pred_region
      _
    $region25: #{tpu_custom_call.1} parent=1 // pred_fallthru
      _
    // Predicated region
    $region26: #{tpu_custom_call.1} parent=1 // pred_check
      _
    $region27: #{tpu_custom_call.1} parent=1 // pred_check_branch
      %35 = sbr.rel (0) target = $region29
    $region28: #{tpu_custom_call.1} parent=1 // pred_region
      _
    $region29: #{tpu_custom_call.1} parent=1 // pred_fallthru
      _
    // Predicated region
    $region30: #{tpu_custom_call.1} parent=1 // pred_check
      _
    $region31: #{tpu_custom_call.1} parent=1 // pred_check_branch
      %37 = sbr.rel (0) target = $region33
    $region32: #{tpu_custom_call.1} parent=1 // pred_region
      %38 = dma.done [#allocation4], 256
    $region33: #{tpu_custom_call.1} parent=1 // pred_fallthru
      _
    %v39 = vld [vmem:[%s1] sm:$0xf]
    %v40 = vld [vmem:[%s2] sm:$0xf]
    %v41 = vld [vmem:[#allocation3] sm:$0xff]
    %v42 = vld [vmem:[#allocation3 + $0x8] sm:$0xff]
    %v43 = vld [vmem:[%s3] sm:$0xf]
    %v44 = vld [vmem:[%s4] sm:$0xf]
    %v47 = vcombine.high %v41, %v41
    %v48 = vcombine.high %v42, %v42
    %51 = vrot.lane.b32.xlu0 %v41, 34
    %v52 = vpop.permute.xlu0 %51
    %53 = vrot.lane.b32.xlu0 %v47, 34
    %v54 = vpop.permute.xlu0 %53
    %55 = vrot.lane.b32.xlu0 %v42, 34
    %v56 = vpop.permute.xlu0 %55
    %57 = vrot.lane.b32.xlu0 %v48, 34
    %v58 = vpop.permute.xlu0 %57
    %v59 = vlaneseq
    %v60 = vand.u32 %v59, 127
    %vm61 = vcmp.lt.s32.totalorder %v60, 34
    %v62 = vsel %vm61, %v56, %v58
    %v63 = vsel %vm61, %v54, %v56
    %v64 = vsel %vm61, %v52, %v54
    %v65 = vsel %vm61, %v58, %v52
    %vm66 = vcmp.ge.s32.totalorder %v39, 2
    %vm67 = vcmp.ge.s32.totalorder %v40, 2
    %vm68 = vmand %vm66, %vm67
    %v69 = vsel %vm68, 1, 0
    %v70 = vlaneseq
    %v71 = vshrl.u32 %v70, 7
    %v72 = vsub.s32 0, %v71
    %v73 = vrot.slane %v69, %v72
    %v74 = vlaneseq
    %v75 = vshrl.u32 %v74, 7
    %v76 = vsub.s32 1, %v75
    %v77 = vrot.slane %v69, %v76
    %v78 = vlaneseq
    %v79 = vshrl.u32 %v78, 7
    %v80 = vsub.s32 2, %v79
    %v81 = vrot.slane %v69, %v80
    %v82 = vlaneseq
    %v83 = vshrl.u32 %v82, 7
    %v84 = vsub.s32 3, %v83
    %v85 = vrot.slane %v69, %v84
    %vm86 = vcmp.eq.s32.totalorder %v73, 1
    %vm87 = vcmp.eq.s32.totalorder %v77, 1
    %vm88 = vcmp.eq.s32.totalorder %v81, 1
    %vm89 = vcmp.eq.s32.totalorder %v85, 1
    %v90 = vsel %vm86, %v65, 0.0
    %v91 = vsel %vm87, %v64, 0.0
    %v92 = vsel %vm88, %v63, 0.0
    %v93 = vsel %vm89, %v62, 0.0
    %94 = vst [vmem:[#allocation2] sm:$0xf] %v90
    %95 = vst [vmem:[#allocation2 + $0x8] sm:$0xf] %v91
    %96 = vst [vmem:[#allocation2 + $0x10] sm:$0xf] %v92
    %97 = vst [vmem:[#allocation2 + $0x18] sm:$0xf] %v93
    %98 = vrot.lane.b32.xlu0 %v41, 33
    %v99 = vpop.permute.xlu0 %98
    %100 = vrot.lane.b32.xlu0 %v47, 33
    %v101 = vpop.permute.xlu0 %100
    %102 = vrot.lane.b32.xlu0 %v42, 33
    %v103 = vpop.permute.xlu0 %102
    %104 = vrot.lane.b32.xlu0 %v48, 33
    %v105 = vpop.permute.xlu0 %104
    %vm106 = vcmp.lt.s32.totalorder %v60, 33
    %v107 = vsel %vm106, %v103, %v105
    %v108 = vsel %vm106, %v101, %v103
    %v109 = vsel %vm106, %v99, %v101
    %v110 = vsel %vm106, %v105, %v99
    %vm111 = vcmp.ge.s32.totalorder %v40, 1
    %vm112 = vmand %vm66, %vm111
    %v113 = vsel %vm112, 1, 0
    %v114 = vlaneseq
    %v115 = vshrl.u32 %v114, 7
    %v116 = vsub.s32 0, %v115
    %v117 = vrot.slane %v113, %v116
    %v118 = vlaneseq
    %v119 = vshrl.u32 %v118, 7
    %v120 = vsub.s32 1, %v119
    %v121 = vrot.slane %v113, %v120
    %v122 = vlaneseq
    %v123 = vshrl.u32 %v122, 7
    %v124 = vsub.s32 2, %v123
    %v125 = vrot.slane %v113, %v124
    %v126 = vlaneseq
    %v127 = vshrl.u32 %v126, 7
    %v128 = vsub.s32 3, %v127
    %v129 = vrot.slane %v113, %v128
    %vm130 = vcmp.eq.s32.totalorder %v117, 1
    %vm131 = vcmp.eq.s32.totalorder %v121, 1
    %vm132 = vcmp.eq.s32.totalorder %v125, 1
    %vm133 = vcmp.eq.s32.totalorder %v129, 1
    %v134 = vsel %vm130, %v110, 0.0
    %v135 = vsel %vm131, %v109, 0.0
    %v136 = vsel %vm132, %v108, 0.0
    %v137 = vsel %vm133, %v107, 0.0
    %v142 = vrot.slane %v134, 4
    %v143 = vrot.slane %v135, 4
    %v144 = vrot.slane %v136, 4
    %v145 = vrot.slane %v137, 4
    %150 = vst [vmem:[#allocation2] sm:$0xf0] %v142
    %151 = vst [vmem:[#allocation2 + $0x8] sm:$0xf0] %v143
    %152 = vst [vmem:[#allocation2 + $0x10] sm:$0xf0] %v144
    %153 = vst [vmem:[#allocation2 + $0x18] sm:$0xf0] %v145
    %154 = vrot.lane.b32.xlu0 %v41, 32
    %v155 = vpop.permute.xlu0 %154
    %156 = vrot.lane.b32.xlu0 %v47, 32
    %v157 = vpop.permute.xlu0 %156
    %158 = vrot.lane.b32.xlu0 %v42, 32
    %v159 = vpop.permute.xlu0 %158
    %160 = vrot.lane.b32.xlu0 %v48, 32
    %v161 = vpop.permute.xlu0 %160
    %vm162 = vcmp.lt.s32.totalorder %v60, 32
    %v163 = vsel %vm162, %v159, %v161
    %v164 = vsel %vm162, %v157, %v159
    %v165 = vsel %vm162, %v155, %v157
    %v166 = vsel %vm162, %v161, %v155
    %v167 = vsel %vm66, 1, 0
    %v168 = vlaneseq
    %v169 = vshrl.u32 %v168, 7
    %v170 = vsub.s32 0, %v169
    %v171 = vrot.slane %v167, %v170
    %v172 = vlaneseq
    %v173 = vshrl.u32 %v172, 7
    %v174 = vsub.s32 1, %v173
    %v175 = vrot.slane %v167, %v174
    %v176 = vlaneseq
    %v177 = vshrl.u32 %v176, 7
    %v178 = vsub.s32 2, %v177
    %v179 = vrot.slane %v167, %v178
    %v180 = vlaneseq
    %v181 = vshrl.u32 %v180, 7
    %v182 = vsub.s32 3, %v181
    %v183 = vrot.slane %v167, %v182
    %vm184 = vcmp.eq.s32.totalorder %v171, 1
    %vm185 = vcmp.eq.s32.totalorder %v175, 1
    %vm186 = vcmp.eq.s32.totalorder %v179, 1
    %vm187 = vcmp.eq.s32.totalorder %v183, 1
    %v188 = vsel %vm184, %v166, 0.0
    %v189 = vsel %vm185, %v165, 0.0
    %v190 = vsel %vm186, %v164, 0.0
    %v191 = vsel %vm187, %v163, 0.0
    %192 = vst [vmem:[#allocation2 + $0x20] sm:$0xf] %v188
    %193 = vst [vmem:[#allocation2 + $0x28] sm:$0xf] %v189
    %194 = vst [vmem:[#allocation2 + $0x30] sm:$0xf] %v190
    %195 = vst [vmem:[#allocation2 + $0x38] sm:$0xf] %v191
    %196 = vrot.lane.b32.xlu0 %v41, 31
    %v197 = vpop.permute.xlu0 %196
    %198 = vrot.lane.b32.xlu0 %v47, 31
    %v199 = vpop.permute.xlu0 %198
    %200 = vrot.lane.b32.xlu0 %v42, 31
    %v201 = vpop.permute.xlu0 %200
    %202 = vrot.lane.b32.xlu0 %v48, 31
    %v203 = vpop.permute.xlu0 %202
    %vm204 = vcmp.lt.s32.totalorder %v60, 31
    %v205 = vsel %vm204, %v201, %v203
    %v206 = vsel %vm204, %v199, %v201
    %v207 = vsel %vm204, %v197, %v199
    %v208 = vsel %vm204, %v203, %v197
    %vm209 = vcmp.lt.s32.totalorder %v40, 15
    %vm210 = vmand %vm66, %vm209
    %v211 = vsel %vm210, 1, 0
    %v212 = vlaneseq
    %v213 = vshrl.u32 %v212, 7
    %v214 = vsub.s32 0, %v213
    %v215 = vrot.slane %v211, %v214
    %v216 = vlaneseq
    %v217 = vshrl.u32 %v216, 7
    %v218 = vsub.s32 1, %v217
    %v219 = vrot.slane %v211, %v218
    %v220 = vlaneseq
    %v221 = vshrl.u32 %v220, 7
    %v222 = vsub.s32 2, %v221
    %v223 = vrot.slane %v211, %v222
    %v224 = vlaneseq
    %v225 = vshrl.u32 %v224, 7
    %v226 = vsub.s32 3, %v225
    %v227 = vrot.slane %v211, %v226
    %vm228 = vcmp.eq.s32.totalorder %v215, 1
    %vm229 = vcmp.eq.s32.totalorder %v219, 1
    %vm230 = vcmp.eq.s32.totalorder %v223, 1
    %vm231 = vcmp.eq.s32.totalorder %v227, 1
    %v232 = vsel %vm228, %v208, 0.0
    %v233 = vsel %vm229, %v207, 0.0
    %v234 = vsel %vm230, %v206, 0.0
    %v235 = vsel %vm231, %v205, 0.0
    %v240 = vrot.slane %v232, 4
    %v241 = vrot.slane %v233, 4
    %v242 = vrot.slane %v234, 4
    %v243 = vrot.slane %v235, 4
    %248 = vst [vmem:[#allocation2 + $0x20] sm:$0xf0] %v240
    %249 = vst [vmem:[#allocation2 + $0x28] sm:$0xf0] %v241
    %250 = vst [vmem:[#allocation2 + $0x30] sm:$0xf0] %v242
    %251 = vst [vmem:[#allocation2 + $0x38] sm:$0xf0] %v243
    %252 = vrot.lane.b32.xlu0 %v41, 30
    %v253 = vpop.permute.xlu0 %252
    %254 = vrot.lane.b32.xlu0 %v47, 30
    %v255 = vpop.permute.xlu0 %254
    %256 = vrot.lane.b32.xlu0 %v42, 30
    %v257 = vpop.permute.xlu0 %256
    %258 = vrot.lane.b32.xlu0 %v48, 30
    %v259 = vpop.permute.xlu0 %258
    %vm260 = vcmp.lt.s32.totalorder %v60, 30
    %v261 = vsel %vm260, %v257, %v259
    %v262 = vsel %vm260, %v255, %v257
    %v263 = vsel %vm260, %v253, %v255
    %v264 = vsel %vm260, %v259, %v253
    %vm265 = vcmp.lt.s32.totalorder %v40, 14
    %vm266 = vmand %vm66, %vm265
    %v267 = vsel %vm266, 1, 0
    %v268 = vlaneseq
    %v269 = vshrl.u32 %v268, 7
    %v270 = vsub.s32 0, %v269
    %v271 = vrot.slane %v267, %v270
    %v272 = vlaneseq
    %v273 = vshrl.u32 %v272, 7
    %v274 = vsub.s32 1, %v273
    %v275 = vrot.slane %v267, %v274
    %v276 = vlaneseq
    %v277 = vshrl.u32 %v276, 7
    %v278 = vsub.s32 2, %v277
    %v279 = vrot.slane %v267, %v278
    %v280 = vlaneseq
    %v281 = vshrl.u32 %v280, 7
    %v282 = vsub.s32 3, %v281
    %v283 = vrot.slane %v267, %v282
    %vm284 = vcmp.eq.s32.totalorder %v271, 1
    %vm285 = vcmp.eq.s32.totalorder %v275, 1
    %vm286 = vcmp.eq.s32.totalorder %v279, 1
    %vm287 = vcmp.eq.s32.totalorder %v283, 1
    %v288 = vsel %vm284, %v264, 0.0
    %v289 = vsel %vm285, %v263, 0.0
    %v290 = vsel %vm286, %v262, 0.0
    %v291 = vsel %vm287, %v261, 0.0
    %292 = vst [vmem:[#allocation2 + $0x40] sm:$0xf] %v288
    %293 = vst [vmem:[#allocation2 + $0x48] sm:$0xf] %v289
    %294 = vst [vmem:[#allocation2 + $0x50] sm:$0xf] %v290
    %295 = vst [vmem:[#allocation2 + $0x58] sm:$0xf] %v291
    %296 = vrot.lane.b32.xlu0 %v41, 18
    %v297 = vpop.permute.xlu0 %296
    %298 = vrot.lane.b32.xlu0 %v47, 18
    %v299 = vpop.permute.xlu0 %298
    %300 = vrot.lane.b32.xlu0 %v42, 18
    %v301 = vpop.permute.xlu0 %300
    %302 = vrot.lane.b32.xlu0 %v48, 18
    %v303 = vpop.permute.xlu0 %302
    %vm304 = vcmp.lt.s32.totalorder %v60, 18
    %v305 = vsel %vm304, %v301, %v303
    %v306 = vsel %vm304, %v299, %v301
    %v307 = vsel %vm304, %v297, %v299
    %v308 = vsel %vm304, %v303, %v297
    %vm309 = vcmp.ge.s32.totalorder %v39, 1
    %vm310 = vmand %vm309, %vm67
    %v311 = vsel %vm310, 1, 0
    %v312 = vlaneseq
    %v313 = vshrl.u32 %v312, 7
    %v314 = vsub.s32 0, %v313
    %v315 = vrot.slane %v311, %v314
    %v316 = vlaneseq
    %v317 = vshrl.u32 %v316, 7
    %v318 = vsub.s32 1, %v317
    %v319 = vrot.slane %v311, %v318
    %v320 = vlaneseq
    %v321 = vshrl.u32 %v320, 7
    %v322 = vsub.s32 2, %v321
    %v323 = vrot.slane %v311, %v322
    %v324 = vlaneseq
    %v325 = vshrl.u32 %v324, 7
    %v326 = vsub.s32 3, %v325
    %v327 = vrot.slane %v311, %v326
    %vm328 = vcmp.eq.s32.totalorder %v315, 1
    %vm329 = vcmp.eq.s32.totalorder %v319, 1
    %vm330 = vcmp.eq.s32.totalorder %v323, 1
    %vm331 = vcmp.eq.s32.totalorder %v327, 1
    %v332 = vsel %vm328, %v308, 0.0
    %v333 = vsel %vm329, %v307, 0.0
    %v334 = vsel %vm330, %v306, 0.0
    %v335 = vsel %vm331, %v305, 0.0
    %v340 = vrot.slane %v332, 4
    %v341 = vrot.slane %v333, 4
    %v342 = vrot.slane %v334, 4
    %v343 = vrot.slane %v335, 4
    %348 = vst [vmem:[#allocation2 + $0x40] sm:$0xf0] %v340
    %349 = vst [vmem:[#allocation2 + $0x48] sm:$0xf0] %v341
    %350 = vst [vmem:[#allocation2 + $0x50] sm:$0xf0] %v342
    %351 = vst [vmem:[#allocation2 + $0x58] sm:$0xf0] %v343
    %352 = vrot.lane.b32.xlu0 %v41, 17
    %v353 = vpop.permute.xlu0 %352
    %354 = vrot.lane.b32.xlu0 %v47, 17
    %v355 = vpop.permute.xlu0 %354
    %356 = vrot.lane.b32.xlu0 %v42, 17
    %v357 = vpop.permute.xlu0 %356
    %358 = vrot.lane.b32.xlu0 %v48, 17
    %v359 = vpop.permute.xlu0 %358
    %vm360 = vcmp.lt.s32.totalorder %v60, 17
    %v361 = vsel %vm360, %v357, %v359
    %v362 = vsel %vm360, %v355, %v357
    %v363 = vsel %vm360, %v353, %v355
    %v364 = vsel %vm360, %v359, %v353
    %vm365 = vmand %vm309, %vm111
    %v366 = vsel %vm365, 1, 0
    %v367 = vlaneseq
    %v368 = vshrl.u32 %v367, 7
    %v369 = vsub.s32 0, %v368
    %v370 = vrot.slane %v366, %v369
    %v371 = vlaneseq
    %v372 = vshrl.u32 %v371, 7
    %v373 = vsub.s32 1, %v372
    %v374 = vrot.slane %v366, %v373
    %v375 = vlaneseq
    %v376 = vshrl.u32 %v375, 7
    %v377 = vsub.s32 2, %v376
    %v378 = vrot.slane %v366, %v377
    %v379 = vlaneseq
    %v380 = vshrl.u32 %v379, 7
    %v381 = vsub.s32 3, %v380
    %v382 = vrot.slane %v366, %v381
    %vm383 = vcmp.eq.s32.totalorder %v370, 1
    %vm384 = vcmp.eq.s32.totalorder %v374, 1
    %vm385 = vcmp.eq.s32.totalorder %v378, 1
    %vm386 = vcmp.eq.s32.totalorder %v382, 1
    %v387 = vsel %vm383, %v364, 0.0
    %v388 = vsel %vm384, %v363, 0.0
    %v389 = vsel %vm385, %v362, 0.0
    %v390 = vsel %vm386, %v361, 0.0
    %391 = vst [vmem:[#allocation2 + $0x60] sm:$0xf] %v387
    %392 = vst [vmem:[#allocation2 + $0x68] sm:$0xf] %v388
    %393 = vst [vmem:[#allocation2 + $0x70] sm:$0xf] %v389
    %394 = vst [vmem:[#allocation2 + $0x78] sm:$0xf] %v390
    %395 = vrot.lane.b32.xlu0 %v41, 16
    %v396 = vpop.permute.xlu0 %395
    %397 = vrot.lane.b32.xlu0 %v47, 16
    %v398 = vpop.permute.xlu0 %397
    %399 = vrot.lane.b32.xlu0 %v42, 16
    %v400 = vpop.permute.xlu0 %399
    %401 = vrot.lane.b32.xlu0 %v48, 16
    %v402 = vpop.permute.xlu0 %401
    %vm403 = vcmp.lt.s32.totalorder %v60, 16
    %v404 = vsel %vm403, %v400, %v402
    %v405 = vsel %vm403, %v398, %v400
    %v406 = vsel %vm403, %v396, %v398
    %v407 = vsel %vm403, %v402, %v396
    %v408 = vsel %vm309, 1, 0
    %v409 = vlaneseq
    %v410 = vshrl.u32 %v409, 7
    %v411 = vsub.s32 0, %v410
    %v412 = vrot.slane %v408, %v411
    %v413 = vlaneseq
    %v414 = vshrl.u32 %v413, 7
    %v415 = vsub.s32 1, %v414
    %v416 = vrot.slane %v408, %v415
    %v417 = vlaneseq
    %v418 = vshrl.u32 %v417, 7
    %v419 = vsub.s32 2, %v418
    %v420 = vrot.slane %v408, %v419
    %v421 = vlaneseq
    %v422 = vshrl.u32 %v421, 7
    %v423 = vsub.s32 3, %v422
    %v424 = vrot.slane %v408, %v423
    %vm425 = vcmp.eq.s32.totalorder %v412, 1
    %vm426 = vcmp.eq.s32.totalorder %v416, 1
    %vm427 = vcmp.eq.s32.totalorder %v420, 1
    %vm428 = vcmp.eq.s32.totalorder %v424, 1
    %v429 = vsel %vm425, %v407, 0.0
    %v430 = vsel %vm426, %v406, 0.0
    %v431 = vsel %vm427, %v405, 0.0
    %v432 = vsel %vm428, %v404, 0.0
    %v437 = vrot.slane %v429, 4
    %v438 = vrot.slane %v430, 4
    %v439 = vrot.slane %v431, 4
    %v440 = vrot.slane %v432, 4
    %445 = vst [vmem:[#allocation2 + $0x60] sm:$0xf0] %v437
    %446 = vst [vmem:[#allocation2 + $0x68] sm:$0xf0] %v438
    %447 = vst [vmem:[#allocation2 + $0x70] sm:$0xf0] %v439
    %448 = vst [vmem:[#allocation2 + $0x78] sm:$0xf0] %v440
    %449 = vrot.lane.b32.xlu0 %v41, 15
    %v450 = vpop.permute.xlu0 %449
    %451 = vrot.lane.b32.xlu0 %v47, 15
    %v452 = vpop.permute.xlu0 %451
    %453 = vrot.lane.b32.xlu0 %v42, 15
    %v454 = vpop.permute.xlu0 %453
    %455 = vrot.lane.b32.xlu0 %v48, 15
    %v456 = vpop.permute.xlu0 %455
    %vm457 = vcmp.lt.s32.totalorder %v60, 15
    %v458 = vsel %vm457, %v454, %v456
    %v459 = vsel %vm457, %v452, %v454
    %v460 = vsel %vm457, %v450, %v452
    %v461 = vsel %vm457, %v456, %v450
    %vm462 = vmand %vm309, %vm209
    %v463 = vsel %vm462, 1, 0
    %v464 = vlaneseq
    %v465 = vshrl.u32 %v464, 7
    %v466 = vsub.s32 0, %v465
    %v467 = vrot.slane %v463, %v466
    %v468 = vlaneseq
    %v469 = vshrl.u32 %v468, 7
    %v470 = vsub.s32 1, %v469
    %v471 = vrot.slane %v463, %v470
    %v472 = vlaneseq
    %v473 = vshrl.u32 %v472, 7
    %v474 = vsub.s32 2, %v473
    %v475 = vrot.slane %v463, %v474
    %v476 = vlaneseq
    %v477 = vshrl.u32 %v476, 7
    %v478 = vsub.s32 3, %v477
    %v479 = vrot.slane %v463, %v478
    %vm480 = vcmp.eq.s32.totalorder %v467, 1
    %vm481 = vcmp.eq.s32.totalorder %v471, 1
    %vm482 = vcmp.eq.s32.totalorder %v475, 1
    %vm483 = vcmp.eq.s32.totalorder %v479, 1
    %v484 = vsel %vm480, %v461, 0.0
    %v485 = vsel %vm481, %v460, 0.0
    %v486 = vsel %vm482, %v459, 0.0
    %v487 = vsel %vm483, %v458, 0.0
    %488 = vst [vmem:[#allocation2 + $0x80] sm:$0xf] %v484
    %489 = vst [vmem:[#allocation2 + $0x88] sm:$0xf] %v485
    %490 = vst [vmem:[#allocation2 + $0x90] sm:$0xf] %v486
    %491 = vst [vmem:[#allocation2 + $0x98] sm:$0xf] %v487
    %492 = vrot.lane.b32.xlu0 %v41, 14
    %v493 = vpop.permute.xlu0 %492
    %494 = vrot.lane.b32.xlu0 %v47, 14
    %v495 = vpop.permute.xlu0 %494
    %496 = vrot.lane.b32.xlu0 %v42, 14
    %v497 = vpop.permute.xlu0 %496
    %498 = vrot.lane.b32.xlu0 %v48, 14
    %v499 = vpop.permute.xlu0 %498
    %vm500 = vcmp.lt.s32.totalorder %v60, 14
    %v501 = vsel %vm500, %v497, %v499
    %v502 = vsel %vm500, %v495, %v497
    %v503 = vsel %vm500, %v493, %v495
    %v504 = vsel %vm500, %v499, %v493
    %vm505 = vmand %vm309, %vm265
    %v506 = vsel %vm505, 1, 0
    %v507 = vlaneseq
    %v508 = vshrl.u32 %v507, 7
    %v509 = vsub.s32 0, %v508
    %v510 = vrot.slane %v506, %v509
    %v511 = vlaneseq
    %v512 = vshrl.u32 %v511, 7
    %v513 = vsub.s32 1, %v512
    %v514 = vrot.slane %v506, %v513
    %v515 = vlaneseq
    %v516 = vshrl.u32 %v515, 7
    %v517 = vsub.s32 2, %v516
    %v518 = vrot.slane %v506, %v517
    %v519 = vlaneseq
    %v520 = vshrl.u32 %v519, 7
    %v521 = vsub.s32 3, %v520
    %v522 = vrot.slane %v506, %v521
    %vm523 = vcmp.eq.s32.totalorder %v510, 1
    %vm524 = vcmp.eq.s32.totalorder %v514, 1
    %vm525 = vcmp.eq.s32.totalorder %v518, 1
    %vm526 = vcmp.eq.s32.totalorder %v522, 1
    %v527 = vsel %vm523, %v504, 0.0
    %v528 = vsel %vm524, %v503, 0.0
    %v529 = vsel %vm525, %v502, 0.0
    %v530 = vsel %vm526, %v501, 0.0
    %v535 = vrot.slane %v527, 4
    %v536 = vrot.slane %v528, 4
    %v537 = vrot.slane %v529, 4
    %v538 = vrot.slane %v530, 4
    %543 = vst [vmem:[#allocation2 + $0x80] sm:$0xf0] %v535
    %544 = vst [vmem:[#allocation2 + $0x88] sm:$0xf0] %v536
    %545 = vst [vmem:[#allocation2 + $0x90] sm:$0xf0] %v537
    %546 = vst [vmem:[#allocation2 + $0x98] sm:$0xf0] %v538
    %547 = vrot.lane.b32.xlu0 %v41, 2
    %v548 = vpop.permute.xlu0 %547
    %549 = vrot.lane.b32.xlu0 %v47, 2
    %v550 = vpop.permute.xlu0 %549
    %551 = vrot.lane.b32.xlu0 %v42, 2
    %v552 = vpop.permute.xlu0 %551
    %553 = vrot.lane.b32.xlu0 %v48, 2
    %v554 = vpop.permute.xlu0 %553
    %vm555 = vcmp.lt.s32.totalorder %v60, 2
    %v556 = vsel %vm555, %v552, %v554
    %v557 = vsel %vm555, %v550, %v552
    %v558 = vsel %vm555, %v548, %v550
    %v559 = vsel %vm555, %v554, %v548
    %v560 = vsel %vm67, 1, 0
    %v561 = vlaneseq
    %v562 = vshrl.u32 %v561, 7
    %v563 = vsub.s32 0, %v562
    %v564 = vrot.slane %v560, %v563
    %v565 = vlaneseq
    %v566 = vshrl.u32 %v565, 7
    %v567 = vsub.s32 1, %v566
    %v568 = vrot.slane %v560, %v567
    %v569 = vlaneseq
    %v570 = vshrl.u32 %v569, 7
    %v571 = vsub.s32 2, %v570
    %v572 = vrot.slane %v560, %v571
    %v573 = vlaneseq
    %v574 = vshrl.u32 %v573, 7
    %v575 = vsub.s32 3, %v574
    %v576 = vrot.slane %v560, %v575
    %vm577 = vcmp.eq.s32.totalorder %v564, 1
    %vm578 = vcmp.eq.s32.totalorder %v568, 1
    %vm579 = vcmp.eq.s32.totalorder %v572, 1
    %vm580 = vcmp.eq.s32.totalorder %v576, 1
    %v581 = vsel %vm577, %v559, 0.0
    %v582 = vsel %vm578, %v558, 0.0
    %v583 = vsel %vm579, %v557, 0.0
    %v584 = vsel %vm580, %v556, 0.0
    %585 = vst [vmem:[#allocation2 + $0xa0] sm:$0xf] %v581
    %586 = vst [vmem:[#allocation2 + $0xa8] sm:$0xf] %v582
    %587 = vst [vmem:[#allocation2 + $0xb0] sm:$0xf] %v583
    %588 = vst [vmem:[#allocation2 + $0xb8] sm:$0xf] %v584
    %589 = vrot.lane.b32.xlu0 %v41, 1
    %v590 = vpop.permute.xlu0 %589
    %591 = vrot.lane.b32.xlu0 %v47, 1
    %v592 = vpop.permute.xlu0 %591
    %593 = vrot.lane.b32.xlu0 %v42, 1
    %v594 = vpop.permute.xlu0 %593
    %595 = vrot.lane.b32.xlu0 %v48, 1
    %v596 = vpop.permute.xlu0 %595
    %vm597 = vcmp.lt.s32.totalorder %v60, 1
    %v598 = vsel %vm597, %v594, %v596
    %v599 = vsel %vm597, %v592, %v594
    %v600 = vsel %vm597, %v590, %v592
    %v601 = vsel %vm597, %v596, %v590
    %v602 = vsel %vm111, 1, 0
    %v603 = vlaneseq
    %v604 = vshrl.u32 %v603, 7
    %v605 = vsub.s32 0, %v604
    %v606 = vrot.slane %v602, %v605
    %v607 = vlaneseq
    %v608 = vshrl.u32 %v607, 7
    %v609 = vsub.s32 1, %v608
    %v610 = vrot.slane %v602, %v609
    %v611 = vlaneseq
    %v612 = vshrl.u32 %v611, 7
    %v613 = vsub.s32 2, %v612
    %v614 = vrot.slane %v602, %v613
    %v615 = vlaneseq
    %v616 = vshrl.u32 %v615, 7
    %v617 = vsub.s32 3, %v616
    %v618 = vrot.slane %v602, %v617
    %vm619 = vcmp.eq.s32.totalorder %v606, 1
    %vm620 = vcmp.eq.s32.totalorder %v610, 1
    %vm621 = vcmp.eq.s32.totalorder %v614, 1
    %vm622 = vcmp.eq.s32.totalorder %v618, 1
    %v623 = vsel %vm619, %v601, 0.0
    %v624 = vsel %vm620, %v600, 0.0
    %v625 = vsel %vm621, %v599, 0.0
    %v626 = vsel %vm622, %v598, 0.0
    %v631 = vrot.slane %v623, 4
    %v632 = vrot.slane %v624, 4
    %v633 = vrot.slane %v625, 4
    %v634 = vrot.slane %v626, 4
    %639 = vst [vmem:[#allocation2 + $0xa0] sm:$0xf0] %v631
    %640 = vst [vmem:[#allocation2 + $0xa8] sm:$0xf0] %v632
    %641 = vst [vmem:[#allocation2 + $0xb0] sm:$0xf0] %v633
    %642 = vst [vmem:[#allocation2 + $0xb8] sm:$0xf0] %v634
    %643 = vst [vmem:[#allocation2 + $0xc0] sm:$0xf] %v41
    %644 = vst [vmem:[#allocation2 + $0xc8] sm:$0xf] %v47
    %645 = vst [vmem:[#allocation2 + $0xd0] sm:$0xf] %v42
    %646 = vst [vmem:[#allocation2 + $0xd8] sm:$0xf] %v48
    %647 = vrot.lane.b32.xlu0 %v41, 127
    %v648 = vpop.permute.xlu0 %647
    %649 = vrot.lane.b32.xlu0 %v47, 127
    %v650 = vpop.permute.xlu0 %649
    %651 = vrot.lane.b32.xlu0 %v42, 127
    %v652 = vpop.permute.xlu0 %651
    %653 = vrot.lane.b32.xlu0 %v48, 127
    %v654 = vpop.permute.xlu0 %653
    %vm655 = vcmp.lt.s32.totalorder %v60, 127
    %v656 = vsel %vm655, %v652, %v654
    %v657 = vsel %vm655, %v650, %v652
    %v658 = vsel %vm655, %v648, %v650
    %v659 = vsel %vm655, %v654, %v648
    %v660 = vsel %vm209, 1, 0
    %v661 = vlaneseq
    %v662 = vshrl.u32 %v661, 7
    %v663 = vsub.s32 0, %v662
    %v664 = vrot.slane %v660, %v663
    %v665 = vlaneseq
    %v666 = vshrl.u32 %v665, 7
    %v667 = vsub.s32 1, %v666
    %v668 = vrot.slane %v660, %v667
    %v669 = vlaneseq
    %v670 = vshrl.u32 %v669, 7
    %v671 = vsub.s32 2, %v670
    %v672 = vrot.slane %v660, %v671
    %v673 = vlaneseq
    %v674 = vshrl.u32 %v673, 7
    %v675 = vsub.s32 3, %v674
    %v676 = vrot.slane %v660, %v675
    %vm677 = vcmp.eq.s32.totalorder %v664, 1
    %vm678 = vcmp.eq.s32.totalorder %v668, 1
    %vm679 = vcmp.eq.s32.totalorder %v672, 1
    %vm680 = vcmp.eq.s32.totalorder %v676, 1
    %v681 = vsel %vm677, %v658, 0.0
    %v682 = vsel %vm678, %v657, 0.0
    %v683 = vsel %vm679, %v656, 0.0
    %v684 = vsel %vm680, %v659, 0.0
    %v689 = vrot.slane %v681, 4
    %v690 = vrot.slane %v682, 4
    %v691 = vrot.slane %v683, 4
    %v692 = vrot.slane %v684, 4
    %697 = vst [vmem:[#allocation2 + $0xc0] sm:$0xf0] %v689
    %698 = vst [vmem:[#allocation2 + $0xc8] sm:$0xf0] %v690
    %699 = vst [vmem:[#allocation2 + $0xd0] sm:$0xf0] %v691
    %700 = vst [vmem:[#allocation2 + $0xd8] sm:$0xf0] %v692
    %701 = vrot.lane.b32.xlu0 %v41, 126
    %v702 = vpop.permute.xlu0 %701
    %703 = vrot.lane.b32.xlu0 %v47, 126
    %v704 = vpop.permute.xlu0 %703
    %705 = vrot.lane.b32.xlu0 %v42, 126
    %v706 = vpop.permute.xlu0 %705
    %707 = vrot.lane.b32.xlu0 %v48, 126
    %v708 = vpop.permute.xlu0 %707
    %vm709 = vcmp.lt.s32.totalorder %v60, 126
    %v710 = vsel %vm709, %v706, %v708
    %v711 = vsel %vm709, %v704, %v706
    %v712 = vsel %vm709, %v702, %v704
    %v713 = vsel %vm709, %v708, %v702
    %v714 = vsel %vm265, 1, 0
    %v715 = vlaneseq
    %v716 = vshrl.u32 %v715, 7
    %v717 = vsub.s32 0, %v716
    %v718 = vrot.slane %v714, %v717
    %v719 = vlaneseq
    %v720 = vshrl.u32 %v719, 7
    %v721 = vsub.s32 1, %v720
    %v722 = vrot.slane %v714, %v721
    %v723 = vlaneseq
    %v724 = vshrl.u32 %v723, 7
    %v725 = vsub.s32 2, %v724
    %v726 = vrot.slane %v714, %v725
    %v727 = vlaneseq
    %v728 = vshrl.u32 %v727, 7
    %v729 = vsub.s32 3, %v728
    %v730 = vrot.slane %v714, %v729
    %vm731 = vcmp.eq.s32.totalorder %v718, 1
    %vm732 = vcmp.eq.s32.totalorder %v722, 1
    %vm733 = vcmp.eq.s32.totalorder %v726, 1
    %vm734 = vcmp.eq.s32.totalorder %v730, 1
    %v735 = vsel %vm731, %v712, 0.0
    %v736 = vsel %vm732, %v711, 0.0
    %v737 = vsel %vm733, %v710, 0.0
    %v738 = vsel %vm734, %v713, 0.0
    %739 = vst [vmem:[#allocation2 + $0xe0] sm:$0xf] %v735
    %740 = vst [vmem:[#allocation2 + $0xe8] sm:$0xf] %v736
    %741 = vst [vmem:[#allocation2 + $0xf0] sm:$0xf] %v737
    %742 = vst [vmem:[#allocation2 + $0xf8] sm:$0xf] %v738
    %743 = vrot.lane.b32.xlu0 %v41, 114
    %v744 = vpop.permute.xlu0 %743
    %745 = vrot.lane.b32.xlu0 %v47, 114
    %v746 = vpop.permute.xlu0 %745
    %747 = vrot.lane.b32.xlu0 %v42, 114
    %v748 = vpop.permute.xlu0 %747
    %749 = vrot.lane.b32.xlu0 %v48, 114
    %v750 = vpop.permute.xlu0 %749
    %vm751 = vcmp.lt.s32.totalorder %v60, 114
    %v752 = vsel %vm751, %v748, %v750
    %v753 = vsel %vm751, %v746, %v748
    %v754 = vsel %vm751, %v744, %v746
    %v755 = vsel %vm751, %v750, %v744
    %vm756 = vcmp.lt.s32.totalorder %v39, 15
    %vm757 = vmand %vm756, %vm67
    %v758 = vsel %vm757, 1, 0
    %v759 = vlaneseq
    %v760 = vshrl.u32 %v759, 7
    %v761 = vsub.s32 0, %v760
    %v762 = vrot.slane %v758, %v761
    %v763 = vlaneseq
    %v764 = vshrl.u32 %v763, 7
    %v765 = vsub.s32 1, %v764
    %v766 = vrot.slane %v758, %v765
    %v767 = vlaneseq
    %v768 = vshrl.u32 %v767, 7
    %v769 = vsub.s32 2, %v768
    %v770 = vrot.slane %v758, %v769
    %v771 = vlaneseq
    %v772 = vshrl.u32 %v771, 7
    %v773 = vsub.s32 3, %v772
    %v774 = vrot.slane %v758, %v773
    %vm775 = vcmp.eq.s32.totalorder %v762, 1
    %vm776 = vcmp.eq.s32.totalorder %v766, 1
    %vm777 = vcmp.eq.s32.totalorder %v770, 1
    %vm778 = vcmp.eq.s32.totalorder %v774, 1
    %v779 = vsel %vm775, %v754, 0.0
    %v780 = vsel %vm776, %v753, 0.0
    %v781 = vsel %vm777, %v752, 0.0
    %v782 = vsel %vm778, %v755, 0.0
    %v787 = vrot.slane %v779, 4
    %v788 = vrot.slane %v780, 4
    %v789 = vrot.slane %v781, 4
    %v790 = vrot.slane %v782, 4
    %795 = vst [vmem:[#allocation2 + $0xe0] sm:$0xf0] %v787
    %796 = vst [vmem:[#allocation2 + $0xe8] sm:$0xf0] %v788
    %797 = vst [vmem:[#allocation2 + $0xf0] sm:$0xf0] %v789
    %798 = vst [vmem:[#allocation2 + $0xf8] sm:$0xf0] %v790
    %799 = vrot.lane.b32.xlu0 %v41, 113
    %v800 = vpop.permute.xlu0 %799
    %801 = vrot.lane.b32.xlu0 %v47, 113
    %v802 = vpop.permute.xlu0 %801
    %803 = vrot.lane.b32.xlu0 %v42, 113
    %v804 = vpop.permute.xlu0 %803
    %805 = vrot.lane.b32.xlu0 %v48, 113
    %v806 = vpop.permute.xlu0 %805
    %vm807 = vcmp.lt.s32.totalorder %v60, 113
    %v808 = vsel %vm807, %v804, %v806
    %v809 = vsel %vm807, %v802, %v804
    %v810 = vsel %vm807, %v800, %v802
    %v811 = vsel %vm807, %v806, %v800
    %vm812 = vmand %vm756, %vm111
    %v813 = vsel %vm812, 1, 0
    %v814 = vlaneseq
    %v815 = vshrl.u32 %v814, 7
    %v816 = vsub.s32 0, %v815
    %v817 = vrot.slane %v813, %v816
    %v818 = vlaneseq
    %v819 = vshrl.u32 %v818, 7
    %v820 = vsub.s32 1, %v819
    %v821 = vrot.slane %v813, %v820
    %v822 = vlaneseq
    %v823 = vshrl.u32 %v822, 7
    %v824 = vsub.s32 2, %v823
    %v825 = vrot.slane %v813, %v824
    %v826 = vlaneseq
    %v827 = vshrl.u32 %v826, 7
    %v828 = vsub.s32 3, %v827
    %v829 = vrot.slane %v813, %v828
    %vm830 = vcmp.eq.s32.totalorder %v817, 1
    %vm831 = vcmp.eq.s32.totalorder %v821, 1
    %vm832 = vcmp.eq.s32.totalorder %v825, 1
    %vm833 = vcmp.eq.s32.totalorder %v829, 1
    %v834 = vsel %vm830, %v810, 0.0
    %v835 = vsel %vm831, %v809, 0.0
    %v836 = vsel %vm832, %v808, 0.0
    %v837 = vsel %vm833, %v811, 0.0
    %838 = vst [vmem:[#allocation2 + $0x100] sm:$0xf] %v834
    %839 = vst [vmem:[#allocation2 + $0x108] sm:$0xf] %v835
    %840 = vst [vmem:[#allocation2 + $0x110] sm:$0xf] %v836
    %841 = vst [vmem:[#allocation2 + $0x118] sm:$0xf] %v837
    %842 = vrot.lane.b32.xlu0 %v41, 112
    %v843 = vpop.permute.xlu0 %842
    %844 = vrot.lane.b32.xlu0 %v47, 112
    %v845 = vpop.permute.xlu0 %844
    %846 = vrot.lane.b32.xlu0 %v42, 112
    %v847 = vpop.permute.xlu0 %846
    %848 = vrot.lane.b32.xlu0 %v48, 112
    %v849 = vpop.permute.xlu0 %848
    %vm850 = vcmp.lt.s32.totalorder %v60, 112
    %v851 = vsel %vm850, %v847, %v849
    %v852 = vsel %vm850, %v845, %v847
    %v853 = vsel %vm850, %v843, %v845
    %v854 = vsel %vm850, %v849, %v843
    %v855 = vsel %vm756, 1, 0
    %v856 = vlaneseq
    %v857 = vshrl.u32 %v856, 7
    %v858 = vsub.s32 0, %v857
    %v859 = vrot.slane %v855, %v858
    %v860 = vlaneseq
    %v861 = vshrl.u32 %v860, 7
    %v862 = vsub.s32 1, %v861
    %v863 = vrot.slane %v855, %v862
    %v864 = vlaneseq
    %v865 = vshrl.u32 %v864, 7
    %v866 = vsub.s32 2, %v865
    %v867 = vrot.slane %v855, %v866
    %v868 = vlaneseq
    %v869 = vshrl.u32 %v868, 7
    %v870 = vsub.s32 3, %v869
    %v871 = vrot.slane %v855, %v870
    %vm872 = vcmp.eq.s32.totalorder %v859, 1
    %vm873 = vcmp.eq.s32.totalorder %v863, 1
    %vm874 = vcmp.eq.s32.totalorder %v867, 1
    %vm875 = vcmp.eq.s32.totalorder %v871, 1
    %v876 = vsel %vm872, %v853, 0.0
    %v877 = vsel %vm873, %v852, 0.0
    %v878 = vsel %vm874, %v851, 0.0
    %v879 = vsel %vm875, %v854, 0.0
    %v884 = vrot.slane %v876, 4
    %v885 = vrot.slane %v877, 4
    %v886 = vrot.slane %v878, 4
    %v887 = vrot.slane %v879, 4
    %892 = vst [vmem:[#allocation2 + $0x100] sm:$0xf0] %v884
    %893 = vst [vmem:[#allocation2 + $0x108] sm:$0xf0] %v885
    %894 = vst [vmem:[#allocation2 + $0x110] sm:$0xf0] %v886
    %895 = vst [vmem:[#allocation2 + $0x118] sm:$0xf0] %v887
    %896 = vrot.lane.b32.xlu0 %v41, 111
    %v897 = vpop.permute.xlu0 %896
    %898 = vrot.lane.b32.xlu0 %v47, 111
    %v899 = vpop.permute.xlu0 %898
    %900 = vrot.lane.b32.xlu0 %v42, 111
    %v901 = vpop.permute.xlu0 %900
    %902 = vrot.lane.b32.xlu0 %v48, 111
    %v903 = vpop.permute.xlu0 %902
    %vm904 = vcmp.lt.s32.totalorder %v60, 111
    %v905 = vsel %vm904, %v901, %v903
    %v906 = vsel %vm904, %v899, %v901
    %v907 = vsel %vm904, %v897, %v899
    %v908 = vsel %vm904, %v903, %v897
    %vm909 = vmand %vm756, %vm209
    %v910 = vsel %vm909, 1, 0
    %v911 = vlaneseq
    %v912 = vshrl.u32 %v911, 7
    %v913 = vsub.s32 0, %v912
    %v914 = vrot.slane %v910, %v913
    %v915 = vlaneseq
    %v916 = vshrl.u32 %v915, 7
    %v917 = vsub.s32 1, %v916
    %v918 = vrot.slane %v910, %v917
    %v919 = vlaneseq
    %v920 = vshrl.u32 %v919, 7
    %v921 = vsub.s32 2, %v920
    %v922 = vrot.slane %v910, %v921
    %v923 = vlaneseq
    %v924 = vshrl.u32 %v923, 7
    %v925 = vsub.s32 3, %v924
    %v926 = vrot.slane %v910, %v925
    %vm927 = vcmp.eq.s32.totalorder %v914, 1
    %vm928 = vcmp.eq.s32.totalorder %v918, 1
    %vm929 = vcmp.eq.s32.totalorder %v922, 1
    %vm930 = vcmp.eq.s32.totalorder %v926, 1
    %v931 = vsel %vm927, %v907, 0.0
    %v932 = vsel %vm928, %v906, 0.0
    %v933 = vsel %vm929, %v905, 0.0
    %v934 = vsel %vm930, %v908, 0.0
    %935 = vst [vmem:[#allocation2 + $0x120] sm:$0xf] %v931
    %936 = vst [vmem:[#allocation2 + $0x128] sm:$0xf] %v932
    %937 = vst [vmem:[#allocation2 + $0x130] sm:$0xf] %v933
    %938 = vst [vmem:[#allocation2 + $0x138] sm:$0xf] %v934
    %939 = vrot.lane.b32.xlu0 %v41, 110
    %v940 = vpop.permute.xlu0 %939
    %941 = vrot.lane.b32.xlu0 %v47, 110
    %v942 = vpop.permute.xlu0 %941
    %943 = vrot.lane.b32.xlu0 %v42, 110
    %v944 = vpop.permute.xlu0 %943
    %945 = vrot.lane.b32.xlu0 %v48, 110
    %v946 = vpop.permute.xlu0 %945
    %vm947 = vcmp.lt.s32.totalorder %v60, 110
    %v948 = vsel %vm947, %v944, %v946
    %v949 = vsel %vm947, %v942, %v944
    %v950 = vsel %vm947, %v940, %v942
    %v951 = vsel %vm947, %v946, %v940
    %vm952 = vmand %vm756, %vm265
    %v953 = vsel %vm952, 1, 0
    %v954 = vlaneseq
    %v955 = vshrl.u32 %v954, 7
    %v956 = vsub.s32 0, %v955
    %v957 = vrot.slane %v953, %v956
    %v958 = vlaneseq
    %v959 = vshrl.u32 %v958, 7
    %v960 = vsub.s32 1, %v959
    %v961 = vrot.slane %v953, %v960
    %v962 = vlaneseq
    %v963 = vshrl.u32 %v962, 7
    %v964 = vsub.s32 2, %v963
    %v965 = vrot.slane %v953, %v964
    %v966 = vlaneseq
    %v967 = vshrl.u32 %v966, 7
    %v968 = vsub.s32 3, %v967
    %v969 = vrot.slane %v953, %v968
    %vm970 = vcmp.eq.s32.totalorder %v957, 1
    %vm971 = vcmp.eq.s32.totalorder %v961, 1
    %vm972 = vcmp.eq.s32.totalorder %v965, 1
    %vm973 = vcmp.eq.s32.totalorder %v969, 1
    %v974 = vsel %vm970, %v950, 0.0
    %v975 = vsel %vm971, %v949, 0.0
    %v976 = vsel %vm972, %v948, 0.0
    %v977 = vsel %vm973, %v951, 0.0
    %v982 = vrot.slane %v974, 4
    %v983 = vrot.slane %v975, 4
    %v984 = vrot.slane %v976, 4
    %v985 = vrot.slane %v977, 4
    %990 = vst [vmem:[#allocation2 + $0x120] sm:$0xf0] %v982
    %991 = vst [vmem:[#allocation2 + $0x128] sm:$0xf0] %v983
    %992 = vst [vmem:[#allocation2 + $0x130] sm:$0xf0] %v984
    %993 = vst [vmem:[#allocation2 + $0x138] sm:$0xf0] %v985
    %994 = vrot.lane.b32.xlu0 %v41, 98
    %v995 = vpop.permute.xlu0 %994
    %996 = vrot.lane.b32.xlu0 %v47, 98
    %v997 = vpop.permute.xlu0 %996
    %998 = vrot.lane.b32.xlu0 %v42, 98
    %v999 = vpop.permute.xlu0 %998
    %1000 = vrot.lane.b32.xlu0 %v48, 98
    %v1001 = vpop.permute.xlu0 %1000
    %vm1002 = vcmp.lt.s32.totalorder %v60, 98
    %v1003 = vsel %vm1002, %v999, %v1001
    %v1004 = vsel %vm1002, %v997, %v999
    %v1005 = vsel %vm1002, %v995, %v997
    %v1006 = vsel %vm1002, %v1001, %v995
    %vm1007 = vcmp.lt.s32.totalorder %v39, 14
    %vm1008 = vmand %vm1007, %vm67
    %v1009 = vsel %vm1008, 1, 0
    %v1010 = vlaneseq
    %v1011 = vshrl.u32 %v1010, 7
    %v1012 = vsub.s32 0, %v1011
    %v1013 = vrot.slane %v1009, %v1012
    %v1014 = vlaneseq
    %v1015 = vshrl.u32 %v1014, 7
    %v1016 = vsub.s32 1, %v1015
    %v1017 = vrot.slane %v1009, %v1016
    %v1018 = vlaneseq
    %v1019 = vshrl.u32 %v1018, 7
    %v1020 = vsub.s32 2, %v1019
    %v1021 = vrot.slane %v1009, %v1020
    %v1022 = vlaneseq
    %v1023 = vshrl.u32 %v1022, 7
    %v1024 = vsub.s32 3, %v1023
    %v1025 = vrot.slane %v1009, %v1024
    %vm1026 = vcmp.eq.s32.totalorder %v1013, 1
    %vm1027 = vcmp.eq.s32.totalorder %v1017, 1
    %vm1028 = vcmp.eq.s32.totalorder %v1021, 1
    %vm1029 = vcmp.eq.s32.totalorder %v1025, 1
    %v1030 = vsel %vm1026, %v1005, 0.0
    %v1031 = vsel %vm1027, %v1004, 0.0
    %v1032 = vsel %vm1028, %v1003, 0.0
    %v1033 = vsel %vm1029, %v1006, 0.0
    %1034 = vst [vmem:[#allocation2 + $0x140] sm:$0xf] %v1030
    %1035 = vst [vmem:[#allocation2 + $0x148] sm:$0xf] %v1031
    %1036 = vst [vmem:[#allocation2 + $0x150] sm:$0xf] %v1032
    %1037 = vst [vmem:[#allocation2 + $0x158] sm:$0xf] %v1033
    %1038 = vrot.lane.b32.xlu0 %v41, 97
    %v1039 = vpop.permute.xlu0 %1038
    %1040 = vrot.lane.b32.xlu0 %v47, 97
    %v1041 = vpop.permute.xlu0 %1040
    %1042 = vrot.lane.b32.xlu0 %v42, 97
    %v1043 = vpop.permute.xlu0 %1042
    %1044 = vrot.lane.b32.xlu0 %v48, 97
    %v1045 = vpop.permute.xlu0 %1044
    %vm1046 = vcmp.lt.s32.totalorder %v60, 97
    %v1047 = vsel %vm1046, %v1043, %v1045
    %v1048 = vsel %vm1046, %v1041, %v1043
    %v1049 = vsel %vm1046, %v1039, %v1041
    %v1050 = vsel %vm1046, %v1045, %v1039
    %vm1051 = vmand %vm1007, %vm111
    %v1052 = vsel %vm1051, 1, 0
    %v1053 = vlaneseq
    %v1054 = vshrl.u32 %v1053, 7
    %v1055 = vsub.s32 0, %v1054
    %v1056 = vrot.slane %v1052, %v1055
    %v1057 = vlaneseq
    %v1058 = vshrl.u32 %v1057, 7
    %v1059 = vsub.s32 1, %v1058
    %v1060 = vrot.slane %v1052, %v1059
    %v1061 = vlaneseq
    %v1062 = vshrl.u32 %v1061, 7
    %v1063 = vsub.s32 2, %v1062
    %v1064 = vrot.slane %v1052, %v1063
    %v1065 = vlaneseq
    %v1066 = vshrl.u32 %v1065, 7
    %v1067 = vsub.s32 3, %v1066
    %v1068 = vrot.slane %v1052, %v1067
    %vm1069 = vcmp.eq.s32.totalorder %v1056, 1
    %vm1070 = vcmp.eq.s32.totalorder %v1060, 1
    %vm1071 = vcmp.eq.s32.totalorder %v1064, 1
    %vm1072 = vcmp.eq.s32.totalorder %v1068, 1
    %v1073 = vsel %vm1069, %v1049, 0.0
    %v1074 = vsel %vm1070, %v1048, 0.0
    %v1075 = vsel %vm1071, %v1047, 0.0
    %v1076 = vsel %vm1072, %v1050, 0.0
    %v1081 = vrot.slane %v1073, 4
    %v1082 = vrot.slane %v1074, 4
    %v1083 = vrot.slane %v1075, 4
    %v1084 = vrot.slane %v1076, 4
    %1089 = vst [vmem:[#allocation2 + $0x140] sm:$0xf0] %v1081
    %1090 = vst [vmem:[#allocation2 + $0x148] sm:$0xf0] %v1082
    %1091 = vst [vmem:[#allocation2 + $0x150] sm:$0xf0] %v1083
    %1092 = vst [vmem:[#allocation2 + $0x158] sm:$0xf0] %v1084
    %1093 = vrot.lane.b32.xlu0 %v41, 96
    %v1094 = vpop.permute.xlu0 %1093
    %1095 = vrot.lane.b32.xlu0 %v47, 96
    %v1096 = vpop.permute.xlu0 %1095
    %1097 = vrot.lane.b32.xlu0 %v42, 96
    %v1098 = vpop.permute.xlu0 %1097
    %1099 = vrot.lane.b32.xlu0 %v48, 96
    %v1100 = vpop.permute.xlu0 %1099
    %vm1101 = vcmp.lt.s32.totalorder %v60, 96
    %v1102 = vsel %vm1101, %v1098, %v1100
    %v1103 = vsel %vm1101, %v1096, %v1098
    %v1104 = vsel %vm1101, %v1094, %v1096
    %v1105 = vsel %vm1101, %v1100, %v1094
    %v1106 = vsel %vm1007, 1, 0
    %v1107 = vlaneseq
    %v1108 = vshrl.u32 %v1107, 7
    %v1109 = vsub.s32 0, %v1108
    %v1110 = vrot.slane %v1106, %v1109
    %v1111 = vlaneseq
    %v1112 = vshrl.u32 %v1111, 7
    %v1113 = vsub.s32 1, %v1112
    %v1114 = vrot.slane %v1106, %v1113
    %v1115 = vlaneseq
    %v1116 = vshrl.u32 %v1115, 7
    %v1117 = vsub.s32 2, %v1116
    %v1118 = vrot.slane %v1106, %v1117
    %v1119 = vlaneseq
    %v1120 = vshrl.u32 %v1119, 7
    %v1121 = vsub.s32 3, %v1120
    %v1122 = vrot.slane %v1106, %v1121
    %vm1123 = vcmp.eq.s32.totalorder %v1110, 1
    %vm1124 = vcmp.eq.s32.totalorder %v1114, 1
    %vm1125 = vcmp.eq.s32.totalorder %v1118, 1
    %vm1126 = vcmp.eq.s32.totalorder %v1122, 1
    %v1127 = vsel %vm1123, %v1104, 0.0
    %v1128 = vsel %vm1124, %v1103, 0.0
    %v1129 = vsel %vm1125, %v1102, 0.0
    %v1130 = vsel %vm1126, %v1105, 0.0
    %1131 = vst [vmem:[#allocation2 + $0x160] sm:$0xf] %v1127
    %1132 = vst [vmem:[#allocation2 + $0x168] sm:$0xf] %v1128
    %1133 = vst [vmem:[#allocation2 + $0x170] sm:$0xf] %v1129
    %1134 = vst [vmem:[#allocation2 + $0x178] sm:$0xf] %v1130
    %1135 = vrot.lane.b32.xlu0 %v41, 95
    %v1136 = vpop.permute.xlu0 %1135
    %1137 = vrot.lane.b32.xlu0 %v47, 95
    %v1138 = vpop.permute.xlu0 %1137
    %1139 = vrot.lane.b32.xlu0 %v42, 95
    %v1140 = vpop.permute.xlu0 %1139
    %1141 = vrot.lane.b32.xlu0 %v48, 95
    %v1142 = vpop.permute.xlu0 %1141
    %vm1143 = vcmp.lt.s32.totalorder %v60, 95
    %v1144 = vsel %vm1143, %v1140, %v1142
    %v1145 = vsel %vm1143, %v1138, %v1140
    %v1146 = vsel %vm1143, %v1136, %v1138
    %v1147 = vsel %vm1143, %v1142, %v1136
    %vm1148 = vmand %vm1007, %vm209
    %v1149 = vsel %vm1148, 1, 0
    %v1150 = vlaneseq
    %v1151 = vshrl.u32 %v1150, 7
    %v1152 = vsub.s32 0, %v1151
    %v1153 = vrot.slane %v1149, %v1152
    %v1154 = vlaneseq
    %v1155 = vshrl.u32 %v1154, 7
    %v1156 = vsub.s32 1, %v1155
    %v1157 = vrot.slane %v1149, %v1156
    %v1158 = vlaneseq
    %v1159 = vshrl.u32 %v1158, 7
    %v1160 = vsub.s32 2, %v1159
    %v1161 = vrot.slane %v1149, %v1160
    %v1162 = vlaneseq
    %v1163 = vshrl.u32 %v1162, 7
    %v1164 = vsub.s32 3, %v1163
    %v1165 = vrot.slane %v1149, %v1164
    %vm1166 = vcmp.eq.s32.totalorder %v1153, 1
    %vm1167 = vcmp.eq.s32.totalorder %v1157, 1
    %vm1168 = vcmp.eq.s32.totalorder %v1161, 1
    %vm1169 = vcmp.eq.s32.totalorder %v1165, 1
    %v1170 = vsel %vm1166, %v1146, 0.0
    %v1171 = vsel %vm1167, %v1145, 0.0
    %v1172 = vsel %vm1168, %v1144, 0.0
    %v1173 = vsel %vm1169, %v1147, 0.0
    %v1178 = vrot.slane %v1170, 4
    %v1179 = vrot.slane %v1171, 4
    %v1180 = vrot.slane %v1172, 4
    %v1181 = vrot.slane %v1173, 4
    %1186 = vst [vmem:[#allocation2 + $0x160] sm:$0xf0] %v1178
    %1187 = vst [vmem:[#allocation2 + $0x168] sm:$0xf0] %v1179
    %1188 = vst [vmem:[#allocation2 + $0x170] sm:$0xf0] %v1180
    %1189 = vst [vmem:[#allocation2 + $0x178] sm:$0xf0] %v1181
    %1190 = vrot.lane.b32.xlu0 %v41, 94
    %v1191 = vpop.permute.xlu0 %1190
    %1192 = vrot.lane.b32.xlu0 %v47, 94
    %v1193 = vpop.permute.xlu0 %1192
    %1194 = vrot.lane.b32.xlu0 %v42, 94
    %v1195 = vpop.permute.xlu0 %1194
    %1196 = vrot.lane.b32.xlu0 %v48, 94
    %v1197 = vpop.permute.xlu0 %1196
    %vm1198 = vcmp.lt.s32.totalorder %v60, 94
    %v1199 = vsel %vm1198, %v1195, %v1197
    %v1200 = vsel %vm1198, %v1193, %v1195
    %v1201 = vsel %vm1198, %v1191, %v1193
    %v1202 = vsel %vm1198, %v1197, %v1191
    %vm1203 = vmand %vm1007, %vm265
    %v1204 = vsel %vm1203, 1, 0
    %v1205 = vlaneseq
    %v1206 = vshrl.u32 %v1205, 7
    %v1207 = vsub.s32 0, %v1206
    %v1208 = vrot.slane %v1204, %v1207
    %v1209 = vlaneseq
    %v1210 = vshrl.u32 %v1209, 7
    %v1211 = vsub.s32 1, %v1210
    %v1212 = vrot.slane %v1204, %v1211
    %v1213 = vlaneseq
    %v1214 = vshrl.u32 %v1213, 7
    %v1215 = vsub.s32 2, %v1214
    %v1216 = vrot.slane %v1204, %v1215
    %v1217 = vlaneseq
    %v1218 = vshrl.u32 %v1217, 7
    %v1219 = vsub.s32 3, %v1218
    %v1220 = vrot.slane %v1204, %v1219
    %vm1221 = vcmp.eq.s32.totalorder %v1208, 1
    %vm1222 = vcmp.eq.s32.totalorder %v1212, 1
    %vm1223 = vcmp.eq.s32.totalorder %v1216, 1
    %vm1224 = vcmp.eq.s32.totalorder %v1220, 1
    %v1225 = vsel %vm1221, %v1201, 0.0
    %v1226 = vsel %vm1222, %v1200, 0.0
    %v1227 = vsel %vm1223, %v1199, 0.0
    %v1228 = vsel %vm1224, %v1202, 0.0
    %1229 = vst [vmem:[#allocation2 + $0x180] sm:$0xf] %v1225
    %1230 = vst [vmem:[#allocation2 + $0x188] sm:$0xf] %v1226
    %1231 = vst [vmem:[#allocation2 + $0x190] sm:$0xf] %v1227
    %1232 = vst [vmem:[#allocation2 + $0x198] sm:$0xf] %v1228
    %v1233 = vld [vmem:[#allocation2] sm:$0xff]
    %v1234 = vld [vmem:[#allocation2 + $0x8] sm:$0xff]
    %v1235 = vld [vmem:[#allocation2 + $0x10] sm:$0xff]
    %v1236 = vld [vmem:[#allocation2 + $0x18] sm:$0xff]
    %v1237 = vld [vmem:[#allocation2 + $0x20] sm:$0xff]
    %v1238 = vld [vmem:[#allocation2 + $0x28] sm:$0xff]
    %v1239 = vld [vmem:[#allocation2 + $0x30] sm:$0xff]
    %v1240 = vld [vmem:[#allocation2 + $0x38] sm:$0xff]
    %v1241 = vld [vmem:[#allocation2 + $0x40] sm:$0xff]
    %v1242 = vld [vmem:[#allocation2 + $0x48] sm:$0xff]
    %v1243 = vld [vmem:[#allocation2 + $0x50] sm:$0xff]
    %v1244 = vld [vmem:[#allocation2 + $0x58] sm:$0xff]
    %v1245 = vld [vmem:[#allocation2 + $0x60] sm:$0xff]
    %v1246 = vld [vmem:[#allocation2 + $0x68] sm:$0xff]
    %v1247 = vld [vmem:[#allocation2 + $0x70] sm:$0xff]
    %v1248 = vld [vmem:[#allocation2 + $0x78] sm:$0xff]
    %v1249 = vld [vmem:[#allocation2 + $0x80] sm:$0xff]
    %v1250 = vld [vmem:[#allocation2 + $0x88] sm:$0xff]
    %v1251 = vld [vmem:[#allocation2 + $0x90] sm:$0xff]
    %v1252 = vld [vmem:[#allocation2 + $0x98] sm:$0xff]
    %v1253 = vld [vmem:[#allocation2 + $0xa0] sm:$0xff]
    %v1254 = vld [vmem:[#allocation2 + $0xa8] sm:$0xff]
    %v1255 = vld [vmem:[#allocation2 + $0xb0] sm:$0xff]
    %v1256 = vld [vmem:[#allocation2 + $0xb8] sm:$0xff]
    %v1257 = vld [vmem:[#allocation2 + $0xc0] sm:$0xff]
    %v1258 = vld [vmem:[#allocation2 + $0xc8] sm:$0xff]
    %v1259 = vld [vmem:[#allocation2 + $0xd0] sm:$0xff]
    %v1260 = vld [vmem:[#allocation2 + $0xd8] sm:$0xff]
    %v1261 = vld [vmem:[#allocation2 + $0xe0] sm:$0xff]
    %v1262 = vld [vmem:[#allocation2 + $0xe8] sm:$0xff]
    %v1263 = vld [vmem:[#allocation2 + $0xf0] sm:$0xff]
    %v1264 = vld [vmem:[#allocation2 + $0xf8] sm:$0xff]
    %v1265 = vld [vmem:[#allocation2 + $0x100] sm:$0xff]
    %v1266 = vld [vmem:[#allocation2 + $0x108] sm:$0xff]
    %v1267 = vld [vmem:[#allocation2 + $0x110] sm:$0xff]
    %v1268 = vld [vmem:[#allocation2 + $0x118] sm:$0xff]
    %v1269 = vld [vmem:[#allocation2 + $0x120] sm:$0xff]
    %v1270 = vld [vmem:[#allocation2 + $0x128] sm:$0xff]
    %v1271 = vld [vmem:[#allocation2 + $0x130] sm:$0xff]
    %v1272 = vld [vmem:[#allocation2 + $0x138] sm:$0xff]
    %v1273 = vld [vmem:[#allocation2 + $0x140] sm:$0xff]
    %v1274 = vld [vmem:[#allocation2 + $0x148] sm:$0xff]
    %v1275 = vld [vmem:[#allocation2 + $0x150] sm:$0xff]
    %v1276 = vld [vmem:[#allocation2 + $0x158] sm:$0xff]
    %v1277 = vld [vmem:[#allocation2 + $0x160] sm:$0xff]
    %v1278 = vld [vmem:[#allocation2 + $0x168] sm:$0xff]
    %v1279 = vld [vmem:[#allocation2 + $0x170] sm:$0xff]
    %v1280 = vld [vmem:[#allocation2 + $0x178] sm:$0xff]
    %v1281 = vld [vmem:[#allocation2 + $0x180] sm:$0xf]
    %v1282 = vld [vmem:[#allocation2 + $0x188] sm:$0xf]
    %v1283 = vld [vmem:[#allocation2 + $0x190] sm:$0xf]
    %v1284 = vld [vmem:[#allocation2 + $0x198] sm:$0xf]
    %1286 = vset.pattern.permute.xlu0 0
    %1287 = vperm.xlu0 %1286, %v44
    %v1288 = vpop.permute.xlu0 %1287
    %vm1290 = vcmask 818176
    %v1292 = vsel %vm1290, %v43, 0
    %vm1294 = vcmask 1043456
    %v1296 = vsel %vm1294, %v1281, 0
    %v1299 = vsel %vm1294, %v1282, 0
    %v1302 = vsel %vm1294, %v1283, 0
    %v1305 = vsel %vm1294, %v1284, 0
    %1307 = vmatprep.subr.mxu0 0.0
    %1308 = vmatpush1.msra.mxu0 0.0
    %1309 = vmatprep.subr.mxu0 0.0
    %1310 = vmatpush1.msra.mxu0 0.0
    %1311 = vmatprep.subr.mxu0 0.0
    %1312 = vmatpush1.msra.mxu0 0.0
    %1313 = vmatprep.subr.mxu0 %v1299
    %1314 = vmatpush1.msra.mxu0 %v1296
    %1315 = vmatprep.subr.mxu0 %v1278
    %1316 = vmatpush1.msra.mxu0 %v1277
    %1317 = vmatprep.subr.mxu0 %v1274
    %1318 = vmatpush1.msra.mxu0 %v1273
    %1319 = vmatprep.subr.mxu0 %v1270
    %1320 = vmatpush1.msra.mxu0 %v1269
    %1321 = vmatprep.subr.mxu0 %v1266
    %1322 = vmatpush1.msra.mxu0 %v1265
    %1323 = vmatprep.subr.mxu0 %v1262
    %1324 = vmatpush1.msra.mxu0 %v1261
    %1325 = vmatprep.subr.mxu0 %v1258
    %1326 = vmatpush1.msra.mxu0 %v1257
    %1327 = vmatprep.subr.mxu0 %v1254
    %1328 = vmatpush1.msra.mxu0 %v1253
    %1329 = vmatprep.subr.mxu0 %v1250
    %1330 = vmatpush1.msra.mxu0 %v1249
    %1331 = vmatprep.subr.mxu0 %v1246
    %1332 = vmatpush1.msra.mxu0 %v1245
    %1333 = vmatprep.subr.mxu0 %v1242
    %1334 = vmatpush1.msra.mxu0 %v1241
    %1335 = vmatprep.subr.mxu0 %v1238
    %1336 = vmatpush1.msra.mxu0 %v1237
    %1337 = vmatprep.subr.mxu0 %v1234
    %1338 = vmatpush1.msra.mxu0 %v1233
    %1339 = vmatprep.subr.mxu0 0.0
    %1340 = vmatpush2.msra.mxu0 0.0
    %1341 = vmatprep.subr.mxu0 0.0
    %1342 = vmatpush2.msra.mxu0 0.0
    %1343 = vmatprep.subr.mxu0 0.0
    %1344 = vmatpush2.msra.mxu0 0.0
    %1345 = vmatprep.subr.mxu0 0.0
    %1346 = vmatpush2.msra.mxu0 0.0
    %1347 = vmatprep.subr.mxu0 0.0
    %1348 = vmatpush2.msra.mxu0 0.0
    %1349 = vmatprep.subr.mxu0 0.0
    %1350 = vmatpush2.msra.mxu0 0.0
    %1351 = vmatprep.subr.mxu0 0.0
    %1352 = vmatpush2.msra.mxu0 0.0
    %1353 = vmatprep.subr.mxu0 0.0
    %1354 = vmatpush2.msra.mxu0 0.0
    %1355 = vmatprep.subr.mxu0 0.0
    %1356 = vmatpush2.msra.mxu0 0.0
    %1357 = vmatprep.subr.mxu0 0.0
    %1358 = vmatpush2.msra.mxu0 0.0
    %1359 = vmatprep.subr.mxu0 0.0
    %1360 = vmatpush2.msra.mxu0 0.0
    %1361 = vmatprep.subr.mxu0 0.0
    %1362 = vmatpush2.msra.mxu0 0.0
    %1363 = vmatprep.subr.mxu0 0.0
    %1364 = vmatpush2.msra.mxu0 0.0
    %1365 = vmatprep.subr.mxu0 0.0
    %1366 = vmatpush2.msra.mxu0 0.0
    %1367 = vmatprep.subr.mxu0 0.0
    %1368 = vmatpush2.msra.mxu0 0.0
    %1369 = vmatprep.subr.mxu0 0.0
    %1370 = vmatpush2.msra.mxu0 0.0
    %1371 = vmatprep.mubr.f32.mxu0 0.0
    %1372 = vmatmul.mubr.f32.gmra.mxu0 %v1292
    %v1373 = vpop.f32.mrf.mxu0
    %v1374 = vadd.f32 %v1288, %v1373
    %v1375 = vpop.f32.mrf.mxu0
    %v1376 = vadd.f32 %v1288, %v1375
    %1377 = vdwg.mxu0
    %1378 = vmatprep.subr.mxu0 0.0
    %1379 = vmatpush1.msra.mxu0 0.0
    %1380 = vmatprep.subr.mxu0 0.0
    %1381 = vmatpush1.msra.mxu0 0.0
    %1382 = vmatprep.subr.mxu0 0.0
    %1383 = vmatpush1.msra.mxu0 0.0
    %1384 = vmatprep.subr.mxu0 %v1305
    %1385 = vmatpush1.msra.mxu0 %v1302
    %1386 = vmatprep.subr.mxu0 %v1280
    %1387 = vmatpush1.msra.mxu0 %v1279
    %1388 = vmatprep.subr.mxu0 %v1276
    %1389 = vmatpush1.msra.mxu0 %v1275
    %1390 = vmatprep.subr.mxu0 %v1272
    %1391 = vmatpush1.msra.mxu0 %v1271
    %1392 = vmatprep.subr.mxu0 %v1268
    %1393 = vmatpush1.msra.mxu0 %v1267
    %1394 = vmatprep.subr.mxu0 %v1264
    %1395 = vmatpush1.msra.mxu0 %v1263
    %1396 = vmatprep.subr.mxu0 %v1260
    %1397 = vmatpush1.msra.mxu0 %v1259
    %1398 = vmatprep.subr.mxu0 %v1256
    %1399 = vmatpush1.msra.mxu0 %v1255
    %1400 = vmatprep.subr.mxu0 %v1252
    %1401 = vmatpush1.msra.mxu0 %v1251
    %1402 = vmatprep.subr.mxu0 %v1248
    %1403 = vmatpush1.msra.mxu0 %v1247
    %1404 = vmatprep.subr.mxu0 %v1244
    %1405 = vmatpush1.msra.mxu0 %v1243
    %1406 = vmatprep.subr.mxu0 %v1240
    %1407 = vmatpush1.msra.mxu0 %v1239
    %1408 = vmatprep.subr.mxu0 %v1236
    %1409 = vmatpush1.msra.mxu0 %v1235
    %1410 = vmatprep.subr.mxu0 0.0
    %1411 = vmatpush2.msra.mxu0 0.0
    %1412 = vmatprep.subr.mxu0 0.0
    %1413 = vmatpush2.msra.mxu0 0.0
    %1414 = vmatprep.subr.mxu0 0.0
    %1415 = vmatpush2.msra.mxu0 0.0
    %1416 = vmatprep.subr.mxu0 0.0
    %1417 = vmatpush2.msra.mxu0 0.0
    %1418 = vmatprep.subr.mxu0 0.0
    %1419 = vmatpush2.msra.mxu0 0.0
    %1420 = vmatprep.subr.mxu0 0.0
    %1421 = vmatpush2.msra.mxu0 0.0
    %1422 = vmatprep.subr.mxu0 0.0
    %1423 = vmatpush2.msra.mxu0 0.0
    %1424 = vmatprep.subr.mxu0 0.0
    %1425 = vmatpush2.msra.mxu0 0.0
    %1426 = vmatprep.subr.mxu0 0.0
    %1427 = vmatpush2.msra.mxu0 0.0
    %1428 = vmatprep.subr.mxu0 0.0
    %1429 = vmatpush2.msra.mxu0 0.0
    %1430 = vmatprep.subr.mxu0 0.0
    %1431 = vmatpush2.msra.mxu0 0.0
    %1432 = vmatprep.subr.mxu0 0.0
    %1433 = vmatpush2.msra.mxu0 0.0
    %1434 = vmatprep.subr.mxu0 0.0
    %1435 = vmatpush2.msra.mxu0 0.0
    %1436 = vmatprep.subr.mxu0 0.0
    %1437 = vmatpush2.msra.mxu0 0.0
    %1438 = vmatprep.subr.mxu0 0.0
    %1439 = vmatpush2.msra.mxu0 0.0
    %1440 = vmatprep.subr.mxu0 0.0
    %1441 = vmatpush2.msra.mxu0 0.0
    %1442 = vmatprep.mubr.f32.mxu0 0.0
    %1443 = vmatmul.mubr.f32.gmra.mxu0 %v1292
    %v1444 = vpop.f32.mrf.mxu0
    %v1445 = vadd.f32 %v1288, %v1444
    %v1446 = vpop.f32.mrf.mxu0
    %v1447 = vadd.f32 %v1288, %v1446
    %1448 = vdwg.mxu0
    %vm1449 = vcmp.ge.f32.partialorder %v1374, 0.0
    %vm1450 = vcmp.ge.f32.partialorder %v1376, 0.0
    %vm1451 = vcmp.ge.f32.partialorder %v1445, 0.0
    %vm1452 = vcmp.ge.f32.partialorder %v1447, 0.0
    %v1453 = vmul.f32 %v1374, 0.2
    %v1454 = vmul.f32 %v1376, 0.2
    %v1455 = vmul.f32 %v1445, 0.2
    %v1456 = vmul.f32 %v1447, 0.2
    %v1457 = vsel %vm1449, %v1374, %v1453
    %v1458 = vsel %vm1450, %v1376, %v1454
    %v1459 = vsel %vm1451, %v1445, %v1455
    %v1460 = vsel %vm1452, %v1447, %v1456
    %s1461 = scalar_lea.vmem %s3, 4
    %v1462 = vld [vmem:[%s1461] sm:$0xf]
    %s1463 = scalar_lea.vmem %s4, 4
    %v1464 = vld [vmem:[%s1463] sm:$0xf]
    %1465 = vrot.lane.b32.xlu0 %v1457, 34
    %v1466 = vpop.permute.xlu0 %1465
    %1467 = vrot.lane.b32.xlu0 %v1458, 34
    %v1468 = vpop.permute.xlu0 %1467
    %1469 = vrot.lane.b32.xlu0 %v1459, 34
    %v1470 = vpop.permute.xlu0 %1469
    %1471 = vrot.lane.b32.xlu0 %v1460, 34
    %v1472 = vpop.permute.xlu0 %1471
    %v1473 = vsel %vm61, %v1470, %v1472
    %v1474 = vsel %vm61, %v1468, %v1470
    %v1475 = vsel %vm61, %v1466, %v1468
    %v1476 = vsel %vm61, %v1472, %v1466
    %v1477 = vsel %vm86, %v1476, 0.0
    %v1478 = vsel %vm87, %v1475, 0.0
    %v1479 = vsel %vm88, %v1474, 0.0
    %v1480 = vsel %vm89, %v1473, 0.0
    %1481 = vst [vmem:[#allocation2] sm:$0xf] %v1477
    %1482 = vst [vmem:[#allocation2 + $0x8] sm:$0xf] %v1478
    %1483 = vst [vmem:[#allocation2 + $0x10] sm:$0xf] %v1479
    %1484 = vst [vmem:[#allocation2 + $0x18] sm:$0xf] %v1480
    %1485 = vrot.lane.b32.xlu0 %v1457, 33
    %v1486 = vpop.permute.xlu0 %1485
    %1487 = vrot.lane.b32.xlu0 %v1458, 33
    %v1488 = vpop.permute.xlu0 %1487
    %1489 = vrot.lane.b32.xlu0 %v1459, 33
    %v1490 = vpop.permute.xlu0 %1489
    %1491 = vrot.lane.b32.xlu0 %v1460, 33
    %v1492 = vpop.permute.xlu0 %1491
    %v1493 = vsel %vm106, %v1490, %v1492
    %v1494 = vsel %vm106, %v1488, %v1490
    %v1495 = vsel %vm106, %v1486, %v1488
    %v1496 = vsel %vm106, %v1492, %v1486
    %v1497 = vsel %vm130, %v1496, 0.0
    %v1498 = vsel %vm131, %v1495, 0.0
    %v1499 = vsel %vm132, %v1494, 0.0
    %v1500 = vsel %vm133, %v1493, 0.0
    %v1505 = vrot.slane %v1497, 4
    %v1506 = vrot.slane %v1498, 4
    %v1507 = vrot.slane %v1499, 4
    %v1508 = vrot.slane %v1500, 4
    %1513 = vst [vmem:[#allocation2] sm:$0xf0] %v1505
    %1514 = vst [vmem:[#allocation2 + $0x8] sm:$0xf0] %v1506
    %1515 = vst [vmem:[#allocation2 + $0x10] sm:$0xf0] %v1507
    %1516 = vst [vmem:[#allocation2 + $0x18] sm:$0xf0] %v1508
    %1517 = vrot.lane.b32.xlu0 %v1457, 32
    %v1518 = vpop.permute.xlu0 %1517
    %1519 = vrot.lane.b32.xlu0 %v1458, 32
    %v1520 = vpop.permute.xlu0 %1519
    %1521 = vrot.lane.b32.xlu0 %v1459, 32
    %v1522 = vpop.permute.xlu0 %1521
    %1523 = vrot.lane.b32.xlu0 %v1460, 32
    %v1524 = vpop.permute.xlu0 %1523
    %v1525 = vsel %vm162, %v1522, %v1524
    %v1526 = vsel %vm162, %v1520, %v1522
    %v1527 = vsel %vm162, %v1518, %v1520
    %v1528 = vsel %vm162, %v1524, %v1518
    %v1529 = vsel %vm184, %v1528, 0.0
    %v1530 = vsel %vm185, %v1527, 0.0
    %v1531 = vsel %vm186, %v1526, 0.0
    %v1532 = vsel %vm187, %v1525, 0.0
    %1533 = vst [vmem:[#allocation2 + $0x20] sm:$0xf] %v1529
    %1534 = vst [vmem:[#allocation2 + $0x28] sm:$0xf] %v1530
    %1535 = vst [vmem:[#allocation2 + $0x30] sm:$0xf] %v1531
    %1536 = vst [vmem:[#allocation2 + $0x38] sm:$0xf] %v1532
    %1537 = vrot.lane.b32.xlu0 %v1457, 31
    %v1538 = vpop.permute.xlu0 %1537
    %1539 = vrot.lane.b32.xlu0 %v1458, 31
    %v1540 = vpop.permute.xlu0 %1539
    %1541 = vrot.lane.b32.xlu0 %v1459, 31
    %v1542 = vpop.permute.xlu0 %1541
    %1543 = vrot.lane.b32.xlu0 %v1460, 31
    %v1544 = vpop.permute.xlu0 %1543
    %v1545 = vsel %vm204, %v1542, %v1544
    %v1546 = vsel %vm204, %v1540, %v1542
    %v1547 = vsel %vm204, %v1538, %v1540
    %v1548 = vsel %vm204, %v1544, %v1538
    %v1549 = vsel %vm228, %v1548, 0.0
    %v1550 = vsel %vm229, %v1547, 0.0
    %v1551 = vsel %vm230, %v1546, 0.0
    %v1552 = vsel %vm231, %v1545, 0.0
    %v1557 = vrot.slane %v1549, 4
    %v1558 = vrot.slane %v1550, 4
    %v1559 = vrot.slane %v1551, 4
    %v1560 = vrot.slane %v1552, 4
    %1565 = vst [vmem:[#allocation2 + $0x20] sm:$0xf0] %v1557
    %1566 = vst [vmem:[#allocation2 + $0x28] sm:$0xf0] %v1558
    %1567 = vst [vmem:[#allocation2 + $0x30] sm:$0xf0] %v1559
    %1568 = vst [vmem:[#allocation2 + $0x38] sm:$0xf0] %v1560
    %1569 = vrot.lane.b32.xlu0 %v1457, 30
    %v1570 = vpop.permute.xlu0 %1569
    %1571 = vrot.lane.b32.xlu0 %v1458, 30
    %v1572 = vpop.permute.xlu0 %1571
    %1573 = vrot.lane.b32.xlu0 %v1459, 30
    %v1574 = vpop.permute.xlu0 %1573
    %1575 = vrot.lane.b32.xlu0 %v1460, 30
    %v1576 = vpop.permute.xlu0 %1575
    %v1577 = vsel %vm260, %v1574, %v1576
    %v1578 = vsel %vm260, %v1572, %v1574
    %v1579 = vsel %vm260, %v1570, %v1572
    %v1580 = vsel %vm260, %v1576, %v1570
    %v1581 = vsel %vm284, %v1580, 0.0
    %v1582 = vsel %vm285, %v1579, 0.0
    %v1583 = vsel %vm286, %v1578, 0.0
    %v1584 = vsel %vm287, %v1577, 0.0
    %1585 = vst [vmem:[#allocation2 + $0x40] sm:$0xf] %v1581
    %1586 = vst [vmem:[#allocation2 + $0x48] sm:$0xf] %v1582
    %1587 = vst [vmem:[#allocation2 + $0x50] sm:$0xf] %v1583
    %1588 = vst [vmem:[#allocation2 + $0x58] sm:$0xf] %v1584
    %1589 = vrot.lane.b32.xlu0 %v1457, 18
    %v1590 = vpop.permute.xlu0 %1589
    %1591 = vrot.lane.b32.xlu0 %v1458, 18
    %v1592 = vpop.permute.xlu0 %1591
    %1593 = vrot.lane.b32.xlu0 %v1459, 18
    %v1594 = vpop.permute.xlu0 %1593
    %1595 = vrot.lane.b32.xlu0 %v1460, 18
    %v1596 = vpop.permute.xlu0 %1595
    %v1597 = vsel %vm304, %v1594, %v1596
    %v1598 = vsel %vm304, %v1592, %v1594
    %v1599 = vsel %vm304, %v1590, %v1592
    %v1600 = vsel %vm304, %v1596, %v1590
    %v1601 = vsel %vm328, %v1600, 0.0
    %v1602 = vsel %vm329, %v1599, 0.0
    %v1603 = vsel %vm330, %v1598, 0.0
    %v1604 = vsel %vm331, %v1597, 0.0
    %v1609 = vrot.slane %v1601, 4
    %v1610 = vrot.slane %v1602, 4
    %v1611 = vrot.slane %v1603, 4
    %v1612 = vrot.slane %v1604, 4
    %1617 = vst [vmem:[#allocation2 + $0x40] sm:$0xf0] %v1609
    %1618 = vst [vmem:[#allocation2 + $0x48] sm:$0xf0] %v1610
    %1619 = vst [vmem:[#allocation2 + $0x50] sm:$0xf0] %v1611
    %1620 = vst [vmem:[#allocation2 + $0x58] sm:$0xf0] %v1612
    %1621 = vrot.lane.b32.xlu0 %v1457, 17
    %v1622 = vpop.permute.xlu0 %1621
    %1623 = vrot.lane.b32.xlu0 %v1458, 17
    %v1624 = vpop.permute.xlu0 %1623
    %1625 = vrot.lane.b32.xlu0 %v1459, 17
    %v1626 = vpop.permute.xlu0 %1625
    %1627 = vrot.lane.b32.xlu0 %v1460, 17
    %v1628 = vpop.permute.xlu0 %1627
    %v1629 = vsel %vm360, %v1626, %v1628
    %v1630 = vsel %vm360, %v1624, %v1626
    %v1631 = vsel %vm360, %v1622, %v1624
    %v1632 = vsel %vm360, %v1628, %v1622
    %v1633 = vsel %vm383, %v1632, 0.0
    %v1634 = vsel %vm384, %v1631, 0.0
    %v1635 = vsel %vm385, %v1630, 0.0
    %v1636 = vsel %vm386, %v1629, 0.0
    %1637 = vst [vmem:[#allocation2 + $0x60] sm:$0xf] %v1633
    %1638 = vst [vmem:[#allocation2 + $0x68] sm:$0xf] %v1634
    %1639 = vst [vmem:[#allocation2 + $0x70] sm:$0xf] %v1635
    %1640 = vst [vmem:[#allocation2 + $0x78] sm:$0xf] %v1636
    %1641 = vrot.lane.b32.xlu0 %v1457, 16
    %v1642 = vpop.permute.xlu0 %1641
    %1643 = vrot.lane.b32.xlu0 %v1458, 16
    %v1644 = vpop.permute.xlu0 %1643
    %1645 = vrot.lane.b32.xlu0 %v1459, 16
    %v1646 = vpop.permute.xlu0 %1645
    %1647 = vrot.lane.b32.xlu0 %v1460, 16
    %v1648 = vpop.permute.xlu0 %1647
    %v1649 = vsel %vm403, %v1646, %v1648
    %v1650 = vsel %vm403, %v1644, %v1646
    %v1651 = vsel %vm403, %v1642, %v1644
    %v1652 = vsel %vm403, %v1648, %v1642
    %v1653 = vsel %vm425, %v1652, 0.0
    %v1654 = vsel %vm426, %v1651, 0.0
    %v1655 = vsel %vm427, %v1650, 0.0
    %v1656 = vsel %vm428, %v1649, 0.0
    %v1661 = vrot.slane %v1653, 4
    %v1662 = vrot.slane %v1654, 4
    %v1663 = vrot.slane %v1655, 4
    %v1664 = vrot.slane %v1656, 4
    %1669 = vst [vmem:[#allocation2 + $0x60] sm:$0xf0] %v1661
    %1670 = vst [vmem:[#allocation2 + $0x68] sm:$0xf0] %v1662
    %1671 = vst [vmem:[#allocation2 + $0x70] sm:$0xf0] %v1663
    %1672 = vst [vmem:[#allocation2 + $0x78] sm:$0xf0] %v1664
    %1673 = vrot.lane.b32.xlu0 %v1457, 15
    %v1674 = vpop.permute.xlu0 %1673
    %1675 = vrot.lane.b32.xlu0 %v1458, 15
    %v1676 = vpop.permute.xlu0 %1675
    %1677 = vrot.lane.b32.xlu0 %v1459, 15
    %v1678 = vpop.permute.xlu0 %1677
    %1679 = vrot.lane.b32.xlu0 %v1460, 15
    %v1680 = vpop.permute.xlu0 %1679
    %v1681 = vsel %vm457, %v1678, %v1680
    %v1682 = vsel %vm457, %v1676, %v1678
    %v1683 = vsel %vm457, %v1674, %v1676
    %v1684 = vsel %vm457, %v1680, %v1674
    %v1685 = vsel %vm480, %v1684, 0.0
    %v1686 = vsel %vm481, %v1683, 0.0
    %v1687 = vsel %vm482, %v1682, 0.0
    %v1688 = vsel %vm483, %v1681, 0.0
    %1689 = vst [vmem:[#allocation2 + $0x80] sm:$0xf] %v1685
    %1690 = vst [vmem:[#allocation2 + $0x88] sm:$0xf] %v1686
    %1691 = vst [vmem:[#allocation2 + $0x90] sm:$0xf] %v1687
    %1692 = vst [vmem:[#allocation2 + $0x98] sm:$0xf] %v1688
    %1693 = vrot.lane.b32.xlu0 %v1457, 14
    %v1694 = vpop.permute.xlu0 %1693
    %1695 = vrot.lane.b32.xlu0 %v1458, 14
    %v1696 = vpop.permute.xlu0 %1695
    %1697 = vrot.lane.b32.xlu0 %v1459, 14
    %v1698 = vpop.permute.xlu0 %1697
    %1699 = vrot.lane.b32.xlu0 %v1460, 14
    %v1700 = vpop.permute.xlu0 %1699
    %v1701 = vsel %vm500, %v1698, %v1700
    %v1702 = vsel %vm500, %v1696, %v1698
    %v1703 = vsel %vm500, %v1694, %v1696
    %v1704 = vsel %vm500, %v1700, %v1694
    %v1705 = vsel %vm523, %v1704, 0.0
    %v1706 = vsel %vm524, %v1703, 0.0
    %v1707 = vsel %vm525, %v1702, 0.0
    %v1708 = vsel %vm526, %v1701, 0.0
    %v1713 = vrot.slane %v1705, 4
    %v1714 = vrot.slane %v1706, 4
    %v1715 = vrot.slane %v1707, 4
    %v1716 = vrot.slane %v1708, 4
    %1721 = vst [vmem:[#allocation2 + $0x80] sm:$0xf0] %v1713
    %1722 = vst [vmem:[#allocation2 + $0x88] sm:$0xf0] %v1714
    %1723 = vst [vmem:[#allocation2 + $0x90] sm:$0xf0] %v1715
    %1724 = vst [vmem:[#allocation2 + $0x98] sm:$0xf0] %v1716
    %1725 = vrot.lane.b32.xlu0 %v1457, 2
    %v1726 = vpop.permute.xlu0 %1725
    %1727 = vrot.lane.b32.xlu0 %v1458, 2
    %v1728 = vpop.permute.xlu0 %1727
    %1729 = vrot.lane.b32.xlu0 %v1459, 2
    %v1730 = vpop.permute.xlu0 %1729
    %1731 = vrot.lane.b32.xlu0 %v1460, 2
    %v1732 = vpop.permute.xlu0 %1731
    %v1733 = vsel %vm555, %v1730, %v1732
    %v1734 = vsel %vm555, %v1728, %v1730
    %v1735 = vsel %vm555, %v1726, %v1728
    %v1736 = vsel %vm555, %v1732, %v1726
    %v1737 = vsel %vm577, %v1736, 0.0
    %v1738 = vsel %vm578, %v1735, 0.0
    %v1739 = vsel %vm579, %v1734, 0.0
    %v1740 = vsel %vm580, %v1733, 0.0
    %1741 = vst [vmem:[#allocation2 + $0xa0] sm:$0xf] %v1737
    %1742 = vst [vmem:[#allocation2 + $0xa8] sm:$0xf] %v1738
    %1743 = vst [vmem:[#allocation2 + $0xb0] sm:$0xf] %v1739
    %1744 = vst [vmem:[#allocation2 + $0xb8] sm:$0xf] %v1740
    %1745 = vrot.lane.b32.xlu0 %v1457, 1
    %v1746 = vpop.permute.xlu0 %1745
    %1747 = vrot.lane.b32.xlu0 %v1458, 1
    %v1748 = vpop.permute.xlu0 %1747
    %1749 = vrot.lane.b32.xlu0 %v1459, 1
    %v1750 = vpop.permute.xlu0 %1749
    %1751 = vrot.lane.b32.xlu0 %v1460, 1
    %v1752 = vpop.permute.xlu0 %1751
    %v1753 = vsel %vm597, %v1750, %v1752
    %v1754 = vsel %vm597, %v1748, %v1750
    %v1755 = vsel %vm597, %v1746, %v1748
    %v1756 = vsel %vm597, %v1752, %v1746
    %v1757 = vsel %vm619, %v1756, 0.0
    %v1758 = vsel %vm620, %v1755, 0.0
    %v1759 = vsel %vm621, %v1754, 0.0
    %v1760 = vsel %vm622, %v1753, 0.0
    %v1765 = vrot.slane %v1757, 4
    %v1766 = vrot.slane %v1758, 4
    %v1767 = vrot.slane %v1759, 4
    %v1768 = vrot.slane %v1760, 4
    %1773 = vst [vmem:[#allocation2 + $0xa0] sm:$0xf0] %v1765
    %1774 = vst [vmem:[#allocation2 + $0xa8] sm:$0xf0] %v1766
    %1775 = vst [vmem:[#allocation2 + $0xb0] sm:$0xf0] %v1767
    %1776 = vst [vmem:[#allocation2 + $0xb8] sm:$0xf0] %v1768
    %1777 = vst [vmem:[#allocation2 + $0xc0] sm:$0xf] %v1457
    %1778 = vst [vmem:[#allocation2 + $0xc8] sm:$0xf] %v1458
    %1779 = vst [vmem:[#allocation2 + $0xd0] sm:$0xf] %v1459
    %1780 = vst [vmem:[#allocation2 + $0xd8] sm:$0xf] %v1460
    %1781 = vrot.lane.b32.xlu0 %v1457, 127
    %v1782 = vpop.permute.xlu0 %1781
    %1783 = vrot.lane.b32.xlu0 %v1458, 127
    %v1784 = vpop.permute.xlu0 %1783
    %1785 = vrot.lane.b32.xlu0 %v1459, 127
    %v1786 = vpop.permute.xlu0 %1785
    %1787 = vrot.lane.b32.xlu0 %v1460, 127
    %v1788 = vpop.permute.xlu0 %1787
    %v1789 = vsel %vm655, %v1786, %v1788
    %v1790 = vsel %vm655, %v1784, %v1786
    %v1791 = vsel %vm655, %v1782, %v1784
    %v1792 = vsel %vm655, %v1788, %v1782
    %v1793 = vsel %vm677, %v1791, 0.0
    %v1794 = vsel %vm678, %v1790, 0.0
    %v1795 = vsel %vm679, %v1789, 0.0
    %v1796 = vsel %vm680, %v1792, 0.0
    %v1801 = vrot.slane %v1793, 4
    %v1802 = vrot.slane %v1794, 4
    %v1803 = vrot.slane %v1795, 4
    %v1804 = vrot.slane %v1796, 4
    %1809 = vst [vmem:[#allocation2 + $0xc0] sm:$0xf0] %v1801
    %1810 = vst [vmem:[#allocation2 + $0xc8] sm:$0xf0] %v1802
    %1811 = vst [vmem:[#allocation2 + $0xd0] sm:$0xf0] %v1803
    %1812 = vst [vmem:[#allocation2 + $0xd8] sm:$0xf0] %v1804
    %1813 = vrot.lane.b32.xlu0 %v1457, 126
    %v1814 = vpop.permute.xlu0 %1813
    %1815 = vrot.lane.b32.xlu0 %v1458, 126
    %v1816 = vpop.permute.xlu0 %1815
    %1817 = vrot.lane.b32.xlu0 %v1459, 126
    %v1818 = vpop.permute.xlu0 %1817
    %1819 = vrot.lane.b32.xlu0 %v1460, 126
    %v1820 = vpop.permute.xlu0 %1819
    %v1821 = vsel %vm709, %v1818, %v1820
    %v1822 = vsel %vm709, %v1816, %v1818
    %v1823 = vsel %vm709, %v1814, %v1816
    %v1824 = vsel %vm709, %v1820, %v1814
    %v1825 = vsel %vm731, %v1823, 0.0
    %v1826 = vsel %vm732, %v1822, 0.0
    %v1827 = vsel %vm733, %v1821, 0.0
    %v1828 = vsel %vm734, %v1824, 0.0
    %1829 = vst [vmem:[#allocation2 + $0xe0] sm:$0xf] %v1825
    %1830 = vst [vmem:[#allocation2 + $0xe8] sm:$0xf] %v1826
    %1831 = vst [vmem:[#allocation2 + $0xf0] sm:$0xf] %v1827
    %1832 = vst [vmem:[#allocation2 + $0xf8] sm:$0xf] %v1828
    %1833 = vrot.lane.b32.xlu0 %v1457, 114
    %v1834 = vpop.permute.xlu0 %1833
    %1835 = vrot.lane.b32.xlu0 %v1458, 114
    %v1836 = vpop.permute.xlu0 %1835
    %1837 = vrot.lane.b32.xlu0 %v1459, 114
    %v1838 = vpop.permute.xlu0 %1837
    %1839 = vrot.lane.b32.xlu0 %v1460, 114
    %v1840 = vpop.permute.xlu0 %1839
    %v1841 = vsel %vm751, %v1838, %v1840
    %v1842 = vsel %vm751, %v1836, %v1838
    %v1843 = vsel %vm751, %v1834, %v1836
    %v1844 = vsel %vm751, %v1840, %v1834
    %v1845 = vsel %vm775, %v1843, 0.0
    %v1846 = vsel %vm776, %v1842, 0.0
    %v1847 = vsel %vm777, %v1841, 0.0
    %v1848 = vsel %vm778, %v1844, 0.0
    %v1853 = vrot.slane %v1845, 4
    %v1854 = vrot.slane %v1846, 4
    %v1855 = vrot.slane %v1847, 4
    %v1856 = vrot.slane %v1848, 4
    %1861 = vst [vmem:[#allocation2 + $0xe0] sm:$0xf0] %v1853
    %1862 = vst [vmem:[#allocation2 + $0xe8] sm:$0xf0] %v1854
    %1863 = vst [vmem:[#allocation2 + $0xf0] sm:$0xf0] %v1855
    %1864 = vst [vmem:[#allocation2 + $0xf8] sm:$0xf0] %v1856
    %1865 = vrot.lane.b32.xlu0 %v1457, 113
    %v1866 = vpop.permute.xlu0 %1865
    %1867 = vrot.lane.b32.xlu0 %v1458, 113
    %v1868 = vpop.permute.xlu0 %1867
    %1869 = vrot.lane.b32.xlu0 %v1459, 113
    %v1870 = vpop.permute.xlu0 %1869
    %1871 = vrot.lane.b32.xlu0 %v1460, 113
    %v1872 = vpop.permute.xlu0 %1871
    %v1873 = vsel %vm807, %v1870, %v1872
    %v1874 = vsel %vm807, %v1868, %v1870
    %v1875 = vsel %vm807, %v1866, %v1868
    %v1876 = vsel %vm807, %v1872, %v1866
    %v1877 = vsel %vm830, %v1875, 0.0
    %v1878 = vsel %vm831, %v1874, 0.0
    %v1879 = vsel %vm832, %v1873, 0.0
    %v1880 = vsel %vm833, %v1876, 0.0
    %1881 = vst [vmem:[#allocation2 + $0x100] sm:$0xf] %v1877
    %1882 = vst [vmem:[#allocation2 + $0x108] sm:$0xf] %v1878
    %1883 = vst [vmem:[#allocation2 + $0x110] sm:$0xf] %v1879
    %1884 = vst [vmem:[#allocation2 + $0x118] sm:$0xf] %v1880
    %1885 = vrot.lane.b32.xlu0 %v1457, 112
    %v1886 = vpop.permute.xlu0 %1885
    %1887 = vrot.lane.b32.xlu0 %v1458, 112
    %v1888 = vpop.permute.xlu0 %1887
    %1889 = vrot.lane.b32.xlu0 %v1459, 112
    %v1890 = vpop.permute.xlu0 %1889
    %1891 = vrot.lane.b32.xlu0 %v1460, 112
    %v1892 = vpop.permute.xlu0 %1891
    %v1893 = vsel %vm850, %v1890, %v1892
    %v1894 = vsel %vm850, %v1888, %v1890
    %v1895 = vsel %vm850, %v1886, %v1888
    %v1896 = vsel %vm850, %v1892, %v1886
    %v1897 = vsel %vm872, %v1895, 0.0
    %v1898 = vsel %vm873, %v1894, 0.0
    %v1899 = vsel %vm874, %v1893, 0.0
    %v1900 = vsel %vm875, %v1896, 0.0
    %v1905 = vrot.slane %v1897, 4
    %v1906 = vrot.slane %v1898, 4
    %v1907 = vrot.slane %v1899, 4
    %v1908 = vrot.slane %v1900, 4
    %1913 = vst [vmem:[#allocation2 + $0x100] sm:$0xf0] %v1905
    %1914 = vst [vmem:[#allocation2 + $0x108] sm:$0xf0] %v1906
    %1915 = vst [vmem:[#allocation2 + $0x110] sm:$0xf0] %v1907
    %1916 = vst [vmem:[#allocation2 + $0x118] sm:$0xf0] %v1908
    %1917 = vrot.lane.b32.xlu0 %v1457, 111
    %v1918 = vpop.permute.xlu0 %1917
    %1919 = vrot.lane.b32.xlu0 %v1458, 111
    %v1920 = vpop.permute.xlu0 %1919
    %1921 = vrot.lane.b32.xlu0 %v1459, 111
    %v1922 = vpop.permute.xlu0 %1921
    %1923 = vrot.lane.b32.xlu0 %v1460, 111
    %v1924 = vpop.permute.xlu0 %1923
    %v1925 = vsel %vm904, %v1922, %v1924
    %v1926 = vsel %vm904, %v1920, %v1922
    %v1927 = vsel %vm904, %v1918, %v1920
    %v1928 = vsel %vm904, %v1924, %v1918
    %v1929 = vsel %vm927, %v1927, 0.0
    %v1930 = vsel %vm928, %v1926, 0.0
    %v1931 = vsel %vm929, %v1925, 0.0
    %v1932 = vsel %vm930, %v1928, 0.0
    %1933 = vst [vmem:[#allocation2 + $0x120] sm:$0xf] %v1929
    %1934 = vst [vmem:[#allocation2 + $0x128] sm:$0xf] %v1930
    %1935 = vst [vmem:[#allocation2 + $0x130] sm:$0xf] %v1931
    %1936 = vst [vmem:[#allocation2 + $0x138] sm:$0xf] %v1932
    %1937 = vrot.lane.b32.xlu0 %v1457, 110
    %v1938 = vpop.permute.xlu0 %1937
    %1939 = vrot.lane.b32.xlu0 %v1458, 110
    %v1940 = vpop.permute.xlu0 %1939
    %1941 = vrot.lane.b32.xlu0 %v1459, 110
    %v1942 = vpop.permute.xlu0 %1941
    %1943 = vrot.lane.b32.xlu0 %v1460, 110
    %v1944 = vpop.permute.xlu0 %1943
    %v1945 = vsel %vm947, %v1942, %v1944
    %v1946 = vsel %vm947, %v1940, %v1942
    %v1947 = vsel %vm947, %v1938, %v1940
    %v1948 = vsel %vm947, %v1944, %v1938
    %v1949 = vsel %vm970, %v1947, 0.0
    %v1950 = vsel %vm971, %v1946, 0.0
    %v1951 = vsel %vm972, %v1945, 0.0
    %v1952 = vsel %vm973, %v1948, 0.0
    %v1957 = vrot.slane %v1949, 4
    %v1958 = vrot.slane %v1950, 4
    %v1959 = vrot.slane %v1951, 4
    %v1960 = vrot.slane %v1952, 4
    %1965 = vst [vmem:[#allocation2 + $0x120] sm:$0xf0] %v1957
    %1966 = vst [vmem:[#allocation2 + $0x128] sm:$0xf0] %v1958
    %1967 = vst [vmem:[#allocation2 + $0x130] sm:$0xf0] %v1959
    %1968 = vst [vmem:[#allocation2 + $0x138] sm:$0xf0] %v1960
    %1969 = vrot.lane.b32.xlu0 %v1457, 98
    %v1970 = vpop.permute.xlu0 %1969
    %1971 = vrot.lane.b32.xlu0 %v1458, 98
    %v1972 = vpop.permute.xlu0 %1971
    %1973 = vrot.lane.b32.xlu0 %v1459, 98
    %v1974 = vpop.permute.xlu0 %1973
    %1975 = vrot.lane.b32.xlu0 %v1460, 98
    %v1976 = vpop.permute.xlu0 %1975
    %v1977 = vsel %vm1002, %v1974, %v1976
    %v1978 = vsel %vm1002, %v1972, %v1974
    %v1979 = vsel %vm1002, %v1970, %v1972
    %v1980 = vsel %vm1002, %v1976, %v1970
    %v1981 = vsel %vm1026, %v1979, 0.0
    %v1982 = vsel %vm1027, %v1978, 0.0
    %v1983 = vsel %vm1028, %v1977, 0.0
    %v1984 = vsel %vm1029, %v1980, 0.0
    %1985 = vst [vmem:[#allocation2 + $0x140] sm:$0xf] %v1981
    %1986 = vst [vmem:[#allocation2 + $0x148] sm:$0xf] %v1982
    %1987 = vst [vmem:[#allocation2 + $0x150] sm:$0xf] %v1983
    %1988 = vst [vmem:[#allocation2 + $0x158] sm:$0xf] %v1984
    %1989 = vrot.lane.b32.xlu0 %v1457, 97
    %v1990 = vpop.permute.xlu0 %1989
    %1991 = vrot.lane.b32.xlu0 %v1458, 97
    %v1992 = vpop.permute.xlu0 %1991
    %1993 = vrot.lane.b32.xlu0 %v1459, 97
    %v1994 = vpop.permute.xlu0 %1993
    %1995 = vrot.lane.b32.xlu0 %v1460, 97
    %v1996 = vpop.permute.xlu0 %1995
    %v1997 = vsel %vm1046, %v1994, %v1996
    %v1998 = vsel %vm1046, %v1992, %v1994
    %v1999 = vsel %vm1046, %v1990, %v1992
    %v2000 = vsel %vm1046, %v1996, %v1990
    %v2001 = vsel %vm1069, %v1999, 0.0
    %v2002 = vsel %vm1070, %v1998, 0.0
    %v2003 = vsel %vm1071, %v1997, 0.0
    %v2004 = vsel %vm1072, %v2000, 0.0
    %v2009 = vrot.slane %v2001, 4
    %v2010 = vrot.slane %v2002, 4
    %v2011 = vrot.slane %v2003, 4
    %v2012 = vrot.slane %v2004, 4
    %2017 = vst [vmem:[#allocation2 + $0x140] sm:$0xf0] %v2009
    %2018 = vst [vmem:[#allocation2 + $0x148] sm:$0xf0] %v2010
    %2019 = vst [vmem:[#allocation2 + $0x150] sm:$0xf0] %v2011
    %2020 = vst [vmem:[#allocation2 + $0x158] sm:$0xf0] %v2012
    %2021 = vrot.lane.b32.xlu0 %v1457, 96
    %v2022 = vpop.permute.xlu0 %2021
    %2023 = vrot.lane.b32.xlu0 %v1458, 96
    %v2024 = vpop.permute.xlu0 %2023
    %2025 = vrot.lane.b32.xlu0 %v1459, 96
    %v2026 = vpop.permute.xlu0 %2025
    %2027 = vrot.lane.b32.xlu0 %v1460, 96
    %v2028 = vpop.permute.xlu0 %2027
    %v2029 = vsel %vm1101, %v2026, %v2028
    %v2030 = vsel %vm1101, %v2024, %v2026
    %v2031 = vsel %vm1101, %v2022, %v2024
    %v2032 = vsel %vm1101, %v2028, %v2022
    %v2033 = vsel %vm1123, %v2031, 0.0
    %v2034 = vsel %vm1124, %v2030, 0.0
    %v2035 = vsel %vm1125, %v2029, 0.0
    %v2036 = vsel %vm1126, %v2032, 0.0
    %2037 = vst [vmem:[#allocation2 + $0x160] sm:$0xf] %v2033
    %2038 = vst [vmem:[#allocation2 + $0x168] sm:$0xf] %v2034
    %2039 = vst [vmem:[#allocation2 + $0x170] sm:$0xf] %v2035
    %2040 = vst [vmem:[#allocation2 + $0x178] sm:$0xf] %v2036
    %2041 = vrot.lane.b32.xlu0 %v1457, 95
    %v2042 = vpop.permute.xlu0 %2041
    %2043 = vrot.lane.b32.xlu0 %v1458, 95
    %v2044 = vpop.permute.xlu0 %2043
    %2045 = vrot.lane.b32.xlu0 %v1459, 95
    %v2046 = vpop.permute.xlu0 %2045
    %2047 = vrot.lane.b32.xlu0 %v1460, 95
    %v2048 = vpop.permute.xlu0 %2047
    %v2049 = vsel %vm1143, %v2046, %v2048
    %v2050 = vsel %vm1143, %v2044, %v2046
    %v2051 = vsel %vm1143, %v2042, %v2044
    %v2052 = vsel %vm1143, %v2048, %v2042
    %v2053 = vsel %vm1166, %v2051, 0.0
    %v2054 = vsel %vm1167, %v2050, 0.0
    %v2055 = vsel %vm1168, %v2049, 0.0
    %v2056 = vsel %vm1169, %v2052, 0.0
    %v2061 = vrot.slane %v2053, 4
    %v2062 = vrot.slane %v2054, 4
    %v2063 = vrot.slane %v2055, 4
    %v2064 = vrot.slane %v2056, 4
    %2069 = vst [vmem:[#allocation2 + $0x160] sm:$0xf0] %v2061
    %2070 = vst [vmem:[#allocation2 + $0x168] sm:$0xf0] %v2062
    %2071 = vst [vmem:[#allocation2 + $0x170] sm:$0xf0] %v2063
    %2072 = vst [vmem:[#allocation2 + $0x178] sm:$0xf0] %v2064
    %2073 = vrot.lane.b32.xlu0 %v1457, 94
    %v2074 = vpop.permute.xlu0 %2073
    %2075 = vrot.lane.b32.xlu0 %v1458, 94
    %v2076 = vpop.permute.xlu0 %2075
    %2077 = vrot.lane.b32.xlu0 %v1459, 94
    %v2078 = vpop.permute.xlu0 %2077
    %2079 = vrot.lane.b32.xlu0 %v1460, 94
    %v2080 = vpop.permute.xlu0 %2079
    %v2081 = vsel %vm1198, %v2078, %v2080
    %v2082 = vsel %vm1198, %v2076, %v2078
    %v2083 = vsel %vm1198, %v2074, %v2076
    %v2084 = vsel %vm1198, %v2080, %v2074
    %v2085 = vsel %vm1221, %v2083, 0.0
    %v2086 = vsel %vm1222, %v2082, 0.0
    %v2087 = vsel %vm1223, %v2081, 0.0
    %v2088 = vsel %vm1224, %v2084, 0.0
    %2089 = vst [vmem:[#allocation2 + $0x180] sm:$0xf] %v2085
    %2090 = vst [vmem:[#allocation2 + $0x188] sm:$0xf] %v2086
    %2091 = vst [vmem:[#allocation2 + $0x190] sm:$0xf] %v2087
    %2092 = vst [vmem:[#allocation2 + $0x198] sm:$0xf] %v2088
    %v2093 = vld [vmem:[#allocation2] sm:$0xff]
    %v2094 = vld [vmem:[#allocation2 + $0x8] sm:$0xff]
    %v2095 = vld [vmem:[#allocation2 + $0x10] sm:$0xff]
    %v2096 = vld [vmem:[#allocation2 + $0x18] sm:$0xff]
    %v2097 = vld [vmem:[#allocation2 + $0x20] sm:$0xff]
    %v2098 = vld [vmem:[#allocation2 + $0x28] sm:$0xff]
    %v2099 = vld [vmem:[#allocation2 + $0x30] sm:$0xff]
    %v2100 = vld [vmem:[#allocation2 + $0x38] sm:$0xff]
    %v2101 = vld [vmem:[#allocation2 + $0x40] sm:$0xff]
    %v2102 = vld [vmem:[#allocation2 + $0x48] sm:$0xff]
    %v2103 = vld [vmem:[#allocation2 + $0x50] sm:$0xff]
    %v2104 = vld [vmem:[#allocation2 + $0x58] sm:$0xff]
    %v2105 = vld [vmem:[#allocation2 + $0x60] sm:$0xff]
    %v2106 = vld [vmem:[#allocation2 + $0x68] sm:$0xff]
    %v2107 = vld [vmem:[#allocation2 + $0x70] sm:$0xff]
    %v2108 = vld [vmem:[#allocation2 + $0x78] sm:$0xff]
    %v2109 = vld [vmem:[#allocation2 + $0x80] sm:$0xff]
    %v2110 = vld [vmem:[#allocation2 + $0x88] sm:$0xff]
    %v2111 = vld [vmem:[#allocation2 + $0x90] sm:$0xff]
    %v2112 = vld [vmem:[#allocation2 + $0x98] sm:$0xff]
    %v2113 = vld [vmem:[#allocation2 + $0xa0] sm:$0xff]
    %v2114 = vld [vmem:[#allocation2 + $0xa8] sm:$0xff]
    %v2115 = vld [vmem:[#allocation2 + $0xb0] sm:$0xff]
    %v2116 = vld [vmem:[#allocation2 + $0xb8] sm:$0xff]
    %v2117 = vld [vmem:[#allocation2 + $0xc0] sm:$0xff]
    %v2118 = vld [vmem:[#allocation2 + $0xc8] sm:$0xff]
    %v2119 = vld [vmem:[#allocation2 + $0xd0] sm:$0xff]
    %v2120 = vld [vmem:[#allocation2 + $0xd8] sm:$0xff]
    %v2121 = vld [vmem:[#allocation2 + $0xe0] sm:$0xff]
    %v2122 = vld [vmem:[#allocation2 + $0xe8] sm:$0xff]
    %v2123 = vld [vmem:[#allocation2 + $0xf0] sm:$0xff]
    %v2124 = vld [vmem:[#allocation2 + $0xf8] sm:$0xff]
    %v2125 = vld [vmem:[#allocation2 + $0x100] sm:$0xff]
    %v2126 = vld [vmem:[#allocation2 + $0x108] sm:$0xff]
    %v2127 = vld [vmem:[#allocation2 + $0x110] sm:$0xff]
    %v2128 = vld [vmem:[#allocation2 + $0x118] sm:$0xff]
    %v2129 = vld [vmem:[#allocation2 + $0x120] sm:$0xff]
    %v2130 = vld [vmem:[#allocation2 + $0x128] sm:$0xff]
    %v2131 = vld [vmem:[#allocation2 + $0x130] sm:$0xff]
    %v2132 = vld [vmem:[#allocation2 + $0x138] sm:$0xff]
    %v2133 = vld [vmem:[#allocation2 + $0x140] sm:$0xff]
    %v2134 = vld [vmem:[#allocation2 + $0x148] sm:$0xff]
    %v2135 = vld [vmem:[#allocation2 + $0x150] sm:$0xff]
    %v2136 = vld [vmem:[#allocation2 + $0x158] sm:$0xff]
    %v2137 = vld [vmem:[#allocation2 + $0x160] sm:$0xff]
    %v2138 = vld [vmem:[#allocation2 + $0x168] sm:$0xff]
    %v2139 = vld [vmem:[#allocation2 + $0x170] sm:$0xff]
    %v2140 = vld [vmem:[#allocation2 + $0x178] sm:$0xff]
    %v2141 = vld [vmem:[#allocation2 + $0x180] sm:$0xf]
    %v2142 = vld [vmem:[#allocation2 + $0x188] sm:$0xf]
    %v2143 = vld [vmem:[#allocation2 + $0x190] sm:$0xf]
    %v2144 = vld [vmem:[#allocation2 + $0x198] sm:$0xf]
    %2146 = vset.pattern.permute.xlu0 0
    %2147 = vperm.xlu0 %2146, %v1464
    %v2148 = vpop.permute.xlu0 %2147
    %v2151 = vsel %vm1290, %v1462, 0
    %v2154 = vsel %vm1294, %v2141, 0
    %v2157 = vsel %vm1294, %v2142, 0
    %v2160 = vsel %vm1294, %v2143, 0
    %v2163 = vsel %vm1294, %v2144, 0
    %2165 = vmatprep.subr.mxu0 0.0
    %2166 = vmatpush1.msra.mxu0 0.0
    %2167 = vmatprep.subr.mxu0 0.0
    %2168 = vmatpush1.msra.mxu0 0.0
    %2169 = vmatprep.subr.mxu0 0.0
    %2170 = vmatpush1.msra.mxu0 0.0
    %2171 = vmatprep.subr.mxu0 %v2157
    %2172 = vmatpush1.msra.mxu0 %v2154
    %2173 = vmatprep.subr.mxu0 %v2138
    %2174 = vmatpush1.msra.mxu0 %v2137
    %2175 = vmatprep.subr.mxu0 %v2134
    %2176 = vmatpush1.msra.mxu0 %v2133
    %2177 = vmatprep.subr.mxu0 %v2130
    %2178 = vmatpush1.msra.mxu0 %v2129
    %2179 = vmatprep.subr.mxu0 %v2126
    %2180 = vmatpush1.msra.mxu0 %v2125
    %2181 = vmatprep.subr.mxu0 %v2122
    %2182 = vmatpush1.msra.mxu0 %v2121
    %2183 = vmatprep.subr.mxu0 %v2118
    %2184 = vmatpush1.msra.mxu0 %v2117
    %2185 = vmatprep.subr.mxu0 %v2114
    %2186 = vmatpush1.msra.mxu0 %v2113
    %2187 = vmatprep.subr.mxu0 %v2110
    %2188 = vmatpush1.msra.mxu0 %v2109
    %2189 = vmatprep.subr.mxu0 %v2106
    %2190 = vmatpush1.msra.mxu0 %v2105
    %2191 = vmatprep.subr.mxu0 %v2102
    %2192 = vmatpush1.msra.mxu0 %v2101
    %2193 = vmatprep.subr.mxu0 %v2098
    %2194 = vmatpush1.msra.mxu0 %v2097
    %2195 = vmatprep.subr.mxu0 %v2094
    %2196 = vmatpush1.msra.mxu0 %v2093
    %2197 = vmatprep.subr.mxu0 0.0
    %2198 = vmatpush2.msra.mxu0 0.0
    %2199 = vmatprep.subr.mxu0 0.0
    %2200 = vmatpush2.msra.mxu0 0.0
    %2201 = vmatprep.subr.mxu0 0.0
    %2202 = vmatpush2.msra.mxu0 0.0
    %2203 = vmatprep.subr.mxu0 0.0
    %2204 = vmatpush2.msra.mxu0 0.0
    %2205 = vmatprep.subr.mxu0 0.0
    %2206 = vmatpush2.msra.mxu0 0.0
    %2207 = vmatprep.subr.mxu0 0.0
    %2208 = vmatpush2.msra.mxu0 0.0
    %2209 = vmatprep.subr.mxu0 0.0
    %2210 = vmatpush2.msra.mxu0 0.0
    %2211 = vmatprep.subr.mxu0 0.0
    %2212 = vmatpush2.msra.mxu0 0.0
    %2213 = vmatprep.subr.mxu0 0.0
    %2214 = vmatpush2.msra.mxu0 0.0
    %2215 = vmatprep.subr.mxu0 0.0
    %2216 = vmatpush2.msra.mxu0 0.0
    %2217 = vmatprep.subr.mxu0 0.0
    %2218 = vmatpush2.msra.mxu0 0.0
    %2219 = vmatprep.subr.mxu0 0.0
    %2220 = vmatpush2.msra.mxu0 0.0
    %2221 = vmatprep.subr.mxu0 0.0
    %2222 = vmatpush2.msra.mxu0 0.0
    %2223 = vmatprep.subr.mxu0 0.0
    %2224 = vmatpush2.msra.mxu0 0.0
    %2225 = vmatprep.subr.mxu0 0.0
    %2226 = vmatpush2.msra.mxu0 0.0
    %2227 = vmatprep.subr.mxu0 0.0
    %2228 = vmatpush2.msra.mxu0 0.0
    %2229 = vmatprep.mubr.f32.mxu0 0.0
    %2230 = vmatmul.mubr.f32.gmra.mxu0 %v2151
    %v2231 = vpop.f32.mrf.mxu0
    %v2232 = vadd.f32 %v2148, %v2231
    %v2233 = vpop.f32.mrf.mxu0
    %v2234 = vadd.f32 %v2148, %v2233
    %2235 = vdwg.mxu0
    %2236 = vmatprep.subr.mxu0 0.0
    %2237 = vmatpush1.msra.mxu0 0.0
    %2238 = vmatprep.subr.mxu0 0.0
    %2239 = vmatpush1.msra.mxu0 0.0
    %2240 = vmatprep.subr.mxu0 0.0
    %2241 = vmatpush1.msra.mxu0 0.0
    %2242 = vmatprep.subr.mxu0 %v2163
    %2243 = vmatpush1.msra.mxu0 %v2160
    %2244 = vmatprep.subr.mxu0 %v2140
    %2245 = vmatpush1.msra.mxu0 %v2139
    %2246 = vmatprep.subr.mxu0 %v2136
    %2247 = vmatpush1.msra.mxu0 %v2135
    %2248 = vmatprep.subr.mxu0 %v2132
    %2249 = vmatpush1.msra.mxu0 %v2131
    %2250 = vmatprep.subr.mxu0 %v2128
    %2251 = vmatpush1.msra.mxu0 %v2127
    %2252 = vmatprep.subr.mxu0 %v2124
    %2253 = vmatpush1.msra.mxu0 %v2123
    %2254 = vmatprep.subr.mxu0 %v2120
    %2255 = vmatpush1.msra.mxu0 %v2119
    %2256 = vmatprep.subr.mxu0 %v2116
    %2257 = vmatpush1.msra.mxu0 %v2115
    %2258 = vmatprep.subr.mxu0 %v2112
    %2259 = vmatpush1.msra.mxu0 %v2111
    %2260 = vmatprep.subr.mxu0 %v2108
    %2261 = vmatpush1.msra.mxu0 %v2107
    %2262 = vmatprep.subr.mxu0 %v2104
    %2263 = vmatpush1.msra.mxu0 %v2103
    %2264 = vmatprep.subr.mxu0 %v2100
    %2265 = vmatpush1.msra.mxu0 %v2099
    %2266 = vmatprep.subr.mxu0 %v2096
    %2267 = vmatpush1.msra.mxu0 %v2095
    %2268 = vmatprep.subr.mxu0 0.0
    %2269 = vmatpush2.msra.mxu0 0.0
    %2270 = vmatprep.subr.mxu0 0.0
    %2271 = vmatpush2.msra.mxu0 0.0
    %2272 = vmatprep.subr.mxu0 0.0
    %2273 = vmatpush2.msra.mxu0 0.0
    %2274 = vmatprep.subr.mxu0 0.0
    %2275 = vmatpush2.msra.mxu0 0.0
    %2276 = vmatprep.subr.mxu0 0.0
    %2277 = vmatpush2.msra.mxu0 0.0
    %2278 = vmatprep.subr.mxu0 0.0
    %2279 = vmatpush2.msra.mxu0 0.0
    %2280 = vmatprep.subr.mxu0 0.0
    %2281 = vmatpush2.msra.mxu0 0.0
    %2282 = vmatprep.subr.mxu0 0.0
    %2283 = vmatpush2.msra.mxu0 0.0
    %2284 = vmatprep.subr.mxu0 0.0
    %2285 = vmatpush2.msra.mxu0 0.0
    %2286 = vmatprep.subr.mxu0 0.0
    %2287 = vmatpush2.msra.mxu0 0.0
    %2288 = vmatprep.subr.mxu0 0.0
    %2289 = vmatpush2.msra.mxu0 0.0
    %2290 = vmatprep.subr.mxu0 0.0
    %2291 = vmatpush2.msra.mxu0 0.0
    %2292 = vmatprep.subr.mxu0 0.0
    %2293 = vmatpush2.msra.mxu0 0.0
    %2294 = vmatprep.subr.mxu0 0.0
    %2295 = vmatpush2.msra.mxu0 0.0
    %2296 = vmatprep.subr.mxu0 0.0
    %2297 = vmatpush2.msra.mxu0 0.0
    %2298 = vmatprep.subr.mxu0 0.0
    %2299 = vmatpush2.msra.mxu0 0.0
    %2300 = vmatprep.mubr.f32.mxu0 0.0
    %2301 = vmatmul.mubr.f32.gmra.mxu0 %v2151
    %v2302 = vpop.f32.mrf.mxu0
    %v2303 = vadd.f32 %v2148, %v2302
    %v2304 = vpop.f32.mrf.mxu0
    %v2305 = vadd.f32 %v2148, %v2304
    %2306 = vdwg.mxu0
    %v2307 = vadd.f32 %v2232, %v41
    %v2308 = vadd.f32 %v2234, %v47
    %v2309 = vadd.f32 %v2303, %v42
    %v2310 = vadd.f32 %v2305, %v48
    %s2311 = scalar_lea.vmem %s3, 8
    %v2312 = vld [vmem:[%s2311] sm:$0xf]
    %s2313 = scalar_lea.vmem %s4, 8
    %v2314 = vld [vmem:[%s2313] sm:$0xf]
    %2315 = vrot.lane.b32.xlu0 %v2307, 34
    %v2316 = vpop.permute.xlu0 %2315
    %2317 = vrot.lane.b32.xlu0 %v2308, 34
    %v2318 = vpop.permute.xlu0 %2317
    %2319 = vrot.lane.b32.xlu0 %v2309, 34
    %v2320 = vpop.permute.xlu0 %2319
    %2321 = vrot.lane.b32.xlu0 %v2310, 34
    %v2322 = vpop.permute.xlu0 %2321
    %v2323 = vsel %vm61, %v2320, %v2322
    %v2324 = vsel %vm61, %v2318, %v2320
    %v2325 = vsel %vm61, %v2316, %v2318
    %v2326 = vsel %vm61, %v2322, %v2316
    %v2327 = vsel %vm86, %v2326, 0.0
    %v2328 = vsel %vm87, %v2325, 0.0
    %v2329 = vsel %vm88, %v2324, 0.0
    %v2330 = vsel %vm89, %v2323, 0.0
    %2331 = vst [vmem:[#allocation2] sm:$0xf] %v2327
    %2332 = vst [vmem:[#allocation2 + $0x8] sm:$0xf] %v2328
    %2333 = vst [vmem:[#allocation2 + $0x10] sm:$0xf] %v2329
    %2334 = vst [vmem:[#allocation2 + $0x18] sm:$0xf] %v2330
    %2335 = vrot.lane.b32.xlu0 %v2307, 33
    %v2336 = vpop.permute.xlu0 %2335
    %2337 = vrot.lane.b32.xlu0 %v2308, 33
    %v2338 = vpop.permute.xlu0 %2337
    %2339 = vrot.lane.b32.xlu0 %v2309, 33
    %v2340 = vpop.permute.xlu0 %2339
    %2341 = vrot.lane.b32.xlu0 %v2310, 33
    %v2342 = vpop.permute.xlu0 %2341
    %v2343 = vsel %vm106, %v2340, %v2342
    %v2344 = vsel %vm106, %v2338, %v2340
    %v2345 = vsel %vm106, %v2336, %v2338
    %v2346 = vsel %vm106, %v2342, %v2336
    %v2347 = vsel %vm130, %v2346, 0.0
    %v2348 = vsel %vm131, %v2345, 0.0
    %v2349 = vsel %vm132, %v2344, 0.0
    %v2350 = vsel %vm133, %v2343, 0.0
    %v2355 = vrot.slane %v2347, 4
    %v2356 = vrot.slane %v2348, 4
    %v2357 = vrot.slane %v2349, 4
    %v2358 = vrot.slane %v2350, 4
    %2363 = vst [vmem:[#allocation2] sm:$0xf0] %v2355
    %2364 = vst [vmem:[#allocation2 + $0x8] sm:$0xf0] %v2356
    %2365 = vst [vmem:[#allocation2 + $0x10] sm:$0xf0] %v2357
    %2366 = vst [vmem:[#allocation2 + $0x18] sm:$0xf0] %v2358
    %2367 = vrot.lane.b32.xlu0 %v2307, 32
    %v2368 = vpop.permute.xlu0 %2367
    %2369 = vrot.lane.b32.xlu0 %v2308, 32
    %v2370 = vpop.permute.xlu0 %2369
    %2371 = vrot.lane.b32.xlu0 %v2309, 32
    %v2372 = vpop.permute.xlu0 %2371
    %2373 = vrot.lane.b32.xlu0 %v2310, 32
    %v2374 = vpop.permute.xlu0 %2373
    %v2375 = vsel %vm162, %v2372, %v2374
    %v2376 = vsel %vm162, %v2370, %v2372
    %v2377 = vsel %vm162, %v2368, %v2370
    %v2378 = vsel %vm162, %v2374, %v2368
    %v2379 = vsel %vm184, %v2378, 0.0
    %v2380 = vsel %vm185, %v2377, 0.0
    %v2381 = vsel %vm186, %v2376, 0.0
    %v2382 = vsel %vm187, %v2375, 0.0
    %2383 = vst [vmem:[#allocation2 + $0x20] sm:$0xf] %v2379
    %2384 = vst [vmem:[#allocation2 + $0x28] sm:$0xf] %v2380
    %2385 = vst [vmem:[#allocation2 + $0x30] sm:$0xf] %v2381
    %2386 = vst [vmem:[#allocation2 + $0x38] sm:$0xf] %v2382
    %2387 = vrot.lane.b32.xlu0 %v2307, 31
    %v2388 = vpop.permute.xlu0 %2387
    %2389 = vrot.lane.b32.xlu0 %v2308, 31
    %v2390 = vpop.permute.xlu0 %2389
    %2391 = vrot.lane.b32.xlu0 %v2309, 31
    %v2392 = vpop.permute.xlu0 %2391
    %2393 = vrot.lane.b32.xlu0 %v2310, 31
    %v2394 = vpop.permute.xlu0 %2393
    %v2395 = vsel %vm204, %v2392, %v2394
    %v2396 = vsel %vm204, %v2390, %v2392
    %v2397 = vsel %vm204, %v2388, %v2390
    %v2398 = vsel %vm204, %v2394, %v2388
    %v2399 = vsel %vm228, %v2398, 0.0
    %v2400 = vsel %vm229, %v2397, 0.0
    %v2401 = vsel %vm230, %v2396, 0.0
    %v2402 = vsel %vm231, %v2395, 0.0
    %v2407 = vrot.slane %v2399, 4
    %v2408 = vrot.slane %v2400, 4
    %v2409 = vrot.slane %v2401, 4
    %v2410 = vrot.slane %v2402, 4
    %2415 = vst [vmem:[#allocation2 + $0x20] sm:$0xf0] %v2407
    %2416 = vst [vmem:[#allocation2 + $0x28] sm:$0xf0] %v2408
    %2417 = vst [vmem:[#allocation2 + $0x30] sm:$0xf0] %v2409
    %2418 = vst [vmem:[#allocation2 + $0x38] sm:$0xf0] %v2410
    %2419 = vrot.lane.b32.xlu0 %v2307, 30
    %v2420 = vpop.permute.xlu0 %2419
    %2421 = vrot.lane.b32.xlu0 %v2308, 30
    %v2422 = vpop.permute.xlu0 %2421
    %2423 = vrot.lane.b32.xlu0 %v2309, 30
    %v2424 = vpop.permute.xlu0 %2423
    %2425 = vrot.lane.b32.xlu0 %v2310, 30
    %v2426 = vpop.permute.xlu0 %2425
    %v2427 = vsel %vm260, %v2424, %v2426
    %v2428 = vsel %vm260, %v2422, %v2424
    %v2429 = vsel %vm260, %v2420, %v2422
    %v2430 = vsel %vm260, %v2426, %v2420
    %v2431 = vsel %vm284, %v2430, 0.0
    %v2432 = vsel %vm285, %v2429, 0.0
    %v2433 = vsel %vm286, %v2428, 0.0
    %v2434 = vsel %vm287, %v2427, 0.0
    %2435 = vst [vmem:[#allocation2 + $0x40] sm:$0xf] %v2431
    %2436 = vst [vmem:[#allocation2 + $0x48] sm:$0xf] %v2432
    %2437 = vst [vmem:[#allocation2 + $0x50] sm:$0xf] %v2433
    %2438 = vst [vmem:[#allocation2 + $0x58] sm:$0xf] %v2434
    %2439 = vrot.lane.b32.xlu0 %v2307, 18
    %v2440 = vpop.permute.xlu0 %2439
    %2441 = vrot.lane.b32.xlu0 %v2308, 18
    %v2442 = vpop.permute.xlu0 %2441
    %2443 = vrot.lane.b32.xlu0 %v2309, 18
    %v2444 = vpop.permute.xlu0 %2443
    %2445 = vrot.lane.b32.xlu0 %v2310, 18
    %v2446 = vpop.permute.xlu0 %2445
    %v2447 = vsel %vm304, %v2444, %v2446
    %v2448 = vsel %vm304, %v2442, %v2444
    %v2449 = vsel %vm304, %v2440, %v2442
    %v2450 = vsel %vm304, %v2446, %v2440
    %v2451 = vsel %vm328, %v2450, 0.0
    %v2452 = vsel %vm329, %v2449, 0.0
    %v2453 = vsel %vm330, %v2448, 0.0
    %v2454 = vsel %vm331, %v2447, 0.0
    %v2459 = vrot.slane %v2451, 4
    %v2460 = vrot.slane %v2452, 4
    %v2461 = vrot.slane %v2453, 4
    %v2462 = vrot.slane %v2454, 4
    %2467 = vst [vmem:[#allocation2 + $0x40] sm:$0xf0] %v2459
    %2468 = vst [vmem:[#allocation2 + $0x48] sm:$0xf0] %v2460
    %2469 = vst [vmem:[#allocation2 + $0x50] sm:$0xf0] %v2461
    %2470 = vst [vmem:[#allocation2 + $0x58] sm:$0xf0] %v2462
    %2471 = vrot.lane.b32.xlu0 %v2307, 17
    %v2472 = vpop.permute.xlu0 %2471
    %2473 = vrot.lane.b32.xlu0 %v2308, 17
    %v2474 = vpop.permute.xlu0 %2473
    %2475 = vrot.lane.b32.xlu0 %v2309, 17
    %v2476 = vpop.permute.xlu0 %2475
    %2477 = vrot.lane.b32.xlu0 %v2310, 17
    %v2478 = vpop.permute.xlu0 %2477
    %v2479 = vsel %vm360, %v2476, %v2478
    %v2480 = vsel %vm360, %v2474, %v2476
    %v2481 = vsel %vm360, %v2472, %v2474
    %v2482 = vsel %vm360, %v2478, %v2472
    %v2483 = vsel %vm383, %v2482, 0.0
    %v2484 = vsel %vm384, %v2481, 0.0
    %v2485 = vsel %vm385, %v2480, 0.0
    %v2486 = vsel %vm386, %v2479, 0.0
    %2487 = vst [vmem:[#allocation2 + $0x60] sm:$0xf] %v2483
    %2488 = vst [vmem:[#allocation2 + $0x68] sm:$0xf] %v2484
    %2489 = vst [vmem:[#allocation2 + $0x70] sm:$0xf] %v2485
    %2490 = vst [vmem:[#allocation2 + $0x78] sm:$0xf] %v2486
    %2491 = vrot.lane.b32.xlu0 %v2307, 16
    %v2492 = vpop.permute.xlu0 %2491
    %2493 = vrot.lane.b32.xlu0 %v2308, 16
    %v2494 = vpop.permute.xlu0 %2493
    %2495 = vrot.lane.b32.xlu0 %v2309, 16
    %v2496 = vpop.permute.xlu0 %2495
    %2497 = vrot.lane.b32.xlu0 %v2310, 16
    %v2498 = vpop.permute.xlu0 %2497
    %v2499 = vsel %vm403, %v2496, %v2498
    %v2500 = vsel %vm403, %v2494, %v2496
    %v2501 = vsel %vm403, %v2492, %v2494
    %v2502 = vsel %vm403, %v2498, %v2492
    %v2503 = vsel %vm425, %v2502, 0.0
    %v2504 = vsel %vm426, %v2501, 0.0
    %v2505 = vsel %vm427, %v2500, 0.0
    %v2506 = vsel %vm428, %v2499, 0.0
    %v2511 = vrot.slane %v2503, 4
    %v2512 = vrot.slane %v2504, 4
    %v2513 = vrot.slane %v2505, 4
    %v2514 = vrot.slane %v2506, 4
    %2519 = vst [vmem:[#allocation2 + $0x60] sm:$0xf0] %v2511
    %2520 = vst [vmem:[#allocation2 + $0x68] sm:$0xf0] %v2512
    %2521 = vst [vmem:[#allocation2 + $0x70] sm:$0xf0] %v2513
    %2522 = vst [vmem:[#allocation2 + $0x78] sm:$0xf0] %v2514
    %2523 = vrot.lane.b32.xlu0 %v2307, 15
    %v2524 = vpop.permute.xlu0 %2523
    %2525 = vrot.lane.b32.xlu0 %v2308, 15
    %v2526 = vpop.permute.xlu0 %2525
    %2527 = vrot.lane.b32.xlu0 %v2309, 15
    %v2528 = vpop.permute.xlu0 %2527
    %2529 = vrot.lane.b32.xlu0 %v2310, 15
    %v2530 = vpop.permute.xlu0 %2529
    %v2531 = vsel %vm457, %v2528, %v2530
    %v2532 = vsel %vm457, %v2526, %v2528
    %v2533 = vsel %vm457, %v2524, %v2526
    %v2534 = vsel %vm457, %v2530, %v2524
    %v2535 = vsel %vm480, %v2534, 0.0
    %v2536 = vsel %vm481, %v2533, 0.0
    %v2537 = vsel %vm482, %v2532, 0.0
    %v2538 = vsel %vm483, %v2531, 0.0
    %2539 = vst [vmem:[#allocation2 + $0x80] sm:$0xf] %v2535
    %2540 = vst [vmem:[#allocation2 + $0x88] sm:$0xf] %v2536
    %2541 = vst [vmem:[#allocation2 + $0x90] sm:$0xf] %v2537
    %2542 = vst [vmem:[#allocation2 + $0x98] sm:$0xf] %v2538
    %2543 = vrot.lane.b32.xlu0 %v2307, 14
    %v2544 = vpop.permute.xlu0 %2543
    %2545 = vrot.lane.b32.xlu0 %v2308, 14
    %v2546 = vpop.permute.xlu0 %2545
    %2547 = vrot.lane.b32.xlu0 %v2309, 14
    %v2548 = vpop.permute.xlu0 %2547
    %2549 = vrot.lane.b32.xlu0 %v2310, 14
    %v2550 = vpop.permute.xlu0 %2549
    %v2551 = vsel %vm500, %v2548, %v2550
    %v2552 = vsel %vm500, %v2546, %v2548
    %v2553 = vsel %vm500, %v2544, %v2546
    %v2554 = vsel %vm500, %v2550, %v2544
    %v2555 = vsel %vm523, %v2554, 0.0
    %v2556 = vsel %vm524, %v2553, 0.0
    %v2557 = vsel %vm525, %v2552, 0.0
    %v2558 = vsel %vm526, %v2551, 0.0
    %v2563 = vrot.slane %v2555, 4
    %v2564 = vrot.slane %v2556, 4
    %v2565 = vrot.slane %v2557, 4
    %v2566 = vrot.slane %v2558, 4
    %2571 = vst [vmem:[#allocation2 + $0x80] sm:$0xf0] %v2563
    %2572 = vst [vmem:[#allocation2 + $0x88] sm:$0xf0] %v2564
    %2573 = vst [vmem:[#allocation2 + $0x90] sm:$0xf0] %v2565
    %2574 = vst [vmem:[#allocation2 + $0x98] sm:$0xf0] %v2566
    %2575 = vrot.lane.b32.xlu0 %v2307, 2
    %v2576 = vpop.permute.xlu0 %2575
    %2577 = vrot.lane.b32.xlu0 %v2308, 2
    %v2578 = vpop.permute.xlu0 %2577
    %2579 = vrot.lane.b32.xlu0 %v2309, 2
    %v2580 = vpop.permute.xlu0 %2579
    %2581 = vrot.lane.b32.xlu0 %v2310, 2
    %v2582 = vpop.permute.xlu0 %2581
    %v2583 = vsel %vm555, %v2580, %v2582
    %v2584 = vsel %vm555, %v2578, %v2580
    %v2585 = vsel %vm555, %v2576, %v2578
    %v2586 = vsel %vm555, %v2582, %v2576
    %v2587 = vsel %vm577, %v2586, 0.0
    %v2588 = vsel %vm578, %v2585, 0.0
    %v2589 = vsel %vm579, %v2584, 0.0
    %v2590 = vsel %vm580, %v2583, 0.0
    %2591 = vst [vmem:[#allocation2 + $0xa0] sm:$0xf] %v2587
    %2592 = vst [vmem:[#allocation2 + $0xa8] sm:$0xf] %v2588
    %2593 = vst [vmem:[#allocation2 + $0xb0] sm:$0xf] %v2589
    %2594 = vst [vmem:[#allocation2 + $0xb8] sm:$0xf] %v2590
    %2595 = vrot.lane.b32.xlu0 %v2307, 1
    %v2596 = vpop.permute.xlu0 %2595
    %2597 = vrot.lane.b32.xlu0 %v2308, 1
    %v2598 = vpop.permute.xlu0 %2597
    %2599 = vrot.lane.b32.xlu0 %v2309, 1
    %v2600 = vpop.permute.xlu0 %2599
    %2601 = vrot.lane.b32.xlu0 %v2310, 1
    %v2602 = vpop.permute.xlu0 %2601
    %v2603 = vsel %vm597, %v2600, %v2602
    %v2604 = vsel %vm597, %v2598, %v2600
    %v2605 = vsel %vm597, %v2596, %v2598
    %v2606 = vsel %vm597, %v2602, %v2596
    %v2607 = vsel %vm619, %v2606, 0.0
    %v2608 = vsel %vm620, %v2605, 0.0
    %v2609 = vsel %vm621, %v2604, 0.0
    %v2610 = vsel %vm622, %v2603, 0.0
    %v2615 = vrot.slane %v2607, 4
    %v2616 = vrot.slane %v2608, 4
    %v2617 = vrot.slane %v2609, 4
    %v2618 = vrot.slane %v2610, 4
    %2623 = vst [vmem:[#allocation2 + $0xa0] sm:$0xf0] %v2615
    %2624 = vst [vmem:[#allocation2 + $0xa8] sm:$0xf0] %v2616
    %2625 = vst [vmem:[#allocation2 + $0xb0] sm:$0xf0] %v2617
    %2626 = vst [vmem:[#allocation2 + $0xb8] sm:$0xf0] %v2618
    %2627 = vst [vmem:[#allocation2 + $0xc0] sm:$0xf] %v2307
    %2628 = vst [vmem:[#allocation2 + $0xc8] sm:$0xf] %v2308
    %2629 = vst [vmem:[#allocation2 + $0xd0] sm:$0xf] %v2309
    %2630 = vst [vmem:[#allocation2 + $0xd8] sm:$0xf] %v2310
    %2631 = vrot.lane.b32.xlu0 %v2307, 127
    %v2632 = vpop.permute.xlu0 %2631
    %2633 = vrot.lane.b32.xlu0 %v2308, 127
    %v2634 = vpop.permute.xlu0 %2633
    %2635 = vrot.lane.b32.xlu0 %v2309, 127
    %v2636 = vpop.permute.xlu0 %2635
    %2637 = vrot.lane.b32.xlu0 %v2310, 127
    %v2638 = vpop.permute.xlu0 %2637
    %v2639 = vsel %vm655, %v2636, %v2638
    %v2640 = vsel %vm655, %v2634, %v2636
    %v2641 = vsel %vm655, %v2632, %v2634
    %v2642 = vsel %vm655, %v2638, %v2632
    %v2643 = vsel %vm677, %v2641, 0.0
    %v2644 = vsel %vm678, %v2640, 0.0
    %v2645 = vsel %vm679, %v2639, 0.0
    %v2646 = vsel %vm680, %v2642, 0.0
    %v2651 = vrot.slane %v2643, 4
    %v2652 = vrot.slane %v2644, 4
    %v2653 = vrot.slane %v2645, 4
    %v2654 = vrot.slane %v2646, 4
    %2659 = vst [vmem:[#allocation2 + $0xc0] sm:$0xf0] %v2651
    %2660 = vst [vmem:[#allocation2 + $0xc8] sm:$0xf0] %v2652
    %2661 = vst [vmem:[#allocation2 + $0xd0] sm:$0xf0] %v2653
    %2662 = vst [vmem:[#allocation2 + $0xd8] sm:$0xf0] %v2654
    %2663 = vrot.lane.b32.xlu0 %v2307, 126
    %v2664 = vpop.permute.xlu0 %2663
    %2665 = vrot.lane.b32.xlu0 %v2308, 126
    %v2666 = vpop.permute.xlu0 %2665
    %2667 = vrot.lane.b32.xlu0 %v2309, 126
    %v2668 = vpop.permute.xlu0 %2667
    %2669 = vrot.lane.b32.xlu0 %v2310, 126
    %v2670 = vpop.permute.xlu0 %2669
    %v2671 = vsel %vm709, %v2668, %v2670
    %v2672 = vsel %vm709, %v2666, %v2668
    %v2673 = vsel %vm709, %v2664, %v2666
    %v2674 = vsel %vm709, %v2670, %v2664
    %v2675 = vsel %vm731, %v2673, 0.0
    %v2676 = vsel %vm732, %v2672, 0.0
    %v2677 = vsel %vm733, %v2671, 0.0
    %v2678 = vsel %vm734, %v2674, 0.0
    %2679 = vst [vmem:[#allocation2 + $0xe0] sm:$0xf] %v2675
    %2680 = vst [vmem:[#allocation2 + $0xe8] sm:$0xf] %v2676
    %2681 = vst [vmem:[#allocation2 + $0xf0] sm:$0xf] %v2677
    %2682 = vst [vmem:[#allocation2 + $0xf8] sm:$0xf] %v2678
    %2683 = vrot.lane.b32.xlu0 %v2307, 114
    %v2684 = vpop.permute.xlu0 %2683
    %2685 = vrot.lane.b32.xlu0 %v2308, 114
    %v2686 = vpop.permute.xlu0 %2685
    %2687 = vrot.lane.b32.xlu0 %v2309, 114
    %v2688 = vpop.permute.xlu0 %2687
    %2689 = vrot.lane.b32.xlu0 %v2310, 114
    %v2690 = vpop.permute.xlu0 %2689
    %v2691 = vsel %vm751, %v2688, %v2690
    %v2692 = vsel %vm751, %v2686, %v2688
    %v2693 = vsel %vm751, %v2684, %v2686
    %v2694 = vsel %vm751, %v2690, %v2684
    %v2695 = vsel %vm775, %v2693, 0.0
    %v2696 = vsel %vm776, %v2692, 0.0
    %v2697 = vsel %vm777, %v2691, 0.0
    %v2698 = vsel %vm778, %v2694, 0.0
    %v2703 = vrot.slane %v2695, 4
    %v2704 = vrot.slane %v2696, 4
    %v2705 = vrot.slane %v2697, 4
    %v2706 = vrot.slane %v2698, 4
    %2711 = vst [vmem:[#allocation2 + $0xe0] sm:$0xf0] %v2703
    %2712 = vst [vmem:[#allocation2 + $0xe8] sm:$0xf0] %v2704
    %2713 = vst [vmem:[#allocation2 + $0xf0] sm:$0xf0] %v2705
    %2714 = vst [vmem:[#allocation2 + $0xf8] sm:$0xf0] %v2706
    %2715 = vrot.lane.b32.xlu0 %v2307, 113
    %v2716 = vpop.permute.xlu0 %2715
    %2717 = vrot.lane.b32.xlu0 %v2308, 113
    %v2718 = vpop.permute.xlu0 %2717
    %2719 = vrot.lane.b32.xlu0 %v2309, 113
    %v2720 = vpop.permute.xlu0 %2719
    %2721 = vrot.lane.b32.xlu0 %v2310, 113
    %v2722 = vpop.permute.xlu0 %2721
    %v2723 = vsel %vm807, %v2720, %v2722
    %v2724 = vsel %vm807, %v2718, %v2720
    %v2725 = vsel %vm807, %v2716, %v2718
    %v2726 = vsel %vm807, %v2722, %v2716
    %v2727 = vsel %vm830, %v2725, 0.0
    %v2728 = vsel %vm831, %v2724, 0.0
    %v2729 = vsel %vm832, %v2723, 0.0
    %v2730 = vsel %vm833, %v2726, 0.0
    %2731 = vst [vmem:[#allocation2 + $0x100] sm:$0xf] %v2727
    %2732 = vst [vmem:[#allocation2 + $0x108] sm:$0xf] %v2728
    %2733 = vst [vmem:[#allocation2 + $0x110] sm:$0xf] %v2729
    %2734 = vst [vmem:[#allocation2 + $0x118] sm:$0xf] %v2730
    %2735 = vrot.lane.b32.xlu0 %v2307, 112
    %v2736 = vpop.permute.xlu0 %2735
    %2737 = vrot.lane.b32.xlu0 %v2308, 112
    %v2738 = vpop.permute.xlu0 %2737
    %2739 = vrot.lane.b32.xlu0 %v2309, 112
    %v2740 = vpop.permute.xlu0 %2739
    %2741 = vrot.lane.b32.xlu0 %v2310, 112
    %v2742 = vpop.permute.xlu0 %2741
    %v2743 = vsel %vm850, %v2740, %v2742
    %v2744 = vsel %vm850, %v2738, %v2740
    %v2745 = vsel %vm850, %v2736, %v2738
    %v2746 = vsel %vm850, %v2742, %v2736
    %v2747 = vsel %vm872, %v2745, 0.0
    %v2748 = vsel %vm873, %v2744, 0.0
    %v2749 = vsel %vm874, %v2743, 0.0
    %v2750 = vsel %vm875, %v2746, 0.0
    %v2755 = vrot.slane %v2747, 4
    %v2756 = vrot.slane %v2748, 4
    %v2757 = vrot.slane %v2749, 4
    %v2758 = vrot.slane %v2750, 4
    %2763 = vst [vmem:[#allocation2 + $0x100] sm:$0xf0] %v2755
    %2764 = vst [vmem:[#allocation2 + $0x108] sm:$0xf0] %v2756
    %2765 = vst [vmem:[#allocation2 + $0x110] sm:$0xf0] %v2757
    %2766 = vst [vmem:[#allocation2 + $0x118] sm:$0xf0] %v2758
    %2767 = vrot.lane.b32.xlu0 %v2307, 111
    %v2768 = vpop.permute.xlu0 %2767
    %2769 = vrot.lane.b32.xlu0 %v2308, 111
    %v2770 = vpop.permute.xlu0 %2769
    %2771 = vrot.lane.b32.xlu0 %v2309, 111
    %v2772 = vpop.permute.xlu0 %2771
    %2773 = vrot.lane.b32.xlu0 %v2310, 111
    %v2774 = vpop.permute.xlu0 %2773
    %v2775 = vsel %vm904, %v2772, %v2774
    %v2776 = vsel %vm904, %v2770, %v2772
    %v2777 = vsel %vm904, %v2768, %v2770
    %v2778 = vsel %vm904, %v2774, %v2768
    %v2779 = vsel %vm927, %v2777, 0.0
    %v2780 = vsel %vm928, %v2776, 0.0
    %v2781 = vsel %vm929, %v2775, 0.0
    %v2782 = vsel %vm930, %v2778, 0.0
    %2783 = vst [vmem:[#allocation2 + $0x120] sm:$0xf] %v2779
    %2784 = vst [vmem:[#allocation2 + $0x128] sm:$0xf] %v2780
    %2785 = vst [vmem:[#allocation2 + $0x130] sm:$0xf] %v2781
    %2786 = vst [vmem:[#allocation2 + $0x138] sm:$0xf] %v2782
    %2787 = vrot.lane.b32.xlu0 %v2307, 110
    %v2788 = vpop.permute.xlu0 %2787
    %2789 = vrot.lane.b32.xlu0 %v2308, 110
    %v2790 = vpop.permute.xlu0 %2789
    %2791 = vrot.lane.b32.xlu0 %v2309, 110
    %v2792 = vpop.permute.xlu0 %2791
    %2793 = vrot.lane.b32.xlu0 %v2310, 110
    %v2794 = vpop.permute.xlu0 %2793
    %v2795 = vsel %vm947, %v2792, %v2794
    %v2796 = vsel %vm947, %v2790, %v2792
    %v2797 = vsel %vm947, %v2788, %v2790
    %v2798 = vsel %vm947, %v2794, %v2788
    %v2799 = vsel %vm970, %v2797, 0.0
    %v2800 = vsel %vm971, %v2796, 0.0
    %v2801 = vsel %vm972, %v2795, 0.0
    %v2802 = vsel %vm973, %v2798, 0.0
    %v2807 = vrot.slane %v2799, 4
    %v2808 = vrot.slane %v2800, 4
    %v2809 = vrot.slane %v2801, 4
    %v2810 = vrot.slane %v2802, 4
    %2815 = vst [vmem:[#allocation2 + $0x120] sm:$0xf0] %v2807
    %2816 = vst [vmem:[#allocation2 + $0x128] sm:$0xf0] %v2808
    %2817 = vst [vmem:[#allocation2 + $0x130] sm:$0xf0] %v2809
    %2818 = vst [vmem:[#allocation2 + $0x138] sm:$0xf0] %v2810
    %2819 = vrot.lane.b32.xlu0 %v2307, 98
    %v2820 = vpop.permute.xlu0 %2819
    %2821 = vrot.lane.b32.xlu0 %v2308, 98
    %v2822 = vpop.permute.xlu0 %2821
    %2823 = vrot.lane.b32.xlu0 %v2309, 98
    %v2824 = vpop.permute.xlu0 %2823
    %2825 = vrot.lane.b32.xlu0 %v2310, 98
    %v2826 = vpop.permute.xlu0 %2825
    %v2827 = vsel %vm1002, %v2824, %v2826
    %v2828 = vsel %vm1002, %v2822, %v2824
    %v2829 = vsel %vm1002, %v2820, %v2822
    %v2830 = vsel %vm1002, %v2826, %v2820
    %v2831 = vsel %vm1026, %v2829, 0.0
    %v2832 = vsel %vm1027, %v2828, 0.0
    %v2833 = vsel %vm1028, %v2827, 0.0
    %v2834 = vsel %vm1029, %v2830, 0.0
    %2835 = vst [vmem:[#allocation2 + $0x140] sm:$0xf] %v2831
    %2836 = vst [vmem:[#allocation2 + $0x148] sm:$0xf] %v2832
    %2837 = vst [vmem:[#allocation2 + $0x150] sm:$0xf] %v2833
    %2838 = vst [vmem:[#allocation2 + $0x158] sm:$0xf] %v2834
    %2839 = vrot.lane.b32.xlu0 %v2307, 97
    %v2840 = vpop.permute.xlu0 %2839
    %2841 = vrot.lane.b32.xlu0 %v2308, 97
    %v2842 = vpop.permute.xlu0 %2841
    %2843 = vrot.lane.b32.xlu0 %v2309, 97
    %v2844 = vpop.permute.xlu0 %2843
    %2845 = vrot.lane.b32.xlu0 %v2310, 97
    %v2846 = vpop.permute.xlu0 %2845
    %v2847 = vsel %vm1046, %v2844, %v2846
    %v2848 = vsel %vm1046, %v2842, %v2844
    %v2849 = vsel %vm1046, %v2840, %v2842
    %v2850 = vsel %vm1046, %v2846, %v2840
    %v2851 = vsel %vm1069, %v2849, 0.0
    %v2852 = vsel %vm1070, %v2848, 0.0
    %v2853 = vsel %vm1071, %v2847, 0.0
    %v2854 = vsel %vm1072, %v2850, 0.0
    %v2859 = vrot.slane %v2851, 4
    %v2860 = vrot.slane %v2852, 4
    %v2861 = vrot.slane %v2853, 4
    %v2862 = vrot.slane %v2854, 4
    %2867 = vst [vmem:[#allocation2 + $0x140] sm:$0xf0] %v2859
    %2868 = vst [vmem:[#allocation2 + $0x148] sm:$0xf0] %v2860
    %2869 = vst [vmem:[#allocation2 + $0x150] sm:$0xf0] %v2861
    %2870 = vst [vmem:[#allocation2 + $0x158] sm:$0xf0] %v2862
    %2871 = vrot.lane.b32.xlu0 %v2307, 96
    %v2872 = vpop.permute.xlu0 %2871
    %2873 = vrot.lane.b32.xlu0 %v2308, 96
    %v2874 = vpop.permute.xlu0 %2873
    %2875 = vrot.lane.b32.xlu0 %v2309, 96
    %v2876 = vpop.permute.xlu0 %2875
    %2877 = vrot.lane.b32.xlu0 %v2310, 96
    %v2878 = vpop.permute.xlu0 %2877
    %v2879 = vsel %vm1101, %v2876, %v2878
    %v2880 = vsel %vm1101, %v2874, %v2876
    %v2881 = vsel %vm1101, %v2872, %v2874
    %v2882 = vsel %vm1101, %v2878, %v2872
    %v2883 = vsel %vm1123, %v2881, 0.0
    %v2884 = vsel %vm1124, %v2880, 0.0
    %v2885 = vsel %vm1125, %v2879, 0.0
    %v2886 = vsel %vm1126, %v2882, 0.0
    %2887 = vst [vmem:[#allocation2 + $0x160] sm:$0xf] %v2883
    %2888 = vst [vmem:[#allocation2 + $0x168] sm:$0xf] %v2884
    %2889 = vst [vmem:[#allocation2 + $0x170] sm:$0xf] %v2885
    %2890 = vst [vmem:[#allocation2 + $0x178] sm:$0xf] %v2886
    %2891 = vrot.lane.b32.xlu0 %v2307, 95
    %v2892 = vpop.permute.xlu0 %2891
    %2893 = vrot.lane.b32.xlu0 %v2308, 95
    %v2894 = vpop.permute.xlu0 %2893
    %2895 = vrot.lane.b32.xlu0 %v2309, 95
    %v2896 = vpop.permute.xlu0 %2895
    %2897 = vrot.lane.b32.xlu0 %v2310, 95
    %v2898 = vpop.permute.xlu0 %2897
    %v2899 = vsel %vm1143, %v2896, %v2898
    %v2900 = vsel %vm1143, %v2894, %v2896
    %v2901 = vsel %vm1143, %v2892, %v2894
    %v2902 = vsel %vm1143, %v2898, %v2892
    %v2903 = vsel %vm1166, %v2901, 0.0
    %v2904 = vsel %vm1167, %v2900, 0.0
    %v2905 = vsel %vm1168, %v2899, 0.0
    %v2906 = vsel %vm1169, %v2902, 0.0
    %v2911 = vrot.slane %v2903, 4
    %v2912 = vrot.slane %v2904, 4
    %v2913 = vrot.slane %v2905, 4
    %v2914 = vrot.slane %v2906, 4
    %2919 = vst [vmem:[#allocation2 + $0x160] sm:$0xf0] %v2911
    %2920 = vst [vmem:[#allocation2 + $0x168] sm:$0xf0] %v2912
    %2921 = vst [vmem:[#allocation2 + $0x170] sm:$0xf0] %v2913
    %2922 = vst [vmem:[#allocation2 + $0x178] sm:$0xf0] %v2914
    %2923 = vrot.lane.b32.xlu0 %v2307, 94
    %v2924 = vpop.permute.xlu0 %2923
    %2925 = vrot.lane.b32.xlu0 %v2308, 94
    %v2926 = vpop.permute.xlu0 %2925
    %2927 = vrot.lane.b32.xlu0 %v2309, 94
    %v2928 = vpop.permute.xlu0 %2927
    %2929 = vrot.lane.b32.xlu0 %v2310, 94
    %v2930 = vpop.permute.xlu0 %2929
    %v2931 = vsel %vm1198, %v2928, %v2930
    %v2932 = vsel %vm1198, %v2926, %v2928
    %v2933 = vsel %vm1198, %v2924, %v2926
    %v2934 = vsel %vm1198, %v2930, %v2924
    %v2935 = vsel %vm1221, %v2933, 0.0
    %v2936 = vsel %vm1222, %v2932, 0.0
    %v2937 = vsel %vm1223, %v2931, 0.0
    %v2938 = vsel %vm1224, %v2934, 0.0
    %2939 = vst [vmem:[#allocation2 + $0x180] sm:$0xf] %v2935
    %2940 = vst [vmem:[#allocation2 + $0x188] sm:$0xf] %v2936
    %2941 = vst [vmem:[#allocation2 + $0x190] sm:$0xf] %v2937
    %2942 = vst [vmem:[#allocation2 + $0x198] sm:$0xf] %v2938
    %v2943 = vld [vmem:[#allocation2] sm:$0xff]
    %v2944 = vld [vmem:[#allocation2 + $0x8] sm:$0xff]
    %v2945 = vld [vmem:[#allocation2 + $0x10] sm:$0xff]
    %v2946 = vld [vmem:[#allocation2 + $0x18] sm:$0xff]
    %v2947 = vld [vmem:[#allocation2 + $0x20] sm:$0xff]
    %v2948 = vld [vmem:[#allocation2 + $0x28] sm:$0xff]
    %v2949 = vld [vmem:[#allocation2 + $0x30] sm:$0xff]
    %v2950 = vld [vmem:[#allocation2 + $0x38] sm:$0xff]
    %v2951 = vld [vmem:[#allocation2 + $0x40] sm:$0xff]
    %v2952 = vld [vmem:[#allocation2 + $0x48] sm:$0xff]
    %v2953 = vld [vmem:[#allocation2 + $0x50] sm:$0xff]
    %v2954 = vld [vmem:[#allocation2 + $0x58] sm:$0xff]
    %v2955 = vld [vmem:[#allocation2 + $0x60] sm:$0xff]
    %v2956 = vld [vmem:[#allocation2 + $0x68] sm:$0xff]
    %v2957 = vld [vmem:[#allocation2 + $0x70] sm:$0xff]
    %v2958 = vld [vmem:[#allocation2 + $0x78] sm:$0xff]
    %v2959 = vld [vmem:[#allocation2 + $0x80] sm:$0xff]
    %v2960 = vld [vmem:[#allocation2 + $0x88] sm:$0xff]
    %v2961 = vld [vmem:[#allocation2 + $0x90] sm:$0xff]
    %v2962 = vld [vmem:[#allocation2 + $0x98] sm:$0xff]
    %v2963 = vld [vmem:[#allocation2 + $0xa0] sm:$0xff]
    %v2964 = vld [vmem:[#allocation2 + $0xa8] sm:$0xff]
    %v2965 = vld [vmem:[#allocation2 + $0xb0] sm:$0xff]
    %v2966 = vld [vmem:[#allocation2 + $0xb8] sm:$0xff]
    %v2967 = vld [vmem:[#allocation2 + $0xc0] sm:$0xff]
    %v2968 = vld [vmem:[#allocation2 + $0xc8] sm:$0xff]
    %v2969 = vld [vmem:[#allocation2 + $0xd0] sm:$0xff]
    %v2970 = vld [vmem:[#allocation2 + $0xd8] sm:$0xff]
    %v2971 = vld [vmem:[#allocation2 + $0xe0] sm:$0xff]
    %v2972 = vld [vmem:[#allocation2 + $0xe8] sm:$0xff]
    %v2973 = vld [vmem:[#allocation2 + $0xf0] sm:$0xff]
    %v2974 = vld [vmem:[#allocation2 + $0xf8] sm:$0xff]
    %v2975 = vld [vmem:[#allocation2 + $0x100] sm:$0xff]
    %v2976 = vld [vmem:[#allocation2 + $0x108] sm:$0xff]
    %v2977 = vld [vmem:[#allocation2 + $0x110] sm:$0xff]
    %v2978 = vld [vmem:[#allocation2 + $0x118] sm:$0xff]
    %v2979 = vld [vmem:[#allocation2 + $0x120] sm:$0xff]
    %v2980 = vld [vmem:[#allocation2 + $0x128] sm:$0xff]
    %v2981 = vld [vmem:[#allocation2 + $0x130] sm:$0xff]
    %v2982 = vld [vmem:[#allocation2 + $0x138] sm:$0xff]
    %v2983 = vld [vmem:[#allocation2 + $0x140] sm:$0xff]
    %v2984 = vld [vmem:[#allocation2 + $0x148] sm:$0xff]
    %v2985 = vld [vmem:[#allocation2 + $0x150] sm:$0xff]
    %v2986 = vld [vmem:[#allocation2 + $0x158] sm:$0xff]
    %v2987 = vld [vmem:[#allocation2 + $0x160] sm:$0xff]
    %v2988 = vld [vmem:[#allocation2 + $0x168] sm:$0xff]
    %v2989 = vld [vmem:[#allocation2 + $0x170] sm:$0xff]
    %v2990 = vld [vmem:[#allocation2 + $0x178] sm:$0xff]
    %v2991 = vld [vmem:[#allocation2 + $0x180] sm:$0xf]
    %v2992 = vld [vmem:[#allocation2 + $0x188] sm:$0xf]
    %v2993 = vld [vmem:[#allocation2 + $0x190] sm:$0xf]
    %v2994 = vld [vmem:[#allocation2 + $0x198] sm:$0xf]
    %2996 = vset.pattern.permute.xlu0 0
    %2997 = vperm.xlu0 %2996, %v2314
    %v2998 = vpop.permute.xlu0 %2997
    %v3001 = vsel %vm1290, %v2312, 0
    %v3004 = vsel %vm1294, %v2991, 0
    %v3007 = vsel %vm1294, %v2992, 0
    %v3010 = vsel %vm1294, %v2993, 0
    %v3013 = vsel %vm1294, %v2994, 0
    %3015 = vmatprep.subr.mxu0 0.0
    %3016 = vmatpush1.msra.mxu0 0.0
    %3017 = vmatprep.subr.mxu0 0.0
    %3018 = vmatpush1.msra.mxu0 0.0
    %3019 = vmatprep.subr.mxu0 0.0
    %3020 = vmatpush1.msra.mxu0 0.0
    %3021 = vmatprep.subr.mxu0 %v3007
    %3022 = vmatpush1.msra.mxu0 %v3004
    %3023 = vmatprep.subr.mxu0 %v2988
    %3024 = vmatpush1.msra.mxu0 %v2987
    %3025 = vmatprep.subr.mxu0 %v2984
    %3026 = vmatpush1.msra.mxu0 %v2983
    %3027 = vmatprep.subr.mxu0 %v2980
    %3028 = vmatpush1.msra.mxu0 %v2979
    %3029 = vmatprep.subr.mxu0 %v2976
    %3030 = vmatpush1.msra.mxu0 %v2975
    %3031 = vmatprep.subr.mxu0 %v2972
    %3032 = vmatpush1.msra.mxu0 %v2971
    %3033 = vmatprep.subr.mxu0 %v2968
    %3034 = vmatpush1.msra.mxu0 %v2967
    %3035 = vmatprep.subr.mxu0 %v2964
    %3036 = vmatpush1.msra.mxu0 %v2963
    %3037 = vmatprep.subr.mxu0 %v2960
    %3038 = vmatpush1.msra.mxu0 %v2959
    %3039 = vmatprep.subr.mxu0 %v2956
    %3040 = vmatpush1.msra.mxu0 %v2955
    %3041 = vmatprep.subr.mxu0 %v2952
    %3042 = vmatpush1.msra.mxu0 %v2951
    %3043 = vmatprep.subr.mxu0 %v2948
    %3044 = vmatpush1.msra.mxu0 %v2947
    %3045 = vmatprep.subr.mxu0 %v2944
    %3046 = vmatpush1.msra.mxu0 %v2943
    %3047 = vmatprep.subr.mxu0 0.0
    %3048 = vmatpush2.msra.mxu0 0.0
    %3049 = vmatprep.subr.mxu0 0.0
    %3050 = vmatpush2.msra.mxu0 0.0
    %3051 = vmatprep.subr.mxu0 0.0
    %3052 = vmatpush2.msra.mxu0 0.0
    %3053 = vmatprep.subr.mxu0 0.0
    %3054 = vmatpush2.msra.mxu0 0.0
    %3055 = vmatprep.subr.mxu0 0.0
    %3056 = vmatpush2.msra.mxu0 0.0
    %3057 = vmatprep.subr.mxu0 0.0
    %3058 = vmatpush2.msra.mxu0 0.0
    %3059 = vmatprep.subr.mxu0 0.0
    %3060 = vmatpush2.msra.mxu0 0.0
    %3061 = vmatprep.subr.mxu0 0.0
    %3062 = vmatpush2.msra.mxu0 0.0
    %3063 = vmatprep.subr.mxu0 0.0
    %3064 = vmatpush2.msra.mxu0 0.0
    %3065 = vmatprep.subr.mxu0 0.0
    %3066 = vmatpush2.msra.mxu0 0.0
    %3067 = vmatprep.subr.mxu0 0.0
    %3068 = vmatpush2.msra.mxu0 0.0
    %3069 = vmatprep.subr.mxu0 0.0
    %3070 = vmatpush2.msra.mxu0 0.0
    %3071 = vmatprep.subr.mxu0 0.0
    %3072 = vmatpush2.msra.mxu0 0.0
    %3073 = vmatprep.subr.mxu0 0.0
    %3074 = vmatpush2.msra.mxu0 0.0
    %3075 = vmatprep.subr.mxu0 0.0
    %3076 = vmatpush2.msra.mxu0 0.0
    %3077 = vmatprep.subr.mxu0 0.0
    %3078 = vmatpush2.msra.mxu0 0.0
    %3079 = vmatprep.mubr.f32.mxu0 0.0
    %3080 = vmatmul.mubr.f32.gmra.mxu0 %v3001
    %v3081 = vpop.f32.mrf.mxu0
    %v3082 = vadd.f32 %v2998, %v3081
    %v3083 = vpop.f32.mrf.mxu0
    %v3084 = vadd.f32 %v2998, %v3083
    %3085 = vdwg.mxu0
    %3086 = vmatprep.subr.mxu0 0.0
    %3087 = vmatpush1.msra.mxu0 0.0
    %3088 = vmatprep.subr.mxu0 0.0
    %3089 = vmatpush1.msra.mxu0 0.0
    %3090 = vmatprep.subr.mxu0 0.0
    %3091 = vmatpush1.msra.mxu0 0.0
    %3092 = vmatprep.subr.mxu0 %v3013
    %3093 = vmatpush1.msra.mxu0 %v3010
    %3094 = vmatprep.subr.mxu0 %v2990
    %3095 = vmatpush1.msra.mxu0 %v2989
    %3096 = vmatprep.subr.mxu0 %v2986
    %3097 = vmatpush1.msra.mxu0 %v2985
    %3098 = vmatprep.subr.mxu0 %v2982
    %3099 = vmatpush1.msra.mxu0 %v2981
    %3100 = vmatprep.subr.mxu0 %v2978
    %3101 = vmatpush1.msra.mxu0 %v2977
    %3102 = vmatprep.subr.mxu0 %v2974
    %3103 = vmatpush1.msra.mxu0 %v2973
    %3104 = vmatprep.subr.mxu0 %v2970
    %3105 = vmatpush1.msra.mxu0 %v2969
    %3106 = vmatprep.subr.mxu0 %v2966
    %3107 = vmatpush1.msra.mxu0 %v2965
    %3108 = vmatprep.subr.mxu0 %v2962
    %3109 = vmatpush1.msra.mxu0 %v2961
    %3110 = vmatprep.subr.mxu0 %v2958
    %3111 = vmatpush1.msra.mxu0 %v2957
    %3112 = vmatprep.subr.mxu0 %v2954
    %3113 = vmatpush1.msra.mxu0 %v2953
    %3114 = vmatprep.subr.mxu0 %v2950
    %3115 = vmatpush1.msra.mxu0 %v2949
    %3116 = vmatprep.subr.mxu0 %v2946
    %3117 = vmatpush1.msra.mxu0 %v2945
    %3118 = vmatprep.subr.mxu0 0.0
    %3119 = vmatpush2.msra.mxu0 0.0
    %3120 = vmatprep.subr.mxu0 0.0
    %3121 = vmatpush2.msra.mxu0 0.0
    %3122 = vmatprep.subr.mxu0 0.0
    %3123 = vmatpush2.msra.mxu0 0.0
    %3124 = vmatprep.subr.mxu0 0.0
    %3125 = vmatpush2.msra.mxu0 0.0
    %3126 = vmatprep.subr.mxu0 0.0
    %3127 = vmatpush2.msra.mxu0 0.0
    %3128 = vmatprep.subr.mxu0 0.0
    %3129 = vmatpush2.msra.mxu0 0.0
    %3130 = vmatprep.subr.mxu0 0.0
    %3131 = vmatpush2.msra.mxu0 0.0
    %3132 = vmatprep.subr.mxu0 0.0
    %3133 = vmatpush2.msra.mxu0 0.0
    %3134 = vmatprep.subr.mxu0 0.0
    %3135 = vmatpush2.msra.mxu0 0.0
    %3136 = vmatprep.subr.mxu0 0.0
    %3137 = vmatpush2.msra.mxu0 0.0
    %3138 = vmatprep.subr.mxu0 0.0
    %3139 = vmatpush2.msra.mxu0 0.0
    %3140 = vmatprep.subr.mxu0 0.0
    %3141 = vmatpush2.msra.mxu0 0.0
    %3142 = vmatprep.subr.mxu0 0.0
    %3143 = vmatpush2.msra.mxu0 0.0
    %3144 = vmatprep.subr.mxu0 0.0
    %3145 = vmatpush2.msra.mxu0 0.0
    %3146 = vmatprep.subr.mxu0 0.0
    %3147 = vmatpush2.msra.mxu0 0.0
    %3148 = vmatprep.subr.mxu0 0.0
    %3149 = vmatpush2.msra.mxu0 0.0
    %3150 = vmatprep.mubr.f32.mxu0 0.0
    %3151 = vmatmul.mubr.f32.gmra.mxu0 %v3001
    %v3152 = vpop.f32.mrf.mxu0
    %v3153 = vadd.f32 %v2998, %v3152
    %v3154 = vpop.f32.mrf.mxu0
    %v3155 = vadd.f32 %v2998, %v3154
    %3156 = vdwg.mxu0
    %vm3157 = vcmp.ge.f32.partialorder %v3082, 0.0
    %vm3158 = vcmp.ge.f32.partialorder %v3084, 0.0
    %vm3159 = vcmp.ge.f32.partialorder %v3153, 0.0
    %vm3160 = vcmp.ge.f32.partialorder %v3155, 0.0
    %v3161 = vmul.f32 %v3082, 0.2
    %v3162 = vmul.f32 %v3084, 0.2
    %v3163 = vmul.f32 %v3153, 0.2
    %v3164 = vmul.f32 %v3155, 0.2
    %v3165 = vsel %vm3157, %v3082, %v3161
    %v3166 = vsel %vm3158, %v3084, %v3162
    %v3167 = vsel %vm3159, %v3153, %v3163
    %v3168 = vsel %vm3160, %v3155, %v3164
    %s3169 = scalar_lea.vmem %s3, 12
    %v3170 = vld [vmem:[%s3169] sm:$0xf]
    %s3171 = scalar_lea.vmem %s4, 12
    %v3172 = vld [vmem:[%s3171] sm:$0xf]
    %3173 = vrot.lane.b32.xlu0 %v3165, 34
    %v3174 = vpop.permute.xlu0 %3173
    %3175 = vrot.lane.b32.xlu0 %v3166, 34
    %v3176 = vpop.permute.xlu0 %3175
    %3177 = vrot.lane.b32.xlu0 %v3167, 34
    %v3178 = vpop.permute.xlu0 %3177
    %3179 = vrot.lane.b32.xlu0 %v3168, 34
    %v3180 = vpop.permute.xlu0 %3179
    %v3181 = vsel %vm61, %v3178, %v3180
    %v3182 = vsel %vm61, %v3176, %v3178
    %v3183 = vsel %vm61, %v3174, %v3176
    %v3184 = vsel %vm61, %v3180, %v3174
    %v3185 = vsel %vm86, %v3184, 0.0
    %v3186 = vsel %vm87, %v3183, 0.0
    %v3187 = vsel %vm88, %v3182, 0.0
    %v3188 = vsel %vm89, %v3181, 0.0
    %3189 = vst [vmem:[#allocation2] sm:$0xf] %v3185
    %3190 = vst [vmem:[#allocation2 + $0x8] sm:$0xf] %v3186
    %3191 = vst [vmem:[#allocation2 + $0x10] sm:$0xf] %v3187
    %3192 = vst [vmem:[#allocation2 + $0x18] sm:$0xf] %v3188
    %3193 = vrot.lane.b32.xlu0 %v3165, 33
    %v3194 = vpop.permute.xlu0 %3193
    %3195 = vrot.lane.b32.xlu0 %v3166, 33
    %v3196 = vpop.permute.xlu0 %3195
    %3197 = vrot.lane.b32.xlu0 %v3167, 33
    %v3198 = vpop.permute.xlu0 %3197
    %3199 = vrot.lane.b32.xlu0 %v3168, 33
    %v3200 = vpop.permute.xlu0 %3199
    %v3201 = vsel %vm106, %v3198, %v3200
    %v3202 = vsel %vm106, %v3196, %v3198
    %v3203 = vsel %vm106, %v3194, %v3196
    %v3204 = vsel %vm106, %v3200, %v3194
    %v3205 = vsel %vm130, %v3204, 0.0
    %v3206 = vsel %vm131, %v3203, 0.0
    %v3207 = vsel %vm132, %v3202, 0.0
    %v3208 = vsel %vm133, %v3201, 0.0
    %v3213 = vrot.slane %v3205, 4
    %v3214 = vrot.slane %v3206, 4
    %v3215 = vrot.slane %v3207, 4
    %v3216 = vrot.slane %v3208, 4
    %3221 = vst [vmem:[#allocation2] sm:$0xf0] %v3213
    %3222 = vst [vmem:[#allocation2 + $0x8] sm:$0xf0] %v3214
    %3223 = vst [vmem:[#allocation2 + $0x10] sm:$0xf0] %v3215
    %3224 = vst [vmem:[#allocation2 + $0x18] sm:$0xf0] %v3216
    %3225 = vrot.lane.b32.xlu0 %v3165, 32
    %v3226 = vpop.permute.xlu0 %3225
    %3227 = vrot.lane.b32.xlu0 %v3166, 32
    %v3228 = vpop.permute.xlu0 %3227
    %3229 = vrot.lane.b32.xlu0 %v3167, 32
    %v3230 = vpop.permute.xlu0 %3229
    %3231 = vrot.lane.b32.xlu0 %v3168, 32
    %v3232 = vpop.permute.xlu0 %3231
    %v3233 = vsel %vm162, %v3230, %v3232
    %v3234 = vsel %vm162, %v3228, %v3230
    %v3235 = vsel %vm162, %v3226, %v3228
    %v3236 = vsel %vm162, %v3232, %v3226
    %v3237 = vsel %vm184, %v3236, 0.0
    %v3238 = vsel %vm185, %v3235, 0.0
    %v3239 = vsel %vm186, %v3234, 0.0
    %v3240 = vsel %vm187, %v3233, 0.0
    %3241 = vst [vmem:[#allocation2 + $0x20] sm:$0xf] %v3237
    %3242 = vst [vmem:[#allocation2 + $0x28] sm:$0xf] %v3238
    %3243 = vst [vmem:[#allocation2 + $0x30] sm:$0xf] %v3239
    %3244 = vst [vmem:[#allocation2 + $0x38] sm:$0xf] %v3240
    %3245 = vrot.lane.b32.xlu0 %v3165, 31
    %v3246 = vpop.permute.xlu0 %3245
    %3247 = vrot.lane.b32.xlu0 %v3166, 31
    %v3248 = vpop.permute.xlu0 %3247
    %3249 = vrot.lane.b32.xlu0 %v3167, 31
    %v3250 = vpop.permute.xlu0 %3249
    %3251 = vrot.lane.b32.xlu0 %v3168, 31
    %v3252 = vpop.permute.xlu0 %3251
    %v3253 = vsel %vm204, %v3250, %v3252
    %v3254 = vsel %vm204, %v3248, %v3250
    %v3255 = vsel %vm204, %v3246, %v3248
    %v3256 = vsel %vm204, %v3252, %v3246
    %v3257 = vsel %vm228, %v3256, 0.0
    %v3258 = vsel %vm229, %v3255, 0.0
    %v3259 = vsel %vm230, %v3254, 0.0
    %v3260 = vsel %vm231, %v3253, 0.0
    %v3265 = vrot.slane %v3257, 4
    %v3266 = vrot.slane %v3258, 4
    %v3267 = vrot.slane %v3259, 4
    %v3268 = vrot.slane %v3260, 4
    %3273 = vst [vmem:[#allocation2 + $0x20] sm:$0xf0] %v3265
    %3274 = vst [vmem:[#allocation2 + $0x28] sm:$0xf0] %v3266
    %3275 = vst [vmem:[#allocation2 + $0x30] sm:$0xf0] %v3267
    %3276 = vst [vmem:[#allocation2 + $0x38] sm:$0xf0] %v3268
    %3277 = vrot.lane.b32.xlu0 %v3165, 30
    %v3278 = vpop.permute.xlu0 %3277
    %3279 = vrot.lane.b32.xlu0 %v3166, 30
    %v3280 = vpop.permute.xlu0 %3279
    %3281 = vrot.lane.b32.xlu0 %v3167, 30
    %v3282 = vpop.permute.xlu0 %3281
    %3283 = vrot.lane.b32.xlu0 %v3168, 30
    %v3284 = vpop.permute.xlu0 %3283
    %v3285 = vsel %vm260, %v3282, %v3284
    %v3286 = vsel %vm260, %v3280, %v3282
    %v3287 = vsel %vm260, %v3278, %v3280
    %v3288 = vsel %vm260, %v3284, %v3278
    %v3289 = vsel %vm284, %v3288, 0.0
    %v3290 = vsel %vm285, %v3287, 0.0
    %v3291 = vsel %vm286, %v3286, 0.0
    %v3292 = vsel %vm287, %v3285, 0.0
    %3293 = vst [vmem:[#allocation2 + $0x40] sm:$0xf] %v3289
    %3294 = vst [vmem:[#allocation2 + $0x48] sm:$0xf] %v3290
    %3295 = vst [vmem:[#allocation2 + $0x50] sm:$0xf] %v3291
    %3296 = vst [vmem:[#allocation2 + $0x58] sm:$0xf] %v3292
    %3297 = vrot.lane.b32.xlu0 %v3165, 18
    %v3298 = vpop.permute.xlu0 %3297
    %3299 = vrot.lane.b32.xlu0 %v3166, 18
    %v3300 = vpop.permute.xlu0 %3299
    %3301 = vrot.lane.b32.xlu0 %v3167, 18
    %v3302 = vpop.permute.xlu0 %3301
    %3303 = vrot.lane.b32.xlu0 %v3168, 18
    %v3304 = vpop.permute.xlu0 %3303
    %v3305 = vsel %vm304, %v3302, %v3304
    %v3306 = vsel %vm304, %v3300, %v3302
    %v3307 = vsel %vm304, %v3298, %v3300
    %v3308 = vsel %vm304, %v3304, %v3298
    %v3309 = vsel %vm328, %v3308, 0.0
    %v3310 = vsel %vm329, %v3307, 0.0
    %v3311 = vsel %vm330, %v3306, 0.0
    %v3312 = vsel %vm331, %v3305, 0.0
    %v3317 = vrot.slane %v3309, 4
    %v3318 = vrot.slane %v3310, 4
    %v3319 = vrot.slane %v3311, 4
    %v3320 = vrot.slane %v3312, 4
    %3325 = vst [vmem:[#allocation2 + $0x40] sm:$0xf0] %v3317
    %3326 = vst [vmem:[#allocation2 + $0x48] sm:$0xf0] %v3318
    %3327 = vst [vmem:[#allocation2 + $0x50] sm:$0xf0] %v3319
    %3328 = vst [vmem:[#allocation2 + $0x58] sm:$0xf0] %v3320
    %3329 = vrot.lane.b32.xlu0 %v3165, 17
    %v3330 = vpop.permute.xlu0 %3329
    %3331 = vrot.lane.b32.xlu0 %v3166, 17
    %v3332 = vpop.permute.xlu0 %3331
    %3333 = vrot.lane.b32.xlu0 %v3167, 17
    %v3334 = vpop.permute.xlu0 %3333
    %3335 = vrot.lane.b32.xlu0 %v3168, 17
    %v3336 = vpop.permute.xlu0 %3335
    %v3337 = vsel %vm360, %v3334, %v3336
    %v3338 = vsel %vm360, %v3332, %v3334
    %v3339 = vsel %vm360, %v3330, %v3332
    %v3340 = vsel %vm360, %v3336, %v3330
    %v3341 = vsel %vm383, %v3340, 0.0
    %v3342 = vsel %vm384, %v3339, 0.0
    %v3343 = vsel %vm385, %v3338, 0.0
    %v3344 = vsel %vm386, %v3337, 0.0
    %3345 = vst [vmem:[#allocation2 + $0x60] sm:$0xf] %v3341
    %3346 = vst [vmem:[#allocation2 + $0x68] sm:$0xf] %v3342
    %3347 = vst [vmem:[#allocation2 + $0x70] sm:$0xf] %v3343
    %3348 = vst [vmem:[#allocation2 + $0x78] sm:$0xf] %v3344
    %3349 = vrot.lane.b32.xlu0 %v3165, 16
    %v3350 = vpop.permute.xlu0 %3349
    %3351 = vrot.lane.b32.xlu0 %v3166, 16
    %v3352 = vpop.permute.xlu0 %3351
    %3353 = vrot.lane.b32.xlu0 %v3167, 16
    %v3354 = vpop.permute.xlu0 %3353
    %3355 = vrot.lane.b32.xlu0 %v3168, 16
    %v3356 = vpop.permute.xlu0 %3355
    %v3357 = vsel %vm403, %v3354, %v3356
    %v3358 = vsel %vm403, %v3352, %v3354
    %v3359 = vsel %vm403, %v3350, %v3352
    %v3360 = vsel %vm403, %v3356, %v3350
    %v3361 = vsel %vm425, %v3360, 0.0
    %v3362 = vsel %vm426, %v3359, 0.0
    %v3363 = vsel %vm427, %v3358, 0.0
    %v3364 = vsel %vm428, %v3357, 0.0
    %v3369 = vrot.slane %v3361, 4
    %v3370 = vrot.slane %v3362, 4
    %v3371 = vrot.slane %v3363, 4
    %v3372 = vrot.slane %v3364, 4
    %3377 = vst [vmem:[#allocation2 + $0x60] sm:$0xf0] %v3369
    %3378 = vst [vmem:[#allocation2 + $0x68] sm:$0xf0] %v3370
    %3379 = vst [vmem:[#allocation2 + $0x70] sm:$0xf0] %v3371
    %3380 = vst [vmem:[#allocation2 + $0x78] sm:$0xf0] %v3372
    %3381 = vrot.lane.b32.xlu0 %v3165, 15
    %v3382 = vpop.permute.xlu0 %3381
    %3383 = vrot.lane.b32.xlu0 %v3166, 15
    %v3384 = vpop.permute.xlu0 %3383
    %3385 = vrot.lane.b32.xlu0 %v3167, 15
    %v3386 = vpop.permute.xlu0 %3385
    %3387 = vrot.lane.b32.xlu0 %v3168, 15
    %v3388 = vpop.permute.xlu0 %3387
    %v3389 = vsel %vm457, %v3386, %v3388
    %v3390 = vsel %vm457, %v3384, %v3386
    %v3391 = vsel %vm457, %v3382, %v3384
    %v3392 = vsel %vm457, %v3388, %v3382
    %v3393 = vsel %vm480, %v3392, 0.0
    %v3394 = vsel %vm481, %v3391, 0.0
    %v3395 = vsel %vm482, %v3390, 0.0
    %v3396 = vsel %vm483, %v3389, 0.0
    %3397 = vst [vmem:[#allocation2 + $0x80] sm:$0xf] %v3393
    %3398 = vst [vmem:[#allocation2 + $0x88] sm:$0xf] %v3394
    %3399 = vst [vmem:[#allocation2 + $0x90] sm:$0xf] %v3395
    %3400 = vst [vmem:[#allocation2 + $0x98] sm:$0xf] %v3396
    %3401 = vrot.lane.b32.xlu0 %v3165, 14
    %v3402 = vpop.permute.xlu0 %3401
    %3403 = vrot.lane.b32.xlu0 %v3166, 14
    %v3404 = vpop.permute.xlu0 %3403
    %3405 = vrot.lane.b32.xlu0 %v3167, 14
    %v3406 = vpop.permute.xlu0 %3405
    %3407 = vrot.lane.b32.xlu0 %v3168, 14
    %v3408 = vpop.permute.xlu0 %3407
    %v3409 = vsel %vm500, %v3406, %v3408
    %v3410 = vsel %vm500, %v3404, %v3406
    %v3411 = vsel %vm500, %v3402, %v3404
    %v3412 = vsel %vm500, %v3408, %v3402
    %v3413 = vsel %vm523, %v3412, 0.0
    %v3414 = vsel %vm524, %v3411, 0.0
    %v3415 = vsel %vm525, %v3410, 0.0
    %v3416 = vsel %vm526, %v3409, 0.0
    %v3421 = vrot.slane %v3413, 4
    %v3422 = vrot.slane %v3414, 4
    %v3423 = vrot.slane %v3415, 4
    %v3424 = vrot.slane %v3416, 4
    %3429 = vst [vmem:[#allocation2 + $0x80] sm:$0xf0] %v3421
    %3430 = vst [vmem:[#allocation2 + $0x88] sm:$0xf0] %v3422
    %3431 = vst [vmem:[#allocation2 + $0x90] sm:$0xf0] %v3423
    %3432 = vst [vmem:[#allocation2 + $0x98] sm:$0xf0] %v3424
    %3433 = vrot.lane.b32.xlu0 %v3165, 2
    %v3434 = vpop.permute.xlu0 %3433
    %3435 = vrot.lane.b32.xlu0 %v3166, 2
    %v3436 = vpop.permute.xlu0 %3435
    %3437 = vrot.lane.b32.xlu0 %v3167, 2
    %v3438 = vpop.permute.xlu0 %3437
    %3439 = vrot.lane.b32.xlu0 %v3168, 2
    %v3440 = vpop.permute.xlu0 %3439
    %v3441 = vsel %vm555, %v3438, %v3440
    %v3442 = vsel %vm555, %v3436, %v3438
    %v3443 = vsel %vm555, %v3434, %v3436
    %v3444 = vsel %vm555, %v3440, %v3434
    %v3445 = vsel %vm577, %v3444, 0.0
    %v3446 = vsel %vm578, %v3443, 0.0
    %v3447 = vsel %vm579, %v3442, 0.0
    %v3448 = vsel %vm580, %v3441, 0.0
    %3449 = vst [vmem:[#allocation2 + $0xa0] sm:$0xf] %v3445
    %3450 = vst [vmem:[#allocation2 + $0xa8] sm:$0xf] %v3446
    %3451 = vst [vmem:[#allocation2 + $0xb0] sm:$0xf] %v3447
    %3452 = vst [vmem:[#allocation2 + $0xb8] sm:$0xf] %v3448
    %3453 = vrot.lane.b32.xlu0 %v3165, 1
    %v3454 = vpop.permute.xlu0 %3453
    %3455 = vrot.lane.b32.xlu0 %v3166, 1
    %v3456 = vpop.permute.xlu0 %3455
    %3457 = vrot.lane.b32.xlu0 %v3167, 1
    %v3458 = vpop.permute.xlu0 %3457
    %3459 = vrot.lane.b32.xlu0 %v3168, 1
    %v3460 = vpop.permute.xlu0 %3459
    %v3461 = vsel %vm597, %v3458, %v3460
    %v3462 = vsel %vm597, %v3456, %v3458
    %v3463 = vsel %vm597, %v3454, %v3456
    %v3464 = vsel %vm597, %v3460, %v3454
    %v3465 = vsel %vm619, %v3464, 0.0
    %v3466 = vsel %vm620, %v3463, 0.0
    %v3467 = vsel %vm621, %v3462, 0.0
    %v3468 = vsel %vm622, %v3461, 0.0
    %v3473 = vrot.slane %v3465, 4
    %v3474 = vrot.slane %v3466, 4
    %v3475 = vrot.slane %v3467, 4
    %v3476 = vrot.slane %v3468, 4
    %3481 = vst [vmem:[#allocation2 + $0xa0] sm:$0xf0] %v3473
    %3482 = vst [vmem:[#allocation2 + $0xa8] sm:$0xf0] %v3474
    %3483 = vst [vmem:[#allocation2 + $0xb0] sm:$0xf0] %v3475
    %3484 = vst [vmem:[#allocation2 + $0xb8] sm:$0xf0] %v3476
    %3485 = vst [vmem:[#allocation2 + $0xc0] sm:$0xf] %v3165
    %3486 = vst [vmem:[#allocation2 + $0xc8] sm:$0xf] %v3166
    %3487 = vst [vmem:[#allocation2 + $0xd0] sm:$0xf] %v3167
    %3488 = vst [vmem:[#allocation2 + $0xd8] sm:$0xf] %v3168
    %3489 = vrot.lane.b32.xlu0 %v3165, 127
    %v3490 = vpop.permute.xlu0 %3489
    %3491 = vrot.lane.b32.xlu0 %v3166, 127
    %v3492 = vpop.permute.xlu0 %3491
    %3493 = vrot.lane.b32.xlu0 %v3167, 127
    %v3494 = vpop.permute.xlu0 %3493
    %3495 = vrot.lane.b32.xlu0 %v3168, 127
    %v3496 = vpop.permute.xlu0 %3495
    %v3497 = vsel %vm655, %v3494, %v3496
    %v3498 = vsel %vm655, %v3492, %v3494
    %v3499 = vsel %vm655, %v3490, %v3492
    %v3500 = vsel %vm655, %v3496, %v3490
    %v3501 = vsel %vm677, %v3499, 0.0
    %v3502 = vsel %vm678, %v3498, 0.0
    %v3503 = vsel %vm679, %v3497, 0.0
    %v3504 = vsel %vm680, %v3500, 0.0
    %v3509 = vrot.slane %v3501, 4
    %v3510 = vrot.slane %v3502, 4
    %v3511 = vrot.slane %v3503, 4
    %v3512 = vrot.slane %v3504, 4
    %3517 = vst [vmem:[#allocation2 + $0xc0] sm:$0xf0] %v3509
    %3518 = vst [vmem:[#allocation2 + $0xc8] sm:$0xf0] %v3510
    %3519 = vst [vmem:[#allocation2 + $0xd0] sm:$0xf0] %v3511
    %3520 = vst [vmem:[#allocation2 + $0xd8] sm:$0xf0] %v3512
    %3521 = vrot.lane.b32.xlu0 %v3165, 126
    %v3522 = vpop.permute.xlu0 %3521
    %3523 = vrot.lane.b32.xlu0 %v3166, 126
    %v3524 = vpop.permute.xlu0 %3523
    %3525 = vrot.lane.b32.xlu0 %v3167, 126
    %v3526 = vpop.permute.xlu0 %3525
    %3527 = vrot.lane.b32.xlu0 %v3168, 126
    %v3528 = vpop.permute.xlu0 %3527
    %v3529 = vsel %vm709, %v3526, %v3528
    %v3530 = vsel %vm709, %v3524, %v3526
    %v3531 = vsel %vm709, %v3522, %v3524
    %v3532 = vsel %vm709, %v3528, %v3522
    %v3533 = vsel %vm731, %v3531, 0.0
    %v3534 = vsel %vm732, %v3530, 0.0
    %v3535 = vsel %vm733, %v3529, 0.0
    %v3536 = vsel %vm734, %v3532, 0.0
    %3537 = vst [vmem:[#allocation2 + $0xe0] sm:$0xf] %v3533
    %3538 = vst [vmem:[#allocation2 + $0xe8] sm:$0xf] %v3534
    %3539 = vst [vmem:[#allocation2 + $0xf0] sm:$0xf] %v3535
    %3540 = vst [vmem:[#allocation2 + $0xf8] sm:$0xf] %v3536
    %3541 = vrot.lane.b32.xlu0 %v3165, 114
    %v3542 = vpop.permute.xlu0 %3541
    %3543 = vrot.lane.b32.xlu0 %v3166, 114
    %v3544 = vpop.permute.xlu0 %3543
    %3545 = vrot.lane.b32.xlu0 %v3167, 114
    %v3546 = vpop.permute.xlu0 %3545
    %3547 = vrot.lane.b32.xlu0 %v3168, 114
    %v3548 = vpop.permute.xlu0 %3547
    %v3549 = vsel %vm751, %v3546, %v3548
    %v3550 = vsel %vm751, %v3544, %v3546
    %v3551 = vsel %vm751, %v3542, %v3544
    %v3552 = vsel %vm751, %v3548, %v3542
    %v3553 = vsel %vm775, %v3551, 0.0
    %v3554 = vsel %vm776, %v3550, 0.0
    %v3555 = vsel %vm777, %v3549, 0.0
    %v3556 = vsel %vm778, %v3552, 0.0
    %v3561 = vrot.slane %v3553, 4
    %v3562 = vrot.slane %v3554, 4
    %v3563 = vrot.slane %v3555, 4
    %v3564 = vrot.slane %v3556, 4
    %3569 = vst [vmem:[#allocation2 + $0xe0] sm:$0xf0] %v3561
    %3570 = vst [vmem:[#allocation2 + $0xe8] sm:$0xf0] %v3562
    %3571 = vst [vmem:[#allocation2 + $0xf0] sm:$0xf0] %v3563
    %3572 = vst [vmem:[#allocation2 + $0xf8] sm:$0xf0] %v3564
    %3573 = vrot.lane.b32.xlu0 %v3165, 113
    %v3574 = vpop.permute.xlu0 %3573
    %3575 = vrot.lane.b32.xlu0 %v3166, 113
    %v3576 = vpop.permute.xlu0 %3575
    %3577 = vrot.lane.b32.xlu0 %v3167, 113
    %v3578 = vpop.permute.xlu0 %3577
    %3579 = vrot.lane.b32.xlu0 %v3168, 113
    %v3580 = vpop.permute.xlu0 %3579
    %v3581 = vsel %vm807, %v3578, %v3580
    %v3582 = vsel %vm807, %v3576, %v3578
    %v3583 = vsel %vm807, %v3574, %v3576
    %v3584 = vsel %vm807, %v3580, %v3574
    %v3585 = vsel %vm830, %v3583, 0.0
    %v3586 = vsel %vm831, %v3582, 0.0
    %v3587 = vsel %vm832, %v3581, 0.0
    %v3588 = vsel %vm833, %v3584, 0.0
    %3589 = vst [vmem:[#allocation2 + $0x100] sm:$0xf] %v3585
    %3590 = vst [vmem:[#allocation2 + $0x108] sm:$0xf] %v3586
    %3591 = vst [vmem:[#allocation2 + $0x110] sm:$0xf] %v3587
    %3592 = vst [vmem:[#allocation2 + $0x118] sm:$0xf] %v3588
    %3593 = vrot.lane.b32.xlu0 %v3165, 112
    %v3594 = vpop.permute.xlu0 %3593
    %3595 = vrot.lane.b32.xlu0 %v3166, 112
    %v3596 = vpop.permute.xlu0 %3595
    %3597 = vrot.lane.b32.xlu0 %v3167, 112
    %v3598 = vpop.permute.xlu0 %3597
    %3599 = vrot.lane.b32.xlu0 %v3168, 112
    %v3600 = vpop.permute.xlu0 %3599
    %v3601 = vsel %vm850, %v3598, %v3600
    %v3602 = vsel %vm850, %v3596, %v3598
    %v3603 = vsel %vm850, %v3594, %v3596
    %v3604 = vsel %vm850, %v3600, %v3594
    %v3605 = vsel %vm872, %v3603, 0.0
    %v3606 = vsel %vm873, %v3602, 0.0
    %v3607 = vsel %vm874, %v3601, 0.0
    %v3608 = vsel %vm875, %v3604, 0.0
    %v3613 = vrot.slane %v3605, 4
    %v3614 = vrot.slane %v3606, 4
    %v3615 = vrot.slane %v3607, 4
    %v3616 = vrot.slane %v3608, 4
    %3621 = vst [vmem:[#allocation2 + $0x100] sm:$0xf0] %v3613
    %3622 = vst [vmem:[#allocation2 + $0x108] sm:$0xf0] %v3614
    %3623 = vst [vmem:[#allocation2 + $0x110] sm:$0xf0] %v3615
    %3624 = vst [vmem:[#allocation2 + $0x118] sm:$0xf0] %v3616
    %3625 = vrot.lane.b32.xlu0 %v3165, 111
    %v3626 = vpop.permute.xlu0 %3625
    %3627 = vrot.lane.b32.xlu0 %v3166, 111
    %v3628 = vpop.permute.xlu0 %3627
    %3629 = vrot.lane.b32.xlu0 %v3167, 111
    %v3630 = vpop.permute.xlu0 %3629
    %3631 = vrot.lane.b32.xlu0 %v3168, 111
    %v3632 = vpop.permute.xlu0 %3631
    %v3633 = vsel %vm904, %v3630, %v3632
    %v3634 = vsel %vm904, %v3628, %v3630
    %v3635 = vsel %vm904, %v3626, %v3628
    %v3636 = vsel %vm904, %v3632, %v3626
    %v3637 = vsel %vm927, %v3635, 0.0
    %v3638 = vsel %vm928, %v3634, 0.0
    %v3639 = vsel %vm929, %v3633, 0.0
    %v3640 = vsel %vm930, %v3636, 0.0
    %3641 = vst [vmem:[#allocation2 + $0x120] sm:$0xf] %v3637
    %3642 = vst [vmem:[#allocation2 + $0x128] sm:$0xf] %v3638
    %3643 = vst [vmem:[#allocation2 + $0x130] sm:$0xf] %v3639
    %3644 = vst [vmem:[#allocation2 + $0x138] sm:$0xf] %v3640
    %3645 = vrot.lane.b32.xlu0 %v3165, 110
    %v3646 = vpop.permute.xlu0 %3645
    %3647 = vrot.lane.b32.xlu0 %v3166, 110
    %v3648 = vpop.permute.xlu0 %3647
    %3649 = vrot.lane.b32.xlu0 %v3167, 110
    %v3650 = vpop.permute.xlu0 %3649
    %3651 = vrot.lane.b32.xlu0 %v3168, 110
    %v3652 = vpop.permute.xlu0 %3651
    %v3653 = vsel %vm947, %v3650, %v3652
    %v3654 = vsel %vm947, %v3648, %v3650
    %v3655 = vsel %vm947, %v3646, %v3648
    %v3656 = vsel %vm947, %v3652, %v3646
    %v3657 = vsel %vm970, %v3655, 0.0
    %v3658 = vsel %vm971, %v3654, 0.0
    %v3659 = vsel %vm972, %v3653, 0.0
    %v3660 = vsel %vm973, %v3656, 0.0
    %v3665 = vrot.slane %v3657, 4
    %v3666 = vrot.slane %v3658, 4
    %v3667 = vrot.slane %v3659, 4
    %v3668 = vrot.slane %v3660, 4
    %3673 = vst [vmem:[#allocation2 + $0x120] sm:$0xf0] %v3665
    %3674 = vst [vmem:[#allocation2 + $0x128] sm:$0xf0] %v3666
    %3675 = vst [vmem:[#allocation2 + $0x130] sm:$0xf0] %v3667
    %3676 = vst [vmem:[#allocation2 + $0x138] sm:$0xf0] %v3668
    %3677 = vrot.lane.b32.xlu0 %v3165, 98
    %v3678 = vpop.permute.xlu0 %3677
    %3679 = vrot.lane.b32.xlu0 %v3166, 98
    %v3680 = vpop.permute.xlu0 %3679
    %3681 = vrot.lane.b32.xlu0 %v3167, 98
    %v3682 = vpop.permute.xlu0 %3681
    %3683 = vrot.lane.b32.xlu0 %v3168, 98
    %v3684 = vpop.permute.xlu0 %3683
    %v3685 = vsel %vm1002, %v3682, %v3684
    %v3686 = vsel %vm1002, %v3680, %v3682
    %v3687 = vsel %vm1002, %v3678, %v3680
    %v3688 = vsel %vm1002, %v3684, %v3678
    %v3689 = vsel %vm1026, %v3687, 0.0
    %v3690 = vsel %vm1027, %v3686, 0.0
    %v3691 = vsel %vm1028, %v3685, 0.0
    %v3692 = vsel %vm1029, %v3688, 0.0
    %3693 = vst [vmem:[#allocation2 + $0x140] sm:$0xf] %v3689
    %3694 = vst [vmem:[#allocation2 + $0x148] sm:$0xf] %v3690
    %3695 = vst [vmem:[#allocation2 + $0x150] sm:$0xf] %v3691
    %3696 = vst [vmem:[#allocation2 + $0x158] sm:$0xf] %v3692
    %3697 = vrot.lane.b32.xlu0 %v3165, 97
    %v3698 = vpop.permute.xlu0 %3697
    %3699 = vrot.lane.b32.xlu0 %v3166, 97
    %v3700 = vpop.permute.xlu0 %3699
    %3701 = vrot.lane.b32.xlu0 %v3167, 97
    %v3702 = vpop.permute.xlu0 %3701
    %3703 = vrot.lane.b32.xlu0 %v3168, 97
    %v3704 = vpop.permute.xlu0 %3703
    %v3705 = vsel %vm1046, %v3702, %v3704
    %v3706 = vsel %vm1046, %v3700, %v3702
    %v3707 = vsel %vm1046, %v3698, %v3700
    %v3708 = vsel %vm1046, %v3704, %v3698
    %v3709 = vsel %vm1069, %v3707, 0.0
    %v3710 = vsel %vm1070, %v3706, 0.0
    %v3711 = vsel %vm1071, %v3705, 0.0
    %v3712 = vsel %vm1072, %v3708, 0.0
    %v3717 = vrot.slane %v3709, 4
    %v3718 = vrot.slane %v3710, 4
    %v3719 = vrot.slane %v3711, 4
    %v3720 = vrot.slane %v3712, 4
    %3725 = vst [vmem:[#allocation2 + $0x140] sm:$0xf0] %v3717
    %3726 = vst [vmem:[#allocation2 + $0x148] sm:$0xf0] %v3718
    %3727 = vst [vmem:[#allocation2 + $0x150] sm:$0xf0] %v3719
    %3728 = vst [vmem:[#allocation2 + $0x158] sm:$0xf0] %v3720
    %3729 = vrot.lane.b32.xlu0 %v3165, 96
    %v3730 = vpop.permute.xlu0 %3729
    %3731 = vrot.lane.b32.xlu0 %v3166, 96
    %v3732 = vpop.permute.xlu0 %3731
    %3733 = vrot.lane.b32.xlu0 %v3167, 96
    %v3734 = vpop.permute.xlu0 %3733
    %3735 = vrot.lane.b32.xlu0 %v3168, 96
    %v3736 = vpop.permute.xlu0 %3735
    %v3737 = vsel %vm1101, %v3734, %v3736
    %v3738 = vsel %vm1101, %v3732, %v3734
    %v3739 = vsel %vm1101, %v3730, %v3732
    %v3740 = vsel %vm1101, %v3736, %v3730
    %v3741 = vsel %vm1123, %v3739, 0.0
    %v3742 = vsel %vm1124, %v3738, 0.0
    %v3743 = vsel %vm1125, %v3737, 0.0
    %v3744 = vsel %vm1126, %v3740, 0.0
    %3745 = vst [vmem:[#allocation2 + $0x160] sm:$0xf] %v3741
    %3746 = vst [vmem:[#allocation2 + $0x168] sm:$0xf] %v3742
    %3747 = vst [vmem:[#allocation2 + $0x170] sm:$0xf] %v3743
    %3748 = vst [vmem:[#allocation2 + $0x178] sm:$0xf] %v3744
    %3749 = vrot.lane.b32.xlu0 %v3165, 95
    %v3750 = vpop.permute.xlu0 %3749
    %3751 = vrot.lane.b32.xlu0 %v3166, 95
    %v3752 = vpop.permute.xlu0 %3751
    %3753 = vrot.lane.b32.xlu0 %v3167, 95
    %v3754 = vpop.permute.xlu0 %3753
    %3755 = vrot.lane.b32.xlu0 %v3168, 95
    %v3756 = vpop.permute.xlu0 %3755
    %v3757 = vsel %vm1143, %v3754, %v3756
    %v3758 = vsel %vm1143, %v3752, %v3754
    %v3759 = vsel %vm1143, %v3750, %v3752
    %v3760 = vsel %vm1143, %v3756, %v3750
    %v3761 = vsel %vm1166, %v3759, 0.0
    %v3762 = vsel %vm1167, %v3758, 0.0
    %v3763 = vsel %vm1168, %v3757, 0.0
    %v3764 = vsel %vm1169, %v3760, 0.0
    %v3769 = vrot.slane %v3761, 4
    %v3770 = vrot.slane %v3762, 4
    %v3771 = vrot.slane %v3763, 4
    %v3772 = vrot.slane %v3764, 4
    %3777 = vst [vmem:[#allocation2 + $0x160] sm:$0xf0] %v3769
    %3778 = vst [vmem:[#allocation2 + $0x168] sm:$0xf0] %v3770
    %3779 = vst [vmem:[#allocation2 + $0x170] sm:$0xf0] %v3771
    %3780 = vst [vmem:[#allocation2 + $0x178] sm:$0xf0] %v3772
    %3781 = vrot.lane.b32.xlu0 %v3165, 94
    %v3782 = vpop.permute.xlu0 %3781
    %3783 = vrot.lane.b32.xlu0 %v3166, 94
    %v3784 = vpop.permute.xlu0 %3783
    %3785 = vrot.lane.b32.xlu0 %v3167, 94
    %v3786 = vpop.permute.xlu0 %3785
    %3787 = vrot.lane.b32.xlu0 %v3168, 94
    %v3788 = vpop.permute.xlu0 %3787
    %v3789 = vsel %vm1198, %v3786, %v3788
    %v3790 = vsel %vm1198, %v3784, %v3786
    %v3791 = vsel %vm1198, %v3782, %v3784
    %v3792 = vsel %vm1198, %v3788, %v3782
    %v3793 = vsel %vm1221, %v3791, 0.0
    %v3794 = vsel %vm1222, %v3790, 0.0
    %v3795 = vsel %vm1223, %v3789, 0.0
    %v3796 = vsel %vm1224, %v3792, 0.0
    %3797 = vst [vmem:[#allocation2 + $0x180] sm:$0xf] %v3793
    %3798 = vst [vmem:[#allocation2 + $0x188] sm:$0xf] %v3794
    %3799 = vst [vmem:[#allocation2 + $0x190] sm:$0xf] %v3795
    %3800 = vst [vmem:[#allocation2 + $0x198] sm:$0xf] %v3796
    %v3801 = vld [vmem:[#allocation2] sm:$0xff]
    %v3802 = vld [vmem:[#allocation2 + $0x8] sm:$0xff]
    %v3803 = vld [vmem:[#allocation2 + $0x10] sm:$0xff]
    %v3804 = vld [vmem:[#allocation2 + $0x18] sm:$0xff]
    %v3805 = vld [vmem:[#allocation2 + $0x20] sm:$0xff]
    %v3806 = vld [vmem:[#allocation2 + $0x28] sm:$0xff]
    %v3807 = vld [vmem:[#allocation2 + $0x30] sm:$0xff]
    %v3808 = vld [vmem:[#allocation2 + $0x38] sm:$0xff]
    %v3809 = vld [vmem:[#allocation2 + $0x40] sm:$0xff]
    %v3810 = vld [vmem:[#allocation2 + $0x48] sm:$0xff]
    %v3811 = vld [vmem:[#allocation2 + $0x50] sm:$0xff]
    %v3812 = vld [vmem:[#allocation2 + $0x58] sm:$0xff]
    %v3813 = vld [vmem:[#allocation2 + $0x60] sm:$0xff]
    %v3814 = vld [vmem:[#allocation2 + $0x68] sm:$0xff]
    %v3815 = vld [vmem:[#allocation2 + $0x70] sm:$0xff]
    %v3816 = vld [vmem:[#allocation2 + $0x78] sm:$0xff]
    %v3817 = vld [vmem:[#allocation2 + $0x80] sm:$0xff]
    %v3818 = vld [vmem:[#allocation2 + $0x88] sm:$0xff]
    %v3819 = vld [vmem:[#allocation2 + $0x90] sm:$0xff]
    %v3820 = vld [vmem:[#allocation2 + $0x98] sm:$0xff]
    %v3821 = vld [vmem:[#allocation2 + $0xa0] sm:$0xff]
    %v3822 = vld [vmem:[#allocation2 + $0xa8] sm:$0xff]
    %v3823 = vld [vmem:[#allocation2 + $0xb0] sm:$0xff]
    %v3824 = vld [vmem:[#allocation2 + $0xb8] sm:$0xff]
    %v3825 = vld [vmem:[#allocation2 + $0xc0] sm:$0xff]
    %v3826 = vld [vmem:[#allocation2 + $0xc8] sm:$0xff]
    %v3827 = vld [vmem:[#allocation2 + $0xd0] sm:$0xff]
    %v3828 = vld [vmem:[#allocation2 + $0xd8] sm:$0xff]
    %v3829 = vld [vmem:[#allocation2 + $0xe0] sm:$0xff]
    %v3830 = vld [vmem:[#allocation2 + $0xe8] sm:$0xff]
    %v3831 = vld [vmem:[#allocation2 + $0xf0] sm:$0xff]
    %v3832 = vld [vmem:[#allocation2 + $0xf8] sm:$0xff]
    %v3833 = vld [vmem:[#allocation2 + $0x100] sm:$0xff]
    %v3834 = vld [vmem:[#allocation2 + $0x108] sm:$0xff]
    %v3835 = vld [vmem:[#allocation2 + $0x110] sm:$0xff]
    %v3836 = vld [vmem:[#allocation2 + $0x118] sm:$0xff]
    %v3837 = vld [vmem:[#allocation2 + $0x120] sm:$0xff]
    %v3838 = vld [vmem:[#allocation2 + $0x128] sm:$0xff]
    %v3839 = vld [vmem:[#allocation2 + $0x130] sm:$0xff]
    %v3840 = vld [vmem:[#allocation2 + $0x138] sm:$0xff]
    %v3841 = vld [vmem:[#allocation2 + $0x140] sm:$0xff]
    %v3842 = vld [vmem:[#allocation2 + $0x148] sm:$0xff]
    %v3843 = vld [vmem:[#allocation2 + $0x150] sm:$0xff]
    %v3844 = vld [vmem:[#allocation2 + $0x158] sm:$0xff]
    %v3845 = vld [vmem:[#allocation2 + $0x160] sm:$0xff]
    %v3846 = vld [vmem:[#allocation2 + $0x168] sm:$0xff]
    %v3847 = vld [vmem:[#allocation2 + $0x170] sm:$0xff]
    %v3848 = vld [vmem:[#allocation2 + $0x178] sm:$0xff]
    %v3849 = vld [vmem:[#allocation2 + $0x180] sm:$0xf]
    %v3850 = vld [vmem:[#allocation2 + $0x188] sm:$0xf]
    %v3851 = vld [vmem:[#allocation2 + $0x190] sm:$0xf]
    %v3852 = vld [vmem:[#allocation2 + $0x198] sm:$0xf]
    %3854 = vset.pattern.permute.xlu0 0
    %3855 = vperm.xlu0 %3854, %v3172
    %v3856 = vpop.permute.xlu0 %3855
    %v3859 = vsel %vm1290, %v3170, 0
    %v3862 = vsel %vm1294, %v3849, 0
    %v3865 = vsel %vm1294, %v3850, 0
    %v3868 = vsel %vm1294, %v3851, 0
    %v3871 = vsel %vm1294, %v3852, 0
    %3873 = vmatprep.subr.mxu0 0.0
    %3874 = vmatpush1.msra.mxu0 0.0
    %3875 = vmatprep.subr.mxu0 0.0
    %3876 = vmatpush1.msra.mxu0 0.0
    %3877 = vmatprep.subr.mxu0 0.0
    %3878 = vmatpush1.msra.mxu0 0.0
    %3879 = vmatprep.subr.mxu0 %v3865
    %3880 = vmatpush1.msra.mxu0 %v3862
    %3881 = vmatprep.subr.mxu0 %v3846
    %3882 = vmatpush1.msra.mxu0 %v3845
    %3883 = vmatprep.subr.mxu0 %v3842
    %3884 = vmatpush1.msra.mxu0 %v3841
    %3885 = vmatprep.subr.mxu0 %v3838
    %3886 = vmatpush1.msra.mxu0 %v3837
    %3887 = vmatprep.subr.mxu0 %v3834
    %3888 = vmatpush1.msra.mxu0 %v3833
    %3889 = vmatprep.subr.mxu0 %v3830
    %3890 = vmatpush1.msra.mxu0 %v3829
    %3891 = vmatprep.subr.mxu0 %v3826
    %3892 = vmatpush1.msra.mxu0 %v3825
    %3893 = vmatprep.subr.mxu0 %v3822
    %3894 = vmatpush1.msra.mxu0 %v3821
    %3895 = vmatprep.subr.mxu0 %v3818
    %3896 = vmatpush1.msra.mxu0 %v3817
    %3897 = vmatprep.subr.mxu0 %v3814
    %3898 = vmatpush1.msra.mxu0 %v3813
    %3899 = vmatprep.subr.mxu0 %v3810
    %3900 = vmatpush1.msra.mxu0 %v3809
    %3901 = vmatprep.subr.mxu0 %v3806
    %3902 = vmatpush1.msra.mxu0 %v3805
    %3903 = vmatprep.subr.mxu0 %v3802
    %3904 = vmatpush1.msra.mxu0 %v3801
    %3905 = vmatprep.subr.mxu0 0.0
    %3906 = vmatpush2.msra.mxu0 0.0
    %3907 = vmatprep.subr.mxu0 0.0
    %3908 = vmatpush2.msra.mxu0 0.0
    %3909 = vmatprep.subr.mxu0 0.0
    %3910 = vmatpush2.msra.mxu0 0.0
    %3911 = vmatprep.subr.mxu0 0.0
    %3912 = vmatpush2.msra.mxu0 0.0
    %3913 = vmatprep.subr.mxu0 0.0
    %3914 = vmatpush2.msra.mxu0 0.0
    %3915 = vmatprep.subr.mxu0 0.0
    %3916 = vmatpush2.msra.mxu0 0.0
    %3917 = vmatprep.subr.mxu0 0.0
    %3918 = vmatpush2.msra.mxu0 0.0
    %3919 = vmatprep.subr.mxu0 0.0
    %3920 = vmatpush2.msra.mxu0 0.0
    %3921 = vmatprep.subr.mxu0 0.0
    %3922 = vmatpush2.msra.mxu0 0.0
    %3923 = vmatprep.subr.mxu0 0.0
    %3924 = vmatpush2.msra.mxu0 0.0
    %3925 = vmatprep.subr.mxu0 0.0
    %3926 = vmatpush2.msra.mxu0 0.0
    %3927 = vmatprep.subr.mxu0 0.0
    %3928 = vmatpush2.msra.mxu0 0.0
    %3929 = vmatprep.subr.mxu0 0.0
    %3930 = vmatpush2.msra.mxu0 0.0
    %3931 = vmatprep.subr.mxu0 0.0
    %3932 = vmatpush2.msra.mxu0 0.0
    %3933 = vmatprep.subr.mxu0 0.0
    %3934 = vmatpush2.msra.mxu0 0.0
    %3935 = vmatprep.subr.mxu0 0.0
    %3936 = vmatpush2.msra.mxu0 0.0
    %3937 = vmatprep.mubr.f32.mxu0 0.0
    %3938 = vmatmul.mubr.f32.gmra.mxu0 %v3859
    %v3939 = vpop.f32.mrf.mxu0
    %v3940 = vadd.f32 %v3856, %v3939
    %v3941 = vpop.f32.mrf.mxu0
    %v3942 = vadd.f32 %v3856, %v3941
    %3943 = vdwg.mxu0
    %3944 = vmatprep.subr.mxu0 0.0
    %3945 = vmatpush1.msra.mxu0 0.0
    %3946 = vmatprep.subr.mxu0 0.0
    %3947 = vmatpush1.msra.mxu0 0.0
    %3948 = vmatprep.subr.mxu0 0.0
    %3949 = vmatpush1.msra.mxu0 0.0
    %3950 = vmatprep.subr.mxu0 %v3871
    %3951 = vmatpush1.msra.mxu0 %v3868
    %3952 = vmatprep.subr.mxu0 %v3848
    %3953 = vmatpush1.msra.mxu0 %v3847
    %3954 = vmatprep.subr.mxu0 %v3844
    %3955 = vmatpush1.msra.mxu0 %v3843
    %3956 = vmatprep.subr.mxu0 %v3840
    %3957 = vmatpush1.msra.mxu0 %v3839
    %3958 = vmatprep.subr.mxu0 %v3836
    %3959 = vmatpush1.msra.mxu0 %v3835
    %3960 = vmatprep.subr.mxu0 %v3832
    %3961 = vmatpush1.msra.mxu0 %v3831
    %3962 = vmatprep.subr.mxu0 %v3828
    %3963 = vmatpush1.msra.mxu0 %v3827
    %3964 = vmatprep.subr.mxu0 %v3824
    %3965 = vmatpush1.msra.mxu0 %v3823
    %3966 = vmatprep.subr.mxu0 %v3820
    %3967 = vmatpush1.msra.mxu0 %v3819
    %3968 = vmatprep.subr.mxu0 %v3816
    %3969 = vmatpush1.msra.mxu0 %v3815
    %3970 = vmatprep.subr.mxu0 %v3812
    %3971 = vmatpush1.msra.mxu0 %v3811
    %3972 = vmatprep.subr.mxu0 %v3808
    %3973 = vmatpush1.msra.mxu0 %v3807
    %3974 = vmatprep.subr.mxu0 %v3804
    %3975 = vmatpush1.msra.mxu0 %v3803
    %3976 = vmatprep.subr.mxu0 0.0
    %3977 = vmatpush2.msra.mxu0 0.0
    %3978 = vmatprep.subr.mxu0 0.0
    %3979 = vmatpush2.msra.mxu0 0.0
    %3980 = vmatprep.subr.mxu0 0.0
    %3981 = vmatpush2.msra.mxu0 0.0
    %3982 = vmatprep.subr.mxu0 0.0
    %3983 = vmatpush2.msra.mxu0 0.0
    %3984 = vmatprep.subr.mxu0 0.0
    %3985 = vmatpush2.msra.mxu0 0.0
    %3986 = vmatprep.subr.mxu0 0.0
    %3987 = vmatpush2.msra.mxu0 0.0
    %3988 = vmatprep.subr.mxu0 0.0
    %3989 = vmatpush2.msra.mxu0 0.0
    %3990 = vmatprep.subr.mxu0 0.0
    %3991 = vmatpush2.msra.mxu0 0.0
    %3992 = vmatprep.subr.mxu0 0.0
    %3993 = vmatpush2.msra.mxu0 0.0
    %3994 = vmatprep.subr.mxu0 0.0
    %3995 = vmatpush2.msra.mxu0 0.0
    %3996 = vmatprep.subr.mxu0 0.0
    %3997 = vmatpush2.msra.mxu0 0.0
    %3998 = vmatprep.subr.mxu0 0.0
    %3999 = vmatpush2.msra.mxu0 0.0
    %4000 = vmatprep.subr.mxu0 0.0
    %4001 = vmatpush2.msra.mxu0 0.0
    %4002 = vmatprep.subr.mxu0 0.0
    %4003 = vmatpush2.msra.mxu0 0.0
    %4004 = vmatprep.subr.mxu0 0.0
    %4005 = vmatpush2.msra.mxu0 0.0
    %4006 = vmatprep.subr.mxu0 0.0
    %4007 = vmatpush2.msra.mxu0 0.0
    %4008 = vmatprep.mubr.f32.mxu0 0.0
    %4009 = vmatmul.mubr.f32.gmra.mxu0 %v3859
    %v4010 = vpop.f32.mrf.mxu0
    %v4011 = vadd.f32 %v3856, %v4010
    %v4012 = vpop.f32.mrf.mxu0
    %v4013 = vadd.f32 %v3856, %v4012
    %4014 = vdwg.mxu0
    %v4015 = vadd.f32 %v3940, %v2307
    %v4016 = vadd.f32 %v3942, %v2308
    %v4017 = vadd.f32 %v4011, %v2309
    %v4018 = vadd.f32 %v4013, %v2310
    %s4019 = scalar_lea.vmem %s3, 16
    %v4020 = vld [vmem:[%s4019] sm:$0xf]
    %s4021 = scalar_lea.vmem %s4, 16
    %v4022 = vld [vmem:[%s4021] sm:$0xf]
    %4023 = vrot.lane.b32.xlu0 %v4015, 34
    %v4024 = vpop.permute.xlu0 %4023
    %4025 = vrot.lane.b32.xlu0 %v4016, 34
    %v4026 = vpop.permute.xlu0 %4025
    %4027 = vrot.lane.b32.xlu0 %v4017, 34
    %v4028 = vpop.permute.xlu0 %4027
    %4029 = vrot.lane.b32.xlu0 %v4018, 34
    %v4030 = vpop.permute.xlu0 %4029
    %v4031 = vsel %vm61, %v4028, %v4030
    %v4032 = vsel %vm61, %v4026, %v4028
    %v4033 = vsel %vm61, %v4024, %v4026
    %v4034 = vsel %vm61, %v4030, %v4024
    %v4035 = vsel %vm86, %v4034, 0.0
    %v4036 = vsel %vm87, %v4033, 0.0
    %v4037 = vsel %vm88, %v4032, 0.0
    %v4038 = vsel %vm89, %v4031, 0.0
    %4039 = vst [vmem:[#allocation2] sm:$0xf] %v4035
    %4040 = vst [vmem:[#allocation2 + $0x8] sm:$0xf] %v4036
    %4041 = vst [vmem:[#allocation2 + $0x10] sm:$0xf] %v4037
    %4042 = vst [vmem:[#allocation2 + $0x18] sm:$0xf] %v4038
    %4043 = vrot.lane.b32.xlu0 %v4015, 33
    %v4044 = vpop.permute.xlu0 %4043
    %4045 = vrot.lane.b32.xlu0 %v4016, 33
    %v4046 = vpop.permute.xlu0 %4045
    %4047 = vrot.lane.b32.xlu0 %v4017, 33
    %v4048 = vpop.permute.xlu0 %4047
    %4049 = vrot.lane.b32.xlu0 %v4018, 33
    %v4050 = vpop.permute.xlu0 %4049
    %v4051 = vsel %vm106, %v4048, %v4050
    %v4052 = vsel %vm106, %v4046, %v4048
    %v4053 = vsel %vm106, %v4044, %v4046
    %v4054 = vsel %vm106, %v4050, %v4044
    %v4055 = vsel %vm130, %v4054, 0.0
    %v4056 = vsel %vm131, %v4053, 0.0
    %v4057 = vsel %vm132, %v4052, 0.0
    %v4058 = vsel %vm133, %v4051, 0.0
    %v4063 = vrot.slane %v4055, 4
    %v4064 = vrot.slane %v4056, 4
    %v4065 = vrot.slane %v4057, 4
    %v4066 = vrot.slane %v4058, 4
    %4071 = vst [vmem:[#allocation2] sm:$0xf0] %v4063
    %4072 = vst [vmem:[#allocation2 + $0x8] sm:$0xf0] %v4064
    %4073 = vst [vmem:[#allocation2 + $0x10] sm:$0xf0] %v4065
    %4074 = vst [vmem:[#allocation2 + $0x18] sm:$0xf0] %v4066
    %4075 = vrot.lane.b32.xlu0 %v4015, 32
    %v4076 = vpop.permute.xlu0 %4075
    %4077 = vrot.lane.b32.xlu0 %v4016, 32
    %v4078 = vpop.permute.xlu0 %4077
    %4079 = vrot.lane.b32.xlu0 %v4017, 32
    %v4080 = vpop.permute.xlu0 %4079
    %4081 = vrot.lane.b32.xlu0 %v4018, 32
    %v4082 = vpop.permute.xlu0 %4081
    %v4083 = vsel %vm162, %v4080, %v4082
    %v4084 = vsel %vm162, %v4078, %v4080
    %v4085 = vsel %vm162, %v4076, %v4078
    %v4086 = vsel %vm162, %v4082, %v4076
    %v4087 = vsel %vm184, %v4086, 0.0
    %v4088 = vsel %vm185, %v4085, 0.0
    %v4089 = vsel %vm186, %v4084, 0.0
    %v4090 = vsel %vm187, %v4083, 0.0
    %4091 = vst [vmem:[#allocation2 + $0x20] sm:$0xf] %v4087
    %4092 = vst [vmem:[#allocation2 + $0x28] sm:$0xf] %v4088
    %4093 = vst [vmem:[#allocation2 + $0x30] sm:$0xf] %v4089
    %4094 = vst [vmem:[#allocation2 + $0x38] sm:$0xf] %v4090
    %4095 = vrot.lane.b32.xlu0 %v4015, 31
    %v4096 = vpop.permute.xlu0 %4095
    %4097 = vrot.lane.b32.xlu0 %v4016, 31
    %v4098 = vpop.permute.xlu0 %4097
    %4099 = vrot.lane.b32.xlu0 %v4017, 31
    %v4100 = vpop.permute.xlu0 %4099
    %4101 = vrot.lane.b32.xlu0 %v4018, 31
    %v4102 = vpop.permute.xlu0 %4101
    %v4103 = vsel %vm204, %v4100, %v4102
    %v4104 = vsel %vm204, %v4098, %v4100
    %v4105 = vsel %vm204, %v4096, %v4098
    %v4106 = vsel %vm204, %v4102, %v4096
    %v4107 = vsel %vm228, %v4106, 0.0
    %v4108 = vsel %vm229, %v4105, 0.0
    %v4109 = vsel %vm230, %v4104, 0.0
    %v4110 = vsel %vm231, %v4103, 0.0
    %v4115 = vrot.slane %v4107, 4
    %v4116 = vrot.slane %v4108, 4
    %v4117 = vrot.slane %v4109, 4
    %v4118 = vrot.slane %v4110, 4
    %4123 = vst [vmem:[#allocation2 + $0x20] sm:$0xf0] %v4115
    %4124 = vst [vmem:[#allocation2 + $0x28] sm:$0xf0] %v4116
    %4125 = vst [vmem:[#allocation2 + $0x30] sm:$0xf0] %v4117
    %4126 = vst [vmem:[#allocation2 + $0x38] sm:$0xf0] %v4118
    %4127 = vrot.lane.b32.xlu0 %v4015, 30
    %v4128 = vpop.permute.xlu0 %4127
    %4129 = vrot.lane.b32.xlu0 %v4016, 30
    %v4130 = vpop.permute.xlu0 %4129
    %4131 = vrot.lane.b32.xlu0 %v4017, 30
    %v4132 = vpop.permute.xlu0 %4131
    %4133 = vrot.lane.b32.xlu0 %v4018, 30
    %v4134 = vpop.permute.xlu0 %4133
    %v4135 = vsel %vm260, %v4132, %v4134
    %v4136 = vsel %vm260, %v4130, %v4132
    %v4137 = vsel %vm260, %v4128, %v4130
    %v4138 = vsel %vm260, %v4134, %v4128
    %v4139 = vsel %vm284, %v4138, 0.0
    %v4140 = vsel %vm285, %v4137, 0.0
    %v4141 = vsel %vm286, %v4136, 0.0
    %v4142 = vsel %vm287, %v4135, 0.0
    %4143 = vst [vmem:[#allocation2 + $0x40] sm:$0xf] %v4139
    %4144 = vst [vmem:[#allocation2 + $0x48] sm:$0xf] %v4140
    %4145 = vst [vmem:[#allocation2 + $0x50] sm:$0xf] %v4141
    %4146 = vst [vmem:[#allocation2 + $0x58] sm:$0xf] %v4142
    %4147 = vrot.lane.b32.xlu0 %v4015, 18
    %v4148 = vpop.permute.xlu0 %4147
    %4149 = vrot.lane.b32.xlu0 %v4016, 18
    %v4150 = vpop.permute.xlu0 %4149
    %4151 = vrot.lane.b32.xlu0 %v4017, 18
    %v4152 = vpop.permute.xlu0 %4151
    %4153 = vrot.lane.b32.xlu0 %v4018, 18
    %v4154 = vpop.permute.xlu0 %4153
    %v4155 = vsel %vm304, %v4152, %v4154
    %v4156 = vsel %vm304, %v4150, %v4152
    %v4157 = vsel %vm304, %v4148, %v4150
    %v4158 = vsel %vm304, %v4154, %v4148
    %v4159 = vsel %vm328, %v4158, 0.0
    %v4160 = vsel %vm329, %v4157, 0.0
    %v4161 = vsel %vm330, %v4156, 0.0
    %v4162 = vsel %vm331, %v4155, 0.0
    %v4167 = vrot.slane %v4159, 4
    %v4168 = vrot.slane %v4160, 4
    %v4169 = vrot.slane %v4161, 4
    %v4170 = vrot.slane %v4162, 4
    %4175 = vst [vmem:[#allocation2 + $0x40] sm:$0xf0] %v4167
    %4176 = vst [vmem:[#allocation2 + $0x48] sm:$0xf0] %v4168
    %4177 = vst [vmem:[#allocation2 + $0x50] sm:$0xf0] %v4169
    %4178 = vst [vmem:[#allocation2 + $0x58] sm:$0xf0] %v4170
    %4179 = vrot.lane.b32.xlu0 %v4015, 17
    %v4180 = vpop.permute.xlu0 %4179
    %4181 = vrot.lane.b32.xlu0 %v4016, 17
    %v4182 = vpop.permute.xlu0 %4181
    %4183 = vrot.lane.b32.xlu0 %v4017, 17
    %v4184 = vpop.permute.xlu0 %4183
    %4185 = vrot.lane.b32.xlu0 %v4018, 17
    %v4186 = vpop.permute.xlu0 %4185
    %v4187 = vsel %vm360, %v4184, %v4186
    %v4188 = vsel %vm360, %v4182, %v4184
    %v4189 = vsel %vm360, %v4180, %v4182
    %v4190 = vsel %vm360, %v4186, %v4180
    %v4191 = vsel %vm383, %v4190, 0.0
    %v4192 = vsel %vm384, %v4189, 0.0
    %v4193 = vsel %vm385, %v4188, 0.0
    %v4194 = vsel %vm386, %v4187, 0.0
    %4195 = vst [vmem:[#allocation2 + $0x60] sm:$0xf] %v4191
    %4196 = vst [vmem:[#allocation2 + $0x68] sm:$0xf] %v4192
    %4197 = vst [vmem:[#allocation2 + $0x70] sm:$0xf] %v4193
    %4198 = vst [vmem:[#allocation2 + $0x78] sm:$0xf] %v4194
    %4199 = vrot.lane.b32.xlu0 %v4015, 16
    %v4200 = vpop.permute.xlu0 %4199
    %4201 = vrot.lane.b32.xlu0 %v4016, 16
    %v4202 = vpop.permute.xlu0 %4201
    %4203 = vrot.lane.b32.xlu0 %v4017, 16
    %v4204 = vpop.permute.xlu0 %4203
    %4205 = vrot.lane.b32.xlu0 %v4018, 16
    %v4206 = vpop.permute.xlu0 %4205
    %v4207 = vsel %vm403, %v4204, %v4206
    %v4208 = vsel %vm403, %v4202, %v4204
    %v4209 = vsel %vm403, %v4200, %v4202
    %v4210 = vsel %vm403, %v4206, %v4200
    %v4211 = vsel %vm425, %v4210, 0.0
    %v4212 = vsel %vm426, %v4209, 0.0
    %v4213 = vsel %vm427, %v4208, 0.0
    %v4214 = vsel %vm428, %v4207, 0.0
    %v4219 = vrot.slane %v4211, 4
    %v4220 = vrot.slane %v4212, 4
    %v4221 = vrot.slane %v4213, 4
    %v4222 = vrot.slane %v4214, 4
    %4227 = vst [vmem:[#allocation2 + $0x60] sm:$0xf0] %v4219
    %4228 = vst [vmem:[#allocation2 + $0x68] sm:$0xf0] %v4220
    %4229 = vst [vmem:[#allocation2 + $0x70] sm:$0xf0] %v4221
    %4230 = vst [vmem:[#allocation2 + $0x78] sm:$0xf0] %v4222
    %4231 = vrot.lane.b32.xlu0 %v4015, 15
    %v4232 = vpop.permute.xlu0 %4231
    %4233 = vrot.lane.b32.xlu0 %v4016, 15
    %v4234 = vpop.permute.xlu0 %4233
    %4235 = vrot.lane.b32.xlu0 %v4017, 15
    %v4236 = vpop.permute.xlu0 %4235
    %4237 = vrot.lane.b32.xlu0 %v4018, 15
    %v4238 = vpop.permute.xlu0 %4237
    %v4239 = vsel %vm457, %v4236, %v4238
    %v4240 = vsel %vm457, %v4234, %v4236
    %v4241 = vsel %vm457, %v4232, %v4234
    %v4242 = vsel %vm457, %v4238, %v4232
    %v4243 = vsel %vm480, %v4242, 0.0
    %v4244 = vsel %vm481, %v4241, 0.0
    %v4245 = vsel %vm482, %v4240, 0.0
    %v4246 = vsel %vm483, %v4239, 0.0
    %4247 = vst [vmem:[#allocation2 + $0x80] sm:$0xf] %v4243
    %4248 = vst [vmem:[#allocation2 + $0x88] sm:$0xf] %v4244
    %4249 = vst [vmem:[#allocation2 + $0x90] sm:$0xf] %v4245
    %4250 = vst [vmem:[#allocation2 + $0x98] sm:$0xf] %v4246
    %4251 = vrot.lane.b32.xlu0 %v4015, 14
    %v4252 = vpop.permute.xlu0 %4251
    %4253 = vrot.lane.b32.xlu0 %v4016, 14
    %v4254 = vpop.permute.xlu0 %4253
    %4255 = vrot.lane.b32.xlu0 %v4017, 14
    %v4256 = vpop.permute.xlu0 %4255
    %4257 = vrot.lane.b32.xlu0 %v4018, 14
    %v4258 = vpop.permute.xlu0 %4257
    %v4259 = vsel %vm500, %v4256, %v4258
    %v4260 = vsel %vm500, %v4254, %v4256
    %v4261 = vsel %vm500, %v4252, %v4254
    %v4262 = vsel %vm500, %v4258, %v4252
    %v4263 = vsel %vm523, %v4262, 0.0
    %v4264 = vsel %vm524, %v4261, 0.0
    %v4265 = vsel %vm525, %v4260, 0.0
    %v4266 = vsel %vm526, %v4259, 0.0
    %v4271 = vrot.slane %v4263, 4
    %v4272 = vrot.slane %v4264, 4
    %v4273 = vrot.slane %v4265, 4
    %v4274 = vrot.slane %v4266, 4
    %4279 = vst [vmem:[#allocation2 + $0x80] sm:$0xf0] %v4271
    %4280 = vst [vmem:[#allocation2 + $0x88] sm:$0xf0] %v4272
    %4281 = vst [vmem:[#allocation2 + $0x90] sm:$0xf0] %v4273
    %4282 = vst [vmem:[#allocation2 + $0x98] sm:$0xf0] %v4274
    %4283 = vrot.lane.b32.xlu0 %v4015, 2
    %v4284 = vpop.permute.xlu0 %4283
    %4285 = vrot.lane.b32.xlu0 %v4016, 2
    %v4286 = vpop.permute.xlu0 %4285
    %4287 = vrot.lane.b32.xlu0 %v4017, 2
    %v4288 = vpop.permute.xlu0 %4287
    %4289 = vrot.lane.b32.xlu0 %v4018, 2
    %v4290 = vpop.permute.xlu0 %4289
    %v4291 = vsel %vm555, %v4288, %v4290
    %v4292 = vsel %vm555, %v4286, %v4288
    %v4293 = vsel %vm555, %v4284, %v4286
    %v4294 = vsel %vm555, %v4290, %v4284
    %v4295 = vsel %vm577, %v4294, 0.0
    %v4296 = vsel %vm578, %v4293, 0.0
    %v4297 = vsel %vm579, %v4292, 0.0
    %v4298 = vsel %vm580, %v4291, 0.0
    %4299 = vst [vmem:[#allocation2 + $0xa0] sm:$0xf] %v4295
    %4300 = vst [vmem:[#allocation2 + $0xa8] sm:$0xf] %v4296
    %4301 = vst [vmem:[#allocation2 + $0xb0] sm:$0xf] %v4297
    %4302 = vst [vmem:[#allocation2 + $0xb8] sm:$0xf] %v4298
    %4303 = vrot.lane.b32.xlu0 %v4015, 1
    %v4304 = vpop.permute.xlu0 %4303
    %4305 = vrot.lane.b32.xlu0 %v4016, 1
    %v4306 = vpop.permute.xlu0 %4305
    %4307 = vrot.lane.b32.xlu0 %v4017, 1
    %v4308 = vpop.permute.xlu0 %4307
    %4309 = vrot.lane.b32.xlu0 %v4018, 1
    %v4310 = vpop.permute.xlu0 %4309
    %v4311 = vsel %vm597, %v4308, %v4310
    %v4312 = vsel %vm597, %v4306, %v4308
    %v4313 = vsel %vm597, %v4304, %v4306
    %v4314 = vsel %vm597, %v4310, %v4304
    %v4315 = vsel %vm619, %v4314, 0.0
    %v4316 = vsel %vm620, %v4313, 0.0
    %v4317 = vsel %vm621, %v4312, 0.0
    %v4318 = vsel %vm622, %v4311, 0.0
    %v4323 = vrot.slane %v4315, 4
    %v4324 = vrot.slane %v4316, 4
    %v4325 = vrot.slane %v4317, 4
    %v4326 = vrot.slane %v4318, 4
    %4331 = vst [vmem:[#allocation2 + $0xa0] sm:$0xf0] %v4323
    %4332 = vst [vmem:[#allocation2 + $0xa8] sm:$0xf0] %v4324
    %4333 = vst [vmem:[#allocation2 + $0xb0] sm:$0xf0] %v4325
    %4334 = vst [vmem:[#allocation2 + $0xb8] sm:$0xf0] %v4326
    %4335 = vst [vmem:[#allocation2 + $0xc0] sm:$0xf] %v4015
    %4336 = vst [vmem:[#allocation2 + $0xc8] sm:$0xf] %v4016
    %4337 = vst [vmem:[#allocation2 + $0xd0] sm:$0xf] %v4017
    %4338 = vst [vmem:[#allocation2 + $0xd8] sm:$0xf] %v4018
    %4339 = vrot.lane.b32.xlu0 %v4015, 127
    %v4340 = vpop.permute.xlu0 %4339
    %4341 = vrot.lane.b32.xlu0 %v4016, 127
    %v4342 = vpop.permute.xlu0 %4341
    %4343 = vrot.lane.b32.xlu0 %v4017, 127
    %v4344 = vpop.permute.xlu0 %4343
    %4345 = vrot.lane.b32.xlu0 %v4018, 127
    %v4346 = vpop.permute.xlu0 %4345
    %v4347 = vsel %vm655, %v4344, %v4346
    %v4348 = vsel %vm655, %v4342, %v4344
    %v4349 = vsel %vm655, %v4340, %v4342
    %v4350 = vsel %vm655, %v4346, %v4340
    %v4351 = vsel %vm677, %v4349, 0.0
    %v4352 = vsel %vm678, %v4348, 0.0
    %v4353 = vsel %vm679, %v4347, 0.0
    %v4354 = vsel %vm680, %v4350, 0.0
    %v4359 = vrot.slane %v4351, 4
    %v4360 = vrot.slane %v4352, 4
    %v4361 = vrot.slane %v4353, 4
    %v4362 = vrot.slane %v4354, 4
    %4367 = vst [vmem:[#allocation2 + $0xc0] sm:$0xf0] %v4359
    %4368 = vst [vmem:[#allocation2 + $0xc8] sm:$0xf0] %v4360
    %4369 = vst [vmem:[#allocation2 + $0xd0] sm:$0xf0] %v4361
    %4370 = vst [vmem:[#allocation2 + $0xd8] sm:$0xf0] %v4362
    %4371 = vrot.lane.b32.xlu0 %v4015, 126
    %v4372 = vpop.permute.xlu0 %4371
    %4373 = vrot.lane.b32.xlu0 %v4016, 126
    %v4374 = vpop.permute.xlu0 %4373
    %4375 = vrot.lane.b32.xlu0 %v4017, 126
    %v4376 = vpop.permute.xlu0 %4375
    %4377 = vrot.lane.b32.xlu0 %v4018, 126
    %v4378 = vpop.permute.xlu0 %4377
    %v4379 = vsel %vm709, %v4376, %v4378
    %v4380 = vsel %vm709, %v4374, %v4376
    %v4381 = vsel %vm709, %v4372, %v4374
    %v4382 = vsel %vm709, %v4378, %v4372
    %v4383 = vsel %vm731, %v4381, 0.0
    %v4384 = vsel %vm732, %v4380, 0.0
    %v4385 = vsel %vm733, %v4379, 0.0
    %v4386 = vsel %vm734, %v4382, 0.0
    %4387 = vst [vmem:[#allocation2 + $0xe0] sm:$0xf] %v4383
    %4388 = vst [vmem:[#allocation2 + $0xe8] sm:$0xf] %v4384
    %4389 = vst [vmem:[#allocation2 + $0xf0] sm:$0xf] %v4385
    %4390 = vst [vmem:[#allocation2 + $0xf8] sm:$0xf] %v4386
    %4391 = vrot.lane.b32.xlu0 %v4015, 114
    %v4392 = vpop.permute.xlu0 %4391
    %4393 = vrot.lane.b32.xlu0 %v4016, 114
    %v4394 = vpop.permute.xlu0 %4393
    %4395 = vrot.lane.b32.xlu0 %v4017, 114
    %v4396 = vpop.permute.xlu0 %4395
    %4397 = vrot.lane.b32.xlu0 %v4018, 114
    %v4398 = vpop.permute.xlu0 %4397
    %v4399 = vsel %vm751, %v4396, %v4398
    %v4400 = vsel %vm751, %v4394, %v4396
    %v4401 = vsel %vm751, %v4392, %v4394
    %v4402 = vsel %vm751, %v4398, %v4392
    %v4403 = vsel %vm775, %v4401, 0.0
    %v4404 = vsel %vm776, %v4400, 0.0
    %v4405 = vsel %vm777, %v4399, 0.0
    %v4406 = vsel %vm778, %v4402, 0.0
    %v4411 = vrot.slane %v4403, 4
    %v4412 = vrot.slane %v4404, 4
    %v4413 = vrot.slane %v4405, 4
    %v4414 = vrot.slane %v4406, 4
    %4419 = vst [vmem:[#allocation2 + $0xe0] sm:$0xf0] %v4411
    %4420 = vst [vmem:[#allocation2 + $0xe8] sm:$0xf0] %v4412
    %4421 = vst [vmem:[#allocation2 + $0xf0] sm:$0xf0] %v4413
    %4422 = vst [vmem:[#allocation2 + $0xf8] sm:$0xf0] %v4414
    %4423 = vrot.lane.b32.xlu0 %v4015, 113
    %v4424 = vpop.permute.xlu0 %4423
    %4425 = vrot.lane.b32.xlu0 %v4016, 113
    %v4426 = vpop.permute.xlu0 %4425
    %4427 = vrot.lane.b32.xlu0 %v4017, 113
    %v4428 = vpop.permute.xlu0 %4427
    %4429 = vrot.lane.b32.xlu0 %v4018, 113
    %v4430 = vpop.permute.xlu0 %4429
    %v4431 = vsel %vm807, %v4428, %v4430
    %v4432 = vsel %vm807, %v4426, %v4428
    %v4433 = vsel %vm807, %v4424, %v4426
    %v4434 = vsel %vm807, %v4430, %v4424
    %v4435 = vsel %vm830, %v4433, 0.0
    %v4436 = vsel %vm831, %v4432, 0.0
    %v4437 = vsel %vm832, %v4431, 0.0
    %v4438 = vsel %vm833, %v4434, 0.0
    %4439 = vst [vmem:[#allocation2 + $0x100] sm:$0xf] %v4435
    %4440 = vst [vmem:[#allocation2 + $0x108] sm:$0xf] %v4436
    %4441 = vst [vmem:[#allocation2 + $0x110] sm:$0xf] %v4437
    %4442 = vst [vmem:[#allocation2 + $0x118] sm:$0xf] %v4438
    %4443 = vrot.lane.b32.xlu0 %v4015, 112
    %v4444 = vpop.permute.xlu0 %4443
    %4445 = vrot.lane.b32.xlu0 %v4016, 112
    %v4446 = vpop.permute.xlu0 %4445
    %4447 = vrot.lane.b32.xlu0 %v4017, 112
    %v4448 = vpop.permute.xlu0 %4447
    %4449 = vrot.lane.b32.xlu0 %v4018, 112
    %v4450 = vpop.permute.xlu0 %4449
    %v4451 = vsel %vm850, %v4448, %v4450
    %v4452 = vsel %vm850, %v4446, %v4448
    %v4453 = vsel %vm850, %v4444, %v4446
    %v4454 = vsel %vm850, %v4450, %v4444
    %v4455 = vsel %vm872, %v4453, 0.0
    %v4456 = vsel %vm873, %v4452, 0.0
    %v4457 = vsel %vm874, %v4451, 0.0
    %v4458 = vsel %vm875, %v4454, 0.0
    %v4463 = vrot.slane %v4455, 4
    %v4464 = vrot.slane %v4456, 4
    %v4465 = vrot.slane %v4457, 4
    %v4466 = vrot.slane %v4458, 4
    %4471 = vst [vmem:[#allocation2 + $0x100] sm:$0xf0] %v4463
    %4472 = vst [vmem:[#allocation2 + $0x108] sm:$0xf0] %v4464
    %4473 = vst [vmem:[#allocation2 + $0x110] sm:$0xf0] %v4465
    %4474 = vst [vmem:[#allocation2 + $0x118] sm:$0xf0] %v4466
    %4475 = vrot.lane.b32.xlu0 %v4015, 111
    %v4476 = vpop.permute.xlu0 %4475
    %4477 = vrot.lane.b32.xlu0 %v4016, 111
    %v4478 = vpop.permute.xlu0 %4477
    %4479 = vrot.lane.b32.xlu0 %v4017, 111
    %v4480 = vpop.permute.xlu0 %4479
    %4481 = vrot.lane.b32.xlu0 %v4018, 111
    %v4482 = vpop.permute.xlu0 %4481
    %v4483 = vsel %vm904, %v4480, %v4482
    %v4484 = vsel %vm904, %v4478, %v4480
    %v4485 = vsel %vm904, %v4476, %v4478
    %v4486 = vsel %vm904, %v4482, %v4476
    %v4487 = vsel %vm927, %v4485, 0.0
    %v4488 = vsel %vm928, %v4484, 0.0
    %v4489 = vsel %vm929, %v4483, 0.0
    %v4490 = vsel %vm930, %v4486, 0.0
    %4491 = vst [vmem:[#allocation2 + $0x120] sm:$0xf] %v4487
    %4492 = vst [vmem:[#allocation2 + $0x128] sm:$0xf] %v4488
    %4493 = vst [vmem:[#allocation2 + $0x130] sm:$0xf] %v4489
    %4494 = vst [vmem:[#allocation2 + $0x138] sm:$0xf] %v4490
    %4495 = vrot.lane.b32.xlu0 %v4015, 110
    %v4496 = vpop.permute.xlu0 %4495
    %4497 = vrot.lane.b32.xlu0 %v4016, 110
    %v4498 = vpop.permute.xlu0 %4497
    %4499 = vrot.lane.b32.xlu0 %v4017, 110
    %v4500 = vpop.permute.xlu0 %4499
    %4501 = vrot.lane.b32.xlu0 %v4018, 110
    %v4502 = vpop.permute.xlu0 %4501
    %v4503 = vsel %vm947, %v4500, %v4502
    %v4504 = vsel %vm947, %v4498, %v4500
    %v4505 = vsel %vm947, %v4496, %v4498
    %v4506 = vsel %vm947, %v4502, %v4496
    %v4507 = vsel %vm970, %v4505, 0.0
    %v4508 = vsel %vm971, %v4504, 0.0
    %v4509 = vsel %vm972, %v4503, 0.0
    %v4510 = vsel %vm973, %v4506, 0.0
    %v4515 = vrot.slane %v4507, 4
    %v4516 = vrot.slane %v4508, 4
    %v4517 = vrot.slane %v4509, 4
    %v4518 = vrot.slane %v4510, 4
    %4523 = vst [vmem:[#allocation2 + $0x120] sm:$0xf0] %v4515
    %4524 = vst [vmem:[#allocation2 + $0x128] sm:$0xf0] %v4516
    %4525 = vst [vmem:[#allocation2 + $0x130] sm:$0xf0] %v4517
    %4526 = vst [vmem:[#allocation2 + $0x138] sm:$0xf0] %v4518
    %4527 = vrot.lane.b32.xlu0 %v4015, 98
    %v4528 = vpop.permute.xlu0 %4527
    %4529 = vrot.lane.b32.xlu0 %v4016, 98
    %v4530 = vpop.permute.xlu0 %4529
    %4531 = vrot.lane.b32.xlu0 %v4017, 98
    %v4532 = vpop.permute.xlu0 %4531
    %4533 = vrot.lane.b32.xlu0 %v4018, 98
    %v4534 = vpop.permute.xlu0 %4533
    %v4535 = vsel %vm1002, %v4532, %v4534
    %v4536 = vsel %vm1002, %v4530, %v4532
    %v4537 = vsel %vm1002, %v4528, %v4530
    %v4538 = vsel %vm1002, %v4534, %v4528
    %v4539 = vsel %vm1026, %v4537, 0.0
    %v4540 = vsel %vm1027, %v4536, 0.0
    %v4541 = vsel %vm1028, %v4535, 0.0
    %v4542 = vsel %vm1029, %v4538, 0.0
    %4543 = vst [vmem:[#allocation2 + $0x140] sm:$0xf] %v4539
    %4544 = vst [vmem:[#allocation2 + $0x148] sm:$0xf] %v4540
    %4545 = vst [vmem:[#allocation2 + $0x150] sm:$0xf] %v4541
    %4546 = vst [vmem:[#allocation2 + $0x158] sm:$0xf] %v4542
    %4547 = vrot.lane.b32.xlu0 %v4015, 97
    %v4548 = vpop.permute.xlu0 %4547
    %4549 = vrot.lane.b32.xlu0 %v4016, 97
    %v4550 = vpop.permute.xlu0 %4549
    %4551 = vrot.lane.b32.xlu0 %v4017, 97
    %v4552 = vpop.permute.xlu0 %4551
    %4553 = vrot.lane.b32.xlu0 %v4018, 97
    %v4554 = vpop.permute.xlu0 %4553
    %v4555 = vsel %vm1046, %v4552, %v4554
    %v4556 = vsel %vm1046, %v4550, %v4552
    %v4557 = vsel %vm1046, %v4548, %v4550
    %v4558 = vsel %vm1046, %v4554, %v4548
    %v4559 = vsel %vm1069, %v4557, 0.0
    %v4560 = vsel %vm1070, %v4556, 0.0
    %v4561 = vsel %vm1071, %v4555, 0.0
    %v4562 = vsel %vm1072, %v4558, 0.0
    %v4567 = vrot.slane %v4559, 4
    %v4568 = vrot.slane %v4560, 4
    %v4569 = vrot.slane %v4561, 4
    %v4570 = vrot.slane %v4562, 4
    %4575 = vst [vmem:[#allocation2 + $0x140] sm:$0xf0] %v4567
    %4576 = vst [vmem:[#allocation2 + $0x148] sm:$0xf0] %v4568
    %4577 = vst [vmem:[#allocation2 + $0x150] sm:$0xf0] %v4569
    %4578 = vst [vmem:[#allocation2 + $0x158] sm:$0xf0] %v4570
    %4579 = vrot.lane.b32.xlu0 %v4015, 96
    %v4580 = vpop.permute.xlu0 %4579
    %4581 = vrot.lane.b32.xlu0 %v4016, 96
    %v4582 = vpop.permute.xlu0 %4581
    %4583 = vrot.lane.b32.xlu0 %v4017, 96
    %v4584 = vpop.permute.xlu0 %4583
    %4585 = vrot.lane.b32.xlu0 %v4018, 96
    %v4586 = vpop.permute.xlu0 %4585
    %v4587 = vsel %vm1101, %v4584, %v4586
    %v4588 = vsel %vm1101, %v4582, %v4584
    %v4589 = vsel %vm1101, %v4580, %v4582
    %v4590 = vsel %vm1101, %v4586, %v4580
    %v4591 = vsel %vm1123, %v4589, 0.0
    %v4592 = vsel %vm1124, %v4588, 0.0
    %v4593 = vsel %vm1125, %v4587, 0.0
    %v4594 = vsel %vm1126, %v4590, 0.0
    %4595 = vst [vmem:[#allocation2 + $0x160] sm:$0xf] %v4591
    %4596 = vst [vmem:[#allocation2 + $0x168] sm:$0xf] %v4592
    %4597 = vst [vmem:[#allocation2 + $0x170] sm:$0xf] %v4593
    %4598 = vst [vmem:[#allocation2 + $0x178] sm:$0xf] %v4594
    %4599 = vrot.lane.b32.xlu0 %v4015, 95
    %v4600 = vpop.permute.xlu0 %4599
    %4601 = vrot.lane.b32.xlu0 %v4016, 95
    %v4602 = vpop.permute.xlu0 %4601
    %4603 = vrot.lane.b32.xlu0 %v4017, 95
    %v4604 = vpop.permute.xlu0 %4603
    %4605 = vrot.lane.b32.xlu0 %v4018, 95
    %v4606 = vpop.permute.xlu0 %4605
    %v4607 = vsel %vm1143, %v4604, %v4606
    %v4608 = vsel %vm1143, %v4602, %v4604
    %v4609 = vsel %vm1143, %v4600, %v4602
    %v4610 = vsel %vm1143, %v4606, %v4600
    %v4611 = vsel %vm1166, %v4609, 0.0
    %v4612 = vsel %vm1167, %v4608, 0.0
    %v4613 = vsel %vm1168, %v4607, 0.0
    %v4614 = vsel %vm1169, %v4610, 0.0
    %v4619 = vrot.slane %v4611, 4
    %v4620 = vrot.slane %v4612, 4
    %v4621 = vrot.slane %v4613, 4
    %v4622 = vrot.slane %v4614, 4
    %4627 = vst [vmem:[#allocation2 + $0x160] sm:$0xf0] %v4619
    %4628 = vst [vmem:[#allocation2 + $0x168] sm:$0xf0] %v4620
    %4629 = vst [vmem:[#allocation2 + $0x170] sm:$0xf0] %v4621
    %4630 = vst [vmem:[#allocation2 + $0x178] sm:$0xf0] %v4622
    %4631 = vrot.lane.b32.xlu0 %v4015, 94
    %v4632 = vpop.permute.xlu0 %4631
    %4633 = vrot.lane.b32.xlu0 %v4016, 94
    %v4634 = vpop.permute.xlu0 %4633
    %4635 = vrot.lane.b32.xlu0 %v4017, 94
    %v4636 = vpop.permute.xlu0 %4635
    %4637 = vrot.lane.b32.xlu0 %v4018, 94
    %v4638 = vpop.permute.xlu0 %4637
    %v4639 = vsel %vm1198, %v4636, %v4638
    %v4640 = vsel %vm1198, %v4634, %v4636
    %v4641 = vsel %vm1198, %v4632, %v4634
    %v4642 = vsel %vm1198, %v4638, %v4632
    %v4643 = vsel %vm1221, %v4641, 0.0
    %v4644 = vsel %vm1222, %v4640, 0.0
    %v4645 = vsel %vm1223, %v4639, 0.0
    %v4646 = vsel %vm1224, %v4642, 0.0
    %4647 = vst [vmem:[#allocation2 + $0x180] sm:$0xf] %v4643
    %4648 = vst [vmem:[#allocation2 + $0x188] sm:$0xf] %v4644
    %4649 = vst [vmem:[#allocation2 + $0x190] sm:$0xf] %v4645
    %4650 = vst [vmem:[#allocation2 + $0x198] sm:$0xf] %v4646
    %v4651 = vld [vmem:[#allocation2] sm:$0xff]
    %v4652 = vld [vmem:[#allocation2 + $0x8] sm:$0xff]
    %v4653 = vld [vmem:[#allocation2 + $0x10] sm:$0xff]
    %v4654 = vld [vmem:[#allocation2 + $0x18] sm:$0xff]
    %v4655 = vld [vmem:[#allocation2 + $0x20] sm:$0xff]
    %v4656 = vld [vmem:[#allocation2 + $0x28] sm:$0xff]
    %v4657 = vld [vmem:[#allocation2 + $0x30] sm:$0xff]
    %v4658 = vld [vmem:[#allocation2 + $0x38] sm:$0xff]
    %v4659 = vld [vmem:[#allocation2 + $0x40] sm:$0xff]
    %v4660 = vld [vmem:[#allocation2 + $0x48] sm:$0xff]
    %v4661 = vld [vmem:[#allocation2 + $0x50] sm:$0xff]
    %v4662 = vld [vmem:[#allocation2 + $0x58] sm:$0xff]
    %v4663 = vld [vmem:[#allocation2 + $0x60] sm:$0xff]
    %v4664 = vld [vmem:[#allocation2 + $0x68] sm:$0xff]
    %v4665 = vld [vmem:[#allocation2 + $0x70] sm:$0xff]
    %v4666 = vld [vmem:[#allocation2 + $0x78] sm:$0xff]
    %v4667 = vld [vmem:[#allocation2 + $0x80] sm:$0xff]
    %v4668 = vld [vmem:[#allocation2 + $0x88] sm:$0xff]
    %v4669 = vld [vmem:[#allocation2 + $0x90] sm:$0xff]
    %v4670 = vld [vmem:[#allocation2 + $0x98] sm:$0xff]
    %v4671 = vld [vmem:[#allocation2 + $0xa0] sm:$0xff]
    %v4672 = vld [vmem:[#allocation2 + $0xa8] sm:$0xff]
    %v4673 = vld [vmem:[#allocation2 + $0xb0] sm:$0xff]
    %v4674 = vld [vmem:[#allocation2 + $0xb8] sm:$0xff]
    %v4675 = vld [vmem:[#allocation2 + $0xc0] sm:$0xff]
    %v4676 = vld [vmem:[#allocation2 + $0xc8] sm:$0xff]
    %v4677 = vld [vmem:[#allocation2 + $0xd0] sm:$0xff]
    %v4678 = vld [vmem:[#allocation2 + $0xd8] sm:$0xff]
    %v4679 = vld [vmem:[#allocation2 + $0xe0] sm:$0xff]
    %v4680 = vld [vmem:[#allocation2 + $0xe8] sm:$0xff]
    %v4681 = vld [vmem:[#allocation2 + $0xf0] sm:$0xff]
    %v4682 = vld [vmem:[#allocation2 + $0xf8] sm:$0xff]
    %v4683 = vld [vmem:[#allocation2 + $0x100] sm:$0xff]
    %v4684 = vld [vmem:[#allocation2 + $0x108] sm:$0xff]
    %v4685 = vld [vmem:[#allocation2 + $0x110] sm:$0xff]
    %v4686 = vld [vmem:[#allocation2 + $0x118] sm:$0xff]
    %v4687 = vld [vmem:[#allocation2 + $0x120] sm:$0xff]
    %v4688 = vld [vmem:[#allocation2 + $0x128] sm:$0xff]
    %v4689 = vld [vmem:[#allocation2 + $0x130] sm:$0xff]
    %v4690 = vld [vmem:[#allocation2 + $0x138] sm:$0xff]
    %v4691 = vld [vmem:[#allocation2 + $0x140] sm:$0xff]
    %v4692 = vld [vmem:[#allocation2 + $0x148] sm:$0xff]
    %v4693 = vld [vmem:[#allocation2 + $0x150] sm:$0xff]
    %v4694 = vld [vmem:[#allocation2 + $0x158] sm:$0xff]
    %v4695 = vld [vmem:[#allocation2 + $0x160] sm:$0xff]
    %v4696 = vld [vmem:[#allocation2 + $0x168] sm:$0xff]
    %v4697 = vld [vmem:[#allocation2 + $0x170] sm:$0xff]
    %v4698 = vld [vmem:[#allocation2 + $0x178] sm:$0xff]
    %v4699 = vld [vmem:[#allocation2 + $0x180] sm:$0xf]
    %v4700 = vld [vmem:[#allocation2 + $0x188] sm:$0xf]
    %v4701 = vld [vmem:[#allocation2 + $0x190] sm:$0xf]
    %v4702 = vld [vmem:[#allocation2 + $0x198] sm:$0xf]
    %4704 = vset.pattern.permute.xlu0 0
    %4705 = vperm.xlu0 %4704, %v4022
    %v4706 = vpop.permute.xlu0 %4705
    %v4709 = vsel %vm1290, %v4020, 0
    %v4712 = vsel %vm1294, %v4699, 0
    %v4715 = vsel %vm1294, %v4700, 0
    %v4718 = vsel %vm1294, %v4701, 0
    %v4721 = vsel %vm1294, %v4702, 0
    %4723 = vmatprep.subr.mxu0 0.0
    %4724 = vmatpush1.msra.mxu0 0.0
    %4725 = vmatprep.subr.mxu0 0.0
    %4726 = vmatpush1.msra.mxu0 0.0
    %4727 = vmatprep.subr.mxu0 0.0
    %4728 = vmatpush1.msra.mxu0 0.0
    %4729 = vmatprep.subr.mxu0 %v4715
    %4730 = vmatpush1.msra.mxu0 %v4712
    %4731 = vmatprep.subr.mxu0 %v4696
    %4732 = vmatpush1.msra.mxu0 %v4695
    %4733 = vmatprep.subr.mxu0 %v4692
    %4734 = vmatpush1.msra.mxu0 %v4691
    %4735 = vmatprep.subr.mxu0 %v4688
    %4736 = vmatpush1.msra.mxu0 %v4687
    %4737 = vmatprep.subr.mxu0 %v4684
    %4738 = vmatpush1.msra.mxu0 %v4683
    %4739 = vmatprep.subr.mxu0 %v4680
    %4740 = vmatpush1.msra.mxu0 %v4679
    %4741 = vmatprep.subr.mxu0 %v4676
    %4742 = vmatpush1.msra.mxu0 %v4675
    %4743 = vmatprep.subr.mxu0 %v4672
    %4744 = vmatpush1.msra.mxu0 %v4671
    %4745 = vmatprep.subr.mxu0 %v4668
    %4746 = vmatpush1.msra.mxu0 %v4667
    %4747 = vmatprep.subr.mxu0 %v4664
    %4748 = vmatpush1.msra.mxu0 %v4663
    %4749 = vmatprep.subr.mxu0 %v4660
    %4750 = vmatpush1.msra.mxu0 %v4659
    %4751 = vmatprep.subr.mxu0 %v4656
    %4752 = vmatpush1.msra.mxu0 %v4655
    %4753 = vmatprep.subr.mxu0 %v4652
    %4754 = vmatpush1.msra.mxu0 %v4651
    %4755 = vmatprep.subr.mxu0 0.0
    %4756 = vmatpush2.msra.mxu0 0.0
    %4757 = vmatprep.subr.mxu0 0.0
    %4758 = vmatpush2.msra.mxu0 0.0
    %4759 = vmatprep.subr.mxu0 0.0
    %4760 = vmatpush2.msra.mxu0 0.0
    %4761 = vmatprep.subr.mxu0 0.0
    %4762 = vmatpush2.msra.mxu0 0.0
    %4763 = vmatprep.subr.mxu0 0.0
    %4764 = vmatpush2.msra.mxu0 0.0
    %4765 = vmatprep.subr.mxu0 0.0
    %4766 = vmatpush2.msra.mxu0 0.0
    %4767 = vmatprep.subr.mxu0 0.0
    %4768 = vmatpush2.msra.mxu0 0.0
    %4769 = vmatprep.subr.mxu0 0.0
    %4770 = vmatpush2.msra.mxu0 0.0
    %4771 = vmatprep.subr.mxu0 0.0
    %4772 = vmatpush2.msra.mxu0 0.0
    %4773 = vmatprep.subr.mxu0 0.0
    %4774 = vmatpush2.msra.mxu0 0.0
    %4775 = vmatprep.subr.mxu0 0.0
    %4776 = vmatpush2.msra.mxu0 0.0
    %4777 = vmatprep.subr.mxu0 0.0
    %4778 = vmatpush2.msra.mxu0 0.0
    %4779 = vmatprep.subr.mxu0 0.0
    %4780 = vmatpush2.msra.mxu0 0.0
    %4781 = vmatprep.subr.mxu0 0.0
    %4782 = vmatpush2.msra.mxu0 0.0
    %4783 = vmatprep.subr.mxu0 0.0
    %4784 = vmatpush2.msra.mxu0 0.0
    %4785 = vmatprep.subr.mxu0 0.0
    %4786 = vmatpush2.msra.mxu0 0.0
    %4787 = vmatprep.mubr.f32.mxu0 0.0
    %4788 = vmatmul.mubr.f32.gmra.mxu0 %v4709
    %v4789 = vpop.f32.mrf.mxu0
    %v4790 = vadd.f32 %v4706, %v4789
    %v4791 = vpop.f32.mrf.mxu0
    %v4792 = vadd.f32 %v4706, %v4791
    %4793 = vdwg.mxu0
    %4794 = vmatprep.subr.mxu0 0.0
    %4795 = vmatpush1.msra.mxu0 0.0
    %4796 = vmatprep.subr.mxu0 0.0
    %4797 = vmatpush1.msra.mxu0 0.0
    %4798 = vmatprep.subr.mxu0 0.0
    %4799 = vmatpush1.msra.mxu0 0.0
    %4800 = vmatprep.subr.mxu0 %v4721
    %4801 = vmatpush1.msra.mxu0 %v4718
    %4802 = vmatprep.subr.mxu0 %v4698
    %4803 = vmatpush1.msra.mxu0 %v4697
    %4804 = vmatprep.subr.mxu0 %v4694
    %4805 = vmatpush1.msra.mxu0 %v4693
    %4806 = vmatprep.subr.mxu0 %v4690
    %4807 = vmatpush1.msra.mxu0 %v4689
    %4808 = vmatprep.subr.mxu0 %v4686
    %4809 = vmatpush1.msra.mxu0 %v4685
    %4810 = vmatprep.subr.mxu0 %v4682
    %4811 = vmatpush1.msra.mxu0 %v4681
    %4812 = vmatprep.subr.mxu0 %v4678
    %4813 = vmatpush1.msra.mxu0 %v4677
    %4814 = vmatprep.subr.mxu0 %v4674
    %4815 = vmatpush1.msra.mxu0 %v4673
    %4816 = vmatprep.subr.mxu0 %v4670
    %4817 = vmatpush1.msra.mxu0 %v4669
    %4818 = vmatprep.subr.mxu0 %v4666
    %4819 = vmatpush1.msra.mxu0 %v4665
    %4820 = vmatprep.subr.mxu0 %v4662
    %4821 = vmatpush1.msra.mxu0 %v4661
    %4822 = vmatprep.subr.mxu0 %v4658
    %4823 = vmatpush1.msra.mxu0 %v4657
    %4824 = vmatprep.subr.mxu0 %v4654
    %4825 = vmatpush1.msra.mxu0 %v4653
    %4826 = vmatprep.subr.mxu0 0.0
    %4827 = vmatpush2.msra.mxu0 0.0
    %4828 = vmatprep.subr.mxu0 0.0
    %4829 = vmatpush2.msra.mxu0 0.0
    %4830 = vmatprep.subr.mxu0 0.0
    %4831 = vmatpush2.msra.mxu0 0.0
    %4832 = vmatprep.subr.mxu0 0.0
    %4833 = vmatpush2.msra.mxu0 0.0
    %4834 = vmatprep.subr.mxu0 0.0
    %4835 = vmatpush2.msra.mxu0 0.0
    %4836 = vmatprep.subr.mxu0 0.0
    %4837 = vmatpush2.msra.mxu0 0.0
    %4838 = vmatprep.subr.mxu0 0.0
    %4839 = vmatpush2.msra.mxu0 0.0
    %4840 = vmatprep.subr.mxu0 0.0
    %4841 = vmatpush2.msra.mxu0 0.0
    %4842 = vmatprep.subr.mxu0 0.0
    %4843 = vmatpush2.msra.mxu0 0.0
    %4844 = vmatprep.subr.mxu0 0.0
    %4845 = vmatpush2.msra.mxu0 0.0
    %4846 = vmatprep.subr.mxu0 0.0
    %4847 = vmatpush2.msra.mxu0 0.0
    %4848 = vmatprep.subr.mxu0 0.0
    %4849 = vmatpush2.msra.mxu0 0.0
    %4850 = vmatprep.subr.mxu0 0.0
    %4851 = vmatpush2.msra.mxu0 0.0
    %4852 = vmatprep.subr.mxu0 0.0
    %4853 = vmatpush2.msra.mxu0 0.0
    %4854 = vmatprep.subr.mxu0 0.0
    %4855 = vmatpush2.msra.mxu0 0.0
    %4856 = vmatprep.subr.mxu0 0.0
    %4857 = vmatpush2.msra.mxu0 0.0
    %4858 = vmatprep.mubr.f32.mxu0 0.0
    %4859 = vmatmul.mubr.f32.gmra.mxu0 %v4709
    %v4860 = vpop.f32.mrf.mxu0
    %v4861 = vadd.f32 %v4706, %v4860
    %v4862 = vpop.f32.mrf.mxu0
    %v4863 = vadd.f32 %v4706, %v4862
    %4864 = vdwg.mxu0
    %vm4865 = vcmp.ge.f32.partialorder %v4790, 0.0
    %vm4866 = vcmp.ge.f32.partialorder %v4792, 0.0
    %vm4867 = vcmp.ge.f32.partialorder %v4861, 0.0
    %vm4868 = vcmp.ge.f32.partialorder %v4863, 0.0
    %v4869 = vmul.f32 %v4790, 0.2
    %v4870 = vmul.f32 %v4792, 0.2
    %v4871 = vmul.f32 %v4861, 0.2
    %v4872 = vmul.f32 %v4863, 0.2
    %v4873 = vsel %vm4865, %v4790, %v4869
    %v4874 = vsel %vm4866, %v4792, %v4870
    %v4875 = vsel %vm4867, %v4861, %v4871
    %v4876 = vsel %vm4868, %v4863, %v4872
    %s4877 = scalar_lea.vmem %s3, 20
    %v4878 = vld [vmem:[%s4877] sm:$0xf]
    %s4879 = scalar_lea.vmem %s4, 20
    %v4880 = vld [vmem:[%s4879] sm:$0xf]
    %4881 = vrot.lane.b32.xlu0 %v4873, 34
    %v4882 = vpop.permute.xlu0 %4881
    %4883 = vrot.lane.b32.xlu0 %v4874, 34
    %v4884 = vpop.permute.xlu0 %4883
    %4885 = vrot.lane.b32.xlu0 %v4875, 34
    %v4886 = vpop.permute.xlu0 %4885
    %4887 = vrot.lane.b32.xlu0 %v4876, 34
    %v4888 = vpop.permute.xlu0 %4887
    %v4889 = vsel %vm61, %v4886, %v4888
    %v4890 = vsel %vm61, %v4884, %v4886
    %v4891 = vsel %vm61, %v4882, %v4884
    %v4892 = vsel %vm61, %v4888, %v4882
    %v4893 = vsel %vm86, %v4892, 0.0
    %v4894 = vsel %vm87, %v4891, 0.0
    %v4895 = vsel %vm88, %v4890, 0.0
    %v4896 = vsel %vm89, %v4889, 0.0
    %4897 = vst [vmem:[#allocation2] sm:$0xf] %v4893
    %4898 = vst [vmem:[#allocation2 + $0x8] sm:$0xf] %v4894
    %4899 = vst [vmem:[#allocation2 + $0x10] sm:$0xf] %v4895
    %4900 = vst [vmem:[#allocation2 + $0x18] sm:$0xf] %v4896
    %4901 = vrot.lane.b32.xlu0 %v4873, 33
    %v4902 = vpop.permute.xlu0 %4901
    %4903 = vrot.lane.b32.xlu0 %v4874, 33
    %v4904 = vpop.permute.xlu0 %4903
    %4905 = vrot.lane.b32.xlu0 %v4875, 33
    %v4906 = vpop.permute.xlu0 %4905
    %4907 = vrot.lane.b32.xlu0 %v4876, 33
    %v4908 = vpop.permute.xlu0 %4907
    %v4909 = vsel %vm106, %v4906, %v4908
    %v4910 = vsel %vm106, %v4904, %v4906
    %v4911 = vsel %vm106, %v4902, %v4904
    %v4912 = vsel %vm106, %v4908, %v4902
    %v4913 = vsel %vm130, %v4912, 0.0
    %v4914 = vsel %vm131, %v4911, 0.0
    %v4915 = vsel %vm132, %v4910, 0.0
    %v4916 = vsel %vm133, %v4909, 0.0
    %v4921 = vrot.slane %v4913, 4
    %v4922 = vrot.slane %v4914, 4
    %v4923 = vrot.slane %v4915, 4
    %v4924 = vrot.slane %v4916, 4
    %4929 = vst [vmem:[#allocation2] sm:$0xf0] %v4921
    %4930 = vst [vmem:[#allocation2 + $0x8] sm:$0xf0] %v4922
    %4931 = vst [vmem:[#allocation2 + $0x10] sm:$0xf0] %v4923
    %4932 = vst [vmem:[#allocation2 + $0x18] sm:$0xf0] %v4924
    %4933 = vrot.lane.b32.xlu0 %v4873, 32
    %v4934 = vpop.permute.xlu0 %4933
    %4935 = vrot.lane.b32.xlu0 %v4874, 32
    %v4936 = vpop.permute.xlu0 %4935
    %4937 = vrot.lane.b32.xlu0 %v4875, 32
    %v4938 = vpop.permute.xlu0 %4937
    %4939 = vrot.lane.b32.xlu0 %v4876, 32
    %v4940 = vpop.permute.xlu0 %4939
    %v4941 = vsel %vm162, %v4938, %v4940
    %v4942 = vsel %vm162, %v4936, %v4938
    %v4943 = vsel %vm162, %v4934, %v4936
    %v4944 = vsel %vm162, %v4940, %v4934
    %v4945 = vsel %vm184, %v4944, 0.0
    %v4946 = vsel %vm185, %v4943, 0.0
    %v4947 = vsel %vm186, %v4942, 0.0
    %v4948 = vsel %vm187, %v4941, 0.0
    %4949 = vst [vmem:[#allocation2 + $0x20] sm:$0xf] %v4945
    %4950 = vst [vmem:[#allocation2 + $0x28] sm:$0xf] %v4946
    %4951 = vst [vmem:[#allocation2 + $0x30] sm:$0xf] %v4947
    %4952 = vst [vmem:[#allocation2 + $0x38] sm:$0xf] %v4948
    %4953 = vrot.lane.b32.xlu0 %v4873, 31
    %v4954 = vpop.permute.xlu0 %4953
    %4955 = vrot.lane.b32.xlu0 %v4874, 31
    %v4956 = vpop.permute.xlu0 %4955
    %4957 = vrot.lane.b32.xlu0 %v4875, 31
    %v4958 = vpop.permute.xlu0 %4957
    %4959 = vrot.lane.b32.xlu0 %v4876, 31
    %v4960 = vpop.permute.xlu0 %4959
    %v4961 = vsel %vm204, %v4958, %v4960
    %v4962 = vsel %vm204, %v4956, %v4958
    %v4963 = vsel %vm204, %v4954, %v4956
    %v4964 = vsel %vm204, %v4960, %v4954
    %v4965 = vsel %vm228, %v4964, 0.0
    %v4966 = vsel %vm229, %v4963, 0.0
    %v4967 = vsel %vm230, %v4962, 0.0
    %v4968 = vsel %vm231, %v4961, 0.0
    %v4973 = vrot.slane %v4965, 4
    %v4974 = vrot.slane %v4966, 4
    %v4975 = vrot.slane %v4967, 4
    %v4976 = vrot.slane %v4968, 4
    %4981 = vst [vmem:[#allocation2 + $0x20] sm:$0xf0] %v4973
    %4982 = vst [vmem:[#allocation2 + $0x28] sm:$0xf0] %v4974
    %4983 = vst [vmem:[#allocation2 + $0x30] sm:$0xf0] %v4975
    %4984 = vst [vmem:[#allocation2 + $0x38] sm:$0xf0] %v4976
    %4985 = vrot.lane.b32.xlu0 %v4873, 30
    %v4986 = vpop.permute.xlu0 %4985
    %4987 = vrot.lane.b32.xlu0 %v4874, 30
    %v4988 = vpop.permute.xlu0 %4987
    %4989 = vrot.lane.b32.xlu0 %v4875, 30
    %v4990 = vpop.permute.xlu0 %4989
    %4991 = vrot.lane.b32.xlu0 %v4876, 30
    %v4992 = vpop.permute.xlu0 %4991
    %v4993 = vsel %vm260, %v4990, %v4992
    %v4994 = vsel %vm260, %v4988, %v4990
    %v4995 = vsel %vm260, %v4986, %v4988
    %v4996 = vsel %vm260, %v4992, %v4986
    %v4997 = vsel %vm284, %v4996, 0.0
    %v4998 = vsel %vm285, %v4995, 0.0
    %v4999 = vsel %vm286, %v4994, 0.0
    %v5000 = vsel %vm287, %v4993, 0.0
    %5001 = vst [vmem:[#allocation2 + $0x40] sm:$0xf] %v4997
    %5002 = vst [vmem:[#allocation2 + $0x48] sm:$0xf] %v4998
    %5003 = vst [vmem:[#allocation2 + $0x50] sm:$0xf] %v4999
    %5004 = vst [vmem:[#allocation2 + $0x58] sm:$0xf] %v5000
    %5005 = vrot.lane.b32.xlu0 %v4873, 18
    %v5006 = vpop.permute.xlu0 %5005
    %5007 = vrot.lane.b32.xlu0 %v4874, 18
    %v5008 = vpop.permute.xlu0 %5007
    %5009 = vrot.lane.b32.xlu0 %v4875, 18
    %v5010 = vpop.permute.xlu0 %5009
    %5011 = vrot.lane.b32.xlu0 %v4876, 18
    %v5012 = vpop.permute.xlu0 %5011
    %v5013 = vsel %vm304, %v5010, %v5012
    %v5014 = vsel %vm304, %v5008, %v5010
    %v5015 = vsel %vm304, %v5006, %v5008
    %v5016 = vsel %vm304, %v5012, %v5006
    %v5017 = vsel %vm328, %v5016, 0.0
    %v5018 = vsel %vm329, %v5015, 0.0
    %v5019 = vsel %vm330, %v5014, 0.0
    %v5020 = vsel %vm331, %v5013, 0.0
    %v5025 = vrot.slane %v5017, 4
    %v5026 = vrot.slane %v5018, 4
    %v5027 = vrot.slane %v5019, 4
    %v5028 = vrot.slane %v5020, 4
    %5033 = vst [vmem:[#allocation2 + $0x40] sm:$0xf0] %v5025
    %5034 = vst [vmem:[#allocation2 + $0x48] sm:$0xf0] %v5026
    %5035 = vst [vmem:[#allocation2 + $0x50] sm:$0xf0] %v5027
    %5036 = vst [vmem:[#allocation2 + $0x58] sm:$0xf0] %v5028
    %5037 = vrot.lane.b32.xlu0 %v4873, 17
    %v5038 = vpop.permute.xlu0 %5037
    %5039 = vrot.lane.b32.xlu0 %v4874, 17
    %v5040 = vpop.permute.xlu0 %5039
    %5041 = vrot.lane.b32.xlu0 %v4875, 17
    %v5042 = vpop.permute.xlu0 %5041
    %5043 = vrot.lane.b32.xlu0 %v4876, 17
    %v5044 = vpop.permute.xlu0 %5043
    %v5045 = vsel %vm360, %v5042, %v5044
    %v5046 = vsel %vm360, %v5040, %v5042
    %v5047 = vsel %vm360, %v5038, %v5040
    %v5048 = vsel %vm360, %v5044, %v5038
    %v5049 = vsel %vm383, %v5048, 0.0
    %v5050 = vsel %vm384, %v5047, 0.0
    %v5051 = vsel %vm385, %v5046, 0.0
    %v5052 = vsel %vm386, %v5045, 0.0
    %5053 = vst [vmem:[#allocation2 + $0x60] sm:$0xf] %v5049
    %5054 = vst [vmem:[#allocation2 + $0x68] sm:$0xf] %v5050
    %5055 = vst [vmem:[#allocation2 + $0x70] sm:$0xf] %v5051
    %5056 = vst [vmem:[#allocation2 + $0x78] sm:$0xf] %v5052
    %5057 = vrot.lane.b32.xlu0 %v4873, 16
    %v5058 = vpop.permute.xlu0 %5057
    %5059 = vrot.lane.b32.xlu0 %v4874, 16
    %v5060 = vpop.permute.xlu0 %5059
    %5061 = vrot.lane.b32.xlu0 %v4875, 16
    %v5062 = vpop.permute.xlu0 %5061
    %5063 = vrot.lane.b32.xlu0 %v4876, 16
    %v5064 = vpop.permute.xlu0 %5063
    %v5065 = vsel %vm403, %v5062, %v5064
    %v5066 = vsel %vm403, %v5060, %v5062
    %v5067 = vsel %vm403, %v5058, %v5060
    %v5068 = vsel %vm403, %v5064, %v5058
    %v5069 = vsel %vm425, %v5068, 0.0
    %v5070 = vsel %vm426, %v5067, 0.0
    %v5071 = vsel %vm427, %v5066, 0.0
    %v5072 = vsel %vm428, %v5065, 0.0
    %v5077 = vrot.slane %v5069, 4
    %v5078 = vrot.slane %v5070, 4
    %v5079 = vrot.slane %v5071, 4
    %v5080 = vrot.slane %v5072, 4
    %5085 = vst [vmem:[#allocation2 + $0x60] sm:$0xf0] %v5077
    %5086 = vst [vmem:[#allocation2 + $0x68] sm:$0xf0] %v5078
    %5087 = vst [vmem:[#allocation2 + $0x70] sm:$0xf0] %v5079
    %5088 = vst [vmem:[#allocation2 + $0x78] sm:$0xf0] %v5080
    %5089 = vrot.lane.b32.xlu0 %v4873, 15
    %v5090 = vpop.permute.xlu0 %5089
    %5091 = vrot.lane.b32.xlu0 %v4874, 15
    %v5092 = vpop.permute.xlu0 %5091
    %5093 = vrot.lane.b32.xlu0 %v4875, 15
    %v5094 = vpop.permute.xlu0 %5093
    %5095 = vrot.lane.b32.xlu0 %v4876, 15
    %v5096 = vpop.permute.xlu0 %5095
    %v5097 = vsel %vm457, %v5094, %v5096
    %v5098 = vsel %vm457, %v5092, %v5094
    %v5099 = vsel %vm457, %v5090, %v5092
    %v5100 = vsel %vm457, %v5096, %v5090
    %v5101 = vsel %vm480, %v5100, 0.0
    %v5102 = vsel %vm481, %v5099, 0.0
    %v5103 = vsel %vm482, %v5098, 0.0
    %v5104 = vsel %vm483, %v5097, 0.0
    %5105 = vst [vmem:[#allocation2 + $0x80] sm:$0xf] %v5101
    %5106 = vst [vmem:[#allocation2 + $0x88] sm:$0xf] %v5102
    %5107 = vst [vmem:[#allocation2 + $0x90] sm:$0xf] %v5103
    %5108 = vst [vmem:[#allocation2 + $0x98] sm:$0xf] %v5104
    %5109 = vrot.lane.b32.xlu0 %v4873, 14
    %v5110 = vpop.permute.xlu0 %5109
    %5111 = vrot.lane.b32.xlu0 %v4874, 14
    %v5112 = vpop.permute.xlu0 %5111
    %5113 = vrot.lane.b32.xlu0 %v4875, 14
    %v5114 = vpop.permute.xlu0 %5113
    %5115 = vrot.lane.b32.xlu0 %v4876, 14
    %v5116 = vpop.permute.xlu0 %5115
    %v5117 = vsel %vm500, %v5114, %v5116
    %v5118 = vsel %vm500, %v5112, %v5114
    %v5119 = vsel %vm500, %v5110, %v5112
    %v5120 = vsel %vm500, %v5116, %v5110
    %v5121 = vsel %vm523, %v5120, 0.0
    %v5122 = vsel %vm524, %v5119, 0.0
    %v5123 = vsel %vm525, %v5118, 0.0
    %v5124 = vsel %vm526, %v5117, 0.0
    %v5129 = vrot.slane %v5121, 4
    %v5130 = vrot.slane %v5122, 4
    %v5131 = vrot.slane %v5123, 4
    %v5132 = vrot.slane %v5124, 4
    %5137 = vst [vmem:[#allocation2 + $0x80] sm:$0xf0] %v5129
    %5138 = vst [vmem:[#allocation2 + $0x88] sm:$0xf0] %v5130
    %5139 = vst [vmem:[#allocation2 + $0x90] sm:$0xf0] %v5131
    %5140 = vst [vmem:[#allocation2 + $0x98] sm:$0xf0] %v5132
    %5141 = vrot.lane.b32.xlu0 %v4873, 2
    %v5142 = vpop.permute.xlu0 %5141
    %5143 = vrot.lane.b32.xlu0 %v4874, 2
    %v5144 = vpop.permute.xlu0 %5143
    %5145 = vrot.lane.b32.xlu0 %v4875, 2
    %v5146 = vpop.permute.xlu0 %5145
    %5147 = vrot.lane.b32.xlu0 %v4876, 2
    %v5148 = vpop.permute.xlu0 %5147
    %v5149 = vsel %vm555, %v5146, %v5148
    %v5150 = vsel %vm555, %v5144, %v5146
    %v5151 = vsel %vm555, %v5142, %v5144
    %v5152 = vsel %vm555, %v5148, %v5142
    %v5153 = vsel %vm577, %v5152, 0.0
    %v5154 = vsel %vm578, %v5151, 0.0
    %v5155 = vsel %vm579, %v5150, 0.0
    %v5156 = vsel %vm580, %v5149, 0.0
    %5157 = vst [vmem:[#allocation2 + $0xa0] sm:$0xf] %v5153
    %5158 = vst [vmem:[#allocation2 + $0xa8] sm:$0xf] %v5154
    %5159 = vst [vmem:[#allocation2 + $0xb0] sm:$0xf] %v5155
    %5160 = vst [vmem:[#allocation2 + $0xb8] sm:$0xf] %v5156
    %5161 = vrot.lane.b32.xlu0 %v4873, 1
    %v5162 = vpop.permute.xlu0 %5161
    %5163 = vrot.lane.b32.xlu0 %v4874, 1
    %v5164 = vpop.permute.xlu0 %5163
    %5165 = vrot.lane.b32.xlu0 %v4875, 1
    %v5166 = vpop.permute.xlu0 %5165
    %5167 = vrot.lane.b32.xlu0 %v4876, 1
    %v5168 = vpop.permute.xlu0 %5167
    %v5169 = vsel %vm597, %v5166, %v5168
    %v5170 = vsel %vm597, %v5164, %v5166
    %v5171 = vsel %vm597, %v5162, %v5164
    %v5172 = vsel %vm597, %v5168, %v5162
    %v5173 = vsel %vm619, %v5172, 0.0
    %v5174 = vsel %vm620, %v5171, 0.0
    %v5175 = vsel %vm621, %v5170, 0.0
    %v5176 = vsel %vm622, %v5169, 0.0
    %v5181 = vrot.slane %v5173, 4
    %v5182 = vrot.slane %v5174, 4
    %v5183 = vrot.slane %v5175, 4
    %v5184 = vrot.slane %v5176, 4
    %5189 = vst [vmem:[#allocation2 + $0xa0] sm:$0xf0] %v5181
    %5190 = vst [vmem:[#allocation2 + $0xa8] sm:$0xf0] %v5182
    %5191 = vst [vmem:[#allocation2 + $0xb0] sm:$0xf0] %v5183
    %5192 = vst [vmem:[#allocation2 + $0xb8] sm:$0xf0] %v5184
    %5193 = vst [vmem:[#allocation2 + $0xc0] sm:$0xf] %v4873
    %5194 = vst [vmem:[#allocation2 + $0xc8] sm:$0xf] %v4874
    %5195 = vst [vmem:[#allocation2 + $0xd0] sm:$0xf] %v4875
    %5196 = vst [vmem:[#allocation2 + $0xd8] sm:$0xf] %v4876
    %5197 = vrot.lane.b32.xlu0 %v4873, 127
    %v5198 = vpop.permute.xlu0 %5197
    %5199 = vrot.lane.b32.xlu0 %v4874, 127
    %v5200 = vpop.permute.xlu0 %5199
    %5201 = vrot.lane.b32.xlu0 %v4875, 127
    %v5202 = vpop.permute.xlu0 %5201
    %5203 = vrot.lane.b32.xlu0 %v4876, 127
    %v5204 = vpop.permute.xlu0 %5203
    %v5205 = vsel %vm655, %v5202, %v5204
    %v5206 = vsel %vm655, %v5200, %v5202
    %v5207 = vsel %vm655, %v5198, %v5200
    %v5208 = vsel %vm655, %v5204, %v5198
    %v5209 = vsel %vm677, %v5207, 0.0
    %v5210 = vsel %vm678, %v5206, 0.0
    %v5211 = vsel %vm679, %v5205, 0.0
    %v5212 = vsel %vm680, %v5208, 0.0
    %v5217 = vrot.slane %v5209, 4
    %v5218 = vrot.slane %v5210, 4
    %v5219 = vrot.slane %v5211, 4
    %v5220 = vrot.slane %v5212, 4
    %5225 = vst [vmem:[#allocation2 + $0xc0] sm:$0xf0] %v5217
    %5226 = vst [vmem:[#allocation2 + $0xc8] sm:$0xf0] %v5218
    %5227 = vst [vmem:[#allocation2 + $0xd0] sm:$0xf0] %v5219
    %5228 = vst [vmem:[#allocation2 + $0xd8] sm:$0xf0] %v5220
    %5229 = vrot.lane.b32.xlu0 %v4873, 126
    %v5230 = vpop.permute.xlu0 %5229
    %5231 = vrot.lane.b32.xlu0 %v4874, 126
    %v5232 = vpop.permute.xlu0 %5231
    %5233 = vrot.lane.b32.xlu0 %v4875, 126
    %v5234 = vpop.permute.xlu0 %5233
    %5235 = vrot.lane.b32.xlu0 %v4876, 126
    %v5236 = vpop.permute.xlu0 %5235
    %v5237 = vsel %vm709, %v5234, %v5236
    %v5238 = vsel %vm709, %v5232, %v5234
    %v5239 = vsel %vm709, %v5230, %v5232
    %v5240 = vsel %vm709, %v5236, %v5230
    %v5241 = vsel %vm731, %v5239, 0.0
    %v5242 = vsel %vm732, %v5238, 0.0
    %v5243 = vsel %vm733, %v5237, 0.0
    %v5244 = vsel %vm734, %v5240, 0.0
    %5245 = vst [vmem:[#allocation2 + $0xe0] sm:$0xf] %v5241
    %5246 = vst [vmem:[#allocation2 + $0xe8] sm:$0xf] %v5242
    %5247 = vst [vmem:[#allocation2 + $0xf0] sm:$0xf] %v5243
    %5248 = vst [vmem:[#allocation2 + $0xf8] sm:$0xf] %v5244
    %5249 = vrot.lane.b32.xlu0 %v4873, 114
    %v5250 = vpop.permute.xlu0 %5249
    %5251 = vrot.lane.b32.xlu0 %v4874, 114
    %v5252 = vpop.permute.xlu0 %5251
    %5253 = vrot.lane.b32.xlu0 %v4875, 114
    %v5254 = vpop.permute.xlu0 %5253
    %5255 = vrot.lane.b32.xlu0 %v4876, 114
    %v5256 = vpop.permute.xlu0 %5255
    %v5257 = vsel %vm751, %v5254, %v5256
    %v5258 = vsel %vm751, %v5252, %v5254
    %v5259 = vsel %vm751, %v5250, %v5252
    %v5260 = vsel %vm751, %v5256, %v5250
    %v5261 = vsel %vm775, %v5259, 0.0
    %v5262 = vsel %vm776, %v5258, 0.0
    %v5263 = vsel %vm777, %v5257, 0.0
    %v5264 = vsel %vm778, %v5260, 0.0
    %v5269 = vrot.slane %v5261, 4
    %v5270 = vrot.slane %v5262, 4
    %v5271 = vrot.slane %v5263, 4
    %v5272 = vrot.slane %v5264, 4
    %5277 = vst [vmem:[#allocation2 + $0xe0] sm:$0xf0] %v5269
    %5278 = vst [vmem:[#allocation2 + $0xe8] sm:$0xf0] %v5270
    %5279 = vst [vmem:[#allocation2 + $0xf0] sm:$0xf0] %v5271
    %5280 = vst [vmem:[#allocation2 + $0xf8] sm:$0xf0] %v5272
    %5281 = vrot.lane.b32.xlu0 %v4873, 113
    %v5282 = vpop.permute.xlu0 %5281
    %5283 = vrot.lane.b32.xlu0 %v4874, 113
    %v5284 = vpop.permute.xlu0 %5283
    %5285 = vrot.lane.b32.xlu0 %v4875, 113
    %v5286 = vpop.permute.xlu0 %5285
    %5287 = vrot.lane.b32.xlu0 %v4876, 113
    %v5288 = vpop.permute.xlu0 %5287
    %v5289 = vsel %vm807, %v5286, %v5288
    %v5290 = vsel %vm807, %v5284, %v5286
    %v5291 = vsel %vm807, %v5282, %v5284
    %v5292 = vsel %vm807, %v5288, %v5282
    %v5293 = vsel %vm830, %v5291, 0.0
    %v5294 = vsel %vm831, %v5290, 0.0
    %v5295 = vsel %vm832, %v5289, 0.0
    %v5296 = vsel %vm833, %v5292, 0.0
    %5297 = vst [vmem:[#allocation2 + $0x100] sm:$0xf] %v5293
    %5298 = vst [vmem:[#allocation2 + $0x108] sm:$0xf] %v5294
    %5299 = vst [vmem:[#allocation2 + $0x110] sm:$0xf] %v5295
    %5300 = vst [vmem:[#allocation2 + $0x118] sm:$0xf] %v5296
    %5301 = vrot.lane.b32.xlu0 %v4873, 112
    %v5302 = vpop.permute.xlu0 %5301
    %5303 = vrot.lane.b32.xlu0 %v4874, 112
    %v5304 = vpop.permute.xlu0 %5303
    %5305 = vrot.lane.b32.xlu0 %v4875, 112
    %v5306 = vpop.permute.xlu0 %5305
    %5307 = vrot.lane.b32.xlu0 %v4876, 112
    %v5308 = vpop.permute.xlu0 %5307
    %v5309 = vsel %vm850, %v5306, %v5308
    %v5310 = vsel %vm850, %v5304, %v5306
    %v5311 = vsel %vm850, %v5302, %v5304
    %v5312 = vsel %vm850, %v5308, %v5302
    %v5313 = vsel %vm872, %v5311, 0.0
    %v5314 = vsel %vm873, %v5310, 0.0
    %v5315 = vsel %vm874, %v5309, 0.0
    %v5316 = vsel %vm875, %v5312, 0.0
    %v5321 = vrot.slane %v5313, 4
    %v5322 = vrot.slane %v5314, 4
    %v5323 = vrot.slane %v5315, 4
    %v5324 = vrot.slane %v5316, 4
    %5329 = vst [vmem:[#allocation2 + $0x100] sm:$0xf0] %v5321
    %5330 = vst [vmem:[#allocation2 + $0x108] sm:$0xf0] %v5322
    %5331 = vst [vmem:[#allocation2 + $0x110] sm:$0xf0] %v5323
    %5332 = vst [vmem:[#allocation2 + $0x118] sm:$0xf0] %v5324
    %5333 = vrot.lane.b32.xlu0 %v4873, 111
    %v5334 = vpop.permute.xlu0 %5333
    %5335 = vrot.lane.b32.xlu0 %v4874, 111
    %v5336 = vpop.permute.xlu0 %5335
    %5337 = vrot.lane.b32.xlu0 %v4875, 111
    %v5338 = vpop.permute.xlu0 %5337
    %5339 = vrot.lane.b32.xlu0 %v4876, 111
    %v5340 = vpop.permute.xlu0 %5339
    %v5341 = vsel %vm904, %v5338, %v5340
    %v5342 = vsel %vm904, %v5336, %v5338
    %v5343 = vsel %vm904, %v5334, %v5336
    %v5344 = vsel %vm904, %v5340, %v5334
    %v5345 = vsel %vm927, %v5343, 0.0
    %v5346 = vsel %vm928, %v5342, 0.0
    %v5347 = vsel %vm929, %v5341, 0.0
    %v5348 = vsel %vm930, %v5344, 0.0
    %5349 = vst [vmem:[#allocation2 + $0x120] sm:$0xf] %v5345
    %5350 = vst [vmem:[#allocation2 + $0x128] sm:$0xf] %v5346
    %5351 = vst [vmem:[#allocation2 + $0x130] sm:$0xf] %v5347
    %5352 = vst [vmem:[#allocation2 + $0x138] sm:$0xf] %v5348
    %5353 = vrot.lane.b32.xlu0 %v4873, 110
    %v5354 = vpop.permute.xlu0 %5353
    %5355 = vrot.lane.b32.xlu0 %v4874, 110
    %v5356 = vpop.permute.xlu0 %5355
    %5357 = vrot.lane.b32.xlu0 %v4875, 110
    %v5358 = vpop.permute.xlu0 %5357
    %5359 = vrot.lane.b32.xlu0 %v4876, 110
    %v5360 = vpop.permute.xlu0 %5359
    %v5361 = vsel %vm947, %v5358, %v5360
    %v5362 = vsel %vm947, %v5356, %v5358
    %v5363 = vsel %vm947, %v5354, %v5356
    %v5364 = vsel %vm947, %v5360, %v5354
    %v5365 = vsel %vm970, %v5363, 0.0
    %v5366 = vsel %vm971, %v5362, 0.0
    %v5367 = vsel %vm972, %v5361, 0.0
    %v5368 = vsel %vm973, %v5364, 0.0
    %v5373 = vrot.slane %v5365, 4
    %v5374 = vrot.slane %v5366, 4
    %v5375 = vrot.slane %v5367, 4
    %v5376 = vrot.slane %v5368, 4
    %5381 = vst [vmem:[#allocation2 + $0x120] sm:$0xf0] %v5373
    %5382 = vst [vmem:[#allocation2 + $0x128] sm:$0xf0] %v5374
    %5383 = vst [vmem:[#allocation2 + $0x130] sm:$0xf0] %v5375
    %5384 = vst [vmem:[#allocation2 + $0x138] sm:$0xf0] %v5376
    %5385 = vrot.lane.b32.xlu0 %v4873, 98
    %v5386 = vpop.permute.xlu0 %5385
    %5387 = vrot.lane.b32.xlu0 %v4874, 98
    %v5388 = vpop.permute.xlu0 %5387
    %5389 = vrot.lane.b32.xlu0 %v4875, 98
    %v5390 = vpop.permute.xlu0 %5389
    %5391 = vrot.lane.b32.xlu0 %v4876, 98
    %v5392 = vpop.permute.xlu0 %5391
    %v5393 = vsel %vm1002, %v5390, %v5392
    %v5394 = vsel %vm1002, %v5388, %v5390
    %v5395 = vsel %vm1002, %v5386, %v5388
    %v5396 = vsel %vm1002, %v5392, %v5386
    %v5397 = vsel %vm1026, %v5395, 0.0
    %v5398 = vsel %vm1027, %v5394, 0.0
    %v5399 = vsel %vm1028, %v5393, 0.0
    %v5400 = vsel %vm1029, %v5396, 0.0
    %5401 = vst [vmem:[#allocation2 + $0x140] sm:$0xf] %v5397
    %5402 = vst [vmem:[#allocation2 + $0x148] sm:$0xf] %v5398
    %5403 = vst [vmem:[#allocation2 + $0x150] sm:$0xf] %v5399
    %5404 = vst [vmem:[#allocation2 + $0x158] sm:$0xf] %v5400
    %5405 = vrot.lane.b32.xlu0 %v4873, 97
    %v5406 = vpop.permute.xlu0 %5405
    %5407 = vrot.lane.b32.xlu0 %v4874, 97
    %v5408 = vpop.permute.xlu0 %5407
    %5409 = vrot.lane.b32.xlu0 %v4875, 97
    %v5410 = vpop.permute.xlu0 %5409
    %5411 = vrot.lane.b32.xlu0 %v4876, 97
    %v5412 = vpop.permute.xlu0 %5411
    %v5413 = vsel %vm1046, %v5410, %v5412
    %v5414 = vsel %vm1046, %v5408, %v5410
    %v5415 = vsel %vm1046, %v5406, %v5408
    %v5416 = vsel %vm1046, %v5412, %v5406
    %v5417 = vsel %vm1069, %v5415, 0.0
    %v5418 = vsel %vm1070, %v5414, 0.0
    %v5419 = vsel %vm1071, %v5413, 0.0
    %v5420 = vsel %vm1072, %v5416, 0.0
    %v5425 = vrot.slane %v5417, 4
    %v5426 = vrot.slane %v5418, 4
    %v5427 = vrot.slane %v5419, 4
    %v5428 = vrot.slane %v5420, 4
    %5433 = vst [vmem:[#allocation2 + $0x140] sm:$0xf0] %v5425
    %5434 = vst [vmem:[#allocation2 + $0x148] sm:$0xf0] %v5426
    %5435 = vst [vmem:[#allocation2 + $0x150] sm:$0xf0] %v5427
    %5436 = vst [vmem:[#allocation2 + $0x158] sm:$0xf0] %v5428
    %5437 = vrot.lane.b32.xlu0 %v4873, 96
    %v5438 = vpop.permute.xlu0 %5437
    %5439 = vrot.lane.b32.xlu0 %v4874, 96
    %v5440 = vpop.permute.xlu0 %5439
    %5441 = vrot.lane.b32.xlu0 %v4875, 96
    %v5442 = vpop.permute.xlu0 %5441
    %5443 = vrot.lane.b32.xlu0 %v4876, 96
    %v5444 = vpop.permute.xlu0 %5443
    %v5445 = vsel %vm1101, %v5442, %v5444
    %v5446 = vsel %vm1101, %v5440, %v5442
    %v5447 = vsel %vm1101, %v5438, %v5440
    %v5448 = vsel %vm1101, %v5444, %v5438
    %v5449 = vsel %vm1123, %v5447, 0.0
    %v5450 = vsel %vm1124, %v5446, 0.0
    %v5451 = vsel %vm1125, %v5445, 0.0
    %v5452 = vsel %vm1126, %v5448, 0.0
    %5453 = vst [vmem:[#allocation2 + $0x160] sm:$0xf] %v5449
    %5454 = vst [vmem:[#allocation2 + $0x168] sm:$0xf] %v5450
    %5455 = vst [vmem:[#allocation2 + $0x170] sm:$0xf] %v5451
    %5456 = vst [vmem:[#allocation2 + $0x178] sm:$0xf] %v5452
    %5457 = vrot.lane.b32.xlu0 %v4873, 95
    %v5458 = vpop.permute.xlu0 %5457
    %5459 = vrot.lane.b32.xlu0 %v4874, 95
    %v5460 = vpop.permute.xlu0 %5459
    %5461 = vrot.lane.b32.xlu0 %v4875, 95
    %v5462 = vpop.permute.xlu0 %5461
    %5463 = vrot.lane.b32.xlu0 %v4876, 95
    %v5464 = vpop.permute.xlu0 %5463
    %v5465 = vsel %vm1143, %v5462, %v5464
    %v5466 = vsel %vm1143, %v5460, %v5462
    %v5467 = vsel %vm1143, %v5458, %v5460
    %v5468 = vsel %vm1143, %v5464, %v5458
    %v5469 = vsel %vm1166, %v5467, 0.0
    %v5470 = vsel %vm1167, %v5466, 0.0
    %v5471 = vsel %vm1168, %v5465, 0.0
    %v5472 = vsel %vm1169, %v5468, 0.0
    %v5477 = vrot.slane %v5469, 4
    %v5478 = vrot.slane %v5470, 4
    %v5479 = vrot.slane %v5471, 4
    %v5480 = vrot.slane %v5472, 4
    %5485 = vst [vmem:[#allocation2 + $0x160] sm:$0xf0] %v5477
    %5486 = vst [vmem:[#allocation2 + $0x168] sm:$0xf0] %v5478
    %5487 = vst [vmem:[#allocation2 + $0x170] sm:$0xf0] %v5479
    %5488 = vst [vmem:[#allocation2 + $0x178] sm:$0xf0] %v5480
    %5489 = vrot.lane.b32.xlu0 %v4873, 94
    %v5490 = vpop.permute.xlu0 %5489
    %5491 = vrot.lane.b32.xlu0 %v4874, 94
    %v5492 = vpop.permute.xlu0 %5491
    %5493 = vrot.lane.b32.xlu0 %v4875, 94
    %v5494 = vpop.permute.xlu0 %5493
    %5495 = vrot.lane.b32.xlu0 %v4876, 94
    %v5496 = vpop.permute.xlu0 %5495
    %v5497 = vsel %vm1198, %v5494, %v5496
    %v5498 = vsel %vm1198, %v5492, %v5494
    %v5499 = vsel %vm1198, %v5490, %v5492
    %v5500 = vsel %vm1198, %v5496, %v5490
    %v5501 = vsel %vm1221, %v5499, 0.0
    %v5502 = vsel %vm1222, %v5498, 0.0
    %v5503 = vsel %vm1223, %v5497, 0.0
    %v5504 = vsel %vm1224, %v5500, 0.0
    %5505 = vst [vmem:[#allocation2 + $0x180] sm:$0xf] %v5501
    %5506 = vst [vmem:[#allocation2 + $0x188] sm:$0xf] %v5502
    %5507 = vst [vmem:[#allocation2 + $0x190] sm:$0xf] %v5503
    %5508 = vst [vmem:[#allocation2 + $0x198] sm:$0xf] %v5504
    %v5509 = vld [vmem:[#allocation2] sm:$0xff]
    %v5510 = vld [vmem:[#allocation2 + $0x8] sm:$0xff]
    %v5511 = vld [vmem:[#allocation2 + $0x10] sm:$0xff]
    %v5512 = vld [vmem:[#allocation2 + $0x18] sm:$0xff]
    %v5513 = vld [vmem:[#allocation2 + $0x20] sm:$0xff]
    %v5514 = vld [vmem:[#allocation2 + $0x28] sm:$0xff]
    %v5515 = vld [vmem:[#allocation2 + $0x30] sm:$0xff]
    %v5516 = vld [vmem:[#allocation2 + $0x38] sm:$0xff]
    %v5517 = vld [vmem:[#allocation2 + $0x40] sm:$0xff]
    %v5518 = vld [vmem:[#allocation2 + $0x48] sm:$0xff]
    %v5519 = vld [vmem:[#allocation2 + $0x50] sm:$0xff]
    %v5520 = vld [vmem:[#allocation2 + $0x58] sm:$0xff]
    %v5521 = vld [vmem:[#allocation2 + $0x60] sm:$0xff]
    %v5522 = vld [vmem:[#allocation2 + $0x68] sm:$0xff]
    %v5523 = vld [vmem:[#allocation2 + $0x70] sm:$0xff]
    %v5524 = vld [vmem:[#allocation2 + $0x78] sm:$0xff]
    %v5525 = vld [vmem:[#allocation2 + $0x80] sm:$0xff]
    %v5526 = vld [vmem:[#allocation2 + $0x88] sm:$0xff]
    %v5527 = vld [vmem:[#allocation2 + $0x90] sm:$0xff]
    %v5528 = vld [vmem:[#allocation2 + $0x98] sm:$0xff]
    %v5529 = vld [vmem:[#allocation2 + $0xa0] sm:$0xff]
    %v5530 = vld [vmem:[#allocation2 + $0xa8] sm:$0xff]
    %v5531 = vld [vmem:[#allocation2 + $0xb0] sm:$0xff]
    %v5532 = vld [vmem:[#allocation2 + $0xb8] sm:$0xff]
    %v5533 = vld [vmem:[#allocation2 + $0xc0] sm:$0xff]
    %v5534 = vld [vmem:[#allocation2 + $0xc8] sm:$0xff]
    %v5535 = vld [vmem:[#allocation2 + $0xd0] sm:$0xff]
    %v5536 = vld [vmem:[#allocation2 + $0xd8] sm:$0xff]
    %v5537 = vld [vmem:[#allocation2 + $0xe0] sm:$0xff]
    %v5538 = vld [vmem:[#allocation2 + $0xe8] sm:$0xff]
    %v5539 = vld [vmem:[#allocation2 + $0xf0] sm:$0xff]
    %v5540 = vld [vmem:[#allocation2 + $0xf8] sm:$0xff]
    %v5541 = vld [vmem:[#allocation2 + $0x100] sm:$0xff]
    %v5542 = vld [vmem:[#allocation2 + $0x108] sm:$0xff]
    %v5543 = vld [vmem:[#allocation2 + $0x110] sm:$0xff]
    %v5544 = vld [vmem:[#allocation2 + $0x118] sm:$0xff]
    %v5545 = vld [vmem:[#allocation2 + $0x120] sm:$0xff]
    %v5546 = vld [vmem:[#allocation2 + $0x128] sm:$0xff]
    %v5547 = vld [vmem:[#allocation2 + $0x130] sm:$0xff]
    %v5548 = vld [vmem:[#allocation2 + $0x138] sm:$0xff]
    %v5549 = vld [vmem:[#allocation2 + $0x140] sm:$0xff]
    %v5550 = vld [vmem:[#allocation2 + $0x148] sm:$0xff]
    %v5551 = vld [vmem:[#allocation2 + $0x150] sm:$0xff]
    %v5552 = vld [vmem:[#allocation2 + $0x158] sm:$0xff]
    %v5553 = vld [vmem:[#allocation2 + $0x160] sm:$0xff]
    %v5554 = vld [vmem:[#allocation2 + $0x168] sm:$0xff]
    %v5555 = vld [vmem:[#allocation2 + $0x170] sm:$0xff]
    %v5556 = vld [vmem:[#allocation2 + $0x178] sm:$0xff]
    %v5557 = vld [vmem:[#allocation2 + $0x180] sm:$0xf]
    %v5558 = vld [vmem:[#allocation2 + $0x188] sm:$0xf]
    %v5559 = vld [vmem:[#allocation2 + $0x190] sm:$0xf]
    %v5560 = vld [vmem:[#allocation2 + $0x198] sm:$0xf]
    %5562 = vset.pattern.permute.xlu0 0
    %5563 = vperm.xlu0 %5562, %v4880
    %v5564 = vpop.permute.xlu0 %5563
    %v5567 = vsel %vm1290, %v4878, 0
    %v5570 = vsel %vm1294, %v5557, 0
    %v5573 = vsel %vm1294, %v5558, 0
    %v5576 = vsel %vm1294, %v5559, 0
    %v5579 = vsel %vm1294, %v5560, 0
    %5581 = vmatprep.subr.mxu0 0.0
    %5582 = vmatpush1.msra.mxu0 0.0
    %5583 = vmatprep.subr.mxu0 0.0
    %5584 = vmatpush1.msra.mxu0 0.0
    %5585 = vmatprep.subr.mxu0 0.0
    %5586 = vmatpush1.msra.mxu0 0.0
    %5587 = vmatprep.subr.mxu0 %v5573
    %5588 = vmatpush1.msra.mxu0 %v5570
    %5589 = vmatprep.subr.mxu0 %v5554
    %5590 = vmatpush1.msra.mxu0 %v5553
    %5591 = vmatprep.subr.mxu0 %v5550
    %5592 = vmatpush1.msra.mxu0 %v5549
    %5593 = vmatprep.subr.mxu0 %v5546
    %5594 = vmatpush1.msra.mxu0 %v5545
    %5595 = vmatprep.subr.mxu0 %v5542
    %5596 = vmatpush1.msra.mxu0 %v5541
    %5597 = vmatprep.subr.mxu0 %v5538
    %5598 = vmatpush1.msra.mxu0 %v5537
    %5599 = vmatprep.subr.mxu0 %v5534
    %5600 = vmatpush1.msra.mxu0 %v5533
    %5601 = vmatprep.subr.mxu0 %v5530
    %5602 = vmatpush1.msra.mxu0 %v5529
    %5603 = vmatprep.subr.mxu0 %v5526
    %5604 = vmatpush1.msra.mxu0 %v5525
    %5605 = vmatprep.subr.mxu0 %v5522
    %5606 = vmatpush1.msra.mxu0 %v5521
    %5607 = vmatprep.subr.mxu0 %v5518
    %5608 = vmatpush1.msra.mxu0 %v5517
    %5609 = vmatprep.subr.mxu0 %v5514
    %5610 = vmatpush1.msra.mxu0 %v5513
    %5611 = vmatprep.subr.mxu0 %v5510
    %5612 = vmatpush1.msra.mxu0 %v5509
    %5613 = vmatprep.subr.mxu0 0.0
    %5614 = vmatpush2.msra.mxu0 0.0
    %5615 = vmatprep.subr.mxu0 0.0
    %5616 = vmatpush2.msra.mxu0 0.0
    %5617 = vmatprep.subr.mxu0 0.0
    %5618 = vmatpush2.msra.mxu0 0.0
    %5619 = vmatprep.subr.mxu0 0.0
    %5620 = vmatpush2.msra.mxu0 0.0
    %5621 = vmatprep.subr.mxu0 0.0
    %5622 = vmatpush2.msra.mxu0 0.0
    %5623 = vmatprep.subr.mxu0 0.0
    %5624 = vmatpush2.msra.mxu0 0.0
    %5625 = vmatprep.subr.mxu0 0.0
    %5626 = vmatpush2.msra.mxu0 0.0
    %5627 = vmatprep.subr.mxu0 0.0
    %5628 = vmatpush2.msra.mxu0 0.0
    %5629 = vmatprep.subr.mxu0 0.0
    %5630 = vmatpush2.msra.mxu0 0.0
    %5631 = vmatprep.subr.mxu0 0.0
    %5632 = vmatpush2.msra.mxu0 0.0
    %5633 = vmatprep.subr.mxu0 0.0
    %5634 = vmatpush2.msra.mxu0 0.0
    %5635 = vmatprep.subr.mxu0 0.0
    %5636 = vmatpush2.msra.mxu0 0.0
    %5637 = vmatprep.subr.mxu0 0.0
    %5638 = vmatpush2.msra.mxu0 0.0
    %5639 = vmatprep.subr.mxu0 0.0
    %5640 = vmatpush2.msra.mxu0 0.0
    %5641 = vmatprep.subr.mxu0 0.0
    %5642 = vmatpush2.msra.mxu0 0.0
    %5643 = vmatprep.subr.mxu0 0.0
    %5644 = vmatpush2.msra.mxu0 0.0
    %5645 = vmatprep.mubr.f32.mxu0 0.0
    %5646 = vmatmul.mubr.f32.gmra.mxu0 %v5567
    %v5647 = vpop.f32.mrf.mxu0
    %v5648 = vadd.f32 %v5564, %v5647
    %v5649 = vpop.f32.mrf.mxu0
    %v5650 = vadd.f32 %v5564, %v5649
    %5651 = vdwg.mxu0
    %5652 = vmatprep.subr.mxu0 0.0
    %5653 = vmatpush1.msra.mxu0 0.0
    %5654 = vmatprep.subr.mxu0 0.0
    %5655 = vmatpush1.msra.mxu0 0.0
    %5656 = vmatprep.subr.mxu0 0.0
    %5657 = vmatpush1.msra.mxu0 0.0
    %5658 = vmatprep.subr.mxu0 %v5579
    %5659 = vmatpush1.msra.mxu0 %v5576
    %5660 = vmatprep.subr.mxu0 %v5556
    %5661 = vmatpush1.msra.mxu0 %v5555
    %5662 = vmatprep.subr.mxu0 %v5552
    %5663 = vmatpush1.msra.mxu0 %v5551
    %5664 = vmatprep.subr.mxu0 %v5548
    %5665 = vmatpush1.msra.mxu0 %v5547
    %5666 = vmatprep.subr.mxu0 %v5544
    %5667 = vmatpush1.msra.mxu0 %v5543
    %5668 = vmatprep.subr.mxu0 %v5540
    %5669 = vmatpush1.msra.mxu0 %v5539
    %5670 = vmatprep.subr.mxu0 %v5536
    %5671 = vmatpush1.msra.mxu0 %v5535
    %5672 = vmatprep.subr.mxu0 %v5532
    %5673 = vmatpush1.msra.mxu0 %v5531
    %5674 = vmatprep.subr.mxu0 %v5528
    %5675 = vmatpush1.msra.mxu0 %v5527
    %5676 = vmatprep.subr.mxu0 %v5524
    %5677 = vmatpush1.msra.mxu0 %v5523
    %5678 = vmatprep.subr.mxu0 %v5520
    %5679 = vmatpush1.msra.mxu0 %v5519
    %5680 = vmatprep.subr.mxu0 %v5516
    %5681 = vmatpush1.msra.mxu0 %v5515
    %5682 = vmatprep.subr.mxu0 %v5512
    %5683 = vmatpush1.msra.mxu0 %v5511
    %5684 = vmatprep.subr.mxu0 0.0
    %5685 = vmatpush2.msra.mxu0 0.0
    %5686 = vmatprep.subr.mxu0 0.0
    %5687 = vmatpush2.msra.mxu0 0.0
    %5688 = vmatprep.subr.mxu0 0.0
    %5689 = vmatpush2.msra.mxu0 0.0
    %5690 = vmatprep.subr.mxu0 0.0
    %5691 = vmatpush2.msra.mxu0 0.0
    %5692 = vmatprep.subr.mxu0 0.0
    %5693 = vmatpush2.msra.mxu0 0.0
    %5694 = vmatprep.subr.mxu0 0.0
    %5695 = vmatpush2.msra.mxu0 0.0
    %5696 = vmatprep.subr.mxu0 0.0
    %5697 = vmatpush2.msra.mxu0 0.0
    %5698 = vmatprep.subr.mxu0 0.0
    %5699 = vmatpush2.msra.mxu0 0.0
    %5700 = vmatprep.subr.mxu0 0.0
    %5701 = vmatpush2.msra.mxu0 0.0
    %5702 = vmatprep.subr.mxu0 0.0
    %5703 = vmatpush2.msra.mxu0 0.0
    %5704 = vmatprep.subr.mxu0 0.0
    %5705 = vmatpush2.msra.mxu0 0.0
    %5706 = vmatprep.subr.mxu0 0.0
    %5707 = vmatpush2.msra.mxu0 0.0
    %5708 = vmatprep.subr.mxu0 0.0
    %5709 = vmatpush2.msra.mxu0 0.0
    %5710 = vmatprep.subr.mxu0 0.0
    %5711 = vmatpush2.msra.mxu0 0.0
    %5712 = vmatprep.subr.mxu0 0.0
    %5713 = vmatpush2.msra.mxu0 0.0
    %5714 = vmatprep.subr.mxu0 0.0
    %5715 = vmatpush2.msra.mxu0 0.0
    %5716 = vmatprep.mubr.f32.mxu0 0.0
    %5717 = vmatmul.mubr.f32.gmra.mxu0 %v5567
    %v5718 = vpop.f32.mrf.mxu0
    %v5719 = vadd.f32 %v5564, %v5718
    %v5720 = vpop.f32.mrf.mxu0
    %v5721 = vadd.f32 %v5564, %v5720
    %5722 = vdwg.mxu0
    %v5723 = vadd.f32 %v5648, %v4015
    %v5724 = vadd.f32 %v5650, %v4016
    %v5725 = vadd.f32 %v5719, %v4017
    %v5726 = vadd.f32 %v5721, %v4018
    %v5727 = vld [vmem:[%s5] sm:$0x7]
    %v5728 = vld [vmem:[%s6] sm:$0x7]
    %5729 = vrot.lane.b32.xlu0 %v5723, 34
    %v5730 = vpop.permute.xlu0 %5729
    %5731 = vrot.lane.b32.xlu0 %v5724, 34
    %v5732 = vpop.permute.xlu0 %5731
    %5733 = vrot.lane.b32.xlu0 %v5725, 34
    %v5734 = vpop.permute.xlu0 %5733
    %5735 = vrot.lane.b32.xlu0 %v5726, 34
    %v5736 = vpop.permute.xlu0 %5735
    %v5737 = vsel %vm61, %v5734, %v5736
    %v5738 = vsel %vm61, %v5732, %v5734
    %v5739 = vsel %vm61, %v5730, %v5732
    %v5740 = vsel %vm61, %v5736, %v5730
    %v5741 = vsel %vm86, %v5740, 0.0
    %v5742 = vsel %vm87, %v5739, 0.0
    %v5743 = vsel %vm88, %v5738, 0.0
    %v5744 = vsel %vm89, %v5737, 0.0
    %5745 = vst [vmem:[#allocation2] sm:$0xf] %v5741
    %5746 = vst [vmem:[#allocation2 + $0x8] sm:$0xf] %v5742
    %5747 = vst [vmem:[#allocation2 + $0x10] sm:$0xf] %v5743
    %5748 = vst [vmem:[#allocation2 + $0x18] sm:$0xf] %v5744
    %5749 = vrot.lane.b32.xlu0 %v5723, 33
    %v5750 = vpop.permute.xlu0 %5749
    %5751 = vrot.lane.b32.xlu0 %v5724, 33
    %v5752 = vpop.permute.xlu0 %5751
    %5753 = vrot.lane.b32.xlu0 %v5725, 33
    %v5754 = vpop.permute.xlu0 %5753
    %5755 = vrot.lane.b32.xlu0 %v5726, 33
    %v5756 = vpop.permute.xlu0 %5755
    %v5757 = vsel %vm106, %v5754, %v5756
    %v5758 = vsel %vm106, %v5752, %v5754
    %v5759 = vsel %vm106, %v5750, %v5752
    %v5760 = vsel %vm106, %v5756, %v5750
    %v5761 = vsel %vm130, %v5760, 0.0
    %v5762 = vsel %vm131, %v5759, 0.0
    %v5763 = vsel %vm132, %v5758, 0.0
    %v5764 = vsel %vm133, %v5757, 0.0
    %v5769 = vrot.slane %v5761, 4
    %v5770 = vrot.slane %v5762, 4
    %v5771 = vrot.slane %v5763, 4
    %v5772 = vrot.slane %v5764, 4
    %5777 = vst [vmem:[#allocation2] sm:$0xf0] %v5769
    %5778 = vst [vmem:[#allocation2 + $0x8] sm:$0xf0] %v5770
    %5779 = vst [vmem:[#allocation2 + $0x10] sm:$0xf0] %v5771
    %5780 = vst [vmem:[#allocation2 + $0x18] sm:$0xf0] %v5772
    %5781 = vrot.lane.b32.xlu0 %v5723, 32
    %v5782 = vpop.permute.xlu0 %5781
    %5783 = vrot.lane.b32.xlu0 %v5724, 32
    %v5784 = vpop.permute.xlu0 %5783
    %5785 = vrot.lane.b32.xlu0 %v5725, 32
    %v5786 = vpop.permute.xlu0 %5785
    %5787 = vrot.lane.b32.xlu0 %v5726, 32
    %v5788 = vpop.permute.xlu0 %5787
    %v5789 = vsel %vm162, %v5786, %v5788
    %v5790 = vsel %vm162, %v5784, %v5786
    %v5791 = vsel %vm162, %v5782, %v5784
    %v5792 = vsel %vm162, %v5788, %v5782
    %v5793 = vsel %vm184, %v5792, 0.0
    %v5794 = vsel %vm185, %v5791, 0.0
    %v5795 = vsel %vm186, %v5790, 0.0
    %v5796 = vsel %vm187, %v5789, 0.0
    %5797 = vst [vmem:[#allocation2 + $0x20] sm:$0xf] %v5793
    %5798 = vst [vmem:[#allocation2 + $0x28] sm:$0xf] %v5794
    %5799 = vst [vmem:[#allocation2 + $0x30] sm:$0xf] %v5795
    %5800 = vst [vmem:[#allocation2 + $0x38] sm:$0xf] %v5796
    %5801 = vrot.lane.b32.xlu0 %v5723, 31
    %v5802 = vpop.permute.xlu0 %5801
    %5803 = vrot.lane.b32.xlu0 %v5724, 31
    %v5804 = vpop.permute.xlu0 %5803
    %5805 = vrot.lane.b32.xlu0 %v5725, 31
    %v5806 = vpop.permute.xlu0 %5805
    %5807 = vrot.lane.b32.xlu0 %v5726, 31
    %v5808 = vpop.permute.xlu0 %5807
    %v5809 = vsel %vm204, %v5806, %v5808
    %v5810 = vsel %vm204, %v5804, %v5806
    %v5811 = vsel %vm204, %v5802, %v5804
    %v5812 = vsel %vm204, %v5808, %v5802
    %v5813 = vsel %vm228, %v5812, 0.0
    %v5814 = vsel %vm229, %v5811, 0.0
    %v5815 = vsel %vm230, %v5810, 0.0
    %v5816 = vsel %vm231, %v5809, 0.0
    %v5821 = vrot.slane %v5813, 4
    %v5822 = vrot.slane %v5814, 4
    %v5823 = vrot.slane %v5815, 4
    %v5824 = vrot.slane %v5816, 4
    %5829 = vst [vmem:[#allocation2 + $0x20] sm:$0xf0] %v5821
    %5830 = vst [vmem:[#allocation2 + $0x28] sm:$0xf0] %v5822
    %5831 = vst [vmem:[#allocation2 + $0x30] sm:$0xf0] %v5823
    %5832 = vst [vmem:[#allocation2 + $0x38] sm:$0xf0] %v5824
    %5833 = vrot.lane.b32.xlu0 %v5723, 30
    %v5834 = vpop.permute.xlu0 %5833
    %5835 = vrot.lane.b32.xlu0 %v5724, 30
    %v5836 = vpop.permute.xlu0 %5835
    %5837 = vrot.lane.b32.xlu0 %v5725, 30
    %v5838 = vpop.permute.xlu0 %5837
    %5839 = vrot.lane.b32.xlu0 %v5726, 30
    %v5840 = vpop.permute.xlu0 %5839
    %v5841 = vsel %vm260, %v5838, %v5840
    %v5842 = vsel %vm260, %v5836, %v5838
    %v5843 = vsel %vm260, %v5834, %v5836
    %v5844 = vsel %vm260, %v5840, %v5834
    %v5845 = vsel %vm284, %v5844, 0.0
    %v5846 = vsel %vm285, %v5843, 0.0
    %v5847 = vsel %vm286, %v5842, 0.0
    %v5848 = vsel %vm287, %v5841, 0.0
    %5849 = vst [vmem:[#allocation2 + $0x40] sm:$0xf] %v5845
    %5850 = vst [vmem:[#allocation2 + $0x48] sm:$0xf] %v5846
    %5851 = vst [vmem:[#allocation2 + $0x50] sm:$0xf] %v5847
    %5852 = vst [vmem:[#allocation2 + $0x58] sm:$0xf] %v5848
    %5853 = vrot.lane.b32.xlu0 %v5723, 18
    %v5854 = vpop.permute.xlu0 %5853
    %5855 = vrot.lane.b32.xlu0 %v5724, 18
    %v5856 = vpop.permute.xlu0 %5855
    %5857 = vrot.lane.b32.xlu0 %v5725, 18
    %v5858 = vpop.permute.xlu0 %5857
    %5859 = vrot.lane.b32.xlu0 %v5726, 18
    %v5860 = vpop.permute.xlu0 %5859
    %v5861 = vsel %vm304, %v5858, %v5860
    %v5862 = vsel %vm304, %v5856, %v5858
    %v5863 = vsel %vm304, %v5854, %v5856
    %v5864 = vsel %vm304, %v5860, %v5854
    %v5865 = vsel %vm328, %v5864, 0.0
    %v5866 = vsel %vm329, %v5863, 0.0
    %v5867 = vsel %vm330, %v5862, 0.0
    %v5868 = vsel %vm331, %v5861, 0.0
    %v5873 = vrot.slane %v5865, 4
    %v5874 = vrot.slane %v5866, 4
    %v5875 = vrot.slane %v5867, 4
    %v5876 = vrot.slane %v5868, 4
    %5881 = vst [vmem:[#allocation2 + $0x40] sm:$0xf0] %v5873
    %5882 = vst [vmem:[#allocation2 + $0x48] sm:$0xf0] %v5874
    %5883 = vst [vmem:[#allocation2 + $0x50] sm:$0xf0] %v5875
    %5884 = vst [vmem:[#allocation2 + $0x58] sm:$0xf0] %v5876
    %5885 = vrot.lane.b32.xlu0 %v5723, 17
    %v5886 = vpop.permute.xlu0 %5885
    %5887 = vrot.lane.b32.xlu0 %v5724, 17
    %v5888 = vpop.permute.xlu0 %5887
    %5889 = vrot.lane.b32.xlu0 %v5725, 17
    %v5890 = vpop.permute.xlu0 %5889
    %5891 = vrot.lane.b32.xlu0 %v5726, 17
    %v5892 = vpop.permute.xlu0 %5891
    %v5893 = vsel %vm360, %v5890, %v5892
    %v5894 = vsel %vm360, %v5888, %v5890
    %v5895 = vsel %vm360, %v5886, %v5888
    %v5896 = vsel %vm360, %v5892, %v5886
    %v5897 = vsel %vm383, %v5896, 0.0
    %v5898 = vsel %vm384, %v5895, 0.0
    %v5899 = vsel %vm385, %v5894, 0.0
    %v5900 = vsel %vm386, %v5893, 0.0
    %5901 = vst [vmem:[#allocation2 + $0x60] sm:$0xf] %v5897
    %5902 = vst [vmem:[#allocation2 + $0x68] sm:$0xf] %v5898
    %5903 = vst [vmem:[#allocation2 + $0x70] sm:$0xf] %v5899
    %5904 = vst [vmem:[#allocation2 + $0x78] sm:$0xf] %v5900
    %5905 = vrot.lane.b32.xlu0 %v5723, 16
    %v5906 = vpop.permute.xlu0 %5905
    %5907 = vrot.lane.b32.xlu0 %v5724, 16
    %v5908 = vpop.permute.xlu0 %5907
    %5909 = vrot.lane.b32.xlu0 %v5725, 16
    %v5910 = vpop.permute.xlu0 %5909
    %5911 = vrot.lane.b32.xlu0 %v5726, 16
    %v5912 = vpop.permute.xlu0 %5911
    %v5913 = vsel %vm403, %v5910, %v5912
    %v5914 = vsel %vm403, %v5908, %v5910
    %v5915 = vsel %vm403, %v5906, %v5908
    %v5916 = vsel %vm403, %v5912, %v5906
    %v5917 = vsel %vm425, %v5916, 0.0
    %v5918 = vsel %vm426, %v5915, 0.0
    %v5919 = vsel %vm427, %v5914, 0.0
    %v5920 = vsel %vm428, %v5913, 0.0
    %v5925 = vrot.slane %v5917, 4
    %v5926 = vrot.slane %v5918, 4
    %v5927 = vrot.slane %v5919, 4
    %v5928 = vrot.slane %v5920, 4
    %5933 = vst [vmem:[#allocation2 + $0x60] sm:$0xf0] %v5925
    %5934 = vst [vmem:[#allocation2 + $0x68] sm:$0xf0] %v5926
    %5935 = vst [vmem:[#allocation2 + $0x70] sm:$0xf0] %v5927
    %5936 = vst [vmem:[#allocation2 + $0x78] sm:$0xf0] %v5928
    %5937 = vrot.lane.b32.xlu0 %v5723, 15
    %v5938 = vpop.permute.xlu0 %5937
    %5939 = vrot.lane.b32.xlu0 %v5724, 15
    %v5940 = vpop.permute.xlu0 %5939
    %5941 = vrot.lane.b32.xlu0 %v5725, 15
    %v5942 = vpop.permute.xlu0 %5941
    %5943 = vrot.lane.b32.xlu0 %v5726, 15
    %v5944 = vpop.permute.xlu0 %5943
    %v5945 = vsel %vm457, %v5942, %v5944
    %v5946 = vsel %vm457, %v5940, %v5942
    %v5947 = vsel %vm457, %v5938, %v5940
    %v5948 = vsel %vm457, %v5944, %v5938
    %v5949 = vsel %vm480, %v5948, 0.0
    %v5950 = vsel %vm481, %v5947, 0.0
    %v5951 = vsel %vm482, %v5946, 0.0
    %v5952 = vsel %vm483, %v5945, 0.0
    %5953 = vst [vmem:[#allocation2 + $0x80] sm:$0xf] %v5949
    %5954 = vst [vmem:[#allocation2 + $0x88] sm:$0xf] %v5950
    %5955 = vst [vmem:[#allocation2 + $0x90] sm:$0xf] %v5951
    %5956 = vst [vmem:[#allocation2 + $0x98] sm:$0xf] %v5952
    %5957 = vrot.lane.b32.xlu0 %v5723, 14
    %v5958 = vpop.permute.xlu0 %5957
    %5959 = vrot.lane.b32.xlu0 %v5724, 14
    %v5960 = vpop.permute.xlu0 %5959
    %5961 = vrot.lane.b32.xlu0 %v5725, 14
    %v5962 = vpop.permute.xlu0 %5961
    %5963 = vrot.lane.b32.xlu0 %v5726, 14
    %v5964 = vpop.permute.xlu0 %5963
    %v5965 = vsel %vm500, %v5962, %v5964
    %v5966 = vsel %vm500, %v5960, %v5962
    %v5967 = vsel %vm500, %v5958, %v5960
    %v5968 = vsel %vm500, %v5964, %v5958
    %v5969 = vsel %vm523, %v5968, 0.0
    %v5970 = vsel %vm524, %v5967, 0.0
    %v5971 = vsel %vm525, %v5966, 0.0
    %v5972 = vsel %vm526, %v5965, 0.0
    %v5977 = vrot.slane %v5969, 4
    %v5978 = vrot.slane %v5970, 4
    %v5979 = vrot.slane %v5971, 4
    %v5980 = vrot.slane %v5972, 4
    %5985 = vst [vmem:[#allocation2 + $0x80] sm:$0xf0] %v5977
    %5986 = vst [vmem:[#allocation2 + $0x88] sm:$0xf0] %v5978
    %5987 = vst [vmem:[#allocation2 + $0x90] sm:$0xf0] %v5979
    %5988 = vst [vmem:[#allocation2 + $0x98] sm:$0xf0] %v5980
    %5989 = vrot.lane.b32.xlu0 %v5723, 2
    %v5990 = vpop.permute.xlu0 %5989
    %5991 = vrot.lane.b32.xlu0 %v5724, 2
    %v5992 = vpop.permute.xlu0 %5991
    %5993 = vrot.lane.b32.xlu0 %v5725, 2
    %v5994 = vpop.permute.xlu0 %5993
    %5995 = vrot.lane.b32.xlu0 %v5726, 2
    %v5996 = vpop.permute.xlu0 %5995
    %v5997 = vsel %vm555, %v5994, %v5996
    %v5998 = vsel %vm555, %v5992, %v5994
    %v5999 = vsel %vm555, %v5990, %v5992
    %v6000 = vsel %vm555, %v5996, %v5990
    %v6001 = vsel %vm577, %v6000, 0.0
    %v6002 = vsel %vm578, %v5999, 0.0
    %v6003 = vsel %vm579, %v5998, 0.0
    %v6004 = vsel %vm580, %v5997, 0.0
    %6005 = vst [vmem:[#allocation2 + $0xa0] sm:$0xf] %v6001
    %6006 = vst [vmem:[#allocation2 + $0xa8] sm:$0xf] %v6002
    %6007 = vst [vmem:[#allocation2 + $0xb0] sm:$0xf] %v6003
    %6008 = vst [vmem:[#allocation2 + $0xb8] sm:$0xf] %v6004
    %6009 = vrot.lane.b32.xlu0 %v5723, 1
    %v6010 = vpop.permute.xlu0 %6009
    %6011 = vrot.lane.b32.xlu0 %v5724, 1
    %v6012 = vpop.permute.xlu0 %6011
    %6013 = vrot.lane.b32.xlu0 %v5725, 1
    %v6014 = vpop.permute.xlu0 %6013
    %6015 = vrot.lane.b32.xlu0 %v5726, 1
    %v6016 = vpop.permute.xlu0 %6015
    %v6017 = vsel %vm597, %v6014, %v6016
    %v6018 = vsel %vm597, %v6012, %v6014
    %v6019 = vsel %vm597, %v6010, %v6012
    %v6020 = vsel %vm597, %v6016, %v6010
    %v6021 = vsel %vm619, %v6020, 0.0
    %v6022 = vsel %vm620, %v6019, 0.0
    %v6023 = vsel %vm621, %v6018, 0.0
    %v6024 = vsel %vm622, %v6017, 0.0
    %v6029 = vrot.slane %v6021, 4
    %v6030 = vrot.slane %v6022, 4
    %v6031 = vrot.slane %v6023, 4
    %v6032 = vrot.slane %v6024, 4
    %6037 = vst [vmem:[#allocation2 + $0xa0] sm:$0xf0] %v6029
    %6038 = vst [vmem:[#allocation2 + $0xa8] sm:$0xf0] %v6030
    %6039 = vst [vmem:[#allocation2 + $0xb0] sm:$0xf0] %v6031
    %6040 = vst [vmem:[#allocation2 + $0xb8] sm:$0xf0] %v6032
    %6041 = vst [vmem:[#allocation2 + $0xc0] sm:$0xf] %v5723
    %6042 = vst [vmem:[#allocation2 + $0xc8] sm:$0xf] %v5724
    %6043 = vst [vmem:[#allocation2 + $0xd0] sm:$0xf] %v5725
    %6044 = vst [vmem:[#allocation2 + $0xd8] sm:$0xf] %v5726
    %6045 = vrot.lane.b32.xlu0 %v5723, 127
    %v6046 = vpop.permute.xlu0 %6045
    %6047 = vrot.lane.b32.xlu0 %v5724, 127
    %v6048 = vpop.permute.xlu0 %6047
    %6049 = vrot.lane.b32.xlu0 %v5725, 127
    %v6050 = vpop.permute.xlu0 %6049
    %6051 = vrot.lane.b32.xlu0 %v5726, 127
    %v6052 = vpop.permute.xlu0 %6051
    %v6053 = vsel %vm655, %v6050, %v6052
    %v6054 = vsel %vm655, %v6048, %v6050
    %v6055 = vsel %vm655, %v6046, %v6048
    %v6056 = vsel %vm655, %v6052, %v6046
    %v6057 = vsel %vm677, %v6055, 0.0
    %v6058 = vsel %vm678, %v6054, 0.0
    %v6059 = vsel %vm679, %v6053, 0.0
    %v6060 = vsel %vm680, %v6056, 0.0
    %v6065 = vrot.slane %v6057, 4
    %v6066 = vrot.slane %v6058, 4
    %v6067 = vrot.slane %v6059, 4
    %v6068 = vrot.slane %v6060, 4
    %6073 = vst [vmem:[#allocation2 + $0xc0] sm:$0xf0] %v6065
    %6074 = vst [vmem:[#allocation2 + $0xc8] sm:$0xf0] %v6066
    %6075 = vst [vmem:[#allocation2 + $0xd0] sm:$0xf0] %v6067
    %6076 = vst [vmem:[#allocation2 + $0xd8] sm:$0xf0] %v6068
    %6077 = vrot.lane.b32.xlu0 %v5723, 126
    %v6078 = vpop.permute.xlu0 %6077
    %6079 = vrot.lane.b32.xlu0 %v5724, 126
    %v6080 = vpop.permute.xlu0 %6079
    %6081 = vrot.lane.b32.xlu0 %v5725, 126
    %v6082 = vpop.permute.xlu0 %6081
    %6083 = vrot.lane.b32.xlu0 %v5726, 126
    %v6084 = vpop.permute.xlu0 %6083
    %v6085 = vsel %vm709, %v6082, %v6084
    %v6086 = vsel %vm709, %v6080, %v6082
    %v6087 = vsel %vm709, %v6078, %v6080
    %v6088 = vsel %vm709, %v6084, %v6078
    %v6089 = vsel %vm731, %v6087, 0.0
    %v6090 = vsel %vm732, %v6086, 0.0
    %v6091 = vsel %vm733, %v6085, 0.0
    %v6092 = vsel %vm734, %v6088, 0.0
    %6093 = vst [vmem:[#allocation2 + $0xe0] sm:$0xf] %v6089
    %6094 = vst [vmem:[#allocation2 + $0xe8] sm:$0xf] %v6090
    %6095 = vst [vmem:[#allocation2 + $0xf0] sm:$0xf] %v6091
    %6096 = vst [vmem:[#allocation2 + $0xf8] sm:$0xf] %v6092
    %6097 = vrot.lane.b32.xlu0 %v5723, 114
    %v6098 = vpop.permute.xlu0 %6097
    %6099 = vrot.lane.b32.xlu0 %v5724, 114
    %v6100 = vpop.permute.xlu0 %6099
    %6101 = vrot.lane.b32.xlu0 %v5725, 114
    %v6102 = vpop.permute.xlu0 %6101
    %6103 = vrot.lane.b32.xlu0 %v5726, 114
    %v6104 = vpop.permute.xlu0 %6103
    %v6105 = vsel %vm751, %v6102, %v6104
    %v6106 = vsel %vm751, %v6100, %v6102
    %v6107 = vsel %vm751, %v6098, %v6100
    %v6108 = vsel %vm751, %v6104, %v6098
    %v6109 = vsel %vm775, %v6107, 0.0
    %v6110 = vsel %vm776, %v6106, 0.0
    %v6111 = vsel %vm777, %v6105, 0.0
    %v6112 = vsel %vm778, %v6108, 0.0
    %v6117 = vrot.slane %v6109, 4
    %v6118 = vrot.slane %v6110, 4
    %v6119 = vrot.slane %v6111, 4
    %v6120 = vrot.slane %v6112, 4
    %6125 = vst [vmem:[#allocation2 + $0xe0] sm:$0xf0] %v6117
    %6126 = vst [vmem:[#allocation2 + $0xe8] sm:$0xf0] %v6118
    %6127 = vst [vmem:[#allocation2 + $0xf0] sm:$0xf0] %v6119
    %6128 = vst [vmem:[#allocation2 + $0xf8] sm:$0xf0] %v6120
    %6129 = vrot.lane.b32.xlu0 %v5723, 113
    %v6130 = vpop.permute.xlu0 %6129
    %6131 = vrot.lane.b32.xlu0 %v5724, 113
    %v6132 = vpop.permute.xlu0 %6131
    %6133 = vrot.lane.b32.xlu0 %v5725, 113
    %v6134 = vpop.permute.xlu0 %6133
    %6135 = vrot.lane.b32.xlu0 %v5726, 113
    %v6136 = vpop.permute.xlu0 %6135
    %v6137 = vsel %vm807, %v6134, %v6136
    %v6138 = vsel %vm807, %v6132, %v6134
    %v6139 = vsel %vm807, %v6130, %v6132
    %v6140 = vsel %vm807, %v6136, %v6130
    %v6141 = vsel %vm830, %v6139, 0.0
    %v6142 = vsel %vm831, %v6138, 0.0
    %v6143 = vsel %vm832, %v6137, 0.0
    %v6144 = vsel %vm833, %v6140, 0.0
    %6145 = vst [vmem:[#allocation2 + $0x100] sm:$0xf] %v6141
    %6146 = vst [vmem:[#allocation2 + $0x108] sm:$0xf] %v6142
    %6147 = vst [vmem:[#allocation2 + $0x110] sm:$0xf] %v6143
    %6148 = vst [vmem:[#allocation2 + $0x118] sm:$0xf] %v6144
    %6149 = vrot.lane.b32.xlu0 %v5723, 112
    %v6150 = vpop.permute.xlu0 %6149
    %6151 = vrot.lane.b32.xlu0 %v5724, 112
    %v6152 = vpop.permute.xlu0 %6151
    %6153 = vrot.lane.b32.xlu0 %v5725, 112
    %v6154 = vpop.permute.xlu0 %6153
    %6155 = vrot.lane.b32.xlu0 %v5726, 112
    %v6156 = vpop.permute.xlu0 %6155
    %v6157 = vsel %vm850, %v6154, %v6156
    %v6158 = vsel %vm850, %v6152, %v6154
    %v6159 = vsel %vm850, %v6150, %v6152
    %v6160 = vsel %vm850, %v6156, %v6150
    %v6161 = vsel %vm872, %v6159, 0.0
    %v6162 = vsel %vm873, %v6158, 0.0
    %v6163 = vsel %vm874, %v6157, 0.0
    %v6164 = vsel %vm875, %v6160, 0.0
    %v6169 = vrot.slane %v6161, 4
    %v6170 = vrot.slane %v6162, 4
    %v6171 = vrot.slane %v6163, 4
    %v6172 = vrot.slane %v6164, 4
    %6177 = vst [vmem:[#allocation2 + $0x100] sm:$0xf0] %v6169
    %6178 = vst [vmem:[#allocation2 + $0x108] sm:$0xf0] %v6170
    %6179 = vst [vmem:[#allocation2 + $0x110] sm:$0xf0] %v6171
    %6180 = vst [vmem:[#allocation2 + $0x118] sm:$0xf0] %v6172
    %6181 = vrot.lane.b32.xlu0 %v5723, 111
    %v6182 = vpop.permute.xlu0 %6181
    %6183 = vrot.lane.b32.xlu0 %v5724, 111
    %v6184 = vpop.permute.xlu0 %6183
    %6185 = vrot.lane.b32.xlu0 %v5725, 111
    %v6186 = vpop.permute.xlu0 %6185
    %6187 = vrot.lane.b32.xlu0 %v5726, 111
    %v6188 = vpop.permute.xlu0 %6187
    %v6189 = vsel %vm904, %v6186, %v6188
    %v6190 = vsel %vm904, %v6184, %v6186
    %v6191 = vsel %vm904, %v6182, %v6184
    %v6192 = vsel %vm904, %v6188, %v6182
    %v6193 = vsel %vm927, %v6191, 0.0
    %v6194 = vsel %vm928, %v6190, 0.0
    %v6195 = vsel %vm929, %v6189, 0.0
    %v6196 = vsel %vm930, %v6192, 0.0
    %6197 = vst [vmem:[#allocation2 + $0x120] sm:$0xf] %v6193
    %6198 = vst [vmem:[#allocation2 + $0x128] sm:$0xf] %v6194
    %6199 = vst [vmem:[#allocation2 + $0x130] sm:$0xf] %v6195
    %6200 = vst [vmem:[#allocation2 + $0x138] sm:$0xf] %v6196
    %6201 = vrot.lane.b32.xlu0 %v5723, 110
    %v6202 = vpop.permute.xlu0 %6201
    %6203 = vrot.lane.b32.xlu0 %v5724, 110
    %v6204 = vpop.permute.xlu0 %6203
    %6205 = vrot.lane.b32.xlu0 %v5725, 110
    %v6206 = vpop.permute.xlu0 %6205
    %6207 = vrot.lane.b32.xlu0 %v5726, 110
    %v6208 = vpop.permute.xlu0 %6207
    %v6209 = vsel %vm947, %v6206, %v6208
    %v6210 = vsel %vm947, %v6204, %v6206
    %v6211 = vsel %vm947, %v6202, %v6204
    %v6212 = vsel %vm947, %v6208, %v6202
    %v6213 = vsel %vm970, %v6211, 0.0
    %v6214 = vsel %vm971, %v6210, 0.0
    %v6215 = vsel %vm972, %v6209, 0.0
    %v6216 = vsel %vm973, %v6212, 0.0
    %v6221 = vrot.slane %v6213, 4
    %v6222 = vrot.slane %v6214, 4
    %v6223 = vrot.slane %v6215, 4
    %v6224 = vrot.slane %v6216, 4
    %6229 = vst [vmem:[#allocation2 + $0x120] sm:$0xf0] %v6221
    %6230 = vst [vmem:[#allocation2 + $0x128] sm:$0xf0] %v6222
    %6231 = vst [vmem:[#allocation2 + $0x130] sm:$0xf0] %v6223
    %6232 = vst [vmem:[#allocation2 + $0x138] sm:$0xf0] %v6224
    %6233 = vrot.lane.b32.xlu0 %v5723, 98
    %v6234 = vpop.permute.xlu0 %6233
    %6235 = vrot.lane.b32.xlu0 %v5724, 98
    %v6236 = vpop.permute.xlu0 %6235
    %6237 = vrot.lane.b32.xlu0 %v5725, 98
    %v6238 = vpop.permute.xlu0 %6237
    %6239 = vrot.lane.b32.xlu0 %v5726, 98
    %v6240 = vpop.permute.xlu0 %6239
    %v6241 = vsel %vm1002, %v6238, %v6240
    %v6242 = vsel %vm1002, %v6236, %v6238
    %v6243 = vsel %vm1002, %v6234, %v6236
    %v6244 = vsel %vm1002, %v6240, %v6234
    %v6245 = vsel %vm1026, %v6243, 0.0
    %v6246 = vsel %vm1027, %v6242, 0.0
    %v6247 = vsel %vm1028, %v6241, 0.0
    %v6248 = vsel %vm1029, %v6244, 0.0
    %6249 = vst [vmem:[#allocation2 + $0x140] sm:$0xf] %v6245
    %6250 = vst [vmem:[#allocation2 + $0x148] sm:$0xf] %v6246
    %6251 = vst [vmem:[#allocation2 + $0x150] sm:$0xf] %v6247
    %6252 = vst [vmem:[#allocation2 + $0x158] sm:$0xf] %v6248
    %6253 = vrot.lane.b32.xlu0 %v5723, 97
    %v6254 = vpop.permute.xlu0 %6253
    %6255 = vrot.lane.b32.xlu0 %v5724, 97
    %v6256 = vpop.permute.xlu0 %6255
    %6257 = vrot.lane.b32.xlu0 %v5725, 97
    %v6258 = vpop.permute.xlu0 %6257
    %6259 = vrot.lane.b32.xlu0 %v5726, 97
    %v6260 = vpop.permute.xlu0 %6259
    %v6261 = vsel %vm1046, %v6258, %v6260
    %v6262 = vsel %vm1046, %v6256, %v6258
    %v6263 = vsel %vm1046, %v6254, %v6256
    %v6264 = vsel %vm1046, %v6260, %v6254
    %v6265 = vsel %vm1069, %v6263, 0.0
    %v6266 = vsel %vm1070, %v6262, 0.0
    %v6267 = vsel %vm1071, %v6261, 0.0
    %v6268 = vsel %vm1072, %v6264, 0.0
    %v6273 = vrot.slane %v6265, 4
    %v6274 = vrot.slane %v6266, 4
    %v6275 = vrot.slane %v6267, 4
    %v6276 = vrot.slane %v6268, 4
    %6281 = vst [vmem:[#allocation2 + $0x140] sm:$0xf0] %v6273
    %6282 = vst [vmem:[#allocation2 + $0x148] sm:$0xf0] %v6274
    %6283 = vst [vmem:[#allocation2 + $0x150] sm:$0xf0] %v6275
    %6284 = vst [vmem:[#allocation2 + $0x158] sm:$0xf0] %v6276
    %6285 = vrot.lane.b32.xlu0 %v5723, 96
    %v6286 = vpop.permute.xlu0 %6285
    %6287 = vrot.lane.b32.xlu0 %v5724, 96
    %v6288 = vpop.permute.xlu0 %6287
    %6289 = vrot.lane.b32.xlu0 %v5725, 96
    %v6290 = vpop.permute.xlu0 %6289
    %6291 = vrot.lane.b32.xlu0 %v5726, 96
    %v6292 = vpop.permute.xlu0 %6291
    %v6293 = vsel %vm1101, %v6290, %v6292
    %v6294 = vsel %vm1101, %v6288, %v6290
    %v6295 = vsel %vm1101, %v6286, %v6288
    %v6296 = vsel %vm1101, %v6292, %v6286
    %v6297 = vsel %vm1123, %v6295, 0.0
    %v6298 = vsel %vm1124, %v6294, 0.0
    %v6299 = vsel %vm1125, %v6293, 0.0
    %v6300 = vsel %vm1126, %v6296, 0.0
    %6301 = vst [vmem:[#allocation2 + $0x160] sm:$0xf] %v6297
    %6302 = vst [vmem:[#allocation2 + $0x168] sm:$0xf] %v6298
    %6303 = vst [vmem:[#allocation2 + $0x170] sm:$0xf] %v6299
    %6304 = vst [vmem:[#allocation2 + $0x178] sm:$0xf] %v6300
    %6305 = vrot.lane.b32.xlu0 %v5723, 95
    %v6306 = vpop.permute.xlu0 %6305
    %6307 = vrot.lane.b32.xlu0 %v5724, 95
    %v6308 = vpop.permute.xlu0 %6307
    %6309 = vrot.lane.b32.xlu0 %v5725, 95
    %v6310 = vpop.permute.xlu0 %6309
    %6311 = vrot.lane.b32.xlu0 %v5726, 95
    %v6312 = vpop.permute.xlu0 %6311
    %v6313 = vsel %vm1143, %v6310, %v6312
    %v6314 = vsel %vm1143, %v6308, %v6310
    %v6315 = vsel %vm1143, %v6306, %v6308
    %v6316 = vsel %vm1143, %v6312, %v6306
    %v6317 = vsel %vm1166, %v6315, 0.0
    %v6318 = vsel %vm1167, %v6314, 0.0
    %v6319 = vsel %vm1168, %v6313, 0.0
    %v6320 = vsel %vm1169, %v6316, 0.0
    %v6325 = vrot.slane %v6317, 4
    %v6326 = vrot.slane %v6318, 4
    %v6327 = vrot.slane %v6319, 4
    %v6328 = vrot.slane %v6320, 4
    %6333 = vst [vmem:[#allocation2 + $0x160] sm:$0xf0] %v6325
    %6334 = vst [vmem:[#allocation2 + $0x168] sm:$0xf0] %v6326
    %6335 = vst [vmem:[#allocation2 + $0x170] sm:$0xf0] %v6327
    %6336 = vst [vmem:[#allocation2 + $0x178] sm:$0xf0] %v6328
    %6337 = vrot.lane.b32.xlu0 %v5723, 94
    %v6338 = vpop.permute.xlu0 %6337
    %6339 = vrot.lane.b32.xlu0 %v5724, 94
    %v6340 = vpop.permute.xlu0 %6339
    %6341 = vrot.lane.b32.xlu0 %v5725, 94
    %v6342 = vpop.permute.xlu0 %6341
    %6343 = vrot.lane.b32.xlu0 %v5726, 94
    %v6344 = vpop.permute.xlu0 %6343
    %v6345 = vsel %vm1198, %v6342, %v6344
    %v6346 = vsel %vm1198, %v6340, %v6342
    %v6347 = vsel %vm1198, %v6338, %v6340
    %v6348 = vsel %vm1198, %v6344, %v6338
    %v6349 = vsel %vm1221, %v6347, 0.0
    %v6350 = vsel %vm1222, %v6346, 0.0
    %v6351 = vsel %vm1223, %v6345, 0.0
    %v6352 = vsel %vm1224, %v6348, 0.0
    %6353 = vst [vmem:[#allocation2 + $0x180] sm:$0xf] %v6349
    %6354 = vst [vmem:[#allocation2 + $0x188] sm:$0xf] %v6350
    %6355 = vst [vmem:[#allocation2 + $0x190] sm:$0xf] %v6351
    %6356 = vst [vmem:[#allocation2 + $0x198] sm:$0xf] %v6352
    %v6357 = vld [vmem:[#allocation2] sm:$0xff]
    %v6358 = vld [vmem:[#allocation2 + $0x8] sm:$0xff]
    %v6359 = vld [vmem:[#allocation2 + $0x10] sm:$0xff]
    %v6360 = vld [vmem:[#allocation2 + $0x18] sm:$0xff]
    %v6361 = vld [vmem:[#allocation2 + $0x20] sm:$0xff]
    %v6362 = vld [vmem:[#allocation2 + $0x28] sm:$0xff]
    %v6363 = vld [vmem:[#allocation2 + $0x30] sm:$0xff]
    %v6364 = vld [vmem:[#allocation2 + $0x38] sm:$0xff]
    %v6365 = vld [vmem:[#allocation2 + $0x40] sm:$0xff]
    %v6366 = vld [vmem:[#allocation2 + $0x48] sm:$0xff]
    %v6367 = vld [vmem:[#allocation2 + $0x50] sm:$0xff]
    %v6368 = vld [vmem:[#allocation2 + $0x58] sm:$0xff]
    %v6369 = vld [vmem:[#allocation2 + $0x60] sm:$0xff]
    %v6370 = vld [vmem:[#allocation2 + $0x68] sm:$0xff]
    %v6371 = vld [vmem:[#allocation2 + $0x70] sm:$0xff]
    %v6372 = vld [vmem:[#allocation2 + $0x78] sm:$0xff]
    %v6373 = vld [vmem:[#allocation2 + $0x80] sm:$0xff]
    %v6374 = vld [vmem:[#allocation2 + $0x88] sm:$0xff]
    %v6375 = vld [vmem:[#allocation2 + $0x90] sm:$0xff]
    %v6376 = vld [vmem:[#allocation2 + $0x98] sm:$0xff]
    %v6377 = vld [vmem:[#allocation2 + $0xa0] sm:$0xff]
    %v6378 = vld [vmem:[#allocation2 + $0xa8] sm:$0xff]
    %v6379 = vld [vmem:[#allocation2 + $0xb0] sm:$0xff]
    %v6380 = vld [vmem:[#allocation2 + $0xb8] sm:$0xff]
    %v6381 = vld [vmem:[#allocation2 + $0xc0] sm:$0xff]
    %v6382 = vld [vmem:[#allocation2 + $0xc8] sm:$0xff]
    %v6383 = vld [vmem:[#allocation2 + $0xd0] sm:$0xff]
    %v6384 = vld [vmem:[#allocation2 + $0xd8] sm:$0xff]
    %v6385 = vld [vmem:[#allocation2 + $0xe0] sm:$0xff]
    %v6386 = vld [vmem:[#allocation2 + $0xe8] sm:$0xff]
    %v6387 = vld [vmem:[#allocation2 + $0xf0] sm:$0xff]
    %v6388 = vld [vmem:[#allocation2 + $0xf8] sm:$0xff]
    %v6389 = vld [vmem:[#allocation2 + $0x100] sm:$0xff]
    %v6390 = vld [vmem:[#allocation2 + $0x108] sm:$0xff]
    %v6391 = vld [vmem:[#allocation2 + $0x110] sm:$0xff]
    %v6392 = vld [vmem:[#allocation2 + $0x118] sm:$0xff]
    %v6393 = vld [vmem:[#allocation2 + $0x120] sm:$0xff]
    %v6394 = vld [vmem:[#allocation2 + $0x128] sm:$0xff]
    %v6395 = vld [vmem:[#allocation2 + $0x130] sm:$0xff]
    %v6396 = vld [vmem:[#allocation2 + $0x138] sm:$0xff]
    %v6397 = vld [vmem:[#allocation2 + $0x140] sm:$0xff]
    %v6398 = vld [vmem:[#allocation2 + $0x148] sm:$0xff]
    %v6399 = vld [vmem:[#allocation2 + $0x150] sm:$0xff]
    %v6400 = vld [vmem:[#allocation2 + $0x158] sm:$0xff]
    %v6401 = vld [vmem:[#allocation2 + $0x160] sm:$0xff]
    %v6402 = vld [vmem:[#allocation2 + $0x168] sm:$0xff]
    %v6403 = vld [vmem:[#allocation2 + $0x170] sm:$0xff]
    %v6404 = vld [vmem:[#allocation2 + $0x178] sm:$0xff]
    %v6405 = vld [vmem:[#allocation2 + $0x180] sm:$0xf]
    %v6406 = vld [vmem:[#allocation2 + $0x188] sm:$0xf]
    %v6407 = vld [vmem:[#allocation2 + $0x190] sm:$0xf]
    %v6408 = vld [vmem:[#allocation2 + $0x198] sm:$0xf]
    %6410 = vset.pattern.permute.xlu0 0
    %6411 = vperm.xlu0 %6410, %v5728
    %v6412 = vpop.permute.xlu0 %6411
    %v6415 = vsel %vm1290, %v5727, 0
    %v6418 = vsel %vm1294, %v6405, 0
    %v6421 = vsel %vm1294, %v6406, 0
    %v6424 = vsel %vm1294, %v6407, 0
    %v6427 = vsel %vm1294, %v6408, 0
    %6429 = vmatprep.subr.mxu0 0.0
    %6430 = vmatpush1.msra.mxu0 0.0
    %6431 = vmatprep.subr.mxu0 0.0
    %6432 = vmatpush1.msra.mxu0 0.0
    %6433 = vmatprep.subr.mxu0 0.0
    %6434 = vmatpush1.msra.mxu0 0.0
    %6435 = vmatprep.subr.mxu0 %v6421
    %6436 = vmatpush1.msra.mxu0 %v6418
    %6437 = vmatprep.subr.mxu0 %v6402
    %6438 = vmatpush1.msra.mxu0 %v6401
    %6439 = vmatprep.subr.mxu0 %v6398
    %6440 = vmatpush1.msra.mxu0 %v6397
    %6441 = vmatprep.subr.mxu0 %v6394
    %6442 = vmatpush1.msra.mxu0 %v6393
    %6443 = vmatprep.subr.mxu0 %v6390
    %6444 = vmatpush1.msra.mxu0 %v6389
    %6445 = vmatprep.subr.mxu0 %v6386
    %6446 = vmatpush1.msra.mxu0 %v6385
    %6447 = vmatprep.subr.mxu0 %v6382
    %6448 = vmatpush1.msra.mxu0 %v6381
    %6449 = vmatprep.subr.mxu0 %v6378
    %6450 = vmatpush1.msra.mxu0 %v6377
    %6451 = vmatprep.subr.mxu0 %v6374
    %6452 = vmatpush1.msra.mxu0 %v6373
    %6453 = vmatprep.subr.mxu0 %v6370
    %6454 = vmatpush1.msra.mxu0 %v6369
    %6455 = vmatprep.subr.mxu0 %v6366
    %6456 = vmatpush1.msra.mxu0 %v6365
    %6457 = vmatprep.subr.mxu0 %v6362
    %6458 = vmatpush1.msra.mxu0 %v6361
    %6459 = vmatprep.subr.mxu0 %v6358
    %6460 = vmatpush1.msra.mxu0 %v6357
    %6461 = vmatprep.subr.mxu0 0.0
    %6462 = vmatpush2.msra.mxu0 0.0
    %6463 = vmatprep.subr.mxu0 0.0
    %6464 = vmatpush2.msra.mxu0 0.0
    %6465 = vmatprep.subr.mxu0 0.0
    %6466 = vmatpush2.msra.mxu0 0.0
    %6467 = vmatprep.subr.mxu0 0.0
    %6468 = vmatpush2.msra.mxu0 0.0
    %6469 = vmatprep.subr.mxu0 0.0
    %6470 = vmatpush2.msra.mxu0 0.0
    %6471 = vmatprep.subr.mxu0 0.0
    %6472 = vmatpush2.msra.mxu0 0.0
    %6473 = vmatprep.subr.mxu0 0.0
    %6474 = vmatpush2.msra.mxu0 0.0
    %6475 = vmatprep.subr.mxu0 0.0
    %6476 = vmatpush2.msra.mxu0 0.0
    %6477 = vmatprep.subr.mxu0 0.0
    %6478 = vmatpush2.msra.mxu0 0.0
    %6479 = vmatprep.subr.mxu0 0.0
    %6480 = vmatpush2.msra.mxu0 0.0
    %6481 = vmatprep.subr.mxu0 0.0
    %6482 = vmatpush2.msra.mxu0 0.0
    %6483 = vmatprep.subr.mxu0 0.0
    %6484 = vmatpush2.msra.mxu0 0.0
    %6485 = vmatprep.subr.mxu0 0.0
    %6486 = vmatpush2.msra.mxu0 0.0
    %6487 = vmatprep.subr.mxu0 0.0
    %6488 = vmatpush2.msra.mxu0 0.0
    %6489 = vmatprep.subr.mxu0 0.0
    %6490 = vmatpush2.msra.mxu0 0.0
    %6491 = vmatprep.subr.mxu0 0.0
    %6492 = vmatpush2.msra.mxu0 0.0
    %6493 = vmatprep.mubr.f32.mxu0 0.0
    %6494 = vmatmul.mubr.f32.gmra.mxu0 %v6415
    %v6495 = vpop.f32.mrf.mxu0
    %v6496 = vadd.f32 %v6412, %v6495
    %v6497 = vpop.f32.mrf.mxu0
    %v6498 = vadd.f32 %v6412, %v6497
    %6499 = vdwg.mxu0
    %6500 = vmatprep.subr.mxu0 0.0
    %6501 = vmatpush1.msra.mxu0 0.0
    %6502 = vmatprep.subr.mxu0 0.0
    %6503 = vmatpush1.msra.mxu0 0.0
    %6504 = vmatprep.subr.mxu0 0.0
    %6505 = vmatpush1.msra.mxu0 0.0
    %6506 = vmatprep.subr.mxu0 %v6427
    %6507 = vmatpush1.msra.mxu0 %v6424
    %6508 = vmatprep.subr.mxu0 %v6404
    %6509 = vmatpush1.msra.mxu0 %v6403
    %6510 = vmatprep.subr.mxu0 %v6400
    %6511 = vmatpush1.msra.mxu0 %v6399
    %6512 = vmatprep.subr.mxu0 %v6396
    %6513 = vmatpush1.msra.mxu0 %v6395
    %6514 = vmatprep.subr.mxu0 %v6392
    %6515 = vmatpush1.msra.mxu0 %v6391
    %6516 = vmatprep.subr.mxu0 %v6388
    %6517 = vmatpush1.msra.mxu0 %v6387
    %6518 = vmatprep.subr.mxu0 %v6384
    %6519 = vmatpush1.msra.mxu0 %v6383
    %6520 = vmatprep.subr.mxu0 %v6380
    %6521 = vmatpush1.msra.mxu0 %v6379
    %6522 = vmatprep.subr.mxu0 %v6376
    %6523 = vmatpush1.msra.mxu0 %v6375
    %6524 = vmatprep.subr.mxu0 %v6372
    %6525 = vmatpush1.msra.mxu0 %v6371
    %6526 = vmatprep.subr.mxu0 %v6368
    %6527 = vmatpush1.msra.mxu0 %v6367
    %6528 = vmatprep.subr.mxu0 %v6364
    %6529 = vmatpush1.msra.mxu0 %v6363
    %6530 = vmatprep.subr.mxu0 %v6360
    %6531 = vmatpush1.msra.mxu0 %v6359
    %6532 = vmatprep.subr.mxu0 0.0
    %6533 = vmatpush2.msra.mxu0 0.0
    %6534 = vmatprep.subr.mxu0 0.0
    %6535 = vmatpush2.msra.mxu0 0.0
    %6536 = vmatprep.subr.mxu0 0.0
    %6537 = vmatpush2.msra.mxu0 0.0
    %6538 = vmatprep.subr.mxu0 0.0
    %6539 = vmatpush2.msra.mxu0 0.0
    %6540 = vmatprep.subr.mxu0 0.0
    %6541 = vmatpush2.msra.mxu0 0.0
    %6542 = vmatprep.subr.mxu0 0.0
    %6543 = vmatpush2.msra.mxu0 0.0
    %6544 = vmatprep.subr.mxu0 0.0
    %6545 = vmatpush2.msra.mxu0 0.0
    %6546 = vmatprep.subr.mxu0 0.0
    %6547 = vmatpush2.msra.mxu0 0.0
    %6548 = vmatprep.subr.mxu0 0.0
    %6549 = vmatpush2.msra.mxu0 0.0
    %6550 = vmatprep.subr.mxu0 0.0
    %6551 = vmatpush2.msra.mxu0 0.0
    %6552 = vmatprep.subr.mxu0 0.0
    %6553 = vmatpush2.msra.mxu0 0.0
    %6554 = vmatprep.subr.mxu0 0.0
    %6555 = vmatpush2.msra.mxu0 0.0
    %6556 = vmatprep.subr.mxu0 0.0
    %6557 = vmatpush2.msra.mxu0 0.0
    %6558 = vmatprep.subr.mxu0 0.0
    %6559 = vmatpush2.msra.mxu0 0.0
    %6560 = vmatprep.subr.mxu0 0.0
    %6561 = vmatpush2.msra.mxu0 0.0
    %6562 = vmatprep.subr.mxu0 0.0
    %6563 = vmatpush2.msra.mxu0 0.0
    %6564 = vmatprep.mubr.f32.mxu0 0.0
    %6565 = vmatmul.mubr.f32.gmra.mxu0 %v6415
    %v6566 = vpop.f32.mrf.mxu0
    %v6567 = vadd.f32 %v6412, %v6566
    %v6568 = vpop.f32.mrf.mxu0
    %v6569 = vadd.f32 %v6412, %v6568
    %6570 = vdwg.mxu0
    %v6575 = vcombine.low %v6496, %v6498
    %v6576 = vcombine.low %v6567, %v6569
    %6579 = vst [vmem:[#allocation6] sm:$0x77] %v6575
    %6580 = vst [vmem:[#allocation6 + $0x8] sm:$0x77] %v6576
    // Predicated region
    $region34: #{tpu_custom_call.1} parent=1 // pred_check
      _
    $region35: #{tpu_custom_call.1} parent=1 // pred_check_branch
      %6582 = sbr.rel (0) target = $region37
    $region36: #{tpu_custom_call.1} parent=1 // pred_region
      %s6584 = ssub.s32 256, 256
      %6585 = vsyncadd [#allocation5], %s6584
      %s6587 = sshll.u32 [#allocation6], 4
      %s6588 = int_to_ptr.vmem [resolvable:$true] %s6587
      %6590 = dma.vmem_to_hbm [thread:$0]  %s6588, 256, %s7, [#allocation5]
    $region37: #{tpu_custom_call.1} parent=1 // pred_fallthru
      _
    // Predicated region
    $region38: #{tpu_custom_call.1} parent=1 // pred_check
      _
    $region39: #{tpu_custom_call.1} parent=1 // pred_check_branch
      %6592 = sbr.rel (0) target = $region41
    $region40: #{tpu_custom_call.1} parent=1 // pred_region
      %6593 = dma.done [#allocation5], 256
    $region41: #{tpu_custom_call.1} parent=1 // pred_fallthru
      _
    %6594 = vsyncpa [#allocation4], 1
    %6595 = vsyncpa [#allocation5], 1

</llo_original>
